<compile_context>
chip_gen: v6e
topology: v6e:2x2x1
jax: 0.10.0
libtpu: 0.0.40
codegen_flags: <defaults>
</compile_context>

<pallas_src>
import jax
import jax.numpy as jnp
from jax.experimental import pallas as pl
from jax.experimental.pallas import tpu as pltpu


# ---------------------------------------------------------------------------
# Conv (3x3, stride 2, pad 1) + bias + ReLU as a row-tiled matmul kernel.
# ---------------------------------------------------------------------------
def _conv_mm_kernel(p_ref, w_ref, b_ref, o_ref):
    # p_ref: (tm, K)  w_ref: (K, Cout)  b_ref: (1, Cout)  o_ref: (tm, Cout)
    acc = jnp.dot(p_ref[...], w_ref[...], preferred_element_type=jnp.float32)
    o_ref[...] = jnp.maximum(acc + b_ref[...], 0.0).astype(o_ref.dtype)


def conv3x3_s2_relu(x_nhwc, w, b, tm=512, out_dtype=jnp.float32):
    """x_nhwc: (B, H, W, Cin); w: (3, 3, Cin, Cout); b: (Cout,) -> (B, H/2, W/2, Cout)."""
    B, H, W, C = x_nhwc.shape
    Cout = w.shape[-1]
    Ho, Wo = H // 2, W // 2

    # im2col: pad by 1, gather the 9 taps of the 3x3/stride-2 window.
    xp = jnp.pad(x_nhwc, ((0, 0), (1, 1), (1, 1), (0, 0)))
    taps = [
        xp[:, kh:kh + 2 * Ho:2, kw:kw + 2 * Wo:2, :].reshape(B, Ho * Wo, C)
        for kh in range(3) for kw in range(3)
    ]
    # Batch collapsed into the matmul M dimension; tap order (kh, kw, cin)
    # matches w.reshape(9*C, Cout) below.
    patches = jnp.concatenate(taps, axis=-1).reshape(B * Ho * Wo, 9 * C)
    Mtot, K = patches.shape

    tm = min(tm, Mtot)
    while Mtot % tm:          # keep a divisor (shapes here: 2048 / 512 / 128 rows)
        tm //= 2

    w_mm = w.reshape(9 * C, Cout)
    b_mm = b.reshape(1, Cout)

    out = pl.pallas_call(
        _conv_mm_kernel,
        out_shape=jax.ShapeDtypeStruct((Mtot, Cout), out_dtype),
        grid_spec=pltpu.PrefetchScalarGridSpec(
            num_scalar_prefetch=0,
            grid=(Mtot // tm,),
            in_specs=[
                pl.BlockSpec((tm, K), lambda i: (i, 0)),
                pl.BlockSpec((K, Cout), lambda i: (0, 0)),   # resident weights
                pl.BlockSpec((1, Cout), lambda i: (0, 0)),
            ],
            out_specs=pl.BlockSpec((tm, Cout), lambda i: (i, 0)),
        ),
        compiler_params=pltpu.CompilerParams(dimension_semantics=("parallel",)),
    )(patches, w_mm, b_mm)
    return out.reshape(B, Ho, Wo, Cout)


# ---------------------------------------------------------------------------
# bbox head: Linear(8192->512) + ReLU + [Dropout: identity at inference]
#            + Linear(512->4), fused in one K-tiled kernel.
# Hidden dim split across a leading "parallel" grid axis (2) -> second v7x
# TensorCore streams half of w_fc1; each chunk emits a partial (B, 4) logit
# block that is summed (+ b2, sigmoid, *64) in a tiny JAX epilogue.
# ---------------------------------------------------------------------------
def _mlp_head_kernel(x_ref, w1_ref, b1_ref, w2_ref, o_ref, acc_ref):
    # x_ref: (B, tk) bf16   w1_ref: (tk, Hc) bf16   b1_ref: (1, Hc) f32
    # w2_ref: (Hc, O) f32   o_ref: (1, B, O) f32    acc_ref: (B, Hc) f32
    k = pl.program_id(1)

    @pl.when(k == 0)
    def _():
        acc_ref[...] = jnp.zeros_like(acc_ref)

    # bf16 MXU inputs, f32 accumulation.
    acc_ref[...] += jnp.dot(x_ref[...], w1_ref[...],
                            preferred_element_type=jnp.float32)

    @pl.when(k == pl.num_programs(1) - 1)
    def _():
        # Bias-add / ReLU stay in f32 (v5e VPU has no bf16 path).
        h = jnp.maximum(acc_ref[...] + b1_ref[...], 0.0)
        # TODO(synk): nn.Dropout(0.5) is identity at inference; training-mode
        # dropout (pltpu.prng_random_bits mask) not implemented here.
        o_ref[0] = jnp.dot(h, w2_ref[...], preferred_element_type=jnp.float32)


def bbox_head_partials(feats_bf16, w1_bf16, b1, w2, tk=2048, hsplit=2):
    B, K = feats_bf16.shape
    H = w1_bf16.shape[1]     # 512
    O = w2.shape[1]          # 4
    assert K % tk == 0 and H % hsplit == 0
    Hc = H // hsplit
    return pl.pallas_call(
        _mlp_head_kernel,
        out_shape=jax.ShapeDtypeStruct((hsplit, B, O), jnp.float32),
        grid_spec=pltpu.PrefetchScalarGridSpec(
            num_scalar_prefetch=0,
            grid=(hsplit, K // tk),
            in_specs=[
                pl.BlockSpec((B, tk), lambda c, k: (0, k)),
                pl.BlockSpec((tk, Hc), lambda c, k: (k, c)),
                pl.BlockSpec((1, Hc), lambda c, k: (0, c)),
                pl.BlockSpec((Hc, O), lambda c, k: (c, 0)),
            ],
            out_specs=pl.BlockSpec((1, B, O), lambda c, k: (c, 0, 0)),
            scratch_shapes=[pltpu.VMEM((B, Hc), jnp.float32)],
        ),
        compiler_params=pltpu.CompilerParams(
            dimension_semantics=("parallel", "arbitrary")),
    )(feats_bf16, w1_bf16, b1.reshape(1, H), w2)


# ---------------------------------------------------------------------------
# Full model
# ---------------------------------------------------------------------------
def init_params(key):
    ks = jax.random.split(key, 10)
    s = 0.05
    return {
        "w_c1": jax.random.normal(ks[0], (3, 3, 3, 32), jnp.float32) * s,
        "b_c1": jax.random.normal(ks[1], (32,), jnp.float32) * s,
        "w_c2": jax.random.normal(ks[2], (3, 3, 32, 64), jnp.float32) * s,
        "b_c2": jax.random.normal(ks[3], (64,), jnp.float32) * s,
        "w_c3": jax.random.normal(ks[4], (3, 3, 64, 128), jnp.float32) * s,
        "b_c3": jax.random.normal(ks[5], (128,), jnp.float32) * s,
        # w_fc1 rows follow PyTorch's (C, H, W) flatten order, as nn.Linear would see.
        "w_fc1": jax.random.normal(ks[6], (128 * 8 * 8, 512), jnp.float32) * 0.01,
        "b_fc1": jax.random.normal(ks[7], (512,), jnp.float32) * 0.01,
        "w_fc2": jax.random.normal(ks[8], (512, 4), jnp.float32) * 0.01,
        "b_fc2": jax.random.normal(ks[9], (4,), jnp.float32) * 0.01,
    }


def prepare_params(params):
    """One-time (outside jit): permute w_fc1 rows from PyTorch's (C,H,W) flatten
    order to the NHWC (H,W,C) flatten order of the conv3 output, and cast to bf16.
    This removes the per-call XLA transpose of the feature map before the head."""
    p = dict(params)
    C, Hs, Ws = 128, 8, 8
    w1 = params["w_fc1"].reshape(C, Hs, Ws, -1)
    w1 = jnp.transpose(w1, (1, 2, 0, 3)).reshape(C * Hs * Ws, -1)
    p["w_fc1"] = w1.astype(jnp.bfloat16)
    return p


@jax.jit
def detection_model_forward(x_nchw, params):
    # NCHW (PyTorch) -> NHWC (kernel layout)
    x = jnp.transpose(x_nchw, (0, 2, 3, 1))
    x = conv3x3_s2_relu(x, params["w_c1"], params["b_c1"])   # (B, 32, 32, 32)
    x = conv3x3_s2_relu(x, params["w_c2"], params["b_c2"])   # (B, 16, 16, 64)
    # conv3 emits bf16 directly so the head needs no extra cast pass.
    x = conv3x3_s2_relu(x, params["w_c3"], params["b_c3"],
                        out_dtype=jnp.bfloat16)               # (B, 8, 8, 128) bf16
    B = x.shape[0]
    # NHWC flatten matches the pre-permuted w_fc1 rows (no transpose needed).
    feats = x.reshape(B, -1)                                  # (B, 8192) bf16
    partials = bbox_head_partials(feats, params["w_fc1"], params["b_fc1"],
                                  params["w_fc2"])            # (2, B, 4) f32
    logits = jnp.sum(partials, axis=0) + params["b_fc2"][None, :]
    return jax.nn.sigmoid(logits) * 64.0                      # (B, 4) in [0, 64]


if __name__ == "__main__":
    key = jax.random.PRNGKey(0)
    pkey, xkey = jax.random.split(key)
    params = prepare_params(init_params(pkey))
    # 64x64 input is required so the encoder output is 128*8*8, as the Linear expects.
    x = jax.random.normal(xkey, (2, 3, 64, 64), jnp.float32)
    bbox = detection_model_forward(x, params)
    jax.block_until_ready(bbox)
    assert bbox.shape == (2, 4)
    assert bool(jnp.all(jnp.isfinite(bbox)))
    assert bool(jnp.all((bbox >= 0.0) & (bbox <= 64.0)))
    print("KERNEL_OK")
</pallas_src>

<mosaic_0001>
module attributes {stable_mosaic.version = 11 : i64} {
  func.func @_conv_mm_kernel(%arg0: i32, %arg1: memref<512x27xf32, #tpu.memory_space<vmem>>, %arg2: memref<27x32xf32, #tpu.memory_space<vmem>>, %arg3: memref<1x32xf32, #tpu.memory_space<vmem>>, %arg4: memref<512x32xf32, #tpu.memory_space<vmem>>) attributes {dimension_semantics = [#tpu.dimension_semantics<parallel>], iteration_bounds = array<i64: 4>, scalar_prefetch = 0 : i64, scratch_operands = 0 : i64, tpu.core_type = #tpu.core_type<tc>, window_params = [{transform_indices = @transform_0, window_bounds = array<i64: 512, 27>}, {pipeline_mode = #tpu.pipeline_mode<synchronous>, transform_indices = @transform_1, window_bounds = array<i64: 27, 32>}, {pipeline_mode = #tpu.pipeline_mode<synchronous>, transform_indices = @transform_2, window_bounds = array<i64: 1, 32>}, {transform_indices = @transform_3, window_bounds = array<i64: 512, 32>}]} {
    %c0 = arith.constant 0 : index
    %c0_0 = arith.constant 0 : index
    %0 = vector.load %arg1[%c0, %c0_0] : memref<512x27xf32, #tpu.memory_space<vmem>>, vector<512x27xf32>
    %c0_1 = arith.constant 0 : index
    %c0_2 = arith.constant 0 : index
    %1 = vector.load %arg2[%c0_1, %c0_2] : memref<27x32xf32, #tpu.memory_space<vmem>>, vector<27x32xf32>
    %cst = arith.constant dense<0.000000e+00> : vector<512x32xf32>
    %2 = tpu.matmul %0, %1, %cst {dimension_numbers = #tpu.dot_dimension_numbers<[1], [0], [0], [1], [0, 0, 1, 1], [], []>} : vector<512x27xf32>, vector<27x32xf32>, vector<512x32xf32> -> vector<512x32xf32>
    %c0_3 = arith.constant 0 : index
    %c0_4 = arith.constant 0 : index
    %3 = vector.load %arg3[%c0_3, %c0_4] : memref<1x32xf32, #tpu.memory_space<vmem>>, vector<1x32xf32>
    %4 = vector.broadcast %3 : vector<1x32xf32> to vector<512x32xf32>
    %5 = arith.addf %2, %4 : vector<512x32xf32>
    %cst_5 = arith.constant 0.000000e+00 : f32
    %6 = vector.broadcast %cst_5 : f32 to vector<512x32xf32>
    %7 = arith.maximumf %5, %6 : vector<512x32xf32>
    %c0_6 = arith.constant 0 : index
    %c0_7 = arith.constant 0 : index
    %8 = vector.load %arg4[%c0_6, %c0_7] : memref<512x32xf32, #tpu.memory_space<vmem>>, vector<512x32xf32>
    tpu.vector_store %arg4[%c0_6, %c0_7], %7 {strides = array<i32>} : memref<512x32xf32, #tpu.memory_space<vmem>>, vector<512x32xf32>,
    return
  }
  func.func @transform_0(%arg0: i32) -> (i32, i32) {
    %c0_i32 = arith.constant 0 : i32
    %c0_i32_0 = arith.constant 0 : i32
    return %arg0, %c0_i32 : i32, i32
  }
  func.func @transform_1(%arg0: i32) -> (i32, i32) {
    %c0_i32 = arith.constant 0 : i32
    %c0_i32_0 = arith.constant 0 : i32
    %c0_i32_1 = arith.constant 0 : i32
    return %c0_i32, %c0_i32_0 : i32, i32
  }
  func.func @transform_2(%arg0: i32) -> (i32, i32) {
    %c0_i32 = arith.constant 0 : i32
    %c0_i32_0 = arith.constant 0 : i32
    %c0_i32_1 = arith.constant 0 : i32
    return %c0_i32, %c0_i32_0 : i32, i32
  }
  func.func @transform_3(%arg0: i32) -> (i32, i32) {
    %c0_i32 = arith.constant 0 : i32
    %c0_i32_0 = arith.constant 0 : i32
    return %arg0, %c0_i32 : i32, i32
  }
}

module attributes {stable_mosaic.version = 11 : i64} {
  func.func @_conv_mm_kernel(%arg0: i32, %arg1: memref<512x288xf32, #tpu.memory_space<vmem>>, %arg2: memref<288x64xf32, #tpu.memory_space<vmem>>, %arg3: memref<1x64xf32, #tpu.memory_space<vmem>>, %arg4: memref<512x64xf32, #tpu.memory_space<vmem>>) attributes {dimension_semantics = [#tpu.dimension_semantics<parallel>], iteration_bounds = array<i64: 1>, scalar_prefetch = 0 : i64, scratch_operands = 0 : i64, tpu.core_type = #tpu.core_type<tc>, window_params = [{transform_indices = @transform_0, window_bounds = array<i64: 512, 288>}, {pipeline_mode = #tpu.pipeline_mode<synchronous>, transform_indices = @transform_1, window_bounds = array<i64: 288, 64>}, {pipeline_mode = #tpu.pipeline_mode<synchronous>, transform_indices = @transform_2, window_bounds = array<i64: 1, 64>}, {transform_indices = @transform_3, window_bounds = array<i64: 512, 64>}]} {
    %c0 = arith.constant 0 : index
    %c0_0 = arith.constant 0 : index
    %0 = vector.load %arg1[%c0, %c0_0] : memref<512x288xf32, #tpu.memory_space<vmem>>, vector<512x288xf32>
    %c0_1 = arith.constant 0 : index
    %c0_2 = arith.constant 0 : index
    %1 = vector.load %arg2[%c0_1, %c0_2] : memref<288x64xf32, #tpu.memory_space<vmem>>, vector<288x64xf32>
    %cst = arith.constant dense<0.000000e+00> : vector<512x64xf32>
    %2 = tpu.matmul %0, %1, %cst {dimension_numbers = #tpu.dot_dimension_numbers<[1], [0], [0], [1], [0, 0, 1, 1], [], []>} : vector<512x288xf32>, vector<288x64xf32>, vector<512x64xf32> -> vector<512x64xf32>
    %c0_3 = arith.constant 0 : index
    %c0_4 = arith.constant 0 : index
    %3 = vector.load %arg3[%c0_3, %c0_4] : memref<1x64xf32, #tpu.memory_space<vmem>>, vector<1x64xf32>
    %4 = vector.broadcast %3 : vector<1x64xf32> to vector<512x64xf32>
    %5 = arith.addf %2, %4 : vector<512x64xf32>
    %cst_5 = arith.constant 0.000000e+00 : f32
    %6 = vector.broadcast %cst_5 : f32 to vector<512x64xf32>
    %7 = arith.maximumf %5, %6 : vector<512x64xf32>
    %c0_6 = arith.constant 0 : index
    %c0_7 = arith.constant 0 : index
    %8 = vector.load %arg4[%c0_6, %c0_7] : memref<512x64xf32, #tpu.memory_space<vmem>>, vector<512x64xf32>
    tpu.vector_store %arg4[%c0_6, %c0_7], %7 {strides = array<i32>} : memref<512x64xf32, #tpu.memory_space<vmem>>, vector<512x64xf32>,
    return
  }
  func.func @transform_0(%arg0: i32) -> (i32, i32) {
    %c0_i32 = arith.constant 0 : i32
    %c0_i32_0 = arith.constant 0 : i32
    return %arg0, %c0_i32 : i32, i32
  }
  func.func @transform_1(%arg0: i32) -> (i32, i32) {
    %c0_i32 = arith.constant 0 : i32
    %c0_i32_0 = arith.constant 0 : i32
    %c0_i32_1 = arith.constant 0 : i32
    return %c0_i32, %c0_i32_0 : i32, i32
  }
  func.func @transform_2(%arg0: i32) -> (i32, i32) {
    %c0_i32 = arith.constant 0 : i32
    %c0_i32_0 = arith.constant 0 : i32
    %c0_i32_1 = arith.constant 0 : i32
    return %c0_i32, %c0_i32_0 : i32, i32
  }
  func.func @transform_3(%arg0: i32) -> (i32, i32) {
    %c0_i32 = arith.constant 0 : i32
    %c0_i32_0 = arith.constant 0 : i32
    return %arg0, %c0_i32 : i32, i32
  }
}

module attributes {stable_mosaic.version = 11 : i64} {
  func.func @_conv_mm_kernel(%arg0: i32, %arg1: memref<128x576xf32, #tpu.memory_space<vmem>>, %arg2: memref<576x128xf32, #tpu.memory_space<vmem>>, %arg3: memref<1x128xf32, #tpu.memory_space<vmem>>, %arg4: memref<128x128xbf16, #tpu.memory_space<vmem>>) attributes {dimension_semantics = [#tpu.dimension_semantics<parallel>], iteration_bounds = array<i64: 1>, scalar_prefetch = 0 : i64, scratch_operands = 0 : i64, tpu.core_type = #tpu.core_type<tc>, window_params = [{transform_indices = @transform_0, window_bounds = array<i64: 128, 576>}, {pipeline_mode = #tpu.pipeline_mode<synchronous>, transform_indices = @transform_1, window_bounds = array<i64: 576, 128>}, {pipeline_mode = #tpu.pipeline_mode<synchronous>, transform_indices = @transform_2, window_bounds = array<i64: 1, 128>}, {transform_indices = @transform_3, window_bounds = array<i64: 128, 128>}]} {
    %c0 = arith.constant 0 : index
    %c0_0 = arith.constant 0 : index
    %0 = vector.load %arg1[%c0, %c0_0] : memref<128x576xf32, #tpu.memory_space<vmem>>, vector<128x576xf32>
    %c0_1 = arith.constant 0 : index
    %c0_2 = arith.constant 0 : index
    %1 = vector.load %arg2[%c0_1, %c0_2] : memref<576x128xf32, #tpu.memory_space<vmem>>, vector<576x128xf32>
    %cst = arith.constant dense<0.000000e+00> : vector<128x128xf32>
    %2 = tpu.matmul %0, %1, %cst {dimension_numbers = #tpu.dot_dimension_numbers<[1], [0], [0], [1], [0, 0, 1, 1], [], []>} : vector<128x576xf32>, vector<576x128xf32>, vector<128x128xf32> -> vector<128x128xf32>
    %c0_3 = arith.constant 0 : index
    %c0_4 = arith.constant 0 : index
    %3 = vector.load %arg3[%c0_3, %c0_4] : memref<1x128xf32, #tpu.memory_space<vmem>>, vector<1x128xf32>
    %4 = vector.broadcast %3 : vector<1x128xf32> to vector<128x128xf32>
    %5 = arith.addf %2, %4 : vector<128x128xf32>
    %cst_5 = arith.constant 0.000000e+00 : f32
    %6 = vector.broadcast %cst_5 : f32 to vector<128x128xf32>
    %7 = arith.maximumf %5, %6 : vector<128x128xf32>
    %8 = arith.truncf %7 : vector<128x128xf32> to vector<128x128xbf16>
    %c0_6 = arith.constant 0 : index
    %c0_7 = arith.constant 0 : index
    %9 = vector.load %arg4[%c0_6, %c0_7] : memref<128x128xbf16, #tpu.memory_space<vmem>>, vector<128x128xbf16>
    tpu.vector_store %arg4[%c0_6, %c0_7], %8 {strides = array<i32>} : memref<128x128xbf16, #tpu.memory_space<vmem>>, vector<128x128xbf16>,
    return
  }
  func.func @transform_0(%arg0: i32) -> (i32, i32) {
    %c0_i32 = arith.constant 0 : i32
    %c0_i32_0 = arith.constant 0 : i32
    return %arg0, %c0_i32 : i32, i32
  }
  func.func @transform_1(%arg0: i32) -> (i32, i32) {
    %c0_i32 = arith.constant 0 : i32
    %c0_i32_0 = arith.constant 0 : i32
    %c0_i32_1 = arith.constant 0 : i32
    return %c0_i32, %c0_i32_0 : i32, i32
  }
  func.func @transform_2(%arg0: i32) -> (i32, i32) {
    %c0_i32 = arith.constant 0 : i32
    %c0_i32_0 = arith.constant 0 : i32
    %c0_i32_1 = arith.constant 0 : i32
    return %c0_i32, %c0_i32_0 : i32, i32
  }
  func.func @transform_3(%arg0: i32) -> (i32, i32) {
    %c0_i32 = arith.constant 0 : i32
    %c0_i32_0 = arith.constant 0 : i32
    return %arg0, %c0_i32 : i32, i32
  }
}

module attributes {stable_mosaic.version = 11 : i64} {
  func.func @_mlp_head_kernel(%arg0: i32, %arg1: i32, %arg2: memref<2x2048xbf16, #tpu.memory_space<vmem>>, %arg3: memref<2048x256xbf16, #tpu.memory_space<vmem>>, %arg4: memref<1x256xf32, #tpu.memory_space<vmem>>, %arg5: memref<256x4xf32, #tpu.memory_space<vmem>>, %arg6: memref<1x2x4xf32, #tpu.memory_space<vmem>>, %arg7: memref<2x256xf32, #tpu.memory_space<vmem>>) attributes {dimension_semantics = [#tpu.dimension_semantics<parallel>, #tpu.dimension_semantics<arbitrary>], iteration_bounds = array<i64: 2, 4>, scalar_prefetch = 0 : i64, scratch_operands = 1 : i64, tpu.core_type = #tpu.core_type<tc>, window_params = [{transform_indices = @transform_0, window_bounds = array<i64: 2, 2048>}, {transform_indices = @transform_1, window_bounds = array<i64: 2048, 256>}, {transform_indices = @transform_2, window_bounds = array<i64: 1, 256>}, {transform_indices = @transform_3, window_bounds = array<i64: 256, 4>}, {transform_indices = @transform_4, window_bounds = array<i64: 1, 2, 4>}]} {
    %c0_i32 = arith.constant 0 : i32
    %0 = arith.cmpi eq, %arg1, %c0_i32 : i32
    %1 = arith.extui %0 : i1 to i32
    %c0_i32_0 = arith.constant 0 : i32
    %2 = arith.cmpi ne, %1, %c0_i32_0 : i32
    scf.if %2 {
      %cst_9 = arith.constant 0.000000e+00 : f32
      %12 = vector.broadcast %cst_9 : f32 to vector<2x256xf32>
      %c0_10 = arith.constant 0 : index
      %c0_11 = arith.constant 0 : index
      %13 = vector.load %arg7[%c0_10, %c0_11] : memref<2x256xf32, #tpu.memory_space<vmem>>, vector<2x256xf32>
      tpu.vector_store %arg7[%c0_10, %c0_11], %12 {strides = array<i32>} : memref<2x256xf32, #tpu.memory_space<vmem>>, vector<2x256xf32>,
    } else {
    }
    %c0 = arith.constant 0 : index
    %c0_1 = arith.constant 0 : index
    %3 = vector.load %arg7[%c0, %c0_1] : memref<2x256xf32, #tpu.memory_space<vmem>>, vector<2x256xf32>
    %c0_2 = arith.constant 0 : index
    %c0_3 = arith.constant 0 : index
    %4 = vector.load %arg2[%c0_2, %c0_3] : memref<2x2048xbf16, #tpu.memory_space<vmem>>, vector<2x2048xbf16>
    %c0_4 = arith.constant 0 : index
    %c0_5 = arith.constant 0 : index
    %5 = vector.load %arg3[%c0_4, %c0_5] : memref<2048x256xbf16, #tpu.memory_space<vmem>>, vector<2048x256xbf16>
    %cst = arith.constant dense<0.000000e+00> : vector<2x256xf32>
    %6 = tpu.matmul %4, %5, %cst {dimension_numbers = #tpu.dot_dimension_numbers<[1], [0], [0], [1], [0, 0, 1, 1], [], []>} : vector<2x2048xbf16>, vector<2048x256xbf16>, vector<2x256xf32> -> vector<2x256xf32>
    %7 = arith.addf %3, %6 : vector<2x256xf32>
    %c0_6 = arith.constant 0 : index
    %c0_7 = arith.constant 0 : index
    %8 = vector.load %arg7[%c0_6, %c0_7] : memref<2x256xf32, #tpu.memory_space<vmem>>, vector<2x256xf32>
    tpu.vector_store %arg7[%c0_6, %c0_7], %7 {strides = array<i32>} : memref<2x256xf32, #tpu.memory_space<vmem>>, vector<2x256xf32>,
    %c3_i32 = arith.constant 3 : i32
    %9 = arith.cmpi eq, %arg1, %c3_i32 : i32
    %10 = arith.extui %9 : i1 to i32
    %c0_i32_8 = arith.constant 0 : i32
    %11 = arith.cmpi ne, %10, %c0_i32_8 : i32
    scf.if %11 {
      %c0_9 = arith.constant 0 : index
      %c0_10 = arith.constant 0 : index
      %12 = vector.load %arg7[%c0_9, %c0_10] : memref<2x256xf32, #tpu.memory_space<vmem>>, vector<2x256xf32>
      %c0_11 = arith.constant 0 : index
      %c0_12 = arith.constant 0 : index
      %13 = vector.load %arg4[%c0_11, %c0_12] : memref<1x256xf32, #tpu.memory_space<vmem>>, vector<1x256xf32>
      %14 = vector.broadcast %13 : vector<1x256xf32> to vector<2x256xf32>
      %15 = arith.addf %12, %14 : vector<2x256xf32>
      %cst_13 = arith.constant 0.000000e+00 : f32
      %16 = vector.broadcast %cst_13 : f32 to vector<2x256xf32>
      %17 = arith.maximumf %15, %16 : vector<2x256xf32>
      %c0_14 = arith.constant 0 : index
      %c0_15 = arith.constant 0 : index
      %18 = vector.load %arg5[%c0_14, %c0_15] : memref<256x4xf32, #tpu.memory_space<vmem>>, vector<256x4xf32>
      %cst_16 = arith.constant dense<0.000000e+00> : vector<2x4xf32>
      %19 = tpu.matmul %17, %18, %cst_16 {dimension_numbers = #tpu.dot_dimension_numbers<[1], [0], [0], [1], [0, 0, 1, 1], [], []>} : vector<2x256xf32>, vector<256x4xf32>, vector<2x4xf32> -> vector<2x4xf32>
      %c0_17 = arith.constant 0 : index
      %c0_18 = arith.constant 0 : index
      %c0_19 = arith.constant 0 : index
      %20 = vector.load %arg6[%c0_17, %c0_18, %c0_19] : memref<1x2x4xf32, #tpu.memory_space<vmem>>, vector<1x2x4xf32>
      %21 = vector.shape_cast %20 : vector<1x2x4xf32> to vector<2x4xf32>
      %22 = vector.shape_cast %19 : vector<2x4xf32> to vector<1x2x4xf32>
      tpu.vector_store %arg6[%c0_17, %c0_18, %c0_19], %22 {strides = array<i32>} : memref<1x2x4xf32, #tpu.memory_space<vmem>>, vector<1x2x4xf32>,
    } else {
    }
    return
  }
  func.func @transform_0(%arg0: i32, %arg1: i32) -> (i32, i32) {
    %c0_i32 = arith.constant 0 : i32
    %c0_i32_0 = arith.constant 0 : i32
    return %c0_i32, %arg1 : i32, i32
  }
  func.func @transform_1(%arg0: i32, %arg1: i32) -> (i32, i32) {
    %c0_i32 = arith.constant 0 : i32
    return %arg1, %arg0 : i32, i32
  }
  func.func @transform_2(%arg0: i32, %arg1: i32) -> (i32, i32) {
    %c0_i32 = arith.constant 0 : i32
    %c0_i32_0 = arith.constant 0 : i32
    return %c0_i32, %arg0 : i32, i32
  }
  func.func @transform_3(%arg0: i32, %arg1: i32) -> (i32, i32) {
    %c0_i32 = arith.constant 0 : i32
    %c0_i32_0 = arith.constant 0 : i32
    return %arg0, %c0_i32 : i32, i32
  }
  func.func @transform_4(%arg0: i32, %arg1: i32) -> (i32, i32, i32) {
    %c0_i32 = arith.constant 0 : i32
    %c0_i32_0 = arith.constant 0 : i32
    %c0_i32_1 = arith.constant 0 : i32
    return %arg0, %c0_i32, %c0_i32_0 : i32, i32, i32
  }
}

</mosaic_0001>

<llo_original>
// kernel: detection_model_forward.4
$region0: #{detection_model_forward.4}
  #allocation0 [shape = 'u32[]', space=smem, size = 0x4, offset = 0x4, fixed_abs, tag = 'smem constant byte address 0x4 - core index']
  #allocation1 [shape = 'u32[144,128]{1,0:T(1,128)}', space=vmem, size = 0x12000, scoped, tag = 'internal scratch']
  %s0 = inlined_call_operand.vmem [shape: f32[2048,27], index: 0, kind: input, shape index: {}]
  %s1 = inlined_call_operand.vmem [shape: f32[27,32], index: 1, kind: input, shape index: {}]
  %s2 = inlined_call_operand.hbm [shape: f32[1,32], index: 2, kind: input, shape index: {}]
  %s3 = inlined_call_operand.vmem [shape: f32[2048,32], index: 3, kind: output, shape index: {}]
  %s4 = sld [smem:[#allocation0]]
  $region49: #{detection_model_forward.4} parent=0
    _
  %s6 = ssub.s32 1, %s4
  %s7 = scalar_select 0, %s6, %s4
  $region1: #{detection_model_forward.4} parent=0
    #allocation2 [shape = 'u8[512]{0}', space=vmem, size = 0x400, scoped, tag = 'input window, operand 2, single buffered']
    #allocation3 [shape = 's32[2]{0}', space=sflag, size = 0x8, scoped, tag = 'scoped memory for detection_model_forward.4']
    %8 = vsyncpa [#allocation3], 0
    loop: start=0, step=1, limit=6
    $region2: #{detection_model_forward.4} parent=1 // loop_pre_header
      _
    $region3: #{detection_model_forward.4} parent=1 // loop_header
      %s10 = sphi 0, %s14
      %p11 = scmp.ge.s32.totalorder %s10, 6
      %s20 = sphi 0, %s22
      %s23 = sphi 0, %s20
      %s24 = sphi 0, %s23
      %s40 = sphi 0, %s24
      %s44 = sphi 0, %s44
      %s46 = sphi 0, %s44
      %s47 = sphi 0, %s46
      %s61 = sphi 0, %s47
      %s65 = sphi 0, %s65
      %s67 = sphi 0, %s65
      %s68 = sphi 0, %s67
      %s82 = sphi 0, %s68
      %s88 = sphi 0, %s90
      %s91 = sphi 0, %s88
      %s92 = sphi 0, %s91
      %s108 = sphi 0, %s92
    $region4: #{detection_model_forward.4} parent=1 // loop_header_branch
      %13 = sbr.rel (%p11) target = $region8
    $region5: #{detection_model_forward.4} parent=1 // loop_body
      %s15 = ssub.s32 %s10, 1
      %s16 = ssub.s32 %s10, 2
      %s17 = sadd.s32 %s10, 1
      %s18 = ssub.s32 %s10, %s17
      %p19 = scmp.eq.s32.totalorder %s18, 0
      %s21 = sadd.s32 %s20, 1
      %s22 = scalar_select %p19, %s20, %s21
      %p25 = pneg %p19
      %p26 = scmp.eq.s32.totalorder %s10, 3
      %p27 = por %p25, %p26
      %p28 = scmp.ne.s32.totalorder %s20, %s23
      %p29 = scmp.eq.s32.totalorder %s10, 0
      %p30 = por %p28, %p29
      %p31 = scmp.ne.s32.totalorder %s20, %s23
      %p32 = scmp.eq.s32.totalorder %s15, 3
      %p33 = por %p31, %p32
      %p34 = scmp.ne.s32.totalorder %s23, %s24
      %p35 = scmp.eq.s32.totalorder %s15, 0
      %p36 = por %p34, %p35
      %p37 = scmp.ne.s32.totalorder %s23, %s24
      %p38 = scmp.eq.s32.totalorder %s16, 3
      %p39 = por %p37, %p38
      %p41 = scmp.ne.s32.totalorder %s24, %s40
      %p42 = scmp.eq.s32.totalorder %s16, 0
      %p43 = por %p41, %p42
      %s45 = sadd.s32 %s44, 1
      %p48 = scmp.eq.s32.totalorder %s10, 3
      %p49 = scmp.ne.s32.totalorder %s44, %s46
      %p50 = scmp.eq.s32.totalorder %s10, 0
      %p51 = por %p49, %p50
      %p52 = scmp.ne.s32.totalorder %s44, %s46
      %p53 = scmp.eq.s32.totalorder %s15, 3
      %p54 = por %p52, %p53
      %p55 = scmp.ne.s32.totalorder %s46, %s47
      %p56 = scmp.eq.s32.totalorder %s15, 0
      %p57 = por %p55, %p56
      %p58 = scmp.ne.s32.totalorder %s46, %s47
      %p59 = scmp.eq.s32.totalorder %s16, 3
      %p60 = por %p58, %p59
      %p62 = scmp.ne.s32.totalorder %s47, %s61
      %p63 = scmp.eq.s32.totalorder %s16, 0
      %p64 = por %p62, %p63
      %s66 = sadd.s32 %s65, 1
      %p69 = scmp.eq.s32.totalorder %s10, 3
      %p70 = scmp.ne.s32.totalorder %s65, %s67
      %p71 = scmp.eq.s32.totalorder %s10, 0
      %p72 = por %p70, %p71
      %p73 = scmp.ne.s32.totalorder %s65, %s67
      %p74 = scmp.eq.s32.totalorder %s15, 3
      %p75 = por %p73, %p74
      %p76 = scmp.ne.s32.totalorder %s67, %s68
      %p77 = scmp.eq.s32.totalorder %s15, 0
      %p78 = por %p76, %p77
      %p79 = scmp.ne.s32.totalorder %s67, %s68
      %p80 = scmp.eq.s32.totalorder %s16, 3
      %p81 = por %p79, %p80
      %p83 = scmp.ne.s32.totalorder %s68, %s82
      %p84 = scmp.eq.s32.totalorder %s16, 0
      %p85 = por %p83, %p84
      %s86 = ssub.s32 %s10, %s17
      %p87 = scmp.eq.s32.totalorder %s86, 0
      %s89 = sadd.s32 %s88, 1
      %s90 = scalar_select %p87, %s88, %s89
      %p93 = pneg %p87
      %p94 = scmp.eq.s32.totalorder %s10, 3
      %p95 = por %p93, %p94
      %p96 = scmp.ne.s32.totalorder %s88, %s91
      %p97 = scmp.eq.s32.totalorder %s10, 0
      %p98 = por %p96, %p97
      %p99 = scmp.ne.s32.totalorder %s88, %s91
      %p100 = scmp.eq.s32.totalorder %s15, 3
      %p101 = por %p99, %p100
      %p102 = scmp.ne.s32.totalorder %s91, %s92
      %p103 = scmp.eq.s32.totalorder %s15, 0
      %p104 = por %p102, %p103
      %p105 = scmp.ne.s32.totalorder %s91, %s92
      %p106 = scmp.eq.s32.totalorder %s16, 3
      %p107 = por %p105, %p106
      %p109 = scmp.ne.s32.totalorder %s92, %s108
      %p110 = scmp.eq.s32.totalorder %s16, 0
      %p111 = por %p109, %p110
      %p112 = scmp.le.s32.totalorder 1, %s10
      %p113 = scmp.lt.s32.totalorder %s10, 5
      %p114 = pnand %p112, %p113
      %p115 = pneg %p114
      // Predicated region
      $region9: #{detection_model_forward.4} parent=5 // pred_check
        _
      $region10: #{detection_model_forward.4} parent=5 // pred_check_branch
        %117 = sbr.rel (%p114) target = $region12
      $region11: #{detection_model_forward.4} parent=5 // pred_region
        %s118 = ssub.s32 %s10, 1
        // Predicated region
        $region13: #{detection_model_forward.4} parent=11 // pred_check
          %p119 = pneg %p57
        $region14: #{detection_model_forward.4} parent=11 // pred_check_branch
          %121 = sbr.rel (%p119) target = $region16
        $region15: #{detection_model_forward.4} parent=11 // pred_region
          _
        $region16: #{detection_model_forward.4} parent=11 // pred_fallthru
          _
        // Predicated region
        $region17: #{detection_model_forward.4} parent=11 // pred_check
          %p122 = pneg %p78
        $region18: #{detection_model_forward.4} parent=11 // pred_check_branch
          %124 = sbr.rel (%p122) target = $region20
        $region19: #{detection_model_forward.4} parent=11 // pred_region
          %s126 = ssub.s32 16, 16
          %127 = vsyncadd [#allocation3], %s126
          %s129 = sshll.u32 [#allocation2], 4
          %s130 = int_to_ptr.vmem [resolvable:$true] %s129
          %132 = dma.hbm_to_vmem [thread:$0]  %s2, 16, %s130, [#allocation3]
        $region20: #{detection_model_forward.4} parent=11 // pred_fallthru
          _
      $region12: #{detection_model_forward.4} parent=5 // pred_fallthru
        _
      %p133 = scmp.lt.s32.totalorder %s10, 4
      // Predicated region
      $region21: #{detection_model_forward.4} parent=5 // pred_check
        %p134 = pneg %p133
      $region22: #{detection_model_forward.4} parent=5 // pred_check_branch
        %136 = sbr.rel (%p134) target = $region24
      $region23: #{detection_model_forward.4} parent=5 // pred_region
        // Predicated region
        $region25: #{detection_model_forward.4} parent=23 // pred_check
          %p137 = pneg %p30
        $region26: #{detection_model_forward.4} parent=23 // pred_check_branch
          %139 = sbr.rel (%p137) target = $region28
        $region27: #{detection_model_forward.4} parent=23 // pred_region
          %s140 = smul.u32 64, %s10
          %p141 = scmp.lt.s32.totalorder %s140, 255
          %s142 = scalar_select %p141, %s140, 255
          %s143 = smul.addr %s142, 8
          %s144 = scalar_lea.vmem %s0, %s143
          %s145 = smul.u32 64, %s10
        $region28: #{detection_model_forward.4} parent=23 // pred_fallthru
          _
      $region24: #{detection_model_forward.4} parent=5 // pred_fallthru
        _
      %p146 = scmp.le.s32.totalorder 1, %s10
      %p147 = scmp.lt.s32.totalorder %s10, 5
      %p148 = pnand %p146, %p147
      %p149 = pneg %p148
      // Predicated region
      $region29: #{detection_model_forward.4} parent=5 // pred_check
        _
      $region30: #{detection_model_forward.4} parent=5 // pred_check_branch
        %151 = sbr.rel (%p148) target = $region32
      $region31: #{detection_model_forward.4} parent=5 // pred_region
        %s152 = ssub.s32 %s10, 1
        // Predicated region
        $region33: #{detection_model_forward.4} parent=31 // pred_check
          %p153 = pneg %p78
        $region34: #{detection_model_forward.4} parent=31 // pred_check_branch
          %155 = sbr.rel (%p153) target = $region36
        $region35: #{detection_model_forward.4} parent=31 // pred_region
          %156 = dma.done [#allocation3], 16
        $region36: #{detection_model_forward.4} parent=31 // pred_fallthru
          _
        %s157 = smul.u32 64, %s15
        %p158 = scmp.lt.s32.totalorder %s157, 255
        %s159 = scalar_select %p158, %s157, 255
        %s160 = smul.addr %s159, 8
        %s161 = scalar_lea.vmem %s0, %s160
        %p162 = pneg %p36
        %p163 = pneg %p33
        %p164 = pneg %p57
        %p165 = pneg %p54
        %p166 = pneg %p78
        %p167 = pneg %p75
        %p168 = pneg %p104
        %p169 = pneg %p101
        %s170 = smul.u32 64, %s15
        %p171 = scmp.lt.s32.totalorder %s170, 255
        %s172 = scalar_select %p171, %s170, 255
        %s173 = smul.addr %s172, 8
        %s174 = scalar_lea.vmem %s3, %s173
        %s175 = smul.u32 64, %s15
        %p176 = scmp.lt.s32.totalorder %s175, 255
        %s177 = scalar_select %p176, %s175, 255
        %s178 = smul.addr %s177, 8
        %s179 = scalar_lea.vmem %s0, %s178
        %s180 = smul.u32 64, %s15
        %s181 = smul.u32 64, %s15
        %p182 = scmp.lt.s32.totalorder %s181, 255
        %s183 = scalar_select %p182, %s181, 255
        %s184 = smul.addr %s183, 8
        %s185 = scalar_lea.vmem %s3, %s184
        %s186 = smul.u32 64, %s15
        %v187 = vld [vmem:[%s179] sm:$0xff]
        %v188 = vld [vmem:[%s179 + $0x8] sm:$0xff]
        %v189 = vld [vmem:[%s179 + $0x10] sm:$0xff]
        %v190 = vld [vmem:[%s179 + $0x18] sm:$0xff]
        %v191 = vld [vmem:[%s179 + $0x20] sm:$0xff]
        %v192 = vld [vmem:[%s179 + $0x28] sm:$0xff]
        %v193 = vld [vmem:[%s179 + $0x30] sm:$0xff]
        %v194 = vld [vmem:[%s179 + $0x38] sm:$0xff]
        %v195 = vld [vmem:[%s179 + $0x40] sm:$0xff]
        %v196 = vld [vmem:[%s179 + $0x48] sm:$0xff]
        %v197 = vld [vmem:[%s179 + $0x50] sm:$0xff]
        %v198 = vld [vmem:[%s179 + $0x58] sm:$0xff]
        %v199 = vld [vmem:[%s179 + $0x60] sm:$0xff]
        %v200 = vld [vmem:[%s179 + $0x68] sm:$0xff]
        %v201 = vld [vmem:[%s179 + $0x70] sm:$0xff]
        %v202 = vld [vmem:[%s179 + $0x78] sm:$0xff]
        %v203 = vld [vmem:[%s179 + $0x80] sm:$0xff]
        %v204 = vld [vmem:[%s179 + $0x88] sm:$0xff]
        %v205 = vld [vmem:[%s179 + $0x90] sm:$0xff]
        %v206 = vld [vmem:[%s179 + $0x98] sm:$0xff]
        %v207 = vld [vmem:[%s179 + $0xa0] sm:$0xff]
        %v208 = vld [vmem:[%s179 + $0xa8] sm:$0xff]
        %v209 = vld [vmem:[%s179 + $0xb0] sm:$0xff]
        %v210 = vld [vmem:[%s179 + $0xb8] sm:$0xff]
        %v211 = vld [vmem:[%s179 + $0xc0] sm:$0xff]
        %v212 = vld [vmem:[%s179 + $0xc8] sm:$0xff]
        %v213 = vld [vmem:[%s179 + $0xd0] sm:$0xff]
        %v214 = vld [vmem:[%s179 + $0xd8] sm:$0xff]
        %v215 = vld [vmem:[%s179 + $0xe0] sm:$0xff]
        %v216 = vld [vmem:[%s179 + $0xe8] sm:$0xff]
        %v217 = vld [vmem:[%s179 + $0xf0] sm:$0xff]
        %v218 = vld [vmem:[%s179 + $0xf8] sm:$0xff]
        %v219 = vld [vmem:[%s179 + $0x100] sm:$0xff]
        %v220 = vld [vmem:[%s179 + $0x108] sm:$0xff]
        %v221 = vld [vmem:[%s179 + $0x110] sm:$0xff]
        %v222 = vld [vmem:[%s179 + $0x118] sm:$0xff]
        %v223 = vld [vmem:[%s179 + $0x120] sm:$0xff]
        %v224 = vld [vmem:[%s179 + $0x128] sm:$0xff]
        %v225 = vld [vmem:[%s179 + $0x130] sm:$0xff]
        %v226 = vld [vmem:[%s179 + $0x138] sm:$0xff]
        %v227 = vld [vmem:[%s179 + $0x140] sm:$0xff]
        %v228 = vld [vmem:[%s179 + $0x148] sm:$0xff]
        %v229 = vld [vmem:[%s179 + $0x150] sm:$0xff]
        %v230 = vld [vmem:[%s179 + $0x158] sm:$0xff]
        %v231 = vld [vmem:[%s179 + $0x160] sm:$0xff]
        %v232 = vld [vmem:[%s179 + $0x168] sm:$0xff]
        %v233 = vld [vmem:[%s179 + $0x170] sm:$0xff]
        %v234 = vld [vmem:[%s179 + $0x178] sm:$0xff]
        %v235 = vld [vmem:[%s179 + $0x180] sm:$0xff]
        %v236 = vld [vmem:[%s179 + $0x188] sm:$0xff]
        %v237 = vld [vmem:[%s179 + $0x190] sm:$0xff]
        %v238 = vld [vmem:[%s179 + $0x198] sm:$0xff]
        %v239 = vld [vmem:[%s179 + $0x1a0] sm:$0xff]
        %v240 = vld [vmem:[%s179 + $0x1a8] sm:$0xff]
        %v241 = vld [vmem:[%s179 + $0x1b0] sm:$0xff]
        %v242 = vld [vmem:[%s179 + $0x1b8] sm:$0xff]
        %v243 = vld [vmem:[%s179 + $0x1c0] sm:$0xff]
        %v244 = vld [vmem:[%s179 + $0x1c8] sm:$0xff]
        %v245 = vld [vmem:[%s179 + $0x1d0] sm:$0xff]
        %v246 = vld [vmem:[%s179 + $0x1d8] sm:$0xff]
        %v247 = vld [vmem:[%s179 + $0x1e0] sm:$0xff]
        %v248 = vld [vmem:[%s179 + $0x1e8] sm:$0xff]
        %v249 = vld [vmem:[%s179 + $0x1f0] sm:$0xff]
        %v250 = vld [vmem:[%s179 + $0x1f8] sm:$0xff]
        %v251 = vld [vmem:[%s1] sm:$0xff]
        %v252 = vld [vmem:[%s1 + $0x8] sm:$0xff]
        %v253 = vld [vmem:[%s1 + $0x10] sm:$0xff]
        %v254 = vld [vmem:[%s1 + $0x18] sm:$0x7]
        %v255 = vld [vmem:[#allocation2] sm:$0x1]
        %v257 = vlaneseq
        %v258 = vshrl.u32 %v257, 7
        %v259 = vsub.s32 0, %v258
        %v260 = vrot.slane %v255, %v259
        %vm262 = vcmask 220160
        %v264 = vsel %vm262, %v187, 0
        %v267 = vsel %vm262, %v188, 0
        %v270 = vsel %vm262, %v189, 0
        %v273 = vsel %vm262, %v190, 0
        %v276 = vsel %vm262, %v191, 0
        %v279 = vsel %vm262, %v192, 0
        %v282 = vsel %vm262, %v193, 0
        %v285 = vsel %vm262, %v194, 0
        %v288 = vsel %vm262, %v195, 0
        %v291 = vsel %vm262, %v196, 0
        %v294 = vsel %vm262, %v197, 0
        %v297 = vsel %vm262, %v198, 0
        %v300 = vsel %vm262, %v199, 0
        %v303 = vsel %vm262, %v200, 0
        %v306 = vsel %vm262, %v201, 0
        %v309 = vsel %vm262, %v202, 0
        %v312 = vsel %vm262, %v203, 0
        %v315 = vsel %vm262, %v204, 0
        %v318 = vsel %vm262, %v205, 0
        %v321 = vsel %vm262, %v206, 0
        %v324 = vsel %vm262, %v207, 0
        %v327 = vsel %vm262, %v208, 0
        %v330 = vsel %vm262, %v209, 0
        %v333 = vsel %vm262, %v210, 0
        %v336 = vsel %vm262, %v211, 0
        %v339 = vsel %vm262, %v212, 0
        %v342 = vsel %vm262, %v213, 0
        %v345 = vsel %vm262, %v214, 0
        %v348 = vsel %vm262, %v215, 0
        %v351 = vsel %vm262, %v216, 0
        %v354 = vsel %vm262, %v217, 0
        %v357 = vsel %vm262, %v218, 0
        %v360 = vsel %vm262, %v219, 0
        %v363 = vsel %vm262, %v220, 0
        %v366 = vsel %vm262, %v221, 0
        %v369 = vsel %vm262, %v222, 0
        %v372 = vsel %vm262, %v223, 0
        %v375 = vsel %vm262, %v224, 0
        %v378 = vsel %vm262, %v225, 0
        %v381 = vsel %vm262, %v226, 0
        %v384 = vsel %vm262, %v227, 0
        %v387 = vsel %vm262, %v228, 0
        %v390 = vsel %vm262, %v229, 0
        %v393 = vsel %vm262, %v230, 0
        %v396 = vsel %vm262, %v231, 0
        %v399 = vsel %vm262, %v232, 0
        %v402 = vsel %vm262, %v233, 0
        %v405 = vsel %vm262, %v234, 0
        %v408 = vsel %vm262, %v235, 0
        %v411 = vsel %vm262, %v236, 0
        %v414 = vsel %vm262, %v237, 0
        %v417 = vsel %vm262, %v238, 0
        %v420 = vsel %vm262, %v239, 0
        %v423 = vsel %vm262, %v240, 0
        %v426 = vsel %vm262, %v241, 0
        %v429 = vsel %vm262, %v242, 0
        %v432 = vsel %vm262, %v243, 0
        %v435 = vsel %vm262, %v244, 0
        %v438 = vsel %vm262, %v245, 0
        %v441 = vsel %vm262, %v246, 0
        %v444 = vsel %vm262, %v247, 0
        %v447 = vsel %vm262, %v248, 0
        %v450 = vsel %vm262, %v249, 0
        %v453 = vsel %vm262, %v250, 0
        %vm455 = vcmask 1042432
        %v457 = vsel %vm455, %v254, 0
        %459 = vmatprep.subr.mxu0 0.0
        %460 = vmatpush1.msra.mxu0 0.0
        %461 = vmatprep.subr.mxu0 0.0
        %462 = vmatpush1.msra.mxu0 0.0
        %463 = vmatprep.subr.mxu0 0.0
        %464 = vmatpush1.msra.mxu0 0.0
        %465 = vmatprep.subr.mxu0 0.0
        %466 = vmatpush1.msra.mxu0 0.0
        %467 = vmatprep.subr.mxu0 0.0
        %468 = vmatpush1.msra.mxu0 0.0
        %469 = vmatprep.subr.mxu0 0.0
        %470 = vmatpush1.msra.mxu0 0.0
        %471 = vmatprep.subr.mxu0 0.0
        %472 = vmatpush1.msra.mxu0 0.0
        %473 = vmatprep.subr.mxu0 0.0
        %474 = vmatpush1.msra.mxu0 0.0
        %475 = vmatprep.subr.mxu0 0.0
        %476 = vmatpush1.msra.mxu0 0.0
        %477 = vmatprep.subr.mxu0 0.0
        %478 = vmatpush1.msra.mxu0 0.0
        %479 = vmatprep.subr.mxu0 0.0
        %480 = vmatpush1.msra.mxu0 0.0
        %481 = vmatprep.subr.mxu0 0.0
        %482 = vmatpush1.msra.mxu0 0.0
        %483 = vmatprep.subr.mxu0 0.0
        %484 = vmatpush1.msra.mxu0 %v457
        %485 = vmatprep.subr.mxu0 0.0
        %486 = vmatpush1.msra.mxu0 %v253
        %487 = vmatprep.subr.mxu0 0.0
        %488 = vmatpush1.msra.mxu0 %v252
        %489 = vmatprep.subr.mxu0 0.0
        %490 = vmatpush1.msra.mxu0 %v251
        %491 = vmatprep.subr.mxu0 0.0
        %492 = vmatpush2.msra.mxu0 0.0
        %493 = vmatprep.subr.mxu0 0.0
        %494 = vmatpush2.msra.mxu0 0.0
        %495 = vmatprep.subr.mxu0 0.0
        %496 = vmatpush2.msra.mxu0 0.0
        %497 = vmatprep.subr.mxu0 0.0
        %498 = vmatpush2.msra.mxu0 0.0
        %499 = vmatprep.subr.mxu0 0.0
        %500 = vmatpush2.msra.mxu0 0.0
        %501 = vmatprep.subr.mxu0 0.0
        %502 = vmatpush2.msra.mxu0 0.0
        %503 = vmatprep.subr.mxu0 0.0
        %504 = vmatpush2.msra.mxu0 0.0
        %505 = vmatprep.subr.mxu0 0.0
        %506 = vmatpush2.msra.mxu0 0.0
        %507 = vmatprep.subr.mxu0 0.0
        %508 = vmatpush2.msra.mxu0 0.0
        %509 = vmatprep.subr.mxu0 0.0
        %510 = vmatpush2.msra.mxu0 0.0
        %511 = vmatprep.subr.mxu0 0.0
        %512 = vmatpush2.msra.mxu0 0.0
        %513 = vmatprep.subr.mxu0 0.0
        %514 = vmatpush2.msra.mxu0 0.0
        %515 = vmatprep.subr.mxu0 0.0
        %516 = vmatpush2.msra.mxu0 0.0
        %517 = vmatprep.subr.mxu0 0.0
        %518 = vmatpush2.msra.mxu0 0.0
        %519 = vmatprep.subr.mxu0 0.0
        %520 = vmatpush2.msra.mxu0 0.0
        %521 = vmatprep.subr.mxu0 0.0
        %522 = vmatpush2.msra.mxu0 0.0
        %523 = vmatprep.mubr.f32.mxu0 0.0
        %524 = vmatmul.mubr.f32.gmra.mxu0 %v264
        %v525 = vpop.f32.mrf.mxu0
        %v526 = vadd.f32 %v260, %v525
        %v527 = vpop.f32.mrf.mxu0
        %528 = vmatprep.mubr.f32.mxu0 0.0
        %529 = vmatmul.mubr.f32.gmra.mxu0 %v267
        %v530 = vpop.f32.mrf.mxu0
        %v531 = vadd.f32 %v260, %v530
        %v532 = vpop.f32.mrf.mxu0
        %533 = vmatprep.mubr.f32.mxu0 0.0
        %534 = vmatmul.mubr.f32.gmra.mxu0 %v270
        %v535 = vpop.f32.mrf.mxu0
        %v536 = vadd.f32 %v260, %v535
        %v537 = vpop.f32.mrf.mxu0
        %538 = vmatprep.mubr.f32.mxu0 0.0
        %539 = vmatmul.mubr.f32.gmra.mxu0 %v273
        %v540 = vpop.f32.mrf.mxu0
        %v541 = vadd.f32 %v260, %v540
        %v542 = vpop.f32.mrf.mxu0
        %543 = vmatprep.mubr.f32.mxu0 0.0
        %544 = vmatmul.mubr.f32.gmra.mxu0 %v276
        %v545 = vpop.f32.mrf.mxu0
        %v546 = vadd.f32 %v260, %v545
        %v547 = vpop.f32.mrf.mxu0
        %548 = vmatprep.mubr.f32.mxu0 0.0
        %549 = vmatmul.mubr.f32.gmra.mxu0 %v279
        %v550 = vpop.f32.mrf.mxu0
        %v551 = vadd.f32 %v260, %v550
        %v552 = vpop.f32.mrf.mxu0
        %553 = vmatprep.mubr.f32.mxu0 0.0
        %554 = vmatmul.mubr.f32.gmra.mxu0 %v282
        %v555 = vpop.f32.mrf.mxu0
        %v556 = vadd.f32 %v260, %v555
        %v557 = vpop.f32.mrf.mxu0
        %558 = vmatprep.mubr.f32.mxu0 0.0
        %559 = vmatmul.mubr.f32.gmra.mxu0 %v285
        %v560 = vpop.f32.mrf.mxu0
        %v561 = vadd.f32 %v260, %v560
        %v562 = vpop.f32.mrf.mxu0
        %563 = vmatprep.mubr.f32.mxu0 0.0
        %564 = vmatmul.mubr.f32.gmra.mxu0 %v288
        %v565 = vpop.f32.mrf.mxu0
        %v566 = vadd.f32 %v260, %v565
        %v567 = vpop.f32.mrf.mxu0
        %568 = vmatprep.mubr.f32.mxu0 0.0
        %569 = vmatmul.mubr.f32.gmra.mxu0 %v291
        %v570 = vpop.f32.mrf.mxu0
        %v571 = vadd.f32 %v260, %v570
        %v572 = vpop.f32.mrf.mxu0
        %573 = vmatprep.mubr.f32.mxu0 0.0
        %574 = vmatmul.mubr.f32.gmra.mxu0 %v294
        %v575 = vpop.f32.mrf.mxu0
        %v576 = vadd.f32 %v260, %v575
        %v577 = vpop.f32.mrf.mxu0
        %578 = vmatprep.mubr.f32.mxu0 0.0
        %579 = vmatmul.mubr.f32.gmra.mxu0 %v297
        %v580 = vpop.f32.mrf.mxu0
        %v581 = vadd.f32 %v260, %v580
        %v582 = vpop.f32.mrf.mxu0
        %583 = vmatprep.mubr.f32.mxu0 0.0
        %584 = vmatmul.mubr.f32.gmra.mxu0 %v300
        %v585 = vpop.f32.mrf.mxu0
        %v586 = vadd.f32 %v260, %v585
        %v587 = vpop.f32.mrf.mxu0
        %588 = vmatprep.mubr.f32.mxu0 0.0
        %589 = vmatmul.mubr.f32.gmra.mxu0 %v303
        %v590 = vpop.f32.mrf.mxu0
        %v591 = vadd.f32 %v260, %v590
        %v592 = vpop.f32.mrf.mxu0
        %593 = vmatprep.mubr.f32.mxu0 0.0
        %594 = vmatmul.mubr.f32.gmra.mxu0 %v306
        %v595 = vpop.f32.mrf.mxu0
        %v596 = vadd.f32 %v260, %v595
        %v597 = vpop.f32.mrf.mxu0
        %598 = vmatprep.mubr.f32.mxu0 0.0
        %599 = vmatmul.mubr.f32.gmra.mxu0 %v309
        %v600 = vpop.f32.mrf.mxu0
        %v601 = vadd.f32 %v260, %v600
        %v602 = vpop.f32.mrf.mxu0
        %603 = vmatprep.mubr.f32.mxu0 0.0
        %604 = vmatmul.mubr.f32.gmra.mxu0 %v312
        %v605 = vpop.f32.mrf.mxu0
        %v606 = vadd.f32 %v260, %v605
        %v607 = vpop.f32.mrf.mxu0
        %608 = vmatprep.mubr.f32.mxu0 0.0
        %609 = vmatmul.mubr.f32.gmra.mxu0 %v315
        %v610 = vpop.f32.mrf.mxu0
        %v611 = vadd.f32 %v260, %v610
        %v612 = vpop.f32.mrf.mxu0
        %613 = vmatprep.mubr.f32.mxu0 0.0
        %614 = vmatmul.mubr.f32.gmra.mxu0 %v318
        %v615 = vpop.f32.mrf.mxu0
        %v616 = vadd.f32 %v260, %v615
        %v617 = vpop.f32.mrf.mxu0
        %618 = vmatprep.mubr.f32.mxu0 0.0
        %619 = vmatmul.mubr.f32.gmra.mxu0 %v321
        %v620 = vpop.f32.mrf.mxu0
        %v621 = vadd.f32 %v260, %v620
        %v622 = vpop.f32.mrf.mxu0
        %623 = vmatprep.mubr.f32.mxu0 0.0
        %624 = vmatmul.mubr.f32.gmra.mxu0 %v324
        %v625 = vpop.f32.mrf.mxu0
        %v626 = vadd.f32 %v260, %v625
        %v627 = vpop.f32.mrf.mxu0
        %628 = vmatprep.mubr.f32.mxu0 0.0
        %629 = vmatmul.mubr.f32.gmra.mxu0 %v327
        %v630 = vpop.f32.mrf.mxu0
        %v631 = vadd.f32 %v260, %v630
        %v632 = vpop.f32.mrf.mxu0
        %633 = vmatprep.mubr.f32.mxu0 0.0
        %634 = vmatmul.mubr.f32.gmra.mxu0 %v330
        %v635 = vpop.f32.mrf.mxu0
        %v636 = vadd.f32 %v260, %v635
        %v637 = vpop.f32.mrf.mxu0
        %638 = vmatprep.mubr.f32.mxu0 0.0
        %639 = vmatmul.mubr.f32.gmra.mxu0 %v333
        %v640 = vpop.f32.mrf.mxu0
        %v641 = vadd.f32 %v260, %v640
        %v642 = vpop.f32.mrf.mxu0
        %643 = vmatprep.mubr.f32.mxu0 0.0
        %644 = vmatmul.mubr.f32.gmra.mxu0 %v336
        %v645 = vpop.f32.mrf.mxu0
        %v646 = vadd.f32 %v260, %v645
        %v647 = vpop.f32.mrf.mxu0
        %648 = vmatprep.mubr.f32.mxu0 0.0
        %649 = vmatmul.mubr.f32.gmra.mxu0 %v339
        %v650 = vpop.f32.mrf.mxu0
        %v651 = vadd.f32 %v260, %v650
        %v652 = vpop.f32.mrf.mxu0
        %653 = vmatprep.mubr.f32.mxu0 0.0
        %654 = vmatmul.mubr.f32.gmra.mxu0 %v342
        %v655 = vpop.f32.mrf.mxu0
        %v656 = vadd.f32 %v260, %v655
        %v657 = vpop.f32.mrf.mxu0
        %658 = vmatprep.mubr.f32.mxu0 0.0
        %659 = vmatmul.mubr.f32.gmra.mxu0 %v345
        %v660 = vpop.f32.mrf.mxu0
        %v661 = vadd.f32 %v260, %v660
        %v662 = vpop.f32.mrf.mxu0
        %663 = vmatprep.mubr.f32.mxu0 0.0
        %664 = vmatmul.mubr.f32.gmra.mxu0 %v348
        %v665 = vpop.f32.mrf.mxu0
        %v666 = vadd.f32 %v260, %v665
        %v667 = vpop.f32.mrf.mxu0
        %668 = vmatprep.mubr.f32.mxu0 0.0
        %669 = vmatmul.mubr.f32.gmra.mxu0 %v351
        %v670 = vpop.f32.mrf.mxu0
        %v671 = vadd.f32 %v260, %v670
        %v672 = vpop.f32.mrf.mxu0
        %673 = vmatprep.mubr.f32.mxu0 0.0
        %674 = vmatmul.mubr.f32.gmra.mxu0 %v354
        %v675 = vpop.f32.mrf.mxu0
        %v676 = vadd.f32 %v260, %v675
        %v677 = vpop.f32.mrf.mxu0
        %678 = vmatprep.mubr.f32.mxu0 0.0
        %679 = vmatmul.mubr.f32.gmra.mxu0 %v357
        %v680 = vpop.f32.mrf.mxu0
        %v681 = vadd.f32 %v260, %v680
        %v682 = vpop.f32.mrf.mxu0
        %683 = vmatprep.mubr.f32.mxu0 0.0
        %684 = vmatmul.mubr.f32.gmra.mxu0 %v360
        %v685 = vpop.f32.mrf.mxu0
        %v686 = vadd.f32 %v260, %v685
        %v687 = vpop.f32.mrf.mxu0
        %688 = vmatprep.mubr.f32.mxu0 0.0
        %689 = vmatmul.mubr.f32.gmra.mxu0 %v363
        %v690 = vpop.f32.mrf.mxu0
        %v691 = vadd.f32 %v260, %v690
        %v692 = vpop.f32.mrf.mxu0
        %693 = vmatprep.mubr.f32.mxu0 0.0
        %694 = vmatmul.mubr.f32.gmra.mxu0 %v366
        %v695 = vpop.f32.mrf.mxu0
        %v696 = vadd.f32 %v260, %v695
        %v697 = vpop.f32.mrf.mxu0
        %698 = vmatprep.mubr.f32.mxu0 0.0
        %699 = vmatmul.mubr.f32.gmra.mxu0 %v369
        %v700 = vpop.f32.mrf.mxu0
        %v701 = vadd.f32 %v260, %v700
        %v702 = vpop.f32.mrf.mxu0
        %703 = vmatprep.mubr.f32.mxu0 0.0
        %704 = vmatmul.mubr.f32.gmra.mxu0 %v372
        %v705 = vpop.f32.mrf.mxu0
        %v706 = vadd.f32 %v260, %v705
        %v707 = vpop.f32.mrf.mxu0
        %708 = vmatprep.mubr.f32.mxu0 0.0
        %709 = vmatmul.mubr.f32.gmra.mxu0 %v375
        %v710 = vpop.f32.mrf.mxu0
        %v711 = vadd.f32 %v260, %v710
        %v712 = vpop.f32.mrf.mxu0
        %713 = vmatprep.mubr.f32.mxu0 0.0
        %714 = vmatmul.mubr.f32.gmra.mxu0 %v378
        %v715 = vpop.f32.mrf.mxu0
        %v716 = vadd.f32 %v260, %v715
        %v717 = vpop.f32.mrf.mxu0
        %718 = vmatprep.mubr.f32.mxu0 0.0
        %719 = vmatmul.mubr.f32.gmra.mxu0 %v381
        %v720 = vpop.f32.mrf.mxu0
        %v721 = vadd.f32 %v260, %v720
        %v722 = vpop.f32.mrf.mxu0
        %723 = vmatprep.mubr.f32.mxu0 0.0
        %724 = vmatmul.mubr.f32.gmra.mxu0 %v384
        %v725 = vpop.f32.mrf.mxu0
        %v726 = vadd.f32 %v260, %v725
        %v727 = vpop.f32.mrf.mxu0
        %728 = vmatprep.mubr.f32.mxu0 0.0
        %729 = vmatmul.mubr.f32.gmra.mxu0 %v387
        %v730 = vpop.f32.mrf.mxu0
        %v731 = vadd.f32 %v260, %v730
        %v732 = vpop.f32.mrf.mxu0
        %733 = vmatprep.mubr.f32.mxu0 0.0
        %734 = vmatmul.mubr.f32.gmra.mxu0 %v390
        %v735 = vpop.f32.mrf.mxu0
        %v736 = vadd.f32 %v260, %v735
        %v737 = vpop.f32.mrf.mxu0
        %738 = vmatprep.mubr.f32.mxu0 0.0
        %739 = vmatmul.mubr.f32.gmra.mxu0 %v393
        %v740 = vpop.f32.mrf.mxu0
        %v741 = vadd.f32 %v260, %v740
        %v742 = vpop.f32.mrf.mxu0
        %743 = vmatprep.mubr.f32.mxu0 0.0
        %744 = vmatmul.mubr.f32.gmra.mxu0 %v396
        %v745 = vpop.f32.mrf.mxu0
        %v746 = vadd.f32 %v260, %v745
        %v747 = vpop.f32.mrf.mxu0
        %748 = vmatprep.mubr.f32.mxu0 0.0
        %749 = vmatmul.mubr.f32.gmra.mxu0 %v399
        %v750 = vpop.f32.mrf.mxu0
        %v751 = vadd.f32 %v260, %v750
        %v752 = vpop.f32.mrf.mxu0
        %753 = vmatprep.mubr.f32.mxu0 0.0
        %754 = vmatmul.mubr.f32.gmra.mxu0 %v402
        %v755 = vpop.f32.mrf.mxu0
        %v756 = vadd.f32 %v260, %v755
        %v757 = vpop.f32.mrf.mxu0
        %758 = vmatprep.mubr.f32.mxu0 0.0
        %759 = vmatmul.mubr.f32.gmra.mxu0 %v405
        %v760 = vpop.f32.mrf.mxu0
        %v761 = vadd.f32 %v260, %v760
        %v762 = vpop.f32.mrf.mxu0
        %763 = vmatprep.mubr.f32.mxu0 0.0
        %764 = vmatmul.mubr.f32.gmra.mxu0 %v408
        %v765 = vpop.f32.mrf.mxu0
        %v766 = vadd.f32 %v260, %v765
        %v767 = vpop.f32.mrf.mxu0
        %768 = vmatprep.mubr.f32.mxu0 0.0
        %769 = vmatmul.mubr.f32.gmra.mxu0 %v411
        %v770 = vpop.f32.mrf.mxu0
        %v771 = vadd.f32 %v260, %v770
        %v772 = vpop.f32.mrf.mxu0
        %773 = vmatprep.mubr.f32.mxu0 0.0
        %774 = vmatmul.mubr.f32.gmra.mxu0 %v414
        %v775 = vpop.f32.mrf.mxu0
        %v776 = vadd.f32 %v260, %v775
        %v777 = vpop.f32.mrf.mxu0
        %778 = vmatprep.mubr.f32.mxu0 0.0
        %779 = vmatmul.mubr.f32.gmra.mxu0 %v417
        %v780 = vpop.f32.mrf.mxu0
        %v781 = vadd.f32 %v260, %v780
        %v782 = vpop.f32.mrf.mxu0
        %783 = vmatprep.mubr.f32.mxu0 0.0
        %784 = vmatmul.mubr.f32.gmra.mxu0 %v420
        %v785 = vpop.f32.mrf.mxu0
        %v786 = vadd.f32 %v260, %v785
        %v787 = vpop.f32.mrf.mxu0
        %788 = vmatprep.mubr.f32.mxu0 0.0
        %789 = vmatmul.mubr.f32.gmra.mxu0 %v423
        %v790 = vpop.f32.mrf.mxu0
        %v791 = vadd.f32 %v260, %v790
        %v792 = vpop.f32.mrf.mxu0
        %793 = vmatprep.mubr.f32.mxu0 0.0
        %794 = vmatmul.mubr.f32.gmra.mxu0 %v426
        %v795 = vpop.f32.mrf.mxu0
        %v796 = vadd.f32 %v260, %v795
        %v797 = vpop.f32.mrf.mxu0
        %798 = vmatprep.mubr.f32.mxu0 0.0
        %799 = vmatmul.mubr.f32.gmra.mxu0 %v429
        %v800 = vpop.f32.mrf.mxu0
        %v801 = vadd.f32 %v260, %v800
        %v802 = vpop.f32.mrf.mxu0
        %803 = vmatprep.mubr.f32.mxu0 0.0
        %804 = vmatmul.mubr.f32.gmra.mxu0 %v432
        %v805 = vpop.f32.mrf.mxu0
        %v806 = vadd.f32 %v260, %v805
        %v807 = vpop.f32.mrf.mxu0
        %808 = vmatprep.mubr.f32.mxu0 0.0
        %809 = vmatmul.mubr.f32.gmra.mxu0 %v435
        %v810 = vpop.f32.mrf.mxu0
        %v811 = vadd.f32 %v260, %v810
        %v812 = vpop.f32.mrf.mxu0
        %813 = vmatprep.mubr.f32.mxu0 0.0
        %814 = vmatmul.mubr.f32.gmra.mxu0 %v438
        %v815 = vpop.f32.mrf.mxu0
        %v816 = vadd.f32 %v260, %v815
        %v817 = vpop.f32.mrf.mxu0
        %818 = vmatprep.mubr.f32.mxu0 0.0
        %819 = vmatmul.mubr.f32.gmra.mxu0 %v441
        %v820 = vpop.f32.mrf.mxu0
        %v821 = vadd.f32 %v260, %v820
        %v822 = vpop.f32.mrf.mxu0
        %823 = vmatprep.mubr.f32.mxu0 0.0
        %824 = vmatmul.mubr.f32.gmra.mxu0 %v444
        %v825 = vpop.f32.mrf.mxu0
        %v826 = vadd.f32 %v260, %v825
        %v827 = vpop.f32.mrf.mxu0
        %828 = vmatprep.mubr.f32.mxu0 0.0
        %829 = vmatmul.mubr.f32.gmra.mxu0 %v447
        %v830 = vpop.f32.mrf.mxu0
        %v831 = vadd.f32 %v260, %v830
        %v832 = vpop.f32.mrf.mxu0
        %833 = vmatprep.mubr.f32.mxu0 0.0
        %834 = vmatmul.mubr.f32.gmra.mxu0 %v450
        %v835 = vpop.f32.mrf.mxu0
        %v836 = vadd.f32 %v260, %v835
        %v837 = vpop.f32.mrf.mxu0
        %838 = vmatprep.mubr.f32.mxu0 0.0
        %839 = vmatmul.mubr.f32.gmra.mxu0 %v453
        %v840 = vpop.f32.mrf.mxu0
        %v841 = vadd.f32 %v260, %v840
        %v842 = vpop.f32.mrf.mxu0
        %843 = vdwg.mxu0
        %v844 = vmax.f32 %v526, 0.0
        %v845 = vmax.f32 %v531, 0.0
        %v846 = vmax.f32 %v536, 0.0
        %v847 = vmax.f32 %v541, 0.0
        %v848 = vmax.f32 %v546, 0.0
        %v849 = vmax.f32 %v551, 0.0
        %v850 = vmax.f32 %v556, 0.0
        %v851 = vmax.f32 %v561, 0.0
        %v852 = vmax.f32 %v566, 0.0
        %v853 = vmax.f32 %v571, 0.0
        %v854 = vmax.f32 %v576, 0.0
        %v855 = vmax.f32 %v581, 0.0
        %v856 = vmax.f32 %v586, 0.0
        %v857 = vmax.f32 %v591, 0.0
        %v858 = vmax.f32 %v596, 0.0
        %v859 = vmax.f32 %v601, 0.0
        %v860 = vmax.f32 %v606, 0.0
        %v861 = vmax.f32 %v611, 0.0
        %v862 = vmax.f32 %v616, 0.0
        %v863 = vmax.f32 %v621, 0.0
        %v864 = vmax.f32 %v626, 0.0
        %v865 = vmax.f32 %v631, 0.0
        %v866 = vmax.f32 %v636, 0.0
        %v867 = vmax.f32 %v641, 0.0
        %v868 = vmax.f32 %v646, 0.0
        %v869 = vmax.f32 %v651, 0.0
        %v870 = vmax.f32 %v656, 0.0
        %v871 = vmax.f32 %v661, 0.0
        %v872 = vmax.f32 %v666, 0.0
        %v873 = vmax.f32 %v671, 0.0
        %v874 = vmax.f32 %v676, 0.0
        %v875 = vmax.f32 %v681, 0.0
        %v876 = vmax.f32 %v686, 0.0
        %v877 = vmax.f32 %v691, 0.0
        %v878 = vmax.f32 %v696, 0.0
        %v879 = vmax.f32 %v701, 0.0
        %v880 = vmax.f32 %v706, 0.0
        %v881 = vmax.f32 %v711, 0.0
        %v882 = vmax.f32 %v716, 0.0
        %v883 = vmax.f32 %v721, 0.0
        %v884 = vmax.f32 %v726, 0.0
        %v885 = vmax.f32 %v731, 0.0
        %v886 = vmax.f32 %v736, 0.0
        %v887 = vmax.f32 %v741, 0.0
        %v888 = vmax.f32 %v746, 0.0
        %v889 = vmax.f32 %v751, 0.0
        %v890 = vmax.f32 %v756, 0.0
        %v891 = vmax.f32 %v761, 0.0
        %v892 = vmax.f32 %v766, 0.0
        %v893 = vmax.f32 %v771, 0.0
        %v894 = vmax.f32 %v776, 0.0
        %v895 = vmax.f32 %v781, 0.0
        %v896 = vmax.f32 %v786, 0.0
        %v897 = vmax.f32 %v791, 0.0
        %v898 = vmax.f32 %v796, 0.0
        %v899 = vmax.f32 %v801, 0.0
        %v900 = vmax.f32 %v806, 0.0
        %v901 = vmax.f32 %v811, 0.0
        %v902 = vmax.f32 %v816, 0.0
        %v903 = vmax.f32 %v821, 0.0
        %v904 = vmax.f32 %v826, 0.0
        %v905 = vmax.f32 %v831, 0.0
        %v906 = vmax.f32 %v836, 0.0
        %v907 = vmax.f32 %v841, 0.0
        %vm908 = vcmask 261120
        %909 = vst.msk [vmem:[%s185] sm:$0xff] %vm908, %v844
        %910 = vst.msk [vmem:[%s185 + $0x8] sm:$0xff] %vm908, %v845
        %911 = vst.msk [vmem:[%s185 + $0x10] sm:$0xff] %vm908, %v846
        %912 = vst.msk [vmem:[%s185 + $0x18] sm:$0xff] %vm908, %v847
        %913 = vst.msk [vmem:[%s185 + $0x20] sm:$0xff] %vm908, %v848
        %914 = vst.msk [vmem:[%s185 + $0x28] sm:$0xff] %vm908, %v849
        %915 = vst.msk [vmem:[%s185 + $0x30] sm:$0xff] %vm908, %v850
        %916 = vst.msk [vmem:[%s185 + $0x38] sm:$0xff] %vm908, %v851
        %917 = vst.msk [vmem:[%s185 + $0x40] sm:$0xff] %vm908, %v852
        %918 = vst.msk [vmem:[%s185 + $0x48] sm:$0xff] %vm908, %v853
        %919 = vst.msk [vmem:[%s185 + $0x50] sm:$0xff] %vm908, %v854
        %920 = vst.msk [vmem:[%s185 + $0x58] sm:$0xff] %vm908, %v855
        %921 = vst.msk [vmem:[%s185 + $0x60] sm:$0xff] %vm908, %v856
        %922 = vst.msk [vmem:[%s185 + $0x68] sm:$0xff] %vm908, %v857
        %923 = vst.msk [vmem:[%s185 + $0x70] sm:$0xff] %vm908, %v858
        %924 = vst.msk [vmem:[%s185 + $0x78] sm:$0xff] %vm908, %v859
        %925 = vst.msk [vmem:[%s185 + $0x80] sm:$0xff] %vm908, %v860
        %926 = vst.msk [vmem:[%s185 + $0x88] sm:$0xff] %vm908, %v861
        %927 = vst.msk [vmem:[%s185 + $0x90] sm:$0xff] %vm908, %v862
        %928 = vst.msk [vmem:[%s185 + $0x98] sm:$0xff] %vm908, %v863
        %929 = vst.msk [vmem:[%s185 + $0xa0] sm:$0xff] %vm908, %v864
        %930 = vst.msk [vmem:[%s185 + $0xa8] sm:$0xff] %vm908, %v865
        %931 = vst.msk [vmem:[%s185 + $0xb0] sm:$0xff] %vm908, %v866
        %932 = vst.msk [vmem:[%s185 + $0xb8] sm:$0xff] %vm908, %v867
        %933 = vst.msk [vmem:[%s185 + $0xc0] sm:$0xff] %vm908, %v868
        %934 = vst.msk [vmem:[%s185 + $0xc8] sm:$0xff] %vm908, %v869
        %935 = vst.msk [vmem:[%s185 + $0xd0] sm:$0xff] %vm908, %v870
        %936 = vst.msk [vmem:[%s185 + $0xd8] sm:$0xff] %vm908, %v871
        %937 = vst.msk [vmem:[%s185 + $0xe0] sm:$0xff] %vm908, %v872
        %938 = vst.msk [vmem:[%s185 + $0xe8] sm:$0xff] %vm908, %v873
        %939 = vst.msk [vmem:[%s185 + $0xf0] sm:$0xff] %vm908, %v874
        %940 = vst.msk [vmem:[%s185 + $0xf8] sm:$0xff] %vm908, %v875
        %941 = vst.msk [vmem:[%s185 + $0x100] sm:$0xff] %vm908, %v876
        %942 = vst.msk [vmem:[%s185 + $0x108] sm:$0xff] %vm908, %v877
        %943 = vst.msk [vmem:[%s185 + $0x110] sm:$0xff] %vm908, %v878
        %944 = vst.msk [vmem:[%s185 + $0x118] sm:$0xff] %vm908, %v879
        %945 = vst.msk [vmem:[%s185 + $0x120] sm:$0xff] %vm908, %v880
        %946 = vst.msk [vmem:[%s185 + $0x128] sm:$0xff] %vm908, %v881
        %947 = vst.msk [vmem:[%s185 + $0x130] sm:$0xff] %vm908, %v882
        %948 = vst.msk [vmem:[%s185 + $0x138] sm:$0xff] %vm908, %v883
        %949 = vst.msk [vmem:[%s185 + $0x140] sm:$0xff] %vm908, %v884
        %950 = vst.msk [vmem:[%s185 + $0x148] sm:$0xff] %vm908, %v885
        %951 = vst.msk [vmem:[%s185 + $0x150] sm:$0xff] %vm908, %v886
        %952 = vst.msk [vmem:[%s185 + $0x158] sm:$0xff] %vm908, %v887
        %953 = vst.msk [vmem:[%s185 + $0x160] sm:$0xff] %vm908, %v888
        %954 = vst.msk [vmem:[%s185 + $0x168] sm:$0xff] %vm908, %v889
        %955 = vst.msk [vmem:[%s185 + $0x170] sm:$0xff] %vm908, %v890
        %956 = vst.msk [vmem:[%s185 + $0x178] sm:$0xff] %vm908, %v891
        %957 = vst.msk [vmem:[%s185 + $0x180] sm:$0xff] %vm908, %v892
        %958 = vst.msk [vmem:[%s185 + $0x188] sm:$0xff] %vm908, %v893
        %959 = vst.msk [vmem:[%s185 + $0x190] sm:$0xff] %vm908, %v894
        %960 = vst.msk [vmem:[%s185 + $0x198] sm:$0xff] %vm908, %v895
        %961 = vst.msk [vmem:[%s185 + $0x1a0] sm:$0xff] %vm908, %v896
        %962 = vst.msk [vmem:[%s185 + $0x1a8] sm:$0xff] %vm908, %v897
        %963 = vst.msk [vmem:[%s185 + $0x1b0] sm:$0xff] %vm908, %v898
        %964 = vst.msk [vmem:[%s185 + $0x1b8] sm:$0xff] %vm908, %v899
        %965 = vst.msk [vmem:[%s185 + $0x1c0] sm:$0xff] %vm908, %v900
        %966 = vst.msk [vmem:[%s185 + $0x1c8] sm:$0xff] %vm908, %v901
        %967 = vst.msk [vmem:[%s185 + $0x1d0] sm:$0xff] %vm908, %v902
        %968 = vst.msk [vmem:[%s185 + $0x1d8] sm:$0xff] %vm908, %v903
        %969 = vst.msk [vmem:[%s185 + $0x1e0] sm:$0xff] %vm908, %v904
        %970 = vst.msk [vmem:[%s185 + $0x1e8] sm:$0xff] %vm908, %v905
        %971 = vst.msk [vmem:[%s185 + $0x1f0] sm:$0xff] %vm908, %v906
        %972 = vst.msk [vmem:[%s185 + $0x1f8] sm:$0xff] %vm908, %v907
        %s973 = smul.u32 64, %s15
        %p974 = scmp.lt.s32.totalorder %s973, 255
        %s975 = scalar_select %p974, %s973, 255
        %s976 = smul.addr %s975, 8
        %s977 = scalar_lea.vmem %s3, %s976
        // Predicated region
        $region37: #{detection_model_forward.4} parent=31 // pred_check
          %p978 = pneg %p101
        $region38: #{detection_model_forward.4} parent=31 // pred_check_branch
          %980 = sbr.rel (%p978) target = $region40
        $region39: #{detection_model_forward.4} parent=31 // pred_region
          %s981 = smul.u32 64, %s15
        $region40: #{detection_model_forward.4} parent=31 // pred_fallthru
          _
      $region32: #{detection_model_forward.4} parent=5 // pred_fallthru
        _
      %p982 = scmp.le.s32.totalorder 2, %s10
      // Predicated region
      $region41: #{detection_model_forward.4} parent=5 // pred_check
        %p983 = pneg %p982
      $region42: #{detection_model_forward.4} parent=5 // pred_check_branch
        %985 = sbr.rel (%p983) target = $region44
      $region43: #{detection_model_forward.4} parent=5 // pred_region
        %s986 = ssub.s32 %s10, 2
        // Predicated region
        $region45: #{detection_model_forward.4} parent=43 // pred_check
          %p987 = pneg %p107
        $region46: #{detection_model_forward.4} parent=43 // pred_check_branch
          %989 = sbr.rel (%p987) target = $region48
        $region47: #{detection_model_forward.4} parent=43 // pred_region
          %s990 = smul.u32 64, %s16
          %p991 = scmp.lt.s32.totalorder %s990, 255
          %s992 = scalar_select %p991, %s990, 255
          %s993 = smul.addr %s992, 8
          %s994 = scalar_lea.vmem %s3, %s993
        $region48: #{detection_model_forward.4} parent=43 // pred_fallthru
          _
      $region44: #{detection_model_forward.4} parent=5 // pred_fallthru
        _
    $region6: #{detection_model_forward.4} parent=1 // loop_footer
      %s14 = sadd.s32 1, %s10
    $region7: #{detection_model_forward.4} parent=1 // loop_footer_branch
      %9 = sbr.rel target = $region3
    $region8: #{detection_model_forward.4} parent=1 // loop_exit
      _
    %995 = vsyncpa [#allocation3], 1
    %s996 = scalar_lea.sflag [#allocation3], 1
    %997 = vsyncpa %s996, 1

// kernel: detection_model_forward.5
$region0: #{detection_model_forward.5}
  #allocation0 [shape = 'u32[]', space=smem, size = 0x4, offset = 0x4, fixed_abs, tag = 'smem constant byte address 0x4 - core index']
  #allocation1 [shape = 'u32[144,128]{1,0:T(1,128)}', space=vmem, size = 0x12000, scoped, tag = 'internal scratch']
  %s0 = inlined_call_operand.vmem [shape: f32[512,288], index: 0, kind: input, shape index: {}]
  %s1 = inlined_call_operand.vmem [shape: f32[288,64], index: 1, kind: input, shape index: {}]
  %s2 = inlined_call_operand.vmem [shape: f32[1,64], index: 2, kind: input, shape index: {}]
  %s3 = inlined_call_operand.vmem [shape: f32[512,64], index: 3, kind: output, shape index: {}]
  %s4 = sld [smem:[#allocation0]]
  $region22: #{detection_model_forward.5} parent=0
    _
  %s6 = ssub.s32 1, %s4
  %s7 = scalar_select 0, %s6, %s4
  // Predicated region
  $region2: #{detection_model_forward.5} parent=0 // pred_check
    _
  $region3: #{detection_model_forward.5} parent=0 // pred_check_branch
    %9 = sbr.rel (0) target = $region5
  $region4: #{detection_model_forward.5} parent=0 // pred_region
    _
  $region5: #{detection_model_forward.5} parent=0 // pred_fallthru
    _
  // Predicated region
  $region6: #{detection_model_forward.5} parent=0 // pred_check
    _
  $region7: #{detection_model_forward.5} parent=0 // pred_check_branch
    %11 = sbr.rel (0) target = $region9
  $region8: #{detection_model_forward.5} parent=0 // pred_region
    _
  $region9: #{detection_model_forward.5} parent=0 // pred_fallthru
    _
  // Predicated region
  $region10: #{detection_model_forward.5} parent=0 // pred_check
    _
  $region11: #{detection_model_forward.5} parent=0 // pred_check_branch
    %13 = sbr.rel (0) target = $region13
  $region12: #{detection_model_forward.5} parent=0 // pred_region
    _
  $region13: #{detection_model_forward.5} parent=0 // pred_fallthru
    _
  %v14 = vld [vmem:[%s0] sm:$0xff]
  %v15 = vld [vmem:[%s0 + $0x8] sm:$0xff]
  %v16 = vld [vmem:[%s0 + $0x10] sm:$0xff]
  %v17 = vld [vmem:[%s0 + $0x18] sm:$0xff]
  %v18 = vld [vmem:[%s0 + $0x20] sm:$0xff]
  %v19 = vld [vmem:[%s0 + $0x28] sm:$0xff]
  %v20 = vld [vmem:[%s0 + $0x30] sm:$0xff]
  %v21 = vld [vmem:[%s0 + $0x38] sm:$0xff]
  %v22 = vld [vmem:[%s0 + $0x40] sm:$0xff]
  %v23 = vld [vmem:[%s0 + $0x48] sm:$0xff]
  %v24 = vld [vmem:[%s0 + $0x50] sm:$0xff]
  %v25 = vld [vmem:[%s0 + $0x58] sm:$0xff]
  %v26 = vld [vmem:[%s0 + $0x60] sm:$0xff]
  %v27 = vld [vmem:[%s0 + $0x68] sm:$0xff]
  %v28 = vld [vmem:[%s0 + $0x70] sm:$0xff]
  %v29 = vld [vmem:[%s0 + $0x78] sm:$0xff]
  %v30 = vld [vmem:[%s0 + $0x80] sm:$0xff]
  %v31 = vld [vmem:[%s0 + $0x88] sm:$0xff]
  %v32 = vld [vmem:[%s0 + $0x90] sm:$0xff]
  %v33 = vld [vmem:[%s0 + $0x98] sm:$0xff]
  %v34 = vld [vmem:[%s0 + $0xa0] sm:$0xff]
  %v35 = vld [vmem:[%s0 + $0xa8] sm:$0xff]
  %v36 = vld [vmem:[%s0 + $0xb0] sm:$0xff]
  %v37 = vld [vmem:[%s0 + $0xb8] sm:$0xff]
  %v38 = vld [vmem:[%s0 + $0xc0] sm:$0xff]
  %v39 = vld [vmem:[%s0 + $0xc8] sm:$0xff]
  %v40 = vld [vmem:[%s0 + $0xd0] sm:$0xff]
  %v41 = vld [vmem:[%s0 + $0xd8] sm:$0xff]
  %v42 = vld [vmem:[%s0 + $0xe0] sm:$0xff]
  %v43 = vld [vmem:[%s0 + $0xe8] sm:$0xff]
  %v44 = vld [vmem:[%s0 + $0xf0] sm:$0xff]
  %v45 = vld [vmem:[%s0 + $0xf8] sm:$0xff]
  %v46 = vld [vmem:[%s0 + $0x100] sm:$0xff]
  %v47 = vld [vmem:[%s0 + $0x108] sm:$0xff]
  %v48 = vld [vmem:[%s0 + $0x110] sm:$0xff]
  %v49 = vld [vmem:[%s0 + $0x118] sm:$0xff]
  %v50 = vld [vmem:[%s0 + $0x120] sm:$0xff]
  %v51 = vld [vmem:[%s0 + $0x128] sm:$0xff]
  %v52 = vld [vmem:[%s0 + $0x130] sm:$0xff]
  %v53 = vld [vmem:[%s0 + $0x138] sm:$0xff]
  %v54 = vld [vmem:[%s0 + $0x140] sm:$0xff]
  %v55 = vld [vmem:[%s0 + $0x148] sm:$0xff]
  %v56 = vld [vmem:[%s0 + $0x150] sm:$0xff]
  %v57 = vld [vmem:[%s0 + $0x158] sm:$0xff]
  %v58 = vld [vmem:[%s0 + $0x160] sm:$0xff]
  %v59 = vld [vmem:[%s0 + $0x168] sm:$0xff]
  %v60 = vld [vmem:[%s0 + $0x170] sm:$0xff]
  %v61 = vld [vmem:[%s0 + $0x178] sm:$0xff]
  %v62 = vld [vmem:[%s0 + $0x180] sm:$0xff]
  %v63 = vld [vmem:[%s0 + $0x188] sm:$0xff]
  %v64 = vld [vmem:[%s0 + $0x190] sm:$0xff]
  %v65 = vld [vmem:[%s0 + $0x198] sm:$0xff]
  %v66 = vld [vmem:[%s0 + $0x1a0] sm:$0xff]
  %v67 = vld [vmem:[%s0 + $0x1a8] sm:$0xff]
  %v68 = vld [vmem:[%s0 + $0x1b0] sm:$0xff]
  %v69 = vld [vmem:[%s0 + $0x1b8] sm:$0xff]
  %v70 = vld [vmem:[%s0 + $0x1c0] sm:$0xff]
  %v71 = vld [vmem:[%s0 + $0x1c8] sm:$0xff]
  %v72 = vld [vmem:[%s0 + $0x1d0] sm:$0xff]
  %v73 = vld [vmem:[%s0 + $0x1d8] sm:$0xff]
  %v74 = vld [vmem:[%s0 + $0x1e0] sm:$0xff]
  %v75 = vld [vmem:[%s0 + $0x1e8] sm:$0xff]
  %v76 = vld [vmem:[%s0 + $0x1f0] sm:$0xff]
  %v77 = vld [vmem:[%s0 + $0x1f8] sm:$0xff]
  %v78 = vld [vmem:[%s0 + $0x200] sm:$0xff]
  %v79 = vld [vmem:[%s0 + $0x208] sm:$0xff]
  %v80 = vld [vmem:[%s0 + $0x210] sm:$0xff]
  %v81 = vld [vmem:[%s0 + $0x218] sm:$0xff]
  %v82 = vld [vmem:[%s0 + $0x220] sm:$0xff]
  %v83 = vld [vmem:[%s0 + $0x228] sm:$0xff]
  %v84 = vld [vmem:[%s0 + $0x230] sm:$0xff]
  %v85 = vld [vmem:[%s0 + $0x238] sm:$0xff]
  %v86 = vld [vmem:[%s0 + $0x240] sm:$0xff]
  %v87 = vld [vmem:[%s0 + $0x248] sm:$0xff]
  %v88 = vld [vmem:[%s0 + $0x250] sm:$0xff]
  %v89 = vld [vmem:[%s0 + $0x258] sm:$0xff]
  %v90 = vld [vmem:[%s0 + $0x260] sm:$0xff]
  %v91 = vld [vmem:[%s0 + $0x268] sm:$0xff]
  %v92 = vld [vmem:[%s0 + $0x270] sm:$0xff]
  %v93 = vld [vmem:[%s0 + $0x278] sm:$0xff]
  %v94 = vld [vmem:[%s0 + $0x280] sm:$0xff]
  %v95 = vld [vmem:[%s0 + $0x288] sm:$0xff]
  %v96 = vld [vmem:[%s0 + $0x290] sm:$0xff]
  %v97 = vld [vmem:[%s0 + $0x298] sm:$0xff]
  %v98 = vld [vmem:[%s0 + $0x2a0] sm:$0xff]
  %v99 = vld [vmem:[%s0 + $0x2a8] sm:$0xff]
  %v100 = vld [vmem:[%s0 + $0x2b0] sm:$0xff]
  %v101 = vld [vmem:[%s0 + $0x2b8] sm:$0xff]
  %v102 = vld [vmem:[%s0 + $0x2c0] sm:$0xff]
  %v103 = vld [vmem:[%s0 + $0x2c8] sm:$0xff]
  %v104 = vld [vmem:[%s0 + $0x2d0] sm:$0xff]
  %v105 = vld [vmem:[%s0 + $0x2d8] sm:$0xff]
  %v106 = vld [vmem:[%s0 + $0x2e0] sm:$0xff]
  %v107 = vld [vmem:[%s0 + $0x2e8] sm:$0xff]
  %v108 = vld [vmem:[%s0 + $0x2f0] sm:$0xff]
  %v109 = vld [vmem:[%s0 + $0x2f8] sm:$0xff]
  %v110 = vld [vmem:[%s0 + $0x300] sm:$0xff]
  %v111 = vld [vmem:[%s0 + $0x308] sm:$0xff]
  %v112 = vld [vmem:[%s0 + $0x310] sm:$0xff]
  %v113 = vld [vmem:[%s0 + $0x318] sm:$0xff]
  %v114 = vld [vmem:[%s0 + $0x320] sm:$0xff]
  %v115 = vld [vmem:[%s0 + $0x328] sm:$0xff]
  %v116 = vld [vmem:[%s0 + $0x330] sm:$0xff]
  %v117 = vld [vmem:[%s0 + $0x338] sm:$0xff]
  %v118 = vld [vmem:[%s0 + $0x340] sm:$0xff]
  %v119 = vld [vmem:[%s0 + $0x348] sm:$0xff]
  %v120 = vld [vmem:[%s0 + $0x350] sm:$0xff]
  %v121 = vld [vmem:[%s0 + $0x358] sm:$0xff]
  %v122 = vld [vmem:[%s0 + $0x360] sm:$0xff]
  %v123 = vld [vmem:[%s0 + $0x368] sm:$0xff]
  %v124 = vld [vmem:[%s0 + $0x370] sm:$0xff]
  %v125 = vld [vmem:[%s0 + $0x378] sm:$0xff]
  %v126 = vld [vmem:[%s0 + $0x380] sm:$0xff]
  %v127 = vld [vmem:[%s0 + $0x388] sm:$0xff]
  %v128 = vld [vmem:[%s0 + $0x390] sm:$0xff]
  %v129 = vld [vmem:[%s0 + $0x398] sm:$0xff]
  %v130 = vld [vmem:[%s0 + $0x3a0] sm:$0xff]
  %v131 = vld [vmem:[%s0 + $0x3a8] sm:$0xff]
  %v132 = vld [vmem:[%s0 + $0x3b0] sm:$0xff]
  %v133 = vld [vmem:[%s0 + $0x3b8] sm:$0xff]
  %v134 = vld [vmem:[%s0 + $0x3c0] sm:$0xff]
  %v135 = vld [vmem:[%s0 + $0x3c8] sm:$0xff]
  %v136 = vld [vmem:[%s0 + $0x3d0] sm:$0xff]
  %v137 = vld [vmem:[%s0 + $0x3d8] sm:$0xff]
  %v138 = vld [vmem:[%s0 + $0x3e0] sm:$0xff]
  %v139 = vld [vmem:[%s0 + $0x3e8] sm:$0xff]
  %v140 = vld [vmem:[%s0 + $0x3f0] sm:$0xff]
  %v141 = vld [vmem:[%s0 + $0x3f8] sm:$0xff]
  %v142 = vld [vmem:[%s0 + $0x400] sm:$0xff]
  %v143 = vld [vmem:[%s0 + $0x408] sm:$0xff]
  %v144 = vld [vmem:[%s0 + $0x410] sm:$0xff]
  %v145 = vld [vmem:[%s0 + $0x418] sm:$0xff]
  %v146 = vld [vmem:[%s0 + $0x420] sm:$0xff]
  %v147 = vld [vmem:[%s0 + $0x428] sm:$0xff]
  %v148 = vld [vmem:[%s0 + $0x430] sm:$0xff]
  %v149 = vld [vmem:[%s0 + $0x438] sm:$0xff]
  %v150 = vld [vmem:[%s0 + $0x440] sm:$0xff]
  %v151 = vld [vmem:[%s0 + $0x448] sm:$0xff]
  %v152 = vld [vmem:[%s0 + $0x450] sm:$0xff]
  %v153 = vld [vmem:[%s0 + $0x458] sm:$0xff]
  %v154 = vld [vmem:[%s0 + $0x460] sm:$0xff]
  %v155 = vld [vmem:[%s0 + $0x468] sm:$0xff]
  %v156 = vld [vmem:[%s0 + $0x470] sm:$0xff]
  %v157 = vld [vmem:[%s0 + $0x478] sm:$0xff]
  %v158 = vld [vmem:[%s0 + $0x480] sm:$0xff]
  %v159 = vld [vmem:[%s0 + $0x488] sm:$0xff]
  %v160 = vld [vmem:[%s0 + $0x490] sm:$0xff]
  %v161 = vld [vmem:[%s0 + $0x498] sm:$0xff]
  %v162 = vld [vmem:[%s0 + $0x4a0] sm:$0xff]
  %v163 = vld [vmem:[%s0 + $0x4a8] sm:$0xff]
  %v164 = vld [vmem:[%s0 + $0x4b0] sm:$0xff]
  %v165 = vld [vmem:[%s0 + $0x4b8] sm:$0xff]
  %v166 = vld [vmem:[%s0 + $0x4c0] sm:$0xff]
  %v167 = vld [vmem:[%s0 + $0x4c8] sm:$0xff]
  %v168 = vld [vmem:[%s0 + $0x4d0] sm:$0xff]
  %v169 = vld [vmem:[%s0 + $0x4d8] sm:$0xff]
  %v170 = vld [vmem:[%s0 + $0x4e0] sm:$0xff]
  %v171 = vld [vmem:[%s0 + $0x4e8] sm:$0xff]
  %v172 = vld [vmem:[%s0 + $0x4f0] sm:$0xff]
  %v173 = vld [vmem:[%s0 + $0x4f8] sm:$0xff]
  %v174 = vld [vmem:[%s0 + $0x500] sm:$0xff]
  %v175 = vld [vmem:[%s0 + $0x508] sm:$0xff]
  %v176 = vld [vmem:[%s0 + $0x510] sm:$0xff]
  %v177 = vld [vmem:[%s0 + $0x518] sm:$0xff]
  %v178 = vld [vmem:[%s0 + $0x520] sm:$0xff]
  %v179 = vld [vmem:[%s0 + $0x528] sm:$0xff]
  %v180 = vld [vmem:[%s0 + $0x530] sm:$0xff]
  %v181 = vld [vmem:[%s0 + $0x538] sm:$0xff]
  %v182 = vld [vmem:[%s0 + $0x540] sm:$0xff]
  %v183 = vld [vmem:[%s0 + $0x548] sm:$0xff]
  %v184 = vld [vmem:[%s0 + $0x550] sm:$0xff]
  %v185 = vld [vmem:[%s0 + $0x558] sm:$0xff]
  %v186 = vld [vmem:[%s0 + $0x560] sm:$0xff]
  %v187 = vld [vmem:[%s0 + $0x568] sm:$0xff]
  %v188 = vld [vmem:[%s0 + $0x570] sm:$0xff]
  %v189 = vld [vmem:[%s0 + $0x578] sm:$0xff]
  %v190 = vld [vmem:[%s0 + $0x580] sm:$0xff]
  %v191 = vld [vmem:[%s0 + $0x588] sm:$0xff]
  %v192 = vld [vmem:[%s0 + $0x590] sm:$0xff]
  %v193 = vld [vmem:[%s0 + $0x598] sm:$0xff]
  %v194 = vld [vmem:[%s0 + $0x5a0] sm:$0xff]
  %v195 = vld [vmem:[%s0 + $0x5a8] sm:$0xff]
  %v196 = vld [vmem:[%s0 + $0x5b0] sm:$0xff]
  %v197 = vld [vmem:[%s0 + $0x5b8] sm:$0xff]
  %v198 = vld [vmem:[%s0 + $0x5c0] sm:$0xff]
  %v199 = vld [vmem:[%s0 + $0x5c8] sm:$0xff]
  %v200 = vld [vmem:[%s0 + $0x5d0] sm:$0xff]
  %v201 = vld [vmem:[%s0 + $0x5d8] sm:$0xff]
  %v202 = vld [vmem:[%s0 + $0x5e0] sm:$0xff]
  %v203 = vld [vmem:[%s0 + $0x5e8] sm:$0xff]
  %v204 = vld [vmem:[%s0 + $0x5f0] sm:$0xff]
  %v205 = vld [vmem:[%s0 + $0x5f8] sm:$0xff]
  %v206 = vld [vmem:[%s1] sm:$0xff]
  %v207 = vld [vmem:[%s1 + $0x8] sm:$0xff]
  %v208 = vld [vmem:[%s1 + $0x10] sm:$0xff]
  %v209 = vld [vmem:[%s1 + $0x18] sm:$0xff]
  %v210 = vld [vmem:[%s1 + $0x20] sm:$0xff]
  %v211 = vld [vmem:[%s1 + $0x28] sm:$0xff]
  %v212 = vld [vmem:[%s1 + $0x30] sm:$0xff]
  %v213 = vld [vmem:[%s1 + $0x38] sm:$0xff]
  %v214 = vld [vmem:[%s1 + $0x40] sm:$0xff]
  %v215 = vld [vmem:[%s1 + $0x48] sm:$0xff]
  %v216 = vld [vmem:[%s1 + $0x50] sm:$0xff]
  %v217 = vld [vmem:[%s1 + $0x58] sm:$0xff]
  %v218 = vld [vmem:[%s1 + $0x60] sm:$0xff]
  %v219 = vld [vmem:[%s1 + $0x68] sm:$0xff]
  %v220 = vld [vmem:[%s1 + $0x70] sm:$0xff]
  %v221 = vld [vmem:[%s1 + $0x78] sm:$0xff]
  %v222 = vld [vmem:[%s1 + $0x80] sm:$0xff]
  %v223 = vld [vmem:[%s1 + $0x88] sm:$0xff]
  %v224 = vld [vmem:[%s1 + $0x90] sm:$0xff]
  %v225 = vld [vmem:[%s1 + $0x98] sm:$0xff]
  %v226 = vld [vmem:[%s1 + $0xa0] sm:$0xff]
  %v227 = vld [vmem:[%s1 + $0xa8] sm:$0xff]
  %v228 = vld [vmem:[%s1 + $0xb0] sm:$0xff]
  %v229 = vld [vmem:[%s1 + $0xb8] sm:$0xff]
  %v230 = vld [vmem:[%s1 + $0xc0] sm:$0xff]
  %v231 = vld [vmem:[%s1 + $0xc8] sm:$0xff]
  %v232 = vld [vmem:[%s1 + $0xd0] sm:$0xff]
  %v233 = vld [vmem:[%s1 + $0xd8] sm:$0xff]
  %v234 = vld [vmem:[%s1 + $0xe0] sm:$0xff]
  %v235 = vld [vmem:[%s1 + $0xe8] sm:$0xff]
  %v236 = vld [vmem:[%s1 + $0xf0] sm:$0xff]
  %v237 = vld [vmem:[%s1 + $0xf8] sm:$0xff]
  %v238 = vld [vmem:[%s1 + $0x100] sm:$0xff]
  %v239 = vld [vmem:[%s1 + $0x108] sm:$0xff]
  %v240 = vld [vmem:[%s1 + $0x110] sm:$0xff]
  %v241 = vld [vmem:[%s1 + $0x118] sm:$0xff]
  %v242 = vld [vmem:[%s2] sm:$0x1]
  %v244 = vlaneseq
  %v245 = vshrl.u32 %v244, 7
  %v246 = vsub.s32 0, %v245
  %v247 = vrot.slane %v242, %v246
  %vm249 = vcmask 261120
  %v251 = vsel %vm249, %v16, 0
  %v254 = vsel %vm249, %v19, 0
  %v257 = vsel %vm249, %v22, 0
  %v260 = vsel %vm249, %v25, 0
  %v263 = vsel %vm249, %v28, 0
  %v266 = vsel %vm249, %v31, 0
  %v269 = vsel %vm249, %v34, 0
  %v272 = vsel %vm249, %v37, 0
  %v275 = vsel %vm249, %v40, 0
  %v278 = vsel %vm249, %v43, 0
  %v281 = vsel %vm249, %v46, 0
  %v284 = vsel %vm249, %v49, 0
  %v287 = vsel %vm249, %v52, 0
  %v290 = vsel %vm249, %v55, 0
  %v293 = vsel %vm249, %v58, 0
  %v296 = vsel %vm249, %v61, 0
  %v299 = vsel %vm249, %v64, 0
  %v302 = vsel %vm249, %v67, 0
  %v305 = vsel %vm249, %v70, 0
  %v308 = vsel %vm249, %v73, 0
  %v311 = vsel %vm249, %v76, 0
  %v314 = vsel %vm249, %v79, 0
  %v317 = vsel %vm249, %v82, 0
  %v320 = vsel %vm249, %v85, 0
  %v323 = vsel %vm249, %v88, 0
  %v326 = vsel %vm249, %v91, 0
  %v329 = vsel %vm249, %v94, 0
  %v332 = vsel %vm249, %v97, 0
  %v335 = vsel %vm249, %v100, 0
  %v338 = vsel %vm249, %v103, 0
  %v341 = vsel %vm249, %v106, 0
  %v344 = vsel %vm249, %v109, 0
  %v347 = vsel %vm249, %v112, 0
  %v350 = vsel %vm249, %v115, 0
  %v353 = vsel %vm249, %v118, 0
  %v356 = vsel %vm249, %v121, 0
  %v359 = vsel %vm249, %v124, 0
  %v362 = vsel %vm249, %v127, 0
  %v365 = vsel %vm249, %v130, 0
  %v368 = vsel %vm249, %v133, 0
  %v371 = vsel %vm249, %v136, 0
  %v374 = vsel %vm249, %v139, 0
  %v377 = vsel %vm249, %v142, 0
  %v380 = vsel %vm249, %v145, 0
  %v383 = vsel %vm249, %v148, 0
  %v386 = vsel %vm249, %v151, 0
  %v389 = vsel %vm249, %v154, 0
  %v392 = vsel %vm249, %v157, 0
  %v395 = vsel %vm249, %v160, 0
  %v398 = vsel %vm249, %v163, 0
  %v401 = vsel %vm249, %v166, 0
  %v404 = vsel %vm249, %v169, 0
  %v407 = vsel %vm249, %v172, 0
  %v410 = vsel %vm249, %v175, 0
  %v413 = vsel %vm249, %v178, 0
  %v416 = vsel %vm249, %v181, 0
  %v419 = vsel %vm249, %v184, 0
  %v422 = vsel %vm249, %v187, 0
  %v425 = vsel %vm249, %v190, 0
  %v428 = vsel %vm249, %v193, 0
  %v431 = vsel %vm249, %v196, 0
  %v434 = vsel %vm249, %v199, 0
  %v437 = vsel %vm249, %v202, 0
  %v440 = vsel %vm249, %v205, 0
  %442 = vmatprep.subr.mxu0 0.0
  %443 = vmatpush1.msra.mxu0 %v221
  %444 = vmatprep.subr.mxu0 0.0
  %445 = vmatpush1.msra.mxu0 %v220
  %446 = vmatprep.subr.mxu0 0.0
  %447 = vmatpush1.msra.mxu0 %v219
  %448 = vmatprep.subr.mxu0 0.0
  %449 = vmatpush1.msra.mxu0 %v218
  %450 = vmatprep.subr.mxu0 0.0
  %451 = vmatpush1.msra.mxu0 %v217
  %452 = vmatprep.subr.mxu0 0.0
  %453 = vmatpush1.msra.mxu0 %v216
  %454 = vmatprep.subr.mxu0 0.0
  %455 = vmatpush1.msra.mxu0 %v215
  %456 = vmatprep.subr.mxu0 0.0
  %457 = vmatpush1.msra.mxu0 %v214
  %458 = vmatprep.subr.mxu0 0.0
  %459 = vmatpush1.msra.mxu0 %v213
  %460 = vmatprep.subr.mxu0 0.0
  %461 = vmatpush1.msra.mxu0 %v212
  %462 = vmatprep.subr.mxu0 0.0
  %463 = vmatpush1.msra.mxu0 %v211
  %464 = vmatprep.subr.mxu0 0.0
  %465 = vmatpush1.msra.mxu0 %v210
  %466 = vmatprep.subr.mxu0 0.0
  %467 = vmatpush1.msra.mxu0 %v209
  %468 = vmatprep.subr.mxu0 0.0
  %469 = vmatpush1.msra.mxu0 %v208
  %470 = vmatprep.subr.mxu0 0.0
  %471 = vmatpush1.msra.mxu0 %v207
  %472 = vmatprep.subr.mxu0 0.0
  %473 = vmatpush1.msra.mxu0 %v206
  %474 = vmatprep.subr.mxu0 0.0
  %475 = vmatpush2.msra.mxu0 %v237
  %476 = vmatprep.subr.mxu0 0.0
  %477 = vmatpush2.msra.mxu0 %v236
  %478 = vmatprep.subr.mxu0 0.0
  %479 = vmatpush2.msra.mxu0 %v235
  %480 = vmatprep.subr.mxu0 0.0
  %481 = vmatpush2.msra.mxu0 %v234
  %482 = vmatprep.subr.mxu0 0.0
  %483 = vmatpush2.msra.mxu0 %v233
  %484 = vmatprep.subr.mxu0 0.0
  %485 = vmatpush2.msra.mxu0 %v232
  %486 = vmatprep.subr.mxu0 0.0
  %487 = vmatpush2.msra.mxu0 %v231
  %488 = vmatprep.subr.mxu0 0.0
  %489 = vmatpush2.msra.mxu0 %v230
  %490 = vmatprep.subr.mxu0 0.0
  %491 = vmatpush2.msra.mxu0 %v229
  %492 = vmatprep.subr.mxu0 0.0
  %493 = vmatpush2.msra.mxu0 %v228
  %494 = vmatprep.subr.mxu0 0.0
  %495 = vmatpush2.msra.mxu0 %v227
  %496 = vmatprep.subr.mxu0 0.0
  %497 = vmatpush2.msra.mxu0 %v226
  %498 = vmatprep.subr.mxu0 0.0
  %499 = vmatpush2.msra.mxu0 %v225
  %500 = vmatprep.subr.mxu0 0.0
  %501 = vmatpush2.msra.mxu0 %v224
  %502 = vmatprep.subr.mxu0 0.0
  %503 = vmatpush2.msra.mxu0 %v223
  %504 = vmatprep.subr.mxu0 0.0
  %505 = vmatpush2.msra.mxu0 %v222
  %506 = vmatprep.mubr.f32.mxu0 %v15
  %507 = vmatmul.mubr.f32.gmra.mxu0 %v14
  %v508 = vpop.f32.mrf.mxu0
  %v509 = vadd.f32 %v247, %v508
  %v510 = vpop.f32.mrf.mxu0
  %511 = vmatprep.mubr.f32.mxu0 %v18
  %512 = vmatmul.mubr.f32.gmra.mxu0 %v17
  %v513 = vpop.f32.mrf.mxu0
  %v514 = vadd.f32 %v247, %v513
  %v515 = vpop.f32.mrf.mxu0
  %516 = vmatprep.mubr.f32.mxu0 %v21
  %517 = vmatmul.mubr.f32.gmra.mxu0 %v20
  %v518 = vpop.f32.mrf.mxu0
  %v519 = vadd.f32 %v247, %v518
  %v520 = vpop.f32.mrf.mxu0
  %521 = vmatprep.mubr.f32.mxu0 %v24
  %522 = vmatmul.mubr.f32.gmra.mxu0 %v23
  %v523 = vpop.f32.mrf.mxu0
  %v524 = vadd.f32 %v247, %v523
  %v525 = vpop.f32.mrf.mxu0
  %526 = vmatprep.mubr.f32.mxu0 %v27
  %527 = vmatmul.mubr.f32.gmra.mxu0 %v26
  %v528 = vpop.f32.mrf.mxu0
  %v529 = vadd.f32 %v247, %v528
  %v530 = vpop.f32.mrf.mxu0
  %531 = vmatprep.mubr.f32.mxu0 %v30
  %532 = vmatmul.mubr.f32.gmra.mxu0 %v29
  %v533 = vpop.f32.mrf.mxu0
  %v534 = vadd.f32 %v247, %v533
  %v535 = vpop.f32.mrf.mxu0
  %536 = vmatprep.mubr.f32.mxu0 %v33
  %537 = vmatmul.mubr.f32.gmra.mxu0 %v32
  %v538 = vpop.f32.mrf.mxu0
  %v539 = vadd.f32 %v247, %v538
  %v540 = vpop.f32.mrf.mxu0
  %541 = vmatprep.mubr.f32.mxu0 %v36
  %542 = vmatmul.mubr.f32.gmra.mxu0 %v35
  %v543 = vpop.f32.mrf.mxu0
  %v544 = vadd.f32 %v247, %v543
  %v545 = vpop.f32.mrf.mxu0
  %546 = vmatprep.mubr.f32.mxu0 %v39
  %547 = vmatmul.mubr.f32.gmra.mxu0 %v38
  %v548 = vpop.f32.mrf.mxu0
  %v549 = vadd.f32 %v247, %v548
  %v550 = vpop.f32.mrf.mxu0
  %551 = vmatprep.mubr.f32.mxu0 %v42
  %552 = vmatmul.mubr.f32.gmra.mxu0 %v41
  %v553 = vpop.f32.mrf.mxu0
  %v554 = vadd.f32 %v247, %v553
  %v555 = vpop.f32.mrf.mxu0
  %556 = vmatprep.mubr.f32.mxu0 %v45
  %557 = vmatmul.mubr.f32.gmra.mxu0 %v44
  %v558 = vpop.f32.mrf.mxu0
  %v559 = vadd.f32 %v247, %v558
  %v560 = vpop.f32.mrf.mxu0
  %561 = vmatprep.mubr.f32.mxu0 %v48
  %562 = vmatmul.mubr.f32.gmra.mxu0 %v47
  %v563 = vpop.f32.mrf.mxu0
  %v564 = vadd.f32 %v247, %v563
  %v565 = vpop.f32.mrf.mxu0
  %566 = vmatprep.mubr.f32.mxu0 %v51
  %567 = vmatmul.mubr.f32.gmra.mxu0 %v50
  %v568 = vpop.f32.mrf.mxu0
  %v569 = vadd.f32 %v247, %v568
  %v570 = vpop.f32.mrf.mxu0
  %571 = vmatprep.mubr.f32.mxu0 %v54
  %572 = vmatmul.mubr.f32.gmra.mxu0 %v53
  %v573 = vpop.f32.mrf.mxu0
  %v574 = vadd.f32 %v247, %v573
  %v575 = vpop.f32.mrf.mxu0
  %576 = vmatprep.mubr.f32.mxu0 %v57
  %577 = vmatmul.mubr.f32.gmra.mxu0 %v56
  %v578 = vpop.f32.mrf.mxu0
  %v579 = vadd.f32 %v247, %v578
  %v580 = vpop.f32.mrf.mxu0
  %581 = vmatprep.mubr.f32.mxu0 %v60
  %582 = vmatmul.mubr.f32.gmra.mxu0 %v59
  %v583 = vpop.f32.mrf.mxu0
  %v584 = vadd.f32 %v247, %v583
  %v585 = vpop.f32.mrf.mxu0
  %586 = vmatprep.mubr.f32.mxu0 %v63
  %587 = vmatmul.mubr.f32.gmra.mxu0 %v62
  %v588 = vpop.f32.mrf.mxu0
  %v589 = vadd.f32 %v247, %v588
  %v590 = vpop.f32.mrf.mxu0
  %591 = vmatprep.mubr.f32.mxu0 %v66
  %592 = vmatmul.mubr.f32.gmra.mxu0 %v65
  %v593 = vpop.f32.mrf.mxu0
  %v594 = vadd.f32 %v247, %v593
  %v595 = vpop.f32.mrf.mxu0
  %596 = vmatprep.mubr.f32.mxu0 %v69
  %597 = vmatmul.mubr.f32.gmra.mxu0 %v68
  %v598 = vpop.f32.mrf.mxu0
  %v599 = vadd.f32 %v247, %v598
  %v600 = vpop.f32.mrf.mxu0
  %601 = vmatprep.mubr.f32.mxu0 %v72
  %602 = vmatmul.mubr.f32.gmra.mxu0 %v71
  %v603 = vpop.f32.mrf.mxu0
  %v604 = vadd.f32 %v247, %v603
  %v605 = vpop.f32.mrf.mxu0
  %606 = vmatprep.mubr.f32.mxu0 %v75
  %607 = vmatmul.mubr.f32.gmra.mxu0 %v74
  %v608 = vpop.f32.mrf.mxu0
  %v609 = vadd.f32 %v247, %v608
  %v610 = vpop.f32.mrf.mxu0
  %611 = vmatprep.mubr.f32.mxu0 %v78
  %612 = vmatmul.mubr.f32.gmra.mxu0 %v77
  %v613 = vpop.f32.mrf.mxu0
  %v614 = vadd.f32 %v247, %v613
  %v615 = vpop.f32.mrf.mxu0
  %616 = vmatprep.mubr.f32.mxu0 %v81
  %617 = vmatmul.mubr.f32.gmra.mxu0 %v80
  %v618 = vpop.f32.mrf.mxu0
  %v619 = vadd.f32 %v247, %v618
  %v620 = vpop.f32.mrf.mxu0
  %621 = vmatprep.mubr.f32.mxu0 %v84
  %622 = vmatmul.mubr.f32.gmra.mxu0 %v83
  %v623 = vpop.f32.mrf.mxu0
  %v624 = vadd.f32 %v247, %v623
  %v625 = vpop.f32.mrf.mxu0
  %626 = vmatprep.mubr.f32.mxu0 %v87
  %627 = vmatmul.mubr.f32.gmra.mxu0 %v86
  %v628 = vpop.f32.mrf.mxu0
  %v629 = vadd.f32 %v247, %v628
  %v630 = vpop.f32.mrf.mxu0
  %631 = vmatprep.mubr.f32.mxu0 %v90
  %632 = vmatmul.mubr.f32.gmra.mxu0 %v89
  %v633 = vpop.f32.mrf.mxu0
  %v634 = vadd.f32 %v247, %v633
  %v635 = vpop.f32.mrf.mxu0
  %636 = vmatprep.mubr.f32.mxu0 %v93
  %637 = vmatmul.mubr.f32.gmra.mxu0 %v92
  %v638 = vpop.f32.mrf.mxu0
  %v639 = vadd.f32 %v247, %v638
  %v640 = vpop.f32.mrf.mxu0
  %641 = vmatprep.mubr.f32.mxu0 %v96
  %642 = vmatmul.mubr.f32.gmra.mxu0 %v95
  %v643 = vpop.f32.mrf.mxu0
  %v644 = vadd.f32 %v247, %v643
  %v645 = vpop.f32.mrf.mxu0
  %646 = vmatprep.mubr.f32.mxu0 %v99
  %647 = vmatmul.mubr.f32.gmra.mxu0 %v98
  %v648 = vpop.f32.mrf.mxu0
  %v649 = vadd.f32 %v247, %v648
  %v650 = vpop.f32.mrf.mxu0
  %651 = vmatprep.mubr.f32.mxu0 %v102
  %652 = vmatmul.mubr.f32.gmra.mxu0 %v101
  %v653 = vpop.f32.mrf.mxu0
  %v654 = vadd.f32 %v247, %v653
  %v655 = vpop.f32.mrf.mxu0
  %656 = vmatprep.mubr.f32.mxu0 %v105
  %657 = vmatmul.mubr.f32.gmra.mxu0 %v104
  %v658 = vpop.f32.mrf.mxu0
  %v659 = vadd.f32 %v247, %v658
  %v660 = vpop.f32.mrf.mxu0
  %661 = vmatprep.mubr.f32.mxu0 %v108
  %662 = vmatmul.mubr.f32.gmra.mxu0 %v107
  %v663 = vpop.f32.mrf.mxu0
  %v664 = vadd.f32 %v247, %v663
  %v665 = vpop.f32.mrf.mxu0
  %666 = vmatprep.mubr.f32.mxu0 %v111
  %667 = vmatmul.mubr.f32.gmra.mxu0 %v110
  %v668 = vpop.f32.mrf.mxu0
  %v669 = vadd.f32 %v247, %v668
  %v670 = vpop.f32.mrf.mxu0
  %671 = vmatprep.mubr.f32.mxu0 %v114
  %672 = vmatmul.mubr.f32.gmra.mxu0 %v113
  %v673 = vpop.f32.mrf.mxu0
  %v674 = vadd.f32 %v247, %v673
  %v675 = vpop.f32.mrf.mxu0
  %676 = vmatprep.mubr.f32.mxu0 %v117
  %677 = vmatmul.mubr.f32.gmra.mxu0 %v116
  %v678 = vpop.f32.mrf.mxu0
  %v679 = vadd.f32 %v247, %v678
  %v680 = vpop.f32.mrf.mxu0
  %681 = vmatprep.mubr.f32.mxu0 %v120
  %682 = vmatmul.mubr.f32.gmra.mxu0 %v119
  %v683 = vpop.f32.mrf.mxu0
  %v684 = vadd.f32 %v247, %v683
  %v685 = vpop.f32.mrf.mxu0
  %686 = vmatprep.mubr.f32.mxu0 %v123
  %687 = vmatmul.mubr.f32.gmra.mxu0 %v122
  %v688 = vpop.f32.mrf.mxu0
  %v689 = vadd.f32 %v247, %v688
  %v690 = vpop.f32.mrf.mxu0
  %691 = vmatprep.mubr.f32.mxu0 %v126
  %692 = vmatmul.mubr.f32.gmra.mxu0 %v125
  %v693 = vpop.f32.mrf.mxu0
  %v694 = vadd.f32 %v247, %v693
  %v695 = vpop.f32.mrf.mxu0
  %696 = vmatprep.mubr.f32.mxu0 %v129
  %697 = vmatmul.mubr.f32.gmra.mxu0 %v128
  %v698 = vpop.f32.mrf.mxu0
  %v699 = vadd.f32 %v247, %v698
  %v700 = vpop.f32.mrf.mxu0
  %701 = vmatprep.mubr.f32.mxu0 %v132
  %702 = vmatmul.mubr.f32.gmra.mxu0 %v131
  %v703 = vpop.f32.mrf.mxu0
  %v704 = vadd.f32 %v247, %v703
  %v705 = vpop.f32.mrf.mxu0
  %706 = vmatprep.mubr.f32.mxu0 %v135
  %707 = vmatmul.mubr.f32.gmra.mxu0 %v134
  %v708 = vpop.f32.mrf.mxu0
  %v709 = vadd.f32 %v247, %v708
  %v710 = vpop.f32.mrf.mxu0
  %711 = vmatprep.mubr.f32.mxu0 %v138
  %712 = vmatmul.mubr.f32.gmra.mxu0 %v137
  %v713 = vpop.f32.mrf.mxu0
  %v714 = vadd.f32 %v247, %v713
  %v715 = vpop.f32.mrf.mxu0
  %716 = vmatprep.mubr.f32.mxu0 %v141
  %717 = vmatmul.mubr.f32.gmra.mxu0 %v140
  %v718 = vpop.f32.mrf.mxu0
  %v719 = vadd.f32 %v247, %v718
  %v720 = vpop.f32.mrf.mxu0
  %721 = vmatprep.mubr.f32.mxu0 %v144
  %722 = vmatmul.mubr.f32.gmra.mxu0 %v143
  %v723 = vpop.f32.mrf.mxu0
  %v724 = vadd.f32 %v247, %v723
  %v725 = vpop.f32.mrf.mxu0
  %726 = vmatprep.mubr.f32.mxu0 %v147
  %727 = vmatmul.mubr.f32.gmra.mxu0 %v146
  %v728 = vpop.f32.mrf.mxu0
  %v729 = vadd.f32 %v247, %v728
  %v730 = vpop.f32.mrf.mxu0
  %731 = vmatprep.mubr.f32.mxu0 %v150
  %732 = vmatmul.mubr.f32.gmra.mxu0 %v149
  %v733 = vpop.f32.mrf.mxu0
  %v734 = vadd.f32 %v247, %v733
  %v735 = vpop.f32.mrf.mxu0
  %736 = vmatprep.mubr.f32.mxu0 %v153
  %737 = vmatmul.mubr.f32.gmra.mxu0 %v152
  %v738 = vpop.f32.mrf.mxu0
  %v739 = vadd.f32 %v247, %v738
  %v740 = vpop.f32.mrf.mxu0
  %741 = vmatprep.mubr.f32.mxu0 %v156
  %742 = vmatmul.mubr.f32.gmra.mxu0 %v155
  %v743 = vpop.f32.mrf.mxu0
  %v744 = vadd.f32 %v247, %v743
  %v745 = vpop.f32.mrf.mxu0
  %746 = vmatprep.mubr.f32.mxu0 %v159
  %747 = vmatmul.mubr.f32.gmra.mxu0 %v158
  %v748 = vpop.f32.mrf.mxu0
  %v749 = vadd.f32 %v247, %v748
  %v750 = vpop.f32.mrf.mxu0
  %751 = vmatprep.mubr.f32.mxu0 %v162
  %752 = vmatmul.mubr.f32.gmra.mxu0 %v161
  %v753 = vpop.f32.mrf.mxu0
  %v754 = vadd.f32 %v247, %v753
  %v755 = vpop.f32.mrf.mxu0
  %756 = vmatprep.mubr.f32.mxu0 %v165
  %757 = vmatmul.mubr.f32.gmra.mxu0 %v164
  %v758 = vpop.f32.mrf.mxu0
  %v759 = vadd.f32 %v247, %v758
  %v760 = vpop.f32.mrf.mxu0
  %761 = vmatprep.mubr.f32.mxu0 %v168
  %762 = vmatmul.mubr.f32.gmra.mxu0 %v167
  %v763 = vpop.f32.mrf.mxu0
  %v764 = vadd.f32 %v247, %v763
  %v765 = vpop.f32.mrf.mxu0
  %766 = vmatprep.mubr.f32.mxu0 %v171
  %767 = vmatmul.mubr.f32.gmra.mxu0 %v170
  %v768 = vpop.f32.mrf.mxu0
  %v769 = vadd.f32 %v247, %v768
  %v770 = vpop.f32.mrf.mxu0
  %771 = vmatprep.mubr.f32.mxu0 %v174
  %772 = vmatmul.mubr.f32.gmra.mxu0 %v173
  %v773 = vpop.f32.mrf.mxu0
  %v774 = vadd.f32 %v247, %v773
  %v775 = vpop.f32.mrf.mxu0
  %776 = vmatprep.mubr.f32.mxu0 %v177
  %777 = vmatmul.mubr.f32.gmra.mxu0 %v176
  %v778 = vpop.f32.mrf.mxu0
  %v779 = vadd.f32 %v247, %v778
  %v780 = vpop.f32.mrf.mxu0
  %781 = vmatprep.mubr.f32.mxu0 %v180
  %782 = vmatmul.mubr.f32.gmra.mxu0 %v179
  %v783 = vpop.f32.mrf.mxu0
  %v784 = vadd.f32 %v247, %v783
  %v785 = vpop.f32.mrf.mxu0
  %786 = vmatprep.mubr.f32.mxu0 %v183
  %787 = vmatmul.mubr.f32.gmra.mxu0 %v182
  %v788 = vpop.f32.mrf.mxu0
  %v789 = vadd.f32 %v247, %v788
  %v790 = vpop.f32.mrf.mxu0
  %791 = vmatprep.mubr.f32.mxu0 %v186
  %792 = vmatmul.mubr.f32.gmra.mxu0 %v185
  %v793 = vpop.f32.mrf.mxu0
  %v794 = vadd.f32 %v247, %v793
  %v795 = vpop.f32.mrf.mxu0
  %796 = vmatprep.mubr.f32.mxu0 %v189
  %797 = vmatmul.mubr.f32.gmra.mxu0 %v188
  %v798 = vpop.f32.mrf.mxu0
  %v799 = vadd.f32 %v247, %v798
  %v800 = vpop.f32.mrf.mxu0
  %801 = vmatprep.mubr.f32.mxu0 %v192
  %802 = vmatmul.mubr.f32.gmra.mxu0 %v191
  %v803 = vpop.f32.mrf.mxu0
  %v804 = vadd.f32 %v247, %v803
  %v805 = vpop.f32.mrf.mxu0
  %806 = vmatprep.mubr.f32.mxu0 %v195
  %807 = vmatmul.mubr.f32.gmra.mxu0 %v194
  %v808 = vpop.f32.mrf.mxu0
  %v809 = vadd.f32 %v247, %v808
  %v810 = vpop.f32.mrf.mxu0
  %811 = vmatprep.mubr.f32.mxu0 %v198
  %812 = vmatmul.mubr.f32.gmra.mxu0 %v197
  %v813 = vpop.f32.mrf.mxu0
  %v814 = vadd.f32 %v247, %v813
  %v815 = vpop.f32.mrf.mxu0
  %816 = vmatprep.mubr.f32.mxu0 %v201
  %817 = vmatmul.mubr.f32.gmra.mxu0 %v200
  %v818 = vpop.f32.mrf.mxu0
  %v819 = vadd.f32 %v247, %v818
  %v820 = vpop.f32.mrf.mxu0
  %821 = vmatprep.mubr.f32.mxu0 %v204
  %822 = vmatmul.mubr.f32.gmra.mxu0 %v203
  %v823 = vpop.f32.mrf.mxu0
  %v824 = vadd.f32 %v247, %v823
  %v825 = vpop.f32.mrf.mxu0
  %826 = vdwg.mxu0
  %827 = vmatprep.subr.mxu0 0.0
  %828 = vmatpush1.msra.mxu0 0.0
  %829 = vmatprep.subr.mxu0 0.0
  %830 = vmatpush1.msra.mxu0 0.0
  %831 = vmatprep.subr.mxu0 0.0
  %832 = vmatpush1.msra.mxu0 0.0
  %833 = vmatprep.subr.mxu0 0.0
  %834 = vmatpush1.msra.mxu0 0.0
  %835 = vmatprep.subr.mxu0 0.0
  %836 = vmatpush1.msra.mxu0 0.0
  %837 = vmatprep.subr.mxu0 0.0
  %838 = vmatpush1.msra.mxu0 0.0
  %839 = vmatprep.subr.mxu0 0.0
  %840 = vmatpush1.msra.mxu0 0.0
  %841 = vmatprep.subr.mxu0 0.0
  %842 = vmatpush1.msra.mxu0 0.0
  %843 = vmatprep.subr.mxu0 0.0
  %844 = vmatpush1.msra.mxu0 0.0
  %845 = vmatprep.subr.mxu0 0.0
  %846 = vmatpush1.msra.mxu0 0.0
  %847 = vmatprep.subr.mxu0 0.0
  %848 = vmatpush1.msra.mxu0 0.0
  %849 = vmatprep.subr.mxu0 0.0
  %850 = vmatpush1.msra.mxu0 0.0
  %851 = vmatprep.subr.mxu0 0.0
  %852 = vmatpush1.msra.mxu0 %v241
  %853 = vmatprep.subr.mxu0 0.0
  %854 = vmatpush1.msra.mxu0 %v240
  %855 = vmatprep.subr.mxu0 0.0
  %856 = vmatpush1.msra.mxu0 %v239
  %857 = vmatprep.subr.mxu0 0.0
  %858 = vmatpush1.msra.mxu0 %v238
  %859 = vmatprep.subr.mxu0 0.0
  %860 = vmatpush2.msra.mxu0 0.0
  %861 = vmatprep.subr.mxu0 0.0
  %862 = vmatpush2.msra.mxu0 0.0
  %863 = vmatprep.subr.mxu0 0.0
  %864 = vmatpush2.msra.mxu0 0.0
  %865 = vmatprep.subr.mxu0 0.0
  %866 = vmatpush2.msra.mxu0 0.0
  %867 = vmatprep.subr.mxu0 0.0
  %868 = vmatpush2.msra.mxu0 0.0
  %869 = vmatprep.subr.mxu0 0.0
  %870 = vmatpush2.msra.mxu0 0.0
  %871 = vmatprep.subr.mxu0 0.0
  %872 = vmatpush2.msra.mxu0 0.0
  %873 = vmatprep.subr.mxu0 0.0
  %874 = vmatpush2.msra.mxu0 0.0
  %875 = vmatprep.subr.mxu0 0.0
  %876 = vmatpush2.msra.mxu0 0.0
  %877 = vmatprep.subr.mxu0 0.0
  %878 = vmatpush2.msra.mxu0 0.0
  %879 = vmatprep.subr.mxu0 0.0
  %880 = vmatpush2.msra.mxu0 0.0
  %881 = vmatprep.subr.mxu0 0.0
  %882 = vmatpush2.msra.mxu0 0.0
  %883 = vmatprep.subr.mxu0 0.0
  %884 = vmatpush2.msra.mxu0 0.0
  %885 = vmatprep.subr.mxu0 0.0
  %886 = vmatpush2.msra.mxu0 0.0
  %887 = vmatprep.subr.mxu0 0.0
  %888 = vmatpush2.msra.mxu0 0.0
  %889 = vmatprep.subr.mxu0 0.0
  %890 = vmatpush2.msra.mxu0 0.0
  %891 = vmatprep.mubr.f32.mxu0 0.0
  %892 = vmatmul.mubr.f32.gmra.mxu0 %v251
  %v893 = vpop.f32.mrf.mxu0
  %v894 = vadd.f32 %v509, %v893
  %v895 = vpop.f32.mrf.mxu0
  %896 = vmatprep.mubr.f32.mxu0 0.0
  %897 = vmatmul.mubr.f32.gmra.mxu0 %v254
  %v898 = vpop.f32.mrf.mxu0
  %v899 = vadd.f32 %v514, %v898
  %v900 = vpop.f32.mrf.mxu0
  %901 = vmatprep.mubr.f32.mxu0 0.0
  %902 = vmatmul.mubr.f32.gmra.mxu0 %v257
  %v903 = vpop.f32.mrf.mxu0
  %v904 = vadd.f32 %v519, %v903
  %v905 = vpop.f32.mrf.mxu0
  %906 = vmatprep.mubr.f32.mxu0 0.0
  %907 = vmatmul.mubr.f32.gmra.mxu0 %v260
  %v908 = vpop.f32.mrf.mxu0
  %v909 = vadd.f32 %v524, %v908
  %v910 = vpop.f32.mrf.mxu0
  %911 = vmatprep.mubr.f32.mxu0 0.0
  %912 = vmatmul.mubr.f32.gmra.mxu0 %v263
  %v913 = vpop.f32.mrf.mxu0
  %v914 = vadd.f32 %v529, %v913
  %v915 = vpop.f32.mrf.mxu0
  %916 = vmatprep.mubr.f32.mxu0 0.0
  %917 = vmatmul.mubr.f32.gmra.mxu0 %v266
  %v918 = vpop.f32.mrf.mxu0
  %v919 = vadd.f32 %v534, %v918
  %v920 = vpop.f32.mrf.mxu0
  %921 = vmatprep.mubr.f32.mxu0 0.0
  %922 = vmatmul.mubr.f32.gmra.mxu0 %v269
  %v923 = vpop.f32.mrf.mxu0
  %v924 = vadd.f32 %v539, %v923
  %v925 = vpop.f32.mrf.mxu0
  %926 = vmatprep.mubr.f32.mxu0 0.0
  %927 = vmatmul.mubr.f32.gmra.mxu0 %v272
  %v928 = vpop.f32.mrf.mxu0
  %v929 = vadd.f32 %v544, %v928
  %v930 = vpop.f32.mrf.mxu0
  %931 = vmatprep.mubr.f32.mxu0 0.0
  %932 = vmatmul.mubr.f32.gmra.mxu0 %v275
  %v933 = vpop.f32.mrf.mxu0
  %v934 = vadd.f32 %v549, %v933
  %v935 = vpop.f32.mrf.mxu0
  %936 = vmatprep.mubr.f32.mxu0 0.0
  %937 = vmatmul.mubr.f32.gmra.mxu0 %v278
  %v938 = vpop.f32.mrf.mxu0
  %v939 = vadd.f32 %v554, %v938
  %v940 = vpop.f32.mrf.mxu0
  %941 = vmatprep.mubr.f32.mxu0 0.0
  %942 = vmatmul.mubr.f32.gmra.mxu0 %v281
  %v943 = vpop.f32.mrf.mxu0
  %v944 = vadd.f32 %v559, %v943
  %v945 = vpop.f32.mrf.mxu0
  %946 = vmatprep.mubr.f32.mxu0 0.0
  %947 = vmatmul.mubr.f32.gmra.mxu0 %v284
  %v948 = vpop.f32.mrf.mxu0
  %v949 = vadd.f32 %v564, %v948
  %v950 = vpop.f32.mrf.mxu0
  %951 = vmatprep.mubr.f32.mxu0 0.0
  %952 = vmatmul.mubr.f32.gmra.mxu0 %v287
  %v953 = vpop.f32.mrf.mxu0
  %v954 = vadd.f32 %v569, %v953
  %v955 = vpop.f32.mrf.mxu0
  %956 = vmatprep.mubr.f32.mxu0 0.0
  %957 = vmatmul.mubr.f32.gmra.mxu0 %v290
  %v958 = vpop.f32.mrf.mxu0
  %v959 = vadd.f32 %v574, %v958
  %v960 = vpop.f32.mrf.mxu0
  %961 = vmatprep.mubr.f32.mxu0 0.0
  %962 = vmatmul.mubr.f32.gmra.mxu0 %v293
  %v963 = vpop.f32.mrf.mxu0
  %v964 = vadd.f32 %v579, %v963
  %v965 = vpop.f32.mrf.mxu0
  %966 = vmatprep.mubr.f32.mxu0 0.0
  %967 = vmatmul.mubr.f32.gmra.mxu0 %v296
  %v968 = vpop.f32.mrf.mxu0
  %v969 = vadd.f32 %v584, %v968
  %v970 = vpop.f32.mrf.mxu0
  %971 = vmatprep.mubr.f32.mxu0 0.0
  %972 = vmatmul.mubr.f32.gmra.mxu0 %v299
  %v973 = vpop.f32.mrf.mxu0
  %v974 = vadd.f32 %v589, %v973
  %v975 = vpop.f32.mrf.mxu0
  %976 = vmatprep.mubr.f32.mxu0 0.0
  %977 = vmatmul.mubr.f32.gmra.mxu0 %v302
  %v978 = vpop.f32.mrf.mxu0
  %v979 = vadd.f32 %v594, %v978
  %v980 = vpop.f32.mrf.mxu0
  %981 = vmatprep.mubr.f32.mxu0 0.0
  %982 = vmatmul.mubr.f32.gmra.mxu0 %v305
  %v983 = vpop.f32.mrf.mxu0
  %v984 = vadd.f32 %v599, %v983
  %v985 = vpop.f32.mrf.mxu0
  %986 = vmatprep.mubr.f32.mxu0 0.0
  %987 = vmatmul.mubr.f32.gmra.mxu0 %v308
  %v988 = vpop.f32.mrf.mxu0
  %v989 = vadd.f32 %v604, %v988
  %v990 = vpop.f32.mrf.mxu0
  %991 = vmatprep.mubr.f32.mxu0 0.0
  %992 = vmatmul.mubr.f32.gmra.mxu0 %v311
  %v993 = vpop.f32.mrf.mxu0
  %v994 = vadd.f32 %v609, %v993
  %v995 = vpop.f32.mrf.mxu0
  %996 = vmatprep.mubr.f32.mxu0 0.0
  %997 = vmatmul.mubr.f32.gmra.mxu0 %v314
  %v998 = vpop.f32.mrf.mxu0
  %v999 = vadd.f32 %v614, %v998
  %v1000 = vpop.f32.mrf.mxu0
  %1001 = vmatprep.mubr.f32.mxu0 0.0
  %1002 = vmatmul.mubr.f32.gmra.mxu0 %v317
  %v1003 = vpop.f32.mrf.mxu0
  %v1004 = vadd.f32 %v619, %v1003
  %v1005 = vpop.f32.mrf.mxu0
  %1006 = vmatprep.mubr.f32.mxu0 0.0
  %1007 = vmatmul.mubr.f32.gmra.mxu0 %v320
  %v1008 = vpop.f32.mrf.mxu0
  %v1009 = vadd.f32 %v624, %v1008
  %v1010 = vpop.f32.mrf.mxu0
  %1011 = vmatprep.mubr.f32.mxu0 0.0
  %1012 = vmatmul.mubr.f32.gmra.mxu0 %v323
  %v1013 = vpop.f32.mrf.mxu0
  %v1014 = vadd.f32 %v629, %v1013
  %v1015 = vpop.f32.mrf.mxu0
  %1016 = vmatprep.mubr.f32.mxu0 0.0
  %1017 = vmatmul.mubr.f32.gmra.mxu0 %v326
  %v1018 = vpop.f32.mrf.mxu0
  %v1019 = vadd.f32 %v634, %v1018
  %v1020 = vpop.f32.mrf.mxu0
  %1021 = vmatprep.mubr.f32.mxu0 0.0
  %1022 = vmatmul.mubr.f32.gmra.mxu0 %v329
  %v1023 = vpop.f32.mrf.mxu0
  %v1024 = vadd.f32 %v639, %v1023
  %v1025 = vpop.f32.mrf.mxu0
  %1026 = vmatprep.mubr.f32.mxu0 0.0
  %1027 = vmatmul.mubr.f32.gmra.mxu0 %v332
  %v1028 = vpop.f32.mrf.mxu0
  %v1029 = vadd.f32 %v644, %v1028
  %v1030 = vpop.f32.mrf.mxu0
  %1031 = vmatprep.mubr.f32.mxu0 0.0
  %1032 = vmatmul.mubr.f32.gmra.mxu0 %v335
  %v1033 = vpop.f32.mrf.mxu0
  %v1034 = vadd.f32 %v649, %v1033
  %v1035 = vpop.f32.mrf.mxu0
  %1036 = vmatprep.mubr.f32.mxu0 0.0
  %1037 = vmatmul.mubr.f32.gmra.mxu0 %v338
  %v1038 = vpop.f32.mrf.mxu0
  %v1039 = vadd.f32 %v654, %v1038
  %v1040 = vpop.f32.mrf.mxu0
  %1041 = vmatprep.mubr.f32.mxu0 0.0
  %1042 = vmatmul.mubr.f32.gmra.mxu0 %v341
  %v1043 = vpop.f32.mrf.mxu0
  %v1044 = vadd.f32 %v659, %v1043
  %v1045 = vpop.f32.mrf.mxu0
  %1046 = vmatprep.mubr.f32.mxu0 0.0
  %1047 = vmatmul.mubr.f32.gmra.mxu0 %v344
  %v1048 = vpop.f32.mrf.mxu0
  %v1049 = vadd.f32 %v664, %v1048
  %v1050 = vpop.f32.mrf.mxu0
  %1051 = vmatprep.mubr.f32.mxu0 0.0
  %1052 = vmatmul.mubr.f32.gmra.mxu0 %v347
  %v1053 = vpop.f32.mrf.mxu0
  %v1054 = vadd.f32 %v669, %v1053
  %v1055 = vpop.f32.mrf.mxu0
  %1056 = vmatprep.mubr.f32.mxu0 0.0
  %1057 = vmatmul.mubr.f32.gmra.mxu0 %v350
  %v1058 = vpop.f32.mrf.mxu0
  %v1059 = vadd.f32 %v674, %v1058
  %v1060 = vpop.f32.mrf.mxu0
  %1061 = vmatprep.mubr.f32.mxu0 0.0
  %1062 = vmatmul.mubr.f32.gmra.mxu0 %v353
  %v1063 = vpop.f32.mrf.mxu0
  %v1064 = vadd.f32 %v679, %v1063
  %v1065 = vpop.f32.mrf.mxu0
  %1066 = vmatprep.mubr.f32.mxu0 0.0
  %1067 = vmatmul.mubr.f32.gmra.mxu0 %v356
  %v1068 = vpop.f32.mrf.mxu0
  %v1069 = vadd.f32 %v684, %v1068
  %v1070 = vpop.f32.mrf.mxu0
  %1071 = vmatprep.mubr.f32.mxu0 0.0
  %1072 = vmatmul.mubr.f32.gmra.mxu0 %v359
  %v1073 = vpop.f32.mrf.mxu0
  %v1074 = vadd.f32 %v689, %v1073
  %v1075 = vpop.f32.mrf.mxu0
  %1076 = vmatprep.mubr.f32.mxu0 0.0
  %1077 = vmatmul.mubr.f32.gmra.mxu0 %v362
  %v1078 = vpop.f32.mrf.mxu0
  %v1079 = vadd.f32 %v694, %v1078
  %v1080 = vpop.f32.mrf.mxu0
  %1081 = vmatprep.mubr.f32.mxu0 0.0
  %1082 = vmatmul.mubr.f32.gmra.mxu0 %v365
  %v1083 = vpop.f32.mrf.mxu0
  %v1084 = vadd.f32 %v699, %v1083
  %v1085 = vpop.f32.mrf.mxu0
  %1086 = vmatprep.mubr.f32.mxu0 0.0
  %1087 = vmatmul.mubr.f32.gmra.mxu0 %v368
  %v1088 = vpop.f32.mrf.mxu0
  %v1089 = vadd.f32 %v704, %v1088
  %v1090 = vpop.f32.mrf.mxu0
  %1091 = vmatprep.mubr.f32.mxu0 0.0
  %1092 = vmatmul.mubr.f32.gmra.mxu0 %v371
  %v1093 = vpop.f32.mrf.mxu0
  %v1094 = vadd.f32 %v709, %v1093
  %v1095 = vpop.f32.mrf.mxu0
  %1096 = vmatprep.mubr.f32.mxu0 0.0
  %1097 = vmatmul.mubr.f32.gmra.mxu0 %v374
  %v1098 = vpop.f32.mrf.mxu0
  %v1099 = vadd.f32 %v714, %v1098
  %v1100 = vpop.f32.mrf.mxu0
  %1101 = vmatprep.mubr.f32.mxu0 0.0
  %1102 = vmatmul.mubr.f32.gmra.mxu0 %v377
  %v1103 = vpop.f32.mrf.mxu0
  %v1104 = vadd.f32 %v719, %v1103
  %v1105 = vpop.f32.mrf.mxu0
  %1106 = vmatprep.mubr.f32.mxu0 0.0
  %1107 = vmatmul.mubr.f32.gmra.mxu0 %v380
  %v1108 = vpop.f32.mrf.mxu0
  %v1109 = vadd.f32 %v724, %v1108
  %v1110 = vpop.f32.mrf.mxu0
  %1111 = vmatprep.mubr.f32.mxu0 0.0
  %1112 = vmatmul.mubr.f32.gmra.mxu0 %v383
  %v1113 = vpop.f32.mrf.mxu0
  %v1114 = vadd.f32 %v729, %v1113
  %v1115 = vpop.f32.mrf.mxu0
  %1116 = vmatprep.mubr.f32.mxu0 0.0
  %1117 = vmatmul.mubr.f32.gmra.mxu0 %v386
  %v1118 = vpop.f32.mrf.mxu0
  %v1119 = vadd.f32 %v734, %v1118
  %v1120 = vpop.f32.mrf.mxu0
  %1121 = vmatprep.mubr.f32.mxu0 0.0
  %1122 = vmatmul.mubr.f32.gmra.mxu0 %v389
  %v1123 = vpop.f32.mrf.mxu0
  %v1124 = vadd.f32 %v739, %v1123
  %v1125 = vpop.f32.mrf.mxu0
  %1126 = vmatprep.mubr.f32.mxu0 0.0
  %1127 = vmatmul.mubr.f32.gmra.mxu0 %v392
  %v1128 = vpop.f32.mrf.mxu0
  %v1129 = vadd.f32 %v744, %v1128
  %v1130 = vpop.f32.mrf.mxu0
  %1131 = vmatprep.mubr.f32.mxu0 0.0
  %1132 = vmatmul.mubr.f32.gmra.mxu0 %v395
  %v1133 = vpop.f32.mrf.mxu0
  %v1134 = vadd.f32 %v749, %v1133
  %v1135 = vpop.f32.mrf.mxu0
  %1136 = vmatprep.mubr.f32.mxu0 0.0
  %1137 = vmatmul.mubr.f32.gmra.mxu0 %v398
  %v1138 = vpop.f32.mrf.mxu0
  %v1139 = vadd.f32 %v754, %v1138
  %v1140 = vpop.f32.mrf.mxu0
  %1141 = vmatprep.mubr.f32.mxu0 0.0
  %1142 = vmatmul.mubr.f32.gmra.mxu0 %v401
  %v1143 = vpop.f32.mrf.mxu0
  %v1144 = vadd.f32 %v759, %v1143
  %v1145 = vpop.f32.mrf.mxu0
  %1146 = vmatprep.mubr.f32.mxu0 0.0
  %1147 = vmatmul.mubr.f32.gmra.mxu0 %v404
  %v1148 = vpop.f32.mrf.mxu0
  %v1149 = vadd.f32 %v764, %v1148
  %v1150 = vpop.f32.mrf.mxu0
  %1151 = vmatprep.mubr.f32.mxu0 0.0
  %1152 = vmatmul.mubr.f32.gmra.mxu0 %v407
  %v1153 = vpop.f32.mrf.mxu0
  %v1154 = vadd.f32 %v769, %v1153
  %v1155 = vpop.f32.mrf.mxu0
  %1156 = vmatprep.mubr.f32.mxu0 0.0
  %1157 = vmatmul.mubr.f32.gmra.mxu0 %v410
  %v1158 = vpop.f32.mrf.mxu0
  %v1159 = vadd.f32 %v774, %v1158
  %v1160 = vpop.f32.mrf.mxu0
  %1161 = vmatprep.mubr.f32.mxu0 0.0
  %1162 = vmatmul.mubr.f32.gmra.mxu0 %v413
  %v1163 = vpop.f32.mrf.mxu0
  %v1164 = vadd.f32 %v779, %v1163
  %v1165 = vpop.f32.mrf.mxu0
  %1166 = vmatprep.mubr.f32.mxu0 0.0
  %1167 = vmatmul.mubr.f32.gmra.mxu0 %v416
  %v1168 = vpop.f32.mrf.mxu0
  %v1169 = vadd.f32 %v784, %v1168
  %v1170 = vpop.f32.mrf.mxu0
  %1171 = vmatprep.mubr.f32.mxu0 0.0
  %1172 = vmatmul.mubr.f32.gmra.mxu0 %v419
  %v1173 = vpop.f32.mrf.mxu0
  %v1174 = vadd.f32 %v789, %v1173
  %v1175 = vpop.f32.mrf.mxu0
  %1176 = vmatprep.mubr.f32.mxu0 0.0
  %1177 = vmatmul.mubr.f32.gmra.mxu0 %v422
  %v1178 = vpop.f32.mrf.mxu0
  %v1179 = vadd.f32 %v794, %v1178
  %v1180 = vpop.f32.mrf.mxu0
  %1181 = vmatprep.mubr.f32.mxu0 0.0
  %1182 = vmatmul.mubr.f32.gmra.mxu0 %v425
  %v1183 = vpop.f32.mrf.mxu0
  %v1184 = vadd.f32 %v799, %v1183
  %v1185 = vpop.f32.mrf.mxu0
  %1186 = vmatprep.mubr.f32.mxu0 0.0
  %1187 = vmatmul.mubr.f32.gmra.mxu0 %v428
  %v1188 = vpop.f32.mrf.mxu0
  %v1189 = vadd.f32 %v804, %v1188
  %v1190 = vpop.f32.mrf.mxu0
  %1191 = vmatprep.mubr.f32.mxu0 0.0
  %1192 = vmatmul.mubr.f32.gmra.mxu0 %v431
  %v1193 = vpop.f32.mrf.mxu0
  %v1194 = vadd.f32 %v809, %v1193
  %v1195 = vpop.f32.mrf.mxu0
  %1196 = vmatprep.mubr.f32.mxu0 0.0
  %1197 = vmatmul.mubr.f32.gmra.mxu0 %v434
  %v1198 = vpop.f32.mrf.mxu0
  %v1199 = vadd.f32 %v814, %v1198
  %v1200 = vpop.f32.mrf.mxu0
  %1201 = vmatprep.mubr.f32.mxu0 0.0
  %1202 = vmatmul.mubr.f32.gmra.mxu0 %v437
  %v1203 = vpop.f32.mrf.mxu0
  %v1204 = vadd.f32 %v819, %v1203
  %v1205 = vpop.f32.mrf.mxu0
  %1206 = vmatprep.mubr.f32.mxu0 0.0
  %1207 = vmatmul.mubr.f32.gmra.mxu0 %v440
  %v1208 = vpop.f32.mrf.mxu0
  %v1209 = vadd.f32 %v824, %v1208
  %v1210 = vpop.f32.mrf.mxu0
  %1211 = vdwg.mxu0
  %v1212 = vmax.f32 %v894, 0.0
  %v1213 = vmax.f32 %v899, 0.0
  %v1214 = vmax.f32 %v904, 0.0
  %v1215 = vmax.f32 %v909, 0.0
  %v1216 = vmax.f32 %v914, 0.0
  %v1217 = vmax.f32 %v919, 0.0
  %v1218 = vmax.f32 %v924, 0.0
  %v1219 = vmax.f32 %v929, 0.0
  %v1220 = vmax.f32 %v934, 0.0
  %v1221 = vmax.f32 %v939, 0.0
  %v1222 = vmax.f32 %v944, 0.0
  %v1223 = vmax.f32 %v949, 0.0
  %v1224 = vmax.f32 %v954, 0.0
  %v1225 = vmax.f32 %v959, 0.0
  %v1226 = vmax.f32 %v964, 0.0
  %v1227 = vmax.f32 %v969, 0.0
  %v1228 = vmax.f32 %v974, 0.0
  %v1229 = vmax.f32 %v979, 0.0
  %v1230 = vmax.f32 %v984, 0.0
  %v1231 = vmax.f32 %v989, 0.0
  %v1232 = vmax.f32 %v994, 0.0
  %v1233 = vmax.f32 %v999, 0.0
  %v1234 = vmax.f32 %v1004, 0.0
  %v1235 = vmax.f32 %v1009, 0.0
  %v1236 = vmax.f32 %v1014, 0.0
  %v1237 = vmax.f32 %v1019, 0.0
  %v1238 = vmax.f32 %v1024, 0.0
  %v1239 = vmax.f32 %v1029, 0.0
  %v1240 = vmax.f32 %v1034, 0.0
  %v1241 = vmax.f32 %v1039, 0.0
  %v1242 = vmax.f32 %v1044, 0.0
  %v1243 = vmax.f32 %v1049, 0.0
  %v1244 = vmax.f32 %v1054, 0.0
  %v1245 = vmax.f32 %v1059, 0.0
  %v1246 = vmax.f32 %v1064, 0.0
  %v1247 = vmax.f32 %v1069, 0.0
  %v1248 = vmax.f32 %v1074, 0.0
  %v1249 = vmax.f32 %v1079, 0.0
  %v1250 = vmax.f32 %v1084, 0.0
  %v1251 = vmax.f32 %v1089, 0.0
  %v1252 = vmax.f32 %v1094, 0.0
  %v1253 = vmax.f32 %v1099, 0.0
  %v1254 = vmax.f32 %v1104, 0.0
  %v1255 = vmax.f32 %v1109, 0.0
  %v1256 = vmax.f32 %v1114, 0.0
  %v1257 = vmax.f32 %v1119, 0.0
  %v1258 = vmax.f32 %v1124, 0.0
  %v1259 = vmax.f32 %v1129, 0.0
  %v1260 = vmax.f32 %v1134, 0.0
  %v1261 = vmax.f32 %v1139, 0.0
  %v1262 = vmax.f32 %v1144, 0.0
  %v1263 = vmax.f32 %v1149, 0.0
  %v1264 = vmax.f32 %v1154, 0.0
  %v1265 = vmax.f32 %v1159, 0.0
  %v1266 = vmax.f32 %v1164, 0.0
  %v1267 = vmax.f32 %v1169, 0.0
  %v1268 = vmax.f32 %v1174, 0.0
  %v1269 = vmax.f32 %v1179, 0.0
  %v1270 = vmax.f32 %v1184, 0.0
  %v1271 = vmax.f32 %v1189, 0.0
  %v1272 = vmax.f32 %v1194, 0.0
  %v1273 = vmax.f32 %v1199, 0.0
  %v1274 = vmax.f32 %v1204, 0.0
  %v1275 = vmax.f32 %v1209, 0.0
  %vm1276 = vcmask 523264
  %1277 = vst.msk [vmem:[%s3] sm:$0xff] %vm1276, %v1212
  %1278 = vst.msk [vmem:[%s3 + $0x8] sm:$0xff] %vm1276, %v1213
  %1279 = vst.msk [vmem:[%s3 + $0x10] sm:$0xff] %vm1276, %v1214
  %1280 = vst.msk [vmem:[%s3 + $0x18] sm:$0xff] %vm1276, %v1215
  %1281 = vst.msk [vmem:[%s3 + $0x20] sm:$0xff] %vm1276, %v1216
  %1282 = vst.msk [vmem:[%s3 + $0x28] sm:$0xff] %vm1276, %v1217
  %1283 = vst.msk [vmem:[%s3 + $0x30] sm:$0xff] %vm1276, %v1218
  %1284 = vst.msk [vmem:[%s3 + $0x38] sm:$0xff] %vm1276, %v1219
  %1285 = vst.msk [vmem:[%s3 + $0x40] sm:$0xff] %vm1276, %v1220
  %1286 = vst.msk [vmem:[%s3 + $0x48] sm:$0xff] %vm1276, %v1221
  %1287 = vst.msk [vmem:[%s3 + $0x50] sm:$0xff] %vm1276, %v1222
  %1288 = vst.msk [vmem:[%s3 + $0x58] sm:$0xff] %vm1276, %v1223
  %1289 = vst.msk [vmem:[%s3 + $0x60] sm:$0xff] %vm1276, %v1224
  %1290 = vst.msk [vmem:[%s3 + $0x68] sm:$0xff] %vm1276, %v1225
  %1291 = vst.msk [vmem:[%s3 + $0x70] sm:$0xff] %vm1276, %v1226
  %1292 = vst.msk [vmem:[%s3 + $0x78] sm:$0xff] %vm1276, %v1227
  %1293 = vst.msk [vmem:[%s3 + $0x80] sm:$0xff] %vm1276, %v1228
  %1294 = vst.msk [vmem:[%s3 + $0x88] sm:$0xff] %vm1276, %v1229
  %1295 = vst.msk [vmem:[%s3 + $0x90] sm:$0xff] %vm1276, %v1230
  %1296 = vst.msk [vmem:[%s3 + $0x98] sm:$0xff] %vm1276, %v1231
  %1297 = vst.msk [vmem:[%s3 + $0xa0] sm:$0xff] %vm1276, %v1232
  %1298 = vst.msk [vmem:[%s3 + $0xa8] sm:$0xff] %vm1276, %v1233
  %1299 = vst.msk [vmem:[%s3 + $0xb0] sm:$0xff] %vm1276, %v1234
  %1300 = vst.msk [vmem:[%s3 + $0xb8] sm:$0xff] %vm1276, %v1235
  %1301 = vst.msk [vmem:[%s3 + $0xc0] sm:$0xff] %vm1276, %v1236
  %1302 = vst.msk [vmem:[%s3 + $0xc8] sm:$0xff] %vm1276, %v1237
  %1303 = vst.msk [vmem:[%s3 + $0xd0] sm:$0xff] %vm1276, %v1238
  %1304 = vst.msk [vmem:[%s3 + $0xd8] sm:$0xff] %vm1276, %v1239
  %1305 = vst.msk [vmem:[%s3 + $0xe0] sm:$0xff] %vm1276, %v1240
  %1306 = vst.msk [vmem:[%s3 + $0xe8] sm:$0xff] %vm1276, %v1241
  %1307 = vst.msk [vmem:[%s3 + $0xf0] sm:$0xff] %vm1276, %v1242
  %1308 = vst.msk [vmem:[%s3 + $0xf8] sm:$0xff] %vm1276, %v1243
  %1309 = vst.msk [vmem:[%s3 + $0x100] sm:$0xff] %vm1276, %v1244
  %1310 = vst.msk [vmem:[%s3 + $0x108] sm:$0xff] %vm1276, %v1245
  %1311 = vst.msk [vmem:[%s3 + $0x110] sm:$0xff] %vm1276, %v1246
  %1312 = vst.msk [vmem:[%s3 + $0x118] sm:$0xff] %vm1276, %v1247
  %1313 = vst.msk [vmem:[%s3 + $0x120] sm:$0xff] %vm1276, %v1248
  %1314 = vst.msk [vmem:[%s3 + $0x128] sm:$0xff] %vm1276, %v1249
  %1315 = vst.msk [vmem:[%s3 + $0x130] sm:$0xff] %vm1276, %v1250
  %1316 = vst.msk [vmem:[%s3 + $0x138] sm:$0xff] %vm1276, %v1251
  %1317 = vst.msk [vmem:[%s3 + $0x140] sm:$0xff] %vm1276, %v1252
  %1318 = vst.msk [vmem:[%s3 + $0x148] sm:$0xff] %vm1276, %v1253
  %1319 = vst.msk [vmem:[%s3 + $0x150] sm:$0xff] %vm1276, %v1254
  %1320 = vst.msk [vmem:[%s3 + $0x158] sm:$0xff] %vm1276, %v1255
  %1321 = vst.msk [vmem:[%s3 + $0x160] sm:$0xff] %vm1276, %v1256
  %1322 = vst.msk [vmem:[%s3 + $0x168] sm:$0xff] %vm1276, %v1257
  %1323 = vst.msk [vmem:[%s3 + $0x170] sm:$0xff] %vm1276, %v1258
  %1324 = vst.msk [vmem:[%s3 + $0x178] sm:$0xff] %vm1276, %v1259
  %1325 = vst.msk [vmem:[%s3 + $0x180] sm:$0xff] %vm1276, %v1260
  %1326 = vst.msk [vmem:[%s3 + $0x188] sm:$0xff] %vm1276, %v1261
  %1327 = vst.msk [vmem:[%s3 + $0x190] sm:$0xff] %vm1276, %v1262
  %1328 = vst.msk [vmem:[%s3 + $0x198] sm:$0xff] %vm1276, %v1263
  %1329 = vst.msk [vmem:[%s3 + $0x1a0] sm:$0xff] %vm1276, %v1264
  %1330 = vst.msk [vmem:[%s3 + $0x1a8] sm:$0xff] %vm1276, %v1265
  %1331 = vst.msk [vmem:[%s3 + $0x1b0] sm:$0xff] %vm1276, %v1266
  %1332 = vst.msk [vmem:[%s3 + $0x1b8] sm:$0xff] %vm1276, %v1267
  %1333 = vst.msk [vmem:[%s3 + $0x1c0] sm:$0xff] %vm1276, %v1268
  %1334 = vst.msk [vmem:[%s3 + $0x1c8] sm:$0xff] %vm1276, %v1269
  %1335 = vst.msk [vmem:[%s3 + $0x1d0] sm:$0xff] %vm1276, %v1270
  %1336 = vst.msk [vmem:[%s3 + $0x1d8] sm:$0xff] %vm1276, %v1271
  %1337 = vst.msk [vmem:[%s3 + $0x1e0] sm:$0xff] %vm1276, %v1272
  %1338 = vst.msk [vmem:[%s3 + $0x1e8] sm:$0xff] %vm1276, %v1273
  %1339 = vst.msk [vmem:[%s3 + $0x1f0] sm:$0xff] %vm1276, %v1274
  %1340 = vst.msk [vmem:[%s3 + $0x1f8] sm:$0xff] %vm1276, %v1275
  // Predicated region
  $region14: #{detection_model_forward.5} parent=0 // pred_check
    _
  $region15: #{detection_model_forward.5} parent=0 // pred_check_branch
    %1342 = sbr.rel (0) target = $region17
  $region16: #{detection_model_forward.5} parent=0 // pred_region
    _
  $region17: #{detection_model_forward.5} parent=0 // pred_fallthru
    _
  // Predicated region
  $region18: #{detection_model_forward.5} parent=0 // pred_check
    _
  $region19: #{detection_model_forward.5} parent=0 // pred_check_branch
    %1344 = sbr.rel (0) target = $region21
  $region20: #{detection_model_forward.5} parent=0 // pred_region
    _
  $region21: #{detection_model_forward.5} parent=0 // pred_fallthru
    _

// kernel: detection_model_forward.6
$region0: #{detection_model_forward.6}
  #allocation0 [shape = 'u32[]', space=smem, size = 0x4, offset = 0x4, fixed_abs, tag = 'smem constant byte address 0x4 - core index']
  #allocation1 [shape = 'u32[144,128]{1,0:T(1,128)}', space=vmem, size = 0x12000, scoped, tag = 'internal scratch']
  %s0 = inlined_call_operand.vmem [shape: f32[128,576], index: 0, kind: input, shape index: {}]
  %s1 = inlined_call_operand.vmem [shape: f32[576,128], index: 1, kind: input, shape index: {}]
  %s2 = inlined_call_operand.vmem [shape: f32[1,128], index: 2, kind: input, shape index: {}]
  %s3 = inlined_call_operand.vmem [shape: bf16[128,128], index: 3, kind: output, shape index: {}]
  %s4 = sld [smem:[#allocation0]]
  $region22: #{detection_model_forward.6} parent=0
    _
  %s6 = ssub.s32 1, %s4
  %s7 = scalar_select 0, %s6, %s4
  // Predicated region
  $region2: #{detection_model_forward.6} parent=0 // pred_check
    _
  $region3: #{detection_model_forward.6} parent=0 // pred_check_branch
    %9 = sbr.rel (0) target = $region5
  $region4: #{detection_model_forward.6} parent=0 // pred_region
    _
  $region5: #{detection_model_forward.6} parent=0 // pred_fallthru
    _
  // Predicated region
  $region6: #{detection_model_forward.6} parent=0 // pred_check
    _
  $region7: #{detection_model_forward.6} parent=0 // pred_check_branch
    %11 = sbr.rel (0) target = $region9
  $region8: #{detection_model_forward.6} parent=0 // pred_region
    _
  $region9: #{detection_model_forward.6} parent=0 // pred_fallthru
    _
  // Predicated region
  $region10: #{detection_model_forward.6} parent=0 // pred_check
    _
  $region11: #{detection_model_forward.6} parent=0 // pred_check_branch
    %13 = sbr.rel (0) target = $region13
  $region12: #{detection_model_forward.6} parent=0 // pred_region
    _
  $region13: #{detection_model_forward.6} parent=0 // pred_fallthru
    _
  %v14 = vld [vmem:[%s0] sm:$0xff]
  %v15 = vld [vmem:[%s0 + $0x8] sm:$0xff]
  %v16 = vld [vmem:[%s0 + $0x10] sm:$0xff]
  %v17 = vld [vmem:[%s0 + $0x18] sm:$0xff]
  %v18 = vld [vmem:[%s0 + $0x20] sm:$0xff]
  %v19 = vld [vmem:[%s0 + $0x28] sm:$0xff]
  %v20 = vld [vmem:[%s0 + $0x30] sm:$0xff]
  %v21 = vld [vmem:[%s0 + $0x38] sm:$0xff]
  %v22 = vld [vmem:[%s0 + $0x40] sm:$0xff]
  %v23 = vld [vmem:[%s0 + $0x48] sm:$0xff]
  %v24 = vld [vmem:[%s0 + $0x50] sm:$0xff]
  %v25 = vld [vmem:[%s0 + $0x58] sm:$0xff]
  %v26 = vld [vmem:[%s0 + $0x60] sm:$0xff]
  %v27 = vld [vmem:[%s0 + $0x68] sm:$0xff]
  %v28 = vld [vmem:[%s0 + $0x70] sm:$0xff]
  %v29 = vld [vmem:[%s0 + $0x78] sm:$0xff]
  %v30 = vld [vmem:[%s0 + $0x80] sm:$0xff]
  %v31 = vld [vmem:[%s0 + $0x88] sm:$0xff]
  %v32 = vld [vmem:[%s0 + $0x90] sm:$0xff]
  %v33 = vld [vmem:[%s0 + $0x98] sm:$0xff]
  %v34 = vld [vmem:[%s0 + $0xa0] sm:$0xff]
  %v35 = vld [vmem:[%s0 + $0xa8] sm:$0xff]
  %v36 = vld [vmem:[%s0 + $0xb0] sm:$0xff]
  %v37 = vld [vmem:[%s0 + $0xb8] sm:$0xff]
  %v38 = vld [vmem:[%s0 + $0xc0] sm:$0xff]
  %v39 = vld [vmem:[%s0 + $0xc8] sm:$0xff]
  %v40 = vld [vmem:[%s0 + $0xd0] sm:$0xff]
  %v41 = vld [vmem:[%s0 + $0xd8] sm:$0xff]
  %v42 = vld [vmem:[%s0 + $0xe0] sm:$0xff]
  %v43 = vld [vmem:[%s0 + $0xe8] sm:$0xff]
  %v44 = vld [vmem:[%s0 + $0xf0] sm:$0xff]
  %v45 = vld [vmem:[%s0 + $0xf8] sm:$0xff]
  %v46 = vld [vmem:[%s0 + $0x100] sm:$0xff]
  %v47 = vld [vmem:[%s0 + $0x108] sm:$0xff]
  %v48 = vld [vmem:[%s0 + $0x110] sm:$0xff]
  %v49 = vld [vmem:[%s0 + $0x118] sm:$0xff]
  %v50 = vld [vmem:[%s0 + $0x120] sm:$0xff]
  %v51 = vld [vmem:[%s0 + $0x128] sm:$0xff]
  %v52 = vld [vmem:[%s0 + $0x130] sm:$0xff]
  %v53 = vld [vmem:[%s0 + $0x138] sm:$0xff]
  %v54 = vld [vmem:[%s0 + $0x140] sm:$0xff]
  %v55 = vld [vmem:[%s0 + $0x148] sm:$0xff]
  %v56 = vld [vmem:[%s0 + $0x150] sm:$0xff]
  %v57 = vld [vmem:[%s0 + $0x158] sm:$0xff]
  %v58 = vld [vmem:[%s0 + $0x160] sm:$0xff]
  %v59 = vld [vmem:[%s0 + $0x168] sm:$0xff]
  %v60 = vld [vmem:[%s0 + $0x170] sm:$0xff]
  %v61 = vld [vmem:[%s0 + $0x178] sm:$0xff]
  %v62 = vld [vmem:[%s0 + $0x180] sm:$0xff]
  %v63 = vld [vmem:[%s0 + $0x188] sm:$0xff]
  %v64 = vld [vmem:[%s0 + $0x190] sm:$0xff]
  %v65 = vld [vmem:[%s0 + $0x198] sm:$0xff]
  %v66 = vld [vmem:[%s0 + $0x1a0] sm:$0xff]
  %v67 = vld [vmem:[%s0 + $0x1a8] sm:$0xff]
  %v68 = vld [vmem:[%s0 + $0x1b0] sm:$0xff]
  %v69 = vld [vmem:[%s0 + $0x1b8] sm:$0xff]
  %v70 = vld [vmem:[%s0 + $0x1c0] sm:$0xff]
  %v71 = vld [vmem:[%s0 + $0x1c8] sm:$0xff]
  %v72 = vld [vmem:[%s0 + $0x1d0] sm:$0xff]
  %v73 = vld [vmem:[%s0 + $0x1d8] sm:$0xff]
  %v74 = vld [vmem:[%s0 + $0x1e0] sm:$0xff]
  %v75 = vld [vmem:[%s0 + $0x1e8] sm:$0xff]
  %v76 = vld [vmem:[%s0 + $0x1f0] sm:$0xff]
  %v77 = vld [vmem:[%s0 + $0x1f8] sm:$0xff]
  %v78 = vld [vmem:[%s0 + $0x200] sm:$0xff]
  %v79 = vld [vmem:[%s0 + $0x208] sm:$0xff]
  %v80 = vld [vmem:[%s0 + $0x210] sm:$0xff]
  %v81 = vld [vmem:[%s0 + $0x218] sm:$0xff]
  %v82 = vld [vmem:[%s0 + $0x220] sm:$0xff]
  %v83 = vld [vmem:[%s0 + $0x228] sm:$0xff]
  %v84 = vld [vmem:[%s0 + $0x230] sm:$0xff]
  %v85 = vld [vmem:[%s0 + $0x238] sm:$0xff]
  %v86 = vld [vmem:[%s0 + $0x240] sm:$0xff]
  %v87 = vld [vmem:[%s0 + $0x248] sm:$0xff]
  %v88 = vld [vmem:[%s0 + $0x250] sm:$0xff]
  %v89 = vld [vmem:[%s0 + $0x258] sm:$0xff]
  %v90 = vld [vmem:[%s0 + $0x260] sm:$0xff]
  %v91 = vld [vmem:[%s0 + $0x268] sm:$0xff]
  %v92 = vld [vmem:[%s0 + $0x270] sm:$0xff]
  %v93 = vld [vmem:[%s0 + $0x278] sm:$0xff]
  %v94 = vld [vmem:[%s1] sm:$0xff]
  %v95 = vld [vmem:[%s1 + $0x8] sm:$0xff]
  %v96 = vld [vmem:[%s1 + $0x10] sm:$0xff]
  %v97 = vld [vmem:[%s1 + $0x18] sm:$0xff]
  %v98 = vld [vmem:[%s1 + $0x20] sm:$0xff]
  %v99 = vld [vmem:[%s1 + $0x28] sm:$0xff]
  %v100 = vld [vmem:[%s1 + $0x30] sm:$0xff]
  %v101 = vld [vmem:[%s1 + $0x38] sm:$0xff]
  %v102 = vld [vmem:[%s1 + $0x40] sm:$0xff]
  %v103 = vld [vmem:[%s1 + $0x48] sm:$0xff]
  %v104 = vld [vmem:[%s1 + $0x50] sm:$0xff]
  %v105 = vld [vmem:[%s1 + $0x58] sm:$0xff]
  %v106 = vld [vmem:[%s1 + $0x60] sm:$0xff]
  %v107 = vld [vmem:[%s1 + $0x68] sm:$0xff]
  %v108 = vld [vmem:[%s1 + $0x70] sm:$0xff]
  %v109 = vld [vmem:[%s1 + $0x78] sm:$0xff]
  %v110 = vld [vmem:[%s1 + $0x80] sm:$0xff]
  %v111 = vld [vmem:[%s1 + $0x88] sm:$0xff]
  %v112 = vld [vmem:[%s1 + $0x90] sm:$0xff]
  %v113 = vld [vmem:[%s1 + $0x98] sm:$0xff]
  %v114 = vld [vmem:[%s1 + $0xa0] sm:$0xff]
  %v115 = vld [vmem:[%s1 + $0xa8] sm:$0xff]
  %v116 = vld [vmem:[%s1 + $0xb0] sm:$0xff]
  %v117 = vld [vmem:[%s1 + $0xb8] sm:$0xff]
  %v118 = vld [vmem:[%s1 + $0xc0] sm:$0xff]
  %v119 = vld [vmem:[%s1 + $0xc8] sm:$0xff]
  %v120 = vld [vmem:[%s1 + $0xd0] sm:$0xff]
  %v121 = vld [vmem:[%s1 + $0xd8] sm:$0xff]
  %v122 = vld [vmem:[%s1 + $0xe0] sm:$0xff]
  %v123 = vld [vmem:[%s1 + $0xe8] sm:$0xff]
  %v124 = vld [vmem:[%s1 + $0xf0] sm:$0xff]
  %v125 = vld [vmem:[%s1 + $0xf8] sm:$0xff]
  %v126 = vld [vmem:[%s1 + $0x100] sm:$0xff]
  %v127 = vld [vmem:[%s1 + $0x108] sm:$0xff]
  %v128 = vld [vmem:[%s1 + $0x110] sm:$0xff]
  %v129 = vld [vmem:[%s1 + $0x118] sm:$0xff]
  %v130 = vld [vmem:[%s1 + $0x120] sm:$0xff]
  %v131 = vld [vmem:[%s1 + $0x128] sm:$0xff]
  %v132 = vld [vmem:[%s1 + $0x130] sm:$0xff]
  %v133 = vld [vmem:[%s1 + $0x138] sm:$0xff]
  %v134 = vld [vmem:[%s1 + $0x140] sm:$0xff]
  %v135 = vld [vmem:[%s1 + $0x148] sm:$0xff]
  %v136 = vld [vmem:[%s1 + $0x150] sm:$0xff]
  %v137 = vld [vmem:[%s1 + $0x158] sm:$0xff]
  %v138 = vld [vmem:[%s1 + $0x160] sm:$0xff]
  %v139 = vld [vmem:[%s1 + $0x168] sm:$0xff]
  %v140 = vld [vmem:[%s1 + $0x170] sm:$0xff]
  %v141 = vld [vmem:[%s1 + $0x178] sm:$0xff]
  %v142 = vld [vmem:[%s1 + $0x180] sm:$0xff]
  %v143 = vld [vmem:[%s1 + $0x188] sm:$0xff]
  %v144 = vld [vmem:[%s1 + $0x190] sm:$0xff]
  %v145 = vld [vmem:[%s1 + $0x198] sm:$0xff]
  %v146 = vld [vmem:[%s1 + $0x1a0] sm:$0xff]
  %v147 = vld [vmem:[%s1 + $0x1a8] sm:$0xff]
  %v148 = vld [vmem:[%s1 + $0x1b0] sm:$0xff]
  %v149 = vld [vmem:[%s1 + $0x1b8] sm:$0xff]
  %v150 = vld [vmem:[%s1 + $0x1c0] sm:$0xff]
  %v151 = vld [vmem:[%s1 + $0x1c8] sm:$0xff]
  %v152 = vld [vmem:[%s1 + $0x1d0] sm:$0xff]
  %v153 = vld [vmem:[%s1 + $0x1d8] sm:$0xff]
  %v154 = vld [vmem:[%s1 + $0x1e0] sm:$0xff]
  %v155 = vld [vmem:[%s1 + $0x1e8] sm:$0xff]
  %v156 = vld [vmem:[%s1 + $0x1f0] sm:$0xff]
  %v157 = vld [vmem:[%s1 + $0x1f8] sm:$0xff]
  %v158 = vld [vmem:[%s1 + $0x200] sm:$0xff]
  %v159 = vld [vmem:[%s1 + $0x208] sm:$0xff]
  %v160 = vld [vmem:[%s1 + $0x210] sm:$0xff]
  %v161 = vld [vmem:[%s1 + $0x218] sm:$0xff]
  %v162 = vld [vmem:[%s1 + $0x220] sm:$0xff]
  %v163 = vld [vmem:[%s1 + $0x228] sm:$0xff]
  %v164 = vld [vmem:[%s1 + $0x230] sm:$0xff]
  %v165 = vld [vmem:[%s1 + $0x238] sm:$0xff]
  %v166 = vld [vmem:[%s2] sm:$0x1]
  %v168 = vlaneseq
  %v169 = vshrl.u32 %v168, 7
  %v170 = vsub.s32 0, %v169
  %v171 = vrot.slane %v166, %v170
  %vm173 = vcmask 523264
  %v175 = vsel %vm173, %v18, 0
  %v178 = vsel %vm173, %v23, 0
  %v181 = vsel %vm173, %v28, 0
  %v184 = vsel %vm173, %v33, 0
  %v187 = vsel %vm173, %v38, 0
  %v190 = vsel %vm173, %v43, 0
  %v193 = vsel %vm173, %v48, 0
  %v196 = vsel %vm173, %v53, 0
  %v199 = vsel %vm173, %v58, 0
  %v202 = vsel %vm173, %v63, 0
  %v205 = vsel %vm173, %v68, 0
  %v208 = vsel %vm173, %v73, 0
  %v211 = vsel %vm173, %v78, 0
  %v214 = vsel %vm173, %v83, 0
  %v217 = vsel %vm173, %v88, 0
  %v220 = vsel %vm173, %v93, 0
  %222 = vmatprep.subr.mxu0 0.0
  %223 = vmatpush1.msra.mxu0 %v109
  %224 = vmatprep.subr.mxu0 0.0
  %225 = vmatpush1.msra.mxu0 %v108
  %226 = vmatprep.subr.mxu0 0.0
  %227 = vmatpush1.msra.mxu0 %v107
  %228 = vmatprep.subr.mxu0 0.0
  %229 = vmatpush1.msra.mxu0 %v106
  %230 = vmatprep.subr.mxu0 0.0
  %231 = vmatpush1.msra.mxu0 %v105
  %232 = vmatprep.subr.mxu0 0.0
  %233 = vmatpush1.msra.mxu0 %v104
  %234 = vmatprep.subr.mxu0 0.0
  %235 = vmatpush1.msra.mxu0 %v103
  %236 = vmatprep.subr.mxu0 0.0
  %237 = vmatpush1.msra.mxu0 %v102
  %238 = vmatprep.subr.mxu0 0.0
  %239 = vmatpush1.msra.mxu0 %v101
  %240 = vmatprep.subr.mxu0 0.0
  %241 = vmatpush1.msra.mxu0 %v100
  %242 = vmatprep.subr.mxu0 0.0
  %243 = vmatpush1.msra.mxu0 %v99
  %244 = vmatprep.subr.mxu0 0.0
  %245 = vmatpush1.msra.mxu0 %v98
  %246 = vmatprep.subr.mxu0 0.0
  %247 = vmatpush1.msra.mxu0 %v97
  %248 = vmatprep.subr.mxu0 0.0
  %249 = vmatpush1.msra.mxu0 %v96
  %250 = vmatprep.subr.mxu0 0.0
  %251 = vmatpush1.msra.mxu0 %v95
  %252 = vmatprep.subr.mxu0 0.0
  %253 = vmatpush1.msra.mxu0 %v94
  %254 = vmatprep.subr.mxu0 0.0
  %255 = vmatpush2.msra.mxu0 %v125
  %256 = vmatprep.subr.mxu0 0.0
  %257 = vmatpush2.msra.mxu0 %v124
  %258 = vmatprep.subr.mxu0 0.0
  %259 = vmatpush2.msra.mxu0 %v123
  %260 = vmatprep.subr.mxu0 0.0
  %261 = vmatpush2.msra.mxu0 %v122
  %262 = vmatprep.subr.mxu0 0.0
  %263 = vmatpush2.msra.mxu0 %v121
  %264 = vmatprep.subr.mxu0 0.0
  %265 = vmatpush2.msra.mxu0 %v120
  %266 = vmatprep.subr.mxu0 0.0
  %267 = vmatpush2.msra.mxu0 %v119
  %268 = vmatprep.subr.mxu0 0.0
  %269 = vmatpush2.msra.mxu0 %v118
  %270 = vmatprep.subr.mxu0 0.0
  %271 = vmatpush2.msra.mxu0 %v117
  %272 = vmatprep.subr.mxu0 0.0
  %273 = vmatpush2.msra.mxu0 %v116
  %274 = vmatprep.subr.mxu0 0.0
  %275 = vmatpush2.msra.mxu0 %v115
  %276 = vmatprep.subr.mxu0 0.0
  %277 = vmatpush2.msra.mxu0 %v114
  %278 = vmatprep.subr.mxu0 0.0
  %279 = vmatpush2.msra.mxu0 %v113
  %280 = vmatprep.subr.mxu0 0.0
  %281 = vmatpush2.msra.mxu0 %v112
  %282 = vmatprep.subr.mxu0 0.0
  %283 = vmatpush2.msra.mxu0 %v111
  %284 = vmatprep.subr.mxu0 0.0
  %285 = vmatpush2.msra.mxu0 %v110
  %286 = vmatprep.mubr.f32.mxu0 %v15
  %287 = vmatmul.mubr.f32.gmra.mxu0 %v14
  %v288 = vpop.f32.mrf.mxu0
  %v289 = vadd.f32 %v171, %v288
  %v290 = vpop.f32.mrf.mxu0
  %291 = vmatprep.mubr.f32.mxu0 %v20
  %292 = vmatmul.mubr.f32.gmra.mxu0 %v19
  %v293 = vpop.f32.mrf.mxu0
  %v294 = vadd.f32 %v171, %v293
  %v295 = vpop.f32.mrf.mxu0
  %296 = vmatprep.mubr.f32.mxu0 %v25
  %297 = vmatmul.mubr.f32.gmra.mxu0 %v24
  %v298 = vpop.f32.mrf.mxu0
  %v299 = vadd.f32 %v171, %v298
  %v300 = vpop.f32.mrf.mxu0
  %301 = vmatprep.mubr.f32.mxu0 %v30
  %302 = vmatmul.mubr.f32.gmra.mxu0 %v29
  %v303 = vpop.f32.mrf.mxu0
  %v304 = vadd.f32 %v171, %v303
  %v305 = vpop.f32.mrf.mxu0
  %306 = vmatprep.mubr.f32.mxu0 %v35
  %307 = vmatmul.mubr.f32.gmra.mxu0 %v34
  %v308 = vpop.f32.mrf.mxu0
  %v309 = vadd.f32 %v171, %v308
  %v310 = vpop.f32.mrf.mxu0
  %311 = vmatprep.mubr.f32.mxu0 %v40
  %312 = vmatmul.mubr.f32.gmra.mxu0 %v39
  %v313 = vpop.f32.mrf.mxu0
  %v314 = vadd.f32 %v171, %v313
  %v315 = vpop.f32.mrf.mxu0
  %316 = vmatprep.mubr.f32.mxu0 %v45
  %317 = vmatmul.mubr.f32.gmra.mxu0 %v44
  %v318 = vpop.f32.mrf.mxu0
  %v319 = vadd.f32 %v171, %v318
  %v320 = vpop.f32.mrf.mxu0
  %321 = vmatprep.mubr.f32.mxu0 %v50
  %322 = vmatmul.mubr.f32.gmra.mxu0 %v49
  %v323 = vpop.f32.mrf.mxu0
  %v324 = vadd.f32 %v171, %v323
  %v325 = vpop.f32.mrf.mxu0
  %326 = vmatprep.mubr.f32.mxu0 %v55
  %327 = vmatmul.mubr.f32.gmra.mxu0 %v54
  %v328 = vpop.f32.mrf.mxu0
  %v329 = vadd.f32 %v171, %v328
  %v330 = vpop.f32.mrf.mxu0
  %331 = vmatprep.mubr.f32.mxu0 %v60
  %332 = vmatmul.mubr.f32.gmra.mxu0 %v59
  %v333 = vpop.f32.mrf.mxu0
  %v334 = vadd.f32 %v171, %v333
  %v335 = vpop.f32.mrf.mxu0
  %336 = vmatprep.mubr.f32.mxu0 %v65
  %337 = vmatmul.mubr.f32.gmra.mxu0 %v64
  %v338 = vpop.f32.mrf.mxu0
  %v339 = vadd.f32 %v171, %v338
  %v340 = vpop.f32.mrf.mxu0
  %341 = vmatprep.mubr.f32.mxu0 %v70
  %342 = vmatmul.mubr.f32.gmra.mxu0 %v69
  %v343 = vpop.f32.mrf.mxu0
  %v344 = vadd.f32 %v171, %v343
  %v345 = vpop.f32.mrf.mxu0
  %346 = vmatprep.mubr.f32.mxu0 %v75
  %347 = vmatmul.mubr.f32.gmra.mxu0 %v74
  %v348 = vpop.f32.mrf.mxu0
  %v349 = vadd.f32 %v171, %v348
  %v350 = vpop.f32.mrf.mxu0
  %351 = vmatprep.mubr.f32.mxu0 %v80
  %352 = vmatmul.mubr.f32.gmra.mxu0 %v79
  %v353 = vpop.f32.mrf.mxu0
  %v354 = vadd.f32 %v171, %v353
  %v355 = vpop.f32.mrf.mxu0
  %356 = vmatprep.mubr.f32.mxu0 %v85
  %357 = vmatmul.mubr.f32.gmra.mxu0 %v84
  %v358 = vpop.f32.mrf.mxu0
  %v359 = vadd.f32 %v171, %v358
  %v360 = vpop.f32.mrf.mxu0
  %361 = vmatprep.mubr.f32.mxu0 %v90
  %362 = vmatmul.mubr.f32.gmra.mxu0 %v89
  %v363 = vpop.f32.mrf.mxu0
  %v364 = vadd.f32 %v171, %v363
  %v365 = vpop.f32.mrf.mxu0
  %366 = vdwg.mxu0
  %367 = vmatprep.subr.mxu0 0.0
  %368 = vmatpush1.msra.mxu0 %v141
  %369 = vmatprep.subr.mxu0 0.0
  %370 = vmatpush1.msra.mxu0 %v140
  %371 = vmatprep.subr.mxu0 0.0
  %372 = vmatpush1.msra.mxu0 %v139
  %373 = vmatprep.subr.mxu0 0.0
  %374 = vmatpush1.msra.mxu0 %v138
  %375 = vmatprep.subr.mxu0 0.0
  %376 = vmatpush1.msra.mxu0 %v137
  %377 = vmatprep.subr.mxu0 0.0
  %378 = vmatpush1.msra.mxu0 %v136
  %379 = vmatprep.subr.mxu0 0.0
  %380 = vmatpush1.msra.mxu0 %v135
  %381 = vmatprep.subr.mxu0 0.0
  %382 = vmatpush1.msra.mxu0 %v134
  %383 = vmatprep.subr.mxu0 0.0
  %384 = vmatpush1.msra.mxu0 %v133
  %385 = vmatprep.subr.mxu0 0.0
  %386 = vmatpush1.msra.mxu0 %v132
  %387 = vmatprep.subr.mxu0 0.0
  %388 = vmatpush1.msra.mxu0 %v131
  %389 = vmatprep.subr.mxu0 0.0
  %390 = vmatpush1.msra.mxu0 %v130
  %391 = vmatprep.subr.mxu0 0.0
  %392 = vmatpush1.msra.mxu0 %v129
  %393 = vmatprep.subr.mxu0 0.0
  %394 = vmatpush1.msra.mxu0 %v128
  %395 = vmatprep.subr.mxu0 0.0
  %396 = vmatpush1.msra.mxu0 %v127
  %397 = vmatprep.subr.mxu0 0.0
  %398 = vmatpush1.msra.mxu0 %v126
  %399 = vmatprep.subr.mxu0 0.0
  %400 = vmatpush2.msra.mxu0 %v157
  %401 = vmatprep.subr.mxu0 0.0
  %402 = vmatpush2.msra.mxu0 %v156
  %403 = vmatprep.subr.mxu0 0.0
  %404 = vmatpush2.msra.mxu0 %v155
  %405 = vmatprep.subr.mxu0 0.0
  %406 = vmatpush2.msra.mxu0 %v154
  %407 = vmatprep.subr.mxu0 0.0
  %408 = vmatpush2.msra.mxu0 %v153
  %409 = vmatprep.subr.mxu0 0.0
  %410 = vmatpush2.msra.mxu0 %v152
  %411 = vmatprep.subr.mxu0 0.0
  %412 = vmatpush2.msra.mxu0 %v151
  %413 = vmatprep.subr.mxu0 0.0
  %414 = vmatpush2.msra.mxu0 %v150
  %415 = vmatprep.subr.mxu0 0.0
  %416 = vmatpush2.msra.mxu0 %v149
  %417 = vmatprep.subr.mxu0 0.0
  %418 = vmatpush2.msra.mxu0 %v148
  %419 = vmatprep.subr.mxu0 0.0
  %420 = vmatpush2.msra.mxu0 %v147
  %421 = vmatprep.subr.mxu0 0.0
  %422 = vmatpush2.msra.mxu0 %v146
  %423 = vmatprep.subr.mxu0 0.0
  %424 = vmatpush2.msra.mxu0 %v145
  %425 = vmatprep.subr.mxu0 0.0
  %426 = vmatpush2.msra.mxu0 %v144
  %427 = vmatprep.subr.mxu0 0.0
  %428 = vmatpush2.msra.mxu0 %v143
  %429 = vmatprep.subr.mxu0 0.0
  %430 = vmatpush2.msra.mxu0 %v142
  %431 = vmatprep.mubr.f32.mxu0 %v17
  %432 = vmatmul.mubr.f32.gmra.mxu0 %v16
  %v433 = vpop.f32.mrf.mxu0
  %v434 = vadd.f32 %v289, %v433
  %v435 = vpop.f32.mrf.mxu0
  %436 = vmatprep.mubr.f32.mxu0 %v22
  %437 = vmatmul.mubr.f32.gmra.mxu0 %v21
  %v438 = vpop.f32.mrf.mxu0
  %v439 = vadd.f32 %v294, %v438
  %v440 = vpop.f32.mrf.mxu0
  %441 = vmatprep.mubr.f32.mxu0 %v27
  %442 = vmatmul.mubr.f32.gmra.mxu0 %v26
  %v443 = vpop.f32.mrf.mxu0
  %v444 = vadd.f32 %v299, %v443
  %v445 = vpop.f32.mrf.mxu0
  %446 = vmatprep.mubr.f32.mxu0 %v32
  %447 = vmatmul.mubr.f32.gmra.mxu0 %v31
  %v448 = vpop.f32.mrf.mxu0
  %v449 = vadd.f32 %v304, %v448
  %v450 = vpop.f32.mrf.mxu0
  %451 = vmatprep.mubr.f32.mxu0 %v37
  %452 = vmatmul.mubr.f32.gmra.mxu0 %v36
  %v453 = vpop.f32.mrf.mxu0
  %v454 = vadd.f32 %v309, %v453
  %v455 = vpop.f32.mrf.mxu0
  %456 = vmatprep.mubr.f32.mxu0 %v42
  %457 = vmatmul.mubr.f32.gmra.mxu0 %v41
  %v458 = vpop.f32.mrf.mxu0
  %v459 = vadd.f32 %v314, %v458
  %v460 = vpop.f32.mrf.mxu0
  %461 = vmatprep.mubr.f32.mxu0 %v47
  %462 = vmatmul.mubr.f32.gmra.mxu0 %v46
  %v463 = vpop.f32.mrf.mxu0
  %v464 = vadd.f32 %v319, %v463
  %v465 = vpop.f32.mrf.mxu0
  %466 = vmatprep.mubr.f32.mxu0 %v52
  %467 = vmatmul.mubr.f32.gmra.mxu0 %v51
  %v468 = vpop.f32.mrf.mxu0
  %v469 = vadd.f32 %v324, %v468
  %v470 = vpop.f32.mrf.mxu0
  %471 = vmatprep.mubr.f32.mxu0 %v57
  %472 = vmatmul.mubr.f32.gmra.mxu0 %v56
  %v473 = vpop.f32.mrf.mxu0
  %v474 = vadd.f32 %v329, %v473
  %v475 = vpop.f32.mrf.mxu0
  %476 = vmatprep.mubr.f32.mxu0 %v62
  %477 = vmatmul.mubr.f32.gmra.mxu0 %v61
  %v478 = vpop.f32.mrf.mxu0
  %v479 = vadd.f32 %v334, %v478
  %v480 = vpop.f32.mrf.mxu0
  %481 = vmatprep.mubr.f32.mxu0 %v67
  %482 = vmatmul.mubr.f32.gmra.mxu0 %v66
  %v483 = vpop.f32.mrf.mxu0
  %v484 = vadd.f32 %v339, %v483
  %v485 = vpop.f32.mrf.mxu0
  %486 = vmatprep.mubr.f32.mxu0 %v72
  %487 = vmatmul.mubr.f32.gmra.mxu0 %v71
  %v488 = vpop.f32.mrf.mxu0
  %v489 = vadd.f32 %v344, %v488
  %v490 = vpop.f32.mrf.mxu0
  %491 = vmatprep.mubr.f32.mxu0 %v77
  %492 = vmatmul.mubr.f32.gmra.mxu0 %v76
  %v493 = vpop.f32.mrf.mxu0
  %v494 = vadd.f32 %v349, %v493
  %v495 = vpop.f32.mrf.mxu0
  %496 = vmatprep.mubr.f32.mxu0 %v82
  %497 = vmatmul.mubr.f32.gmra.mxu0 %v81
  %v498 = vpop.f32.mrf.mxu0
  %v499 = vadd.f32 %v354, %v498
  %v500 = vpop.f32.mrf.mxu0
  %501 = vmatprep.mubr.f32.mxu0 %v87
  %502 = vmatmul.mubr.f32.gmra.mxu0 %v86
  %v503 = vpop.f32.mrf.mxu0
  %v504 = vadd.f32 %v359, %v503
  %v505 = vpop.f32.mrf.mxu0
  %506 = vmatprep.mubr.f32.mxu0 %v92
  %507 = vmatmul.mubr.f32.gmra.mxu0 %v91
  %v508 = vpop.f32.mrf.mxu0
  %v509 = vadd.f32 %v364, %v508
  %v510 = vpop.f32.mrf.mxu0
  %511 = vdwg.mxu0
  %512 = vmatprep.subr.mxu0 0.0
  %513 = vmatpush1.msra.mxu0 0.0
  %514 = vmatprep.subr.mxu0 0.0
  %515 = vmatpush1.msra.mxu0 0.0
  %516 = vmatprep.subr.mxu0 0.0
  %517 = vmatpush1.msra.mxu0 0.0
  %518 = vmatprep.subr.mxu0 0.0
  %519 = vmatpush1.msra.mxu0 0.0
  %520 = vmatprep.subr.mxu0 0.0
  %521 = vmatpush1.msra.mxu0 0.0
  %522 = vmatprep.subr.mxu0 0.0
  %523 = vmatpush1.msra.mxu0 0.0
  %524 = vmatprep.subr.mxu0 0.0
  %525 = vmatpush1.msra.mxu0 0.0
  %526 = vmatprep.subr.mxu0 0.0
  %527 = vmatpush1.msra.mxu0 0.0
  %528 = vmatprep.subr.mxu0 0.0
  %529 = vmatpush1.msra.mxu0 %v165
  %530 = vmatprep.subr.mxu0 0.0
  %531 = vmatpush1.msra.mxu0 %v164
  %532 = vmatprep.subr.mxu0 0.0
  %533 = vmatpush1.msra.mxu0 %v163
  %534 = vmatprep.subr.mxu0 0.0
  %535 = vmatpush1.msra.mxu0 %v162
  %536 = vmatprep.subr.mxu0 0.0
  %537 = vmatpush1.msra.mxu0 %v161
  %538 = vmatprep.subr.mxu0 0.0
  %539 = vmatpush1.msra.mxu0 %v160
  %540 = vmatprep.subr.mxu0 0.0
  %541 = vmatpush1.msra.mxu0 %v159
  %542 = vmatprep.subr.mxu0 0.0
  %543 = vmatpush1.msra.mxu0 %v158
  %544 = vmatprep.subr.mxu0 0.0
  %545 = vmatpush2.msra.mxu0 0.0
  %546 = vmatprep.subr.mxu0 0.0
  %547 = vmatpush2.msra.mxu0 0.0
  %548 = vmatprep.subr.mxu0 0.0
  %549 = vmatpush2.msra.mxu0 0.0
  %550 = vmatprep.subr.mxu0 0.0
  %551 = vmatpush2.msra.mxu0 0.0
  %552 = vmatprep.subr.mxu0 0.0
  %553 = vmatpush2.msra.mxu0 0.0
  %554 = vmatprep.subr.mxu0 0.0
  %555 = vmatpush2.msra.mxu0 0.0
  %556 = vmatprep.subr.mxu0 0.0
  %557 = vmatpush2.msra.mxu0 0.0
  %558 = vmatprep.subr.mxu0 0.0
  %559 = vmatpush2.msra.mxu0 0.0
  %560 = vmatprep.subr.mxu0 0.0
  %561 = vmatpush2.msra.mxu0 0.0
  %562 = vmatprep.subr.mxu0 0.0
  %563 = vmatpush2.msra.mxu0 0.0
  %564 = vmatprep.subr.mxu0 0.0
  %565 = vmatpush2.msra.mxu0 0.0
  %566 = vmatprep.subr.mxu0 0.0
  %567 = vmatpush2.msra.mxu0 0.0
  %568 = vmatprep.subr.mxu0 0.0
  %569 = vmatpush2.msra.mxu0 0.0
  %570 = vmatprep.subr.mxu0 0.0
  %571 = vmatpush2.msra.mxu0 0.0
  %572 = vmatprep.subr.mxu0 0.0
  %573 = vmatpush2.msra.mxu0 0.0
  %574 = vmatprep.subr.mxu0 0.0
  %575 = vmatpush2.msra.mxu0 0.0
  %576 = vmatprep.mubr.f32.mxu0 0.0
  %577 = vmatmul.mubr.f32.gmra.mxu0 %v175
  %v578 = vpop.f32.mrf.mxu0
  %v579 = vadd.f32 %v434, %v578
  %v580 = vpop.f32.mrf.mxu0
  %581 = vmatprep.mubr.f32.mxu0 0.0
  %582 = vmatmul.mubr.f32.gmra.mxu0 %v178
  %v583 = vpop.f32.mrf.mxu0
  %v584 = vadd.f32 %v439, %v583
  %v585 = vpop.f32.mrf.mxu0
  %586 = vmatprep.mubr.f32.mxu0 0.0
  %587 = vmatmul.mubr.f32.gmra.mxu0 %v181
  %v588 = vpop.f32.mrf.mxu0
  %v589 = vadd.f32 %v444, %v588
  %v590 = vpop.f32.mrf.mxu0
  %591 = vmatprep.mubr.f32.mxu0 0.0
  %592 = vmatmul.mubr.f32.gmra.mxu0 %v184
  %v593 = vpop.f32.mrf.mxu0
  %v594 = vadd.f32 %v449, %v593
  %v595 = vpop.f32.mrf.mxu0
  %596 = vmatprep.mubr.f32.mxu0 0.0
  %597 = vmatmul.mubr.f32.gmra.mxu0 %v187
  %v598 = vpop.f32.mrf.mxu0
  %v599 = vadd.f32 %v454, %v598
  %v600 = vpop.f32.mrf.mxu0
  %601 = vmatprep.mubr.f32.mxu0 0.0
  %602 = vmatmul.mubr.f32.gmra.mxu0 %v190
  %v603 = vpop.f32.mrf.mxu0
  %v604 = vadd.f32 %v459, %v603
  %v605 = vpop.f32.mrf.mxu0
  %606 = vmatprep.mubr.f32.mxu0 0.0
  %607 = vmatmul.mubr.f32.gmra.mxu0 %v193
  %v608 = vpop.f32.mrf.mxu0
  %v609 = vadd.f32 %v464, %v608
  %v610 = vpop.f32.mrf.mxu0
  %611 = vmatprep.mubr.f32.mxu0 0.0
  %612 = vmatmul.mubr.f32.gmra.mxu0 %v196
  %v613 = vpop.f32.mrf.mxu0
  %v614 = vadd.f32 %v469, %v613
  %v615 = vpop.f32.mrf.mxu0
  %616 = vmatprep.mubr.f32.mxu0 0.0
  %617 = vmatmul.mubr.f32.gmra.mxu0 %v199
  %v618 = vpop.f32.mrf.mxu0
  %v619 = vadd.f32 %v474, %v618
  %v620 = vpop.f32.mrf.mxu0
  %621 = vmatprep.mubr.f32.mxu0 0.0
  %622 = vmatmul.mubr.f32.gmra.mxu0 %v202
  %v623 = vpop.f32.mrf.mxu0
  %v624 = vadd.f32 %v479, %v623
  %v625 = vpop.f32.mrf.mxu0
  %626 = vmatprep.mubr.f32.mxu0 0.0
  %627 = vmatmul.mubr.f32.gmra.mxu0 %v205
  %v628 = vpop.f32.mrf.mxu0
  %v629 = vadd.f32 %v484, %v628
  %v630 = vpop.f32.mrf.mxu0
  %631 = vmatprep.mubr.f32.mxu0 0.0
  %632 = vmatmul.mubr.f32.gmra.mxu0 %v208
  %v633 = vpop.f32.mrf.mxu0
  %v634 = vadd.f32 %v489, %v633
  %v635 = vpop.f32.mrf.mxu0
  %636 = vmatprep.mubr.f32.mxu0 0.0
  %637 = vmatmul.mubr.f32.gmra.mxu0 %v211
  %v638 = vpop.f32.mrf.mxu0
  %v639 = vadd.f32 %v494, %v638
  %v640 = vpop.f32.mrf.mxu0
  %641 = vmatprep.mubr.f32.mxu0 0.0
  %642 = vmatmul.mubr.f32.gmra.mxu0 %v214
  %v643 = vpop.f32.mrf.mxu0
  %v644 = vadd.f32 %v499, %v643
  %v645 = vpop.f32.mrf.mxu0
  %646 = vmatprep.mubr.f32.mxu0 0.0
  %647 = vmatmul.mubr.f32.gmra.mxu0 %v217
  %v648 = vpop.f32.mrf.mxu0
  %v649 = vadd.f32 %v504, %v648
  %v650 = vpop.f32.mrf.mxu0
  %651 = vmatprep.mubr.f32.mxu0 0.0
  %652 = vmatmul.mubr.f32.gmra.mxu0 %v220
  %v653 = vpop.f32.mrf.mxu0
  %v654 = vadd.f32 %v509, %v653
  %v655 = vpop.f32.mrf.mxu0
  %656 = vdwg.mxu0
  %v657 = vmax.f32 %v579, 0.0
  %v658 = vmax.f32 %v584, 0.0
  %v659 = vmax.f32 %v589, 0.0
  %v660 = vmax.f32 %v594, 0.0
  %v661 = vmax.f32 %v599, 0.0
  %v662 = vmax.f32 %v604, 0.0
  %v663 = vmax.f32 %v609, 0.0
  %v664 = vmax.f32 %v614, 0.0
  %v665 = vmax.f32 %v619, 0.0
  %v666 = vmax.f32 %v624, 0.0
  %v667 = vmax.f32 %v629, 0.0
  %v668 = vmax.f32 %v634, 0.0
  %v669 = vmax.f32 %v639, 0.0
  %v670 = vmax.f32 %v644, 0.0
  %v671 = vmax.f32 %v649, 0.0
  %v672 = vmax.f32 %v654, 0.0
  %v673 = vpack.c.bf16 %v658, %v657
  %v674 = vpack.c.bf16 %v660, %v659
  %v675 = vpack.c.bf16 %v662, %v661
  %v676 = vpack.c.bf16 %v664, %v663
  %v677 = vpack.c.bf16 %v666, %v665
  %v678 = vpack.c.bf16 %v668, %v667
  %v679 = vpack.c.bf16 %v670, %v669
  %v680 = vpack.c.bf16 %v672, %v671
  %v689 = vunpack.c.l.b16 %v673
  %v690 = vunpack.c.h.b16 %v673
  %v691 = vunpack.c.l.b16 %v674
  %v692 = vunpack.c.h.b16 %v674
  %v693 = vunpack.c.l.b16 %v675
  %v694 = vunpack.c.h.b16 %v675
  %v695 = vunpack.c.l.b16 %v676
  %v696 = vunpack.c.h.b16 %v676
  %v697 = vunpack.c.l.b16 %v677
  %v698 = vunpack.c.h.b16 %v677
  %v699 = vunpack.c.l.b16 %v678
  %v700 = vunpack.c.h.b16 %v678
  %v701 = vunpack.c.l.b16 %v679
  %v702 = vunpack.c.h.b16 %v679
  %v703 = vunpack.c.l.b16 %v680
  %v704 = vunpack.c.h.b16 %v680
  %v705 = vpack.c.b16 %v689, %v689
  %v706 = vpack.c.b16 %v690, %v690
  %v707 = vpack.c.b16 %v691, %v691
  %v708 = vpack.c.b16 %v692, %v692
  %v709 = vpack.c.b16 %v693, %v693
  %v710 = vpack.c.b16 %v694, %v694
  %v711 = vpack.c.b16 %v695, %v695
  %v712 = vpack.c.b16 %v696, %v696
  %v713 = vpack.c.b16 %v697, %v697
  %v714 = vpack.c.b16 %v698, %v698
  %v715 = vpack.c.b16 %v699, %v699
  %v716 = vpack.c.b16 %v700, %v700
  %v717 = vpack.c.b16 %v701, %v701
  %v718 = vpack.c.b16 %v702, %v702
  %v719 = vpack.c.b16 %v703, %v703
  %v720 = vpack.c.b16 %v704, %v704
  %737 = vst [vmem:[%s3] sm:$0xf] %v705
  %738 = vst [vmem:[%s3 + $0x4] sm:$0xf] %v706
  %739 = vst [vmem:[%s3 + $0x8] sm:$0xf] %v707
  %740 = vst [vmem:[%s3 + $0xc] sm:$0xf] %v708
  %741 = vst [vmem:[%s3 + $0x10] sm:$0xf] %v709
  %742 = vst [vmem:[%s3 + $0x14] sm:$0xf] %v710
  %743 = vst [vmem:[%s3 + $0x18] sm:$0xf] %v711
  %744 = vst [vmem:[%s3 + $0x1c] sm:$0xf] %v712
  %745 = vst [vmem:[%s3 + $0x20] sm:$0xf] %v713
  %746 = vst [vmem:[%s3 + $0x24] sm:$0xf] %v714
  %747 = vst [vmem:[%s3 + $0x28] sm:$0xf] %v715
  %748 = vst [vmem:[%s3 + $0x2c] sm:$0xf] %v716
  %749 = vst [vmem:[%s3 + $0x30] sm:$0xf] %v717
  %750 = vst [vmem:[%s3 + $0x34] sm:$0xf] %v718
  %751 = vst [vmem:[%s3 + $0x38] sm:$0xf] %v719
  %752 = vst [vmem:[%s3 + $0x3c] sm:$0xf] %v720
  // Predicated region
  $region14: #{detection_model_forward.6} parent=0 // pred_check
    _
  $region15: #{detection_model_forward.6} parent=0 // pred_check_branch
    %754 = sbr.rel (0) target = $region17
  $region16: #{detection_model_forward.6} parent=0 // pred_region
    _
  $region17: #{detection_model_forward.6} parent=0 // pred_fallthru
    _
  // Predicated region
  $region18: #{detection_model_forward.6} parent=0 // pred_check
    _
  $region19: #{detection_model_forward.6} parent=0 // pred_check_branch
    %756 = sbr.rel (0) target = $region21
  $region20: #{detection_model_forward.6} parent=0 // pred_region
    _
  $region21: #{detection_model_forward.6} parent=0 // pred_fallthru
    _

// kernel: detection_model_forward.7
$region0: #{detection_model_forward.7}
  #allocation0 [shape = 'u32[]', space=smem, size = 0x4, offset = 0x4, fixed_abs, tag = 'smem constant byte address 0x4 - core index']
  #allocation1 [shape = 'u32[144,128]{1,0:T(1,128)}', space=vmem, size = 0x12000, scoped, tag = 'internal scratch']
  #allocation2 [shape = 'f32[2,256]{1,0:T(2,128)}', space=vmem, size = 0x800, scoped, tag = 'scratch operand']
  %s0 = inlined_call_operand.vmem [shape: bf16[2,8192], index: 0, kind: input, shape index: {}]
  %s1 = inlined_call_operand.vmem [shape: bf16[8192,512], index: 1, kind: input, shape index: {}]
  %s2 = inlined_call_operand.vmem [shape: f32[1,512], index: 2, kind: input, shape index: {}]
  %s3 = inlined_call_operand.vmem [shape: f32[512,4], index: 3, kind: input, shape index: {}]
  %s4 = inlined_call_operand.vmem [shape: f32[2,2,4], index: 4, kind: output, shape index: {}]
  %s5 = sld [smem:[#allocation0]]
  $region95: #{detection_model_forward.7} parent=0
    _
  %s7 = ssub.s32 1, %s5
  %s8 = scalar_select 0, %s7, %s5
  $region1: #{detection_model_forward.7} parent=0
    #allocation3 [shape = 'u8[2097152]{0}', space=vmem, size = 0x200000, scoped, tag = 'input window, operand 1']
    loop: start=0, step=1, limit=10
    $region2: #{detection_model_forward.7} parent=1 // loop_pre_header
      _
    $region3: #{detection_model_forward.7} parent=1 // loop_header
      %s10 = sphi 0, %s14
      %p11 = scmp.ge.s32.totalorder %s10, 10
      %s17 = sphi 0, %s29
      %s18 = sphi 0, %s25
      %s19 = sphi 0, %s17
      %s20 = sphi 0, %s18
      %s21 = sphi 0, %s19
      %s22 = sphi 0, %s20
      %s32 = sphi 0, %s34
      %s35 = sphi 0, %s32
      %s36 = sphi 0, %s35
      %s52 = sphi 0, %s36
      %s60 = sphi 0, %s62
      %s63 = sphi 0, %s60
      %s64 = sphi 0, %s63
      %s80 = sphi 0, %s64
      %s86 = sphi 0, %s88
      %s89 = sphi 0, %s86
      %s90 = sphi 0, %s89
      %s106 = sphi 0, %s90
      %s112 = sphi 0, %s114
      %s115 = sphi 0, %s112
      %s116 = sphi 0, %s115
      %s132 = sphi 0, %s116
      %s138 = sphi 0, %s140
      %s141 = sphi 0, %s138
      %s142 = sphi 0, %s141
      %s158 = sphi 0, %s142
    $region4: #{detection_model_forward.7} parent=1 // loop_header_branch
      %13 = sbr.rel (%p11) target = $region8
    $region5: #{detection_model_forward.7} parent=1 // loop_body
      %s15 = ssub.s32 %s10, 1
      %s16 = ssub.s32 %s10, 2
      %s23 = sadd.s32 1, %s18
      %p24 = scmp.ge.s32.totalorder %s23, 4
      %s25 = scalar_select %p24, 0, %s23
      %s26 = sadd.s32 1, %s17
      %s27 = scalar_select %p24, %s26, %s17
      %p28 = scmp.ge.s32.totalorder %s27, 2
      %s29 = scalar_select %p28, 0, %s27
      %s30 = ssub.s32 %s18, %s25
      %p31 = scmp.eq.s32.totalorder %s30, 0
      %s33 = sadd.s32 %s32, 1
      %s34 = scalar_select %p31, %s32, %s33
      %p37 = pneg %p31
      %p38 = scmp.eq.s32.totalorder %s10, 7
      %p39 = por %p37, %p38
      %p40 = scmp.ne.s32.totalorder %s32, %s35
      %p41 = scmp.eq.s32.totalorder %s10, 0
      %p42 = por %p40, %p41
      %p43 = scmp.ne.s32.totalorder %s32, %s35
      %p44 = scmp.eq.s32.totalorder %s15, 7
      %p45 = por %p43, %p44
      %p46 = scmp.ne.s32.totalorder %s35, %s36
      %p47 = scmp.eq.s32.totalorder %s15, 0
      %p48 = por %p46, %p47
      %p49 = scmp.ne.s32.totalorder %s35, %s36
      %p50 = scmp.eq.s32.totalorder %s16, 7
      %p51 = por %p49, %p50
      %p53 = scmp.ne.s32.totalorder %s36, %s52
      %p54 = scmp.eq.s32.totalorder %s16, 0
      %p55 = por %p53, %p54
      %s56 = ssub.s32 %s18, %s25
      %s57 = ssub.s32 %s17, %s29
      %s58 = sor.u32 %s56, %s57
      %p59 = scmp.eq.s32.totalorder %s58, 0
      %s61 = sadd.s32 %s60, 1
      %s62 = scalar_select %p59, %s60, %s61
      %p65 = pneg %p59
      %p66 = scmp.eq.s32.totalorder %s10, 7
      %p67 = por %p65, %p66
      %p68 = scmp.ne.s32.totalorder %s60, %s63
      %p69 = scmp.eq.s32.totalorder %s10, 0
      %p70 = por %p68, %p69
      %p71 = scmp.ne.s32.totalorder %s60, %s63
      %p72 = scmp.eq.s32.totalorder %s15, 7
      %p73 = por %p71, %p72
      %p74 = scmp.ne.s32.totalorder %s63, %s64
      %p75 = scmp.eq.s32.totalorder %s15, 0
      %p76 = por %p74, %p75
      %p77 = scmp.ne.s32.totalorder %s63, %s64
      %p78 = scmp.eq.s32.totalorder %s16, 7
      %p79 = por %p77, %p78
      %p81 = scmp.ne.s32.totalorder %s64, %s80
      %p82 = scmp.eq.s32.totalorder %s16, 0
      %p83 = por %p81, %p82
      %s84 = ssub.s32 %s17, %s29
      %p85 = scmp.eq.s32.totalorder %s84, 0
      %s87 = sadd.s32 %s86, 1
      %s88 = scalar_select %p85, %s86, %s87
      %p91 = pneg %p85
      %p92 = scmp.eq.s32.totalorder %s10, 7
      %p93 = por %p91, %p92
      %p94 = scmp.ne.s32.totalorder %s86, %s89
      %p95 = scmp.eq.s32.totalorder %s10, 0
      %p96 = por %p94, %p95
      %p97 = scmp.ne.s32.totalorder %s86, %s89
      %p98 = scmp.eq.s32.totalorder %s15, 7
      %p99 = por %p97, %p98
      %p100 = scmp.ne.s32.totalorder %s89, %s90
      %p101 = scmp.eq.s32.totalorder %s15, 0
      %p102 = por %p100, %p101
      %p103 = scmp.ne.s32.totalorder %s89, %s90
      %p104 = scmp.eq.s32.totalorder %s16, 7
      %p105 = por %p103, %p104
      %p107 = scmp.ne.s32.totalorder %s90, %s106
      %p108 = scmp.eq.s32.totalorder %s16, 0
      %p109 = por %p107, %p108
      %s110 = ssub.s32 %s17, %s29
      %p111 = scmp.eq.s32.totalorder %s110, 0
      %s113 = sadd.s32 %s112, 1
      %s114 = scalar_select %p111, %s112, %s113
      %p117 = pneg %p111
      %p118 = scmp.eq.s32.totalorder %s10, 7
      %p119 = por %p117, %p118
      %p120 = scmp.ne.s32.totalorder %s112, %s115
      %p121 = scmp.eq.s32.totalorder %s10, 0
      %p122 = por %p120, %p121
      %p123 = scmp.ne.s32.totalorder %s112, %s115
      %p124 = scmp.eq.s32.totalorder %s15, 7
      %p125 = por %p123, %p124
      %p126 = scmp.ne.s32.totalorder %s115, %s116
      %p127 = scmp.eq.s32.totalorder %s15, 0
      %p128 = por %p126, %p127
      %p129 = scmp.ne.s32.totalorder %s115, %s116
      %p130 = scmp.eq.s32.totalorder %s16, 7
      %p131 = por %p129, %p130
      %p133 = scmp.ne.s32.totalorder %s116, %s132
      %p134 = scmp.eq.s32.totalorder %s16, 0
      %p135 = por %p133, %p134
      %s136 = ssub.s32 %s17, %s29
      %p137 = scmp.eq.s32.totalorder %s136, 0
      %s139 = sadd.s32 %s138, 1
      %s140 = scalar_select %p137, %s138, %s139
      %p143 = pneg %p137
      %p144 = scmp.eq.s32.totalorder %s10, 7
      %p145 = por %p143, %p144
      %p146 = scmp.ne.s32.totalorder %s138, %s141
      %p147 = scmp.eq.s32.totalorder %s10, 0
      %p148 = por %p146, %p147
      %p149 = scmp.ne.s32.totalorder %s138, %s141
      %p150 = scmp.eq.s32.totalorder %s15, 7
      %p151 = por %p149, %p150
      %p152 = scmp.ne.s32.totalorder %s141, %s142
      %p153 = scmp.eq.s32.totalorder %s15, 0
      %p154 = por %p152, %p153
      %p155 = scmp.ne.s32.totalorder %s141, %s142
      %p156 = scmp.eq.s32.totalorder %s16, 7
      %p157 = por %p155, %p156
      %p159 = scmp.ne.s32.totalorder %s142, %s158
      %p160 = scmp.eq.s32.totalorder %s16, 0
      %p161 = por %p159, %p160
      %p162 = scmp.le.s32.totalorder 1, %s10
      %p163 = scmp.lt.s32.totalorder %s10, 9
      %p164 = pnand %p162, %p163
      %p165 = pneg %p164
      // Predicated region
      $region9: #{detection_model_forward.7} parent=5 // pred_check
        _
      $region10: #{detection_model_forward.7} parent=5 // pred_check_branch
        %167 = sbr.rel (%p164) target = $region12
      $region11: #{detection_model_forward.7} parent=5 // pred_region
        %s168 = ssub.s32 %s10, 1
      $region12: #{detection_model_forward.7} parent=5 // pred_fallthru
        _
      %p169 = scmp.lt.s32.totalorder %s10, 8
      // Predicated region
      $region13: #{detection_model_forward.7} parent=5 // pred_check
        %p170 = pneg %p169
      $region14: #{detection_model_forward.7} parent=5 // pred_check_branch
        %172 = sbr.rel (%p170) target = $region16
      $region15: #{detection_model_forward.7} parent=5 // pred_region
        // Predicated region
        $region17: #{detection_model_forward.7} parent=15 // pred_check
          %p173 = pneg %p42
        $region18: #{detection_model_forward.7} parent=15 // pred_check_branch
          %175 = sbr.rel (%p173) target = $region20
        $region19: #{detection_model_forward.7} parent=15 // pred_region
          %s176 = smul.u32 16, %s18
          %p177 = scmp.lt.s32.totalorder %s176, 63
          %s178 = scalar_select %p177, %s176, 63
          %s179 = scalar_lea.vmem %s0, %s178
          %s180 = smul.u32 16, %s18
        $region20: #{detection_model_forward.7} parent=15 // pred_fallthru
          _
        // Predicated region
        $region21: #{detection_model_forward.7} parent=15 // pred_check
          %p181 = pneg %p70
        $region22: #{detection_model_forward.7} parent=15 // pred_check_branch
          %183 = sbr.rel (%p181) target = $region24
        $region23: #{detection_model_forward.7} parent=15 // pred_region
          %s184 = sand.u32 %s60, 1
          %s185 = sand.u32 %s60, 1
          %s186 = smul.addr %s185, 2048
          %s187 = scalar_lea.vmem [#allocation3], %s186
          %s188 = smul.u32 256, %s18
          %s189 = smul.u32 2, %s17
          %s190 = smul.addr %s188, 4
          %s191 = sadd.s32 %s189, %s190
          %s192 = smul.addr %s191, 4
          %s193 = scalar_lea.vmem %s1, %s192
          // Predicated region
          $region25: #{detection_model_forward.7} parent=23 // pred_check
            _
          $region26: #{detection_model_forward.7} parent=23 // pred_check_branch
            %195 = sbr.rel (0) target = $region28
          $region27: #{detection_model_forward.7} parent=23 // pred_region
            // Predicated region
            $region29: #{detection_model_forward.7} parent=27 // pred_check
              _
            $region30: #{detection_model_forward.7} parent=27 // pred_check_branch
              %197 = sbr.rel (0) target = $region32
            $region31: #{detection_model_forward.7} parent=27 // pred_region
              // Predicated region
              $region44: #{detection_model_forward.7} parent=31 // pred_check
                _
              $region45: #{detection_model_forward.7} parent=31 // pred_check_branch
                %723 = sbr.rel (0) target = $region47
              $region46: #{detection_model_forward.7} parent=31 // pred_region
                loop: start=0, step=1, limit=1
                $region48: #{detection_model_forward.7} parent=46 // loop_pre_header
                  _
                $region49: #{detection_model_forward.7} parent=46 // loop_header
                  %s725 = sphi 0, %s729
                  %p726 = scmp.ge.s32.totalorder %s725, 1
                  %s730 = sphi %s193, %s193
                  %s731 = sphi %s187, %s187
                $region50: #{detection_model_forward.7} parent=46 // loop_header_branch
                  %728 = sbr.rel (%p726) target = $region54
                $region51: #{detection_model_forward.7} parent=46 // loop_body
                  %v732 = vld [vmem:[%s730] sm:$0xff]
                  %733 = vst [vmem:[%s731] sm:$0xff] %v732
                  %v734 = vld [vmem:[%s730 + $0x10] sm:$0xff]
                  %735 = vst [vmem:[%s731 + $0x8] sm:$0xff] %v734
                  %v736 = vld [vmem:[%s730 + $0x20] sm:$0xff]
                  %737 = vst [vmem:[%s731 + $0x10] sm:$0xff] %v736
                  %v738 = vld [vmem:[%s730 + $0x30] sm:$0xff]
                  %739 = vst [vmem:[%s731 + $0x18] sm:$0xff] %v738
                  %v740 = vld [vmem:[%s730 + $0x40] sm:$0xff]
                  %741 = vst [vmem:[%s731 + $0x20] sm:$0xff] %v740
                  %v742 = vld [vmem:[%s730 + $0x50] sm:$0xff]
                  %743 = vst [vmem:[%s731 + $0x28] sm:$0xff] %v742
                  %v744 = vld [vmem:[%s730 + $0x60] sm:$0xff]
                  %745 = vst [vmem:[%s731 + $0x30] sm:$0xff] %v744
                  %v746 = vld [vmem:[%s730 + $0x70] sm:$0xff]
                  %747 = vst [vmem:[%s731 + $0x38] sm:$0xff] %v746
                  %v748 = vld [vmem:[%s730 + $0x80] sm:$0xff]
                  %749 = vst [vmem:[%s731 + $0x40] sm:$0xff] %v748
                  %v750 = vld [vmem:[%s730 + $0x90] sm:$0xff]
                  %751 = vst [vmem:[%s731 + $0x48] sm:$0xff] %v750
                  %v752 = vld [vmem:[%s730 + $0xa0] sm:$0xff]
                  %753 = vst [vmem:[%s731 + $0x50] sm:$0xff] %v752
                  %v754 = vld [vmem:[%s730 + $0xb0] sm:$0xff]
                  %755 = vst [vmem:[%s731 + $0x58] sm:$0xff] %v754
                  %v756 = vld [vmem:[%s730 + $0xc0] sm:$0xff]
                  %757 = vst [vmem:[%s731 + $0x60] sm:$0xff] %v756
                  %v758 = vld [vmem:[%s730 + $0xd0] sm:$0xff]
                  %759 = vst [vmem:[%s731 + $0x68] sm:$0xff] %v758
                  %v760 = vld [vmem:[%s730 + $0xe0] sm:$0xff]
                  %761 = vst [vmem:[%s731 + $0x70] sm:$0xff] %v760
                  %v762 = vld [vmem:[%s730 + $0xf0] sm:$0xff]
                  %763 = vst [vmem:[%s731 + $0x78] sm:$0xff] %v762
                  %v764 = vld [vmem:[%s730 + $0x100] sm:$0xff]
                  %765 = vst [vmem:[%s731 + $0x80] sm:$0xff] %v764
                  %v766 = vld [vmem:[%s730 + $0x110] sm:$0xff]
                  %767 = vst [vmem:[%s731 + $0x88] sm:$0xff] %v766
                  %v768 = vld [vmem:[%s730 + $0x120] sm:$0xff]
                  %769 = vst [vmem:[%s731 + $0x90] sm:$0xff] %v768
                  %v770 = vld [vmem:[%s730 + $0x130] sm:$0xff]
                  %771 = vst [vmem:[%s731 + $0x98] sm:$0xff] %v770
                  %v772 = vld [vmem:[%s730 + $0x140] sm:$0xff]
                  %773 = vst [vmem:[%s731 + $0xa0] sm:$0xff] %v772
                  %v774 = vld [vmem:[%s730 + $0x150] sm:$0xff]
                  %775 = vst [vmem:[%s731 + $0xa8] sm:$0xff] %v774
                  %v776 = vld [vmem:[%s730 + $0x160] sm:$0xff]
                  %777 = vst [vmem:[%s731 + $0xb0] sm:$0xff] %v776
                  %v778 = vld [vmem:[%s730 + $0x170] sm:$0xff]
                  %779 = vst [vmem:[%s731 + $0xb8] sm:$0xff] %v778
                  %v780 = vld [vmem:[%s730 + $0x180] sm:$0xff]
                  %781 = vst [vmem:[%s731 + $0xc0] sm:$0xff] %v780
                  %v782 = vld [vmem:[%s730 + $0x190] sm:$0xff]
                  %783 = vst [vmem:[%s731 + $0xc8] sm:$0xff] %v782
                  %v784 = vld [vmem:[%s730 + $0x1a0] sm:$0xff]
                  %785 = vst [vmem:[%s731 + $0xd0] sm:$0xff] %v784
                  %v786 = vld [vmem:[%s730 + $0x1b0] sm:$0xff]
                  %787 = vst [vmem:[%s731 + $0xd8] sm:$0xff] %v786
                  %v788 = vld [vmem:[%s730 + $0x1c0] sm:$0xff]
                  %789 = vst [vmem:[%s731 + $0xe0] sm:$0xff] %v788
                  %v790 = vld [vmem:[%s730 + $0x1d0] sm:$0xff]
                  %791 = vst [vmem:[%s731 + $0xe8] sm:$0xff] %v790
                  %v792 = vld [vmem:[%s730 + $0x1e0] sm:$0xff]
                  %793 = vst [vmem:[%s731 + $0xf0] sm:$0xff] %v792
                  %v794 = vld [vmem:[%s730 + $0x1f0] sm:$0xff]
                  %795 = vst [vmem:[%s731 + $0xf8] sm:$0xff] %v794
                  %v796 = vld [vmem:[%s730 + $0x200] sm:$0xff]
                  %797 = vst [vmem:[%s731 + $0x100] sm:$0xff] %v796
                  %v798 = vld [vmem:[%s730 + $0x210] sm:$0xff]
                  %799 = vst [vmem:[%s731 + $0x108] sm:$0xff] %v798
                  %v800 = vld [vmem:[%s730 + $0x220] sm:$0xff]
                  %801 = vst [vmem:[%s731 + $0x110] sm:$0xff] %v800
                  %v802 = vld [vmem:[%s730 + $0x230] sm:$0xff]
                  %803 = vst [vmem:[%s731 + $0x118] sm:$0xff] %v802
                  %v804 = vld [vmem:[%s730 + $0x240] sm:$0xff]
                  %805 = vst [vmem:[%s731 + $0x120] sm:$0xff] %v804
                  %v806 = vld [vmem:[%s730 + $0x250] sm:$0xff]
                  %807 = vst [vmem:[%s731 + $0x128] sm:$0xff] %v806
                  %v808 = vld [vmem:[%s730 + $0x260] sm:$0xff]
                  %809 = vst [vmem:[%s731 + $0x130] sm:$0xff] %v808
                  %v810 = vld [vmem:[%s730 + $0x270] sm:$0xff]
                  %811 = vst [vmem:[%s731 + $0x138] sm:$0xff] %v810
                  %v812 = vld [vmem:[%s730 + $0x280] sm:$0xff]
                  %813 = vst [vmem:[%s731 + $0x140] sm:$0xff] %v812
                  %v814 = vld [vmem:[%s730 + $0x290] sm:$0xff]
                  %815 = vst [vmem:[%s731 + $0x148] sm:$0xff] %v814
                  %v816 = vld [vmem:[%s730 + $0x2a0] sm:$0xff]
                  %817 = vst [vmem:[%s731 + $0x150] sm:$0xff] %v816
                  %v818 = vld [vmem:[%s730 + $0x2b0] sm:$0xff]
                  %819 = vst [vmem:[%s731 + $0x158] sm:$0xff] %v818
                  %v820 = vld [vmem:[%s730 + $0x2c0] sm:$0xff]
                  %821 = vst [vmem:[%s731 + $0x160] sm:$0xff] %v820
                  %v822 = vld [vmem:[%s730 + $0x2d0] sm:$0xff]
                  %823 = vst [vmem:[%s731 + $0x168] sm:$0xff] %v822
                  %v824 = vld [vmem:[%s730 + $0x2e0] sm:$0xff]
                  %825 = vst [vmem:[%s731 + $0x170] sm:$0xff] %v824
                  %v826 = vld [vmem:[%s730 + $0x2f0] sm:$0xff]
                  %827 = vst [vmem:[%s731 + $0x178] sm:$0xff] %v826
                  %v828 = vld [vmem:[%s730 + $0x300] sm:$0xff]
                  %829 = vst [vmem:[%s731 + $0x180] sm:$0xff] %v828
                  %v830 = vld [vmem:[%s730 + $0x310] sm:$0xff]
                  %831 = vst [vmem:[%s731 + $0x188] sm:$0xff] %v830
                  %v832 = vld [vmem:[%s730 + $0x320] sm:$0xff]
                  %833 = vst [vmem:[%s731 + $0x190] sm:$0xff] %v832
                  %v834 = vld [vmem:[%s730 + $0x330] sm:$0xff]
                  %835 = vst [vmem:[%s731 + $0x198] sm:$0xff] %v834
                  %v836 = vld [vmem:[%s730 + $0x340] sm:$0xff]
                  %837 = vst [vmem:[%s731 + $0x1a0] sm:$0xff] %v836
                  %v838 = vld [vmem:[%s730 + $0x350] sm:$0xff]
                  %839 = vst [vmem:[%s731 + $0x1a8] sm:$0xff] %v838
                  %v840 = vld [vmem:[%s730 + $0x360] sm:$0xff]
                  %841 = vst [vmem:[%s731 + $0x1b0] sm:$0xff] %v840
                  %v842 = vld [vmem:[%s730 + $0x370] sm:$0xff]
                  %843 = vst [vmem:[%s731 + $0x1b8] sm:$0xff] %v842
                  %v844 = vld [vmem:[%s730 + $0x380] sm:$0xff]
                  %845 = vst [vmem:[%s731 + $0x1c0] sm:$0xff] %v844
                  %v846 = vld [vmem:[%s730 + $0x390] sm:$0xff]
                  %847 = vst [vmem:[%s731 + $0x1c8] sm:$0xff] %v846
                  %v848 = vld [vmem:[%s730 + $0x3a0] sm:$0xff]
                  %849 = vst [vmem:[%s731 + $0x1d0] sm:$0xff] %v848
                  %v850 = vld [vmem:[%s730 + $0x3b0] sm:$0xff]
                  %851 = vst [vmem:[%s731 + $0x1d8] sm:$0xff] %v850
                  %v852 = vld [vmem:[%s730 + $0x3c0] sm:$0xff]
                  %853 = vst [vmem:[%s731 + $0x1e0] sm:$0xff] %v852
                  %v854 = vld [vmem:[%s730 + $0x3d0] sm:$0xff]
                  %855 = vst [vmem:[%s731 + $0x1e8] sm:$0xff] %v854
                  %v856 = vld [vmem:[%s730 + $0x3e0] sm:$0xff]
                  %857 = vst [vmem:[%s731 + $0x1f0] sm:$0xff] %v856
                  %v858 = vld [vmem:[%s730 + $0x3f0] sm:$0xff]
                  %859 = vst [vmem:[%s731 + $0x1f8] sm:$0xff] %v858
                  %v860 = vld [vmem:[%s730 + $0x400] sm:$0xff]
                  %861 = vst [vmem:[%s731 + $0x200] sm:$0xff] %v860
                  %v862 = vld [vmem:[%s730 + $0x410] sm:$0xff]
                  %863 = vst [vmem:[%s731 + $0x208] sm:$0xff] %v862
                  %v864 = vld [vmem:[%s730 + $0x420] sm:$0xff]
                  %865 = vst [vmem:[%s731 + $0x210] sm:$0xff] %v864
                  %v866 = vld [vmem:[%s730 + $0x430] sm:$0xff]
                  %867 = vst [vmem:[%s731 + $0x218] sm:$0xff] %v866
                  %v868 = vld [vmem:[%s730 + $0x440] sm:$0xff]
                  %869 = vst [vmem:[%s731 + $0x220] sm:$0xff] %v868
                  %v870 = vld [vmem:[%s730 + $0x450] sm:$0xff]
                  %871 = vst [vmem:[%s731 + $0x228] sm:$0xff] %v870
                  %v872 = vld [vmem:[%s730 + $0x460] sm:$0xff]
                  %873 = vst [vmem:[%s731 + $0x230] sm:$0xff] %v872
                  %v874 = vld [vmem:[%s730 + $0x470] sm:$0xff]
                  %875 = vst [vmem:[%s731 + $0x238] sm:$0xff] %v874
                  %v876 = vld [vmem:[%s730 + $0x480] sm:$0xff]
                  %877 = vst [vmem:[%s731 + $0x240] sm:$0xff] %v876
                  %v878 = vld [vmem:[%s730 + $0x490] sm:$0xff]
                  %879 = vst [vmem:[%s731 + $0x248] sm:$0xff] %v878
                  %v880 = vld [vmem:[%s730 + $0x4a0] sm:$0xff]
                  %881 = vst [vmem:[%s731 + $0x250] sm:$0xff] %v880
                  %v882 = vld [vmem:[%s730 + $0x4b0] sm:$0xff]
                  %883 = vst [vmem:[%s731 + $0x258] sm:$0xff] %v882
                  %v884 = vld [vmem:[%s730 + $0x4c0] sm:$0xff]
                  %885 = vst [vmem:[%s731 + $0x260] sm:$0xff] %v884
                  %v886 = vld [vmem:[%s730 + $0x4d0] sm:$0xff]
                  %887 = vst [vmem:[%s731 + $0x268] sm:$0xff] %v886
                  %v888 = vld [vmem:[%s730 + $0x4e0] sm:$0xff]
                  %889 = vst [vmem:[%s731 + $0x270] sm:$0xff] %v888
                  %v890 = vld [vmem:[%s730 + $0x4f0] sm:$0xff]
                  %891 = vst [vmem:[%s731 + $0x278] sm:$0xff] %v890
                  %v892 = vld [vmem:[%s730 + $0x500] sm:$0xff]
                  %893 = vst [vmem:[%s731 + $0x280] sm:$0xff] %v892
                  %v894 = vld [vmem:[%s730 + $0x510] sm:$0xff]
                  %895 = vst [vmem:[%s731 + $0x288] sm:$0xff] %v894
                  %v896 = vld [vmem:[%s730 + $0x520] sm:$0xff]
                  %897 = vst [vmem:[%s731 + $0x290] sm:$0xff] %v896
                  %v898 = vld [vmem:[%s730 + $0x530] sm:$0xff]
                  %899 = vst [vmem:[%s731 + $0x298] sm:$0xff] %v898
                  %v900 = vld [vmem:[%s730 + $0x540] sm:$0xff]
                  %901 = vst [vmem:[%s731 + $0x2a0] sm:$0xff] %v900
                  %v902 = vld [vmem:[%s730 + $0x550] sm:$0xff]
                  %903 = vst [vmem:[%s731 + $0x2a8] sm:$0xff] %v902
                  %v904 = vld [vmem:[%s730 + $0x560] sm:$0xff]
                  %905 = vst [vmem:[%s731 + $0x2b0] sm:$0xff] %v904
                  %v906 = vld [vmem:[%s730 + $0x570] sm:$0xff]
                  %907 = vst [vmem:[%s731 + $0x2b8] sm:$0xff] %v906
                  %v908 = vld [vmem:[%s730 + $0x580] sm:$0xff]
                  %909 = vst [vmem:[%s731 + $0x2c0] sm:$0xff] %v908
                  %v910 = vld [vmem:[%s730 + $0x590] sm:$0xff]
                  %911 = vst [vmem:[%s731 + $0x2c8] sm:$0xff] %v910
                  %v912 = vld [vmem:[%s730 + $0x5a0] sm:$0xff]
                  %913 = vst [vmem:[%s731 + $0x2d0] sm:$0xff] %v912
                  %v914 = vld [vmem:[%s730 + $0x5b0] sm:$0xff]
                  %915 = vst [vmem:[%s731 + $0x2d8] sm:$0xff] %v914
                  %v916 = vld [vmem:[%s730 + $0x5c0] sm:$0xff]
                  %917 = vst [vmem:[%s731 + $0x2e0] sm:$0xff] %v916
                  %v918 = vld [vmem:[%s730 + $0x5d0] sm:$0xff]
                  %919 = vst [vmem:[%s731 + $0x2e8] sm:$0xff] %v918
                  %v920 = vld [vmem:[%s730 + $0x5e0] sm:$0xff]
                  %921 = vst [vmem:[%s731 + $0x2f0] sm:$0xff] %v920
                  %v922 = vld [vmem:[%s730 + $0x5f0] sm:$0xff]
                  %923 = vst [vmem:[%s731 + $0x2f8] sm:$0xff] %v922
                  %v924 = vld [vmem:[%s730 + $0x600] sm:$0xff]
                  %925 = vst [vmem:[%s731 + $0x300] sm:$0xff] %v924
                  %v926 = vld [vmem:[%s730 + $0x610] sm:$0xff]
                  %927 = vst [vmem:[%s731 + $0x308] sm:$0xff] %v926
                  %v928 = vld [vmem:[%s730 + $0x620] sm:$0xff]
                  %929 = vst [vmem:[%s731 + $0x310] sm:$0xff] %v928
                  %v930 = vld [vmem:[%s730 + $0x630] sm:$0xff]
                  %931 = vst [vmem:[%s731 + $0x318] sm:$0xff] %v930
                  %v932 = vld [vmem:[%s730 + $0x640] sm:$0xff]
                  %933 = vst [vmem:[%s731 + $0x320] sm:$0xff] %v932
                  %v934 = vld [vmem:[%s730 + $0x650] sm:$0xff]
                  %935 = vst [vmem:[%s731 + $0x328] sm:$0xff] %v934
                  %v936 = vld [vmem:[%s730 + $0x660] sm:$0xff]
                  %937 = vst [vmem:[%s731 + $0x330] sm:$0xff] %v936
                  %v938 = vld [vmem:[%s730 + $0x670] sm:$0xff]
                  %939 = vst [vmem:[%s731 + $0x338] sm:$0xff] %v938
                  %v940 = vld [vmem:[%s730 + $0x680] sm:$0xff]
                  %941 = vst [vmem:[%s731 + $0x340] sm:$0xff] %v940
                  %v942 = vld [vmem:[%s730 + $0x690] sm:$0xff]
                  %943 = vst [vmem:[%s731 + $0x348] sm:$0xff] %v942
                  %v944 = vld [vmem:[%s730 + $0x6a0] sm:$0xff]
                  %945 = vst [vmem:[%s731 + $0x350] sm:$0xff] %v944
                  %v946 = vld [vmem:[%s730 + $0x6b0] sm:$0xff]
                  %947 = vst [vmem:[%s731 + $0x358] sm:$0xff] %v946
                  %v948 = vld [vmem:[%s730 + $0x6c0] sm:$0xff]
                  %949 = vst [vmem:[%s731 + $0x360] sm:$0xff] %v948
                  %v950 = vld [vmem:[%s730 + $0x6d0] sm:$0xff]
                  %951 = vst [vmem:[%s731 + $0x368] sm:$0xff] %v950
                  %v952 = vld [vmem:[%s730 + $0x6e0] sm:$0xff]
                  %953 = vst [vmem:[%s731 + $0x370] sm:$0xff] %v952
                  %v954 = vld [vmem:[%s730 + $0x6f0] sm:$0xff]
                  %955 = vst [vmem:[%s731 + $0x378] sm:$0xff] %v954
                  %v956 = vld [vmem:[%s730 + $0x700] sm:$0xff]
                  %957 = vst [vmem:[%s731 + $0x380] sm:$0xff] %v956
                  %v958 = vld [vmem:[%s730 + $0x710] sm:$0xff]
                  %959 = vst [vmem:[%s731 + $0x388] sm:$0xff] %v958
                  %v960 = vld [vmem:[%s730 + $0x720] sm:$0xff]
                  %961 = vst [vmem:[%s731 + $0x390] sm:$0xff] %v960
                  %v962 = vld [vmem:[%s730 + $0x730] sm:$0xff]
                  %963 = vst [vmem:[%s731 + $0x398] sm:$0xff] %v962
                  %v964 = vld [vmem:[%s730 + $0x740] sm:$0xff]
                  %965 = vst [vmem:[%s731 + $0x3a0] sm:$0xff] %v964
                  %v966 = vld [vmem:[%s730 + $0x750] sm:$0xff]
                  %967 = vst [vmem:[%s731 + $0x3a8] sm:$0xff] %v966
                  %v968 = vld [vmem:[%s730 + $0x760] sm:$0xff]
                  %969 = vst [vmem:[%s731 + $0x3b0] sm:$0xff] %v968
                  %v970 = vld [vmem:[%s730 + $0x770] sm:$0xff]
                  %971 = vst [vmem:[%s731 + $0x3b8] sm:$0xff] %v970
                  %v972 = vld [vmem:[%s730 + $0x780] sm:$0xff]
                  %973 = vst [vmem:[%s731 + $0x3c0] sm:$0xff] %v972
                  %v974 = vld [vmem:[%s730 + $0x790] sm:$0xff]
                  %975 = vst [vmem:[%s731 + $0x3c8] sm:$0xff] %v974
                  %v976 = vld [vmem:[%s730 + $0x7a0] sm:$0xff]
                  %977 = vst [vmem:[%s731 + $0x3d0] sm:$0xff] %v976
                  %v978 = vld [vmem:[%s730 + $0x7b0] sm:$0xff]
                  %979 = vst [vmem:[%s731 + $0x3d8] sm:$0xff] %v978
                  %v980 = vld [vmem:[%s730 + $0x7c0] sm:$0xff]
                  %981 = vst [vmem:[%s731 + $0x3e0] sm:$0xff] %v980
                  %v982 = vld [vmem:[%s730 + $0x7d0] sm:$0xff]
                  %983 = vst [vmem:[%s731 + $0x3e8] sm:$0xff] %v982
                  %v984 = vld [vmem:[%s730 + $0x7e0] sm:$0xff]
                  %985 = vst [vmem:[%s731 + $0x3f0] sm:$0xff] %v984
                  %v986 = vld [vmem:[%s730 + $0x7f0] sm:$0xff]
                  %987 = vst [vmem:[%s731 + $0x3f8] sm:$0xff] %v986
                  %v988 = vld [vmem:[%s730 + $0x800] sm:$0xff]
                  %989 = vst [vmem:[%s731 + $0x400] sm:$0xff] %v988
                  %v990 = vld [vmem:[%s730 + $0x810] sm:$0xff]
                  %991 = vst [vmem:[%s731 + $0x408] sm:$0xff] %v990
                  %v992 = vld [vmem:[%s730 + $0x820] sm:$0xff]
                  %993 = vst [vmem:[%s731 + $0x410] sm:$0xff] %v992
                  %v994 = vld [vmem:[%s730 + $0x830] sm:$0xff]
                  %995 = vst [vmem:[%s731 + $0x418] sm:$0xff] %v994
                  %v996 = vld [vmem:[%s730 + $0x840] sm:$0xff]
                  %997 = vst [vmem:[%s731 + $0x420] sm:$0xff] %v996
                  %v998 = vld [vmem:[%s730 + $0x850] sm:$0xff]
                  %999 = vst [vmem:[%s731 + $0x428] sm:$0xff] %v998
                  %v1000 = vld [vmem:[%s730 + $0x860] sm:$0xff]
                  %1001 = vst [vmem:[%s731 + $0x430] sm:$0xff] %v1000
                  %v1002 = vld [vmem:[%s730 + $0x870] sm:$0xff]
                  %1003 = vst [vmem:[%s731 + $0x438] sm:$0xff] %v1002
                  %v1004 = vld [vmem:[%s730 + $0x880] sm:$0xff]
                  %1005 = vst [vmem:[%s731 + $0x440] sm:$0xff] %v1004
                  %v1006 = vld [vmem:[%s730 + $0x890] sm:$0xff]
                  %1007 = vst [vmem:[%s731 + $0x448] sm:$0xff] %v1006
                  %v1008 = vld [vmem:[%s730 + $0x8a0] sm:$0xff]
                  %1009 = vst [vmem:[%s731 + $0x450] sm:$0xff] %v1008
                  %v1010 = vld [vmem:[%s730 + $0x8b0] sm:$0xff]
                  %1011 = vst [vmem:[%s731 + $0x458] sm:$0xff] %v1010
                  %v1012 = vld [vmem:[%s730 + $0x8c0] sm:$0xff]
                  %1013 = vst [vmem:[%s731 + $0x460] sm:$0xff] %v1012
                  %v1014 = vld [vmem:[%s730 + $0x8d0] sm:$0xff]
                  %1015 = vst [vmem:[%s731 + $0x468] sm:$0xff] %v1014
                  %v1016 = vld [vmem:[%s730 + $0x8e0] sm:$0xff]
                  %1017 = vst [vmem:[%s731 + $0x470] sm:$0xff] %v1016
                  %v1018 = vld [vmem:[%s730 + $0x8f0] sm:$0xff]
                  %1019 = vst [vmem:[%s731 + $0x478] sm:$0xff] %v1018
                  %v1020 = vld [vmem:[%s730 + $0x900] sm:$0xff]
                  %1021 = vst [vmem:[%s731 + $0x480] sm:$0xff] %v1020
                  %v1022 = vld [vmem:[%s730 + $0x910] sm:$0xff]
                  %1023 = vst [vmem:[%s731 + $0x488] sm:$0xff] %v1022
                  %v1024 = vld [vmem:[%s730 + $0x920] sm:$0xff]
                  %1025 = vst [vmem:[%s731 + $0x490] sm:$0xff] %v1024
                  %v1026 = vld [vmem:[%s730 + $0x930] sm:$0xff]
                  %1027 = vst [vmem:[%s731 + $0x498] sm:$0xff] %v1026
                  %v1028 = vld [vmem:[%s730 + $0x940] sm:$0xff]
                  %1029 = vst [vmem:[%s731 + $0x4a0] sm:$0xff] %v1028
                  %v1030 = vld [vmem:[%s730 + $0x950] sm:$0xff]
                  %1031 = vst [vmem:[%s731 + $0x4a8] sm:$0xff] %v1030
                  %v1032 = vld [vmem:[%s730 + $0x960] sm:$0xff]
                  %1033 = vst [vmem:[%s731 + $0x4b0] sm:$0xff] %v1032
                  %v1034 = vld [vmem:[%s730 + $0x970] sm:$0xff]
                  %1035 = vst [vmem:[%s731 + $0x4b8] sm:$0xff] %v1034
                  %v1036 = vld [vmem:[%s730 + $0x980] sm:$0xff]
                  %1037 = vst [vmem:[%s731 + $0x4c0] sm:$0xff] %v1036
                  %v1038 = vld [vmem:[%s730 + $0x990] sm:$0xff]
                  %1039 = vst [vmem:[%s731 + $0x4c8] sm:$0xff] %v1038
                  %v1040 = vld [vmem:[%s730 + $0x9a0] sm:$0xff]
                  %1041 = vst [vmem:[%s731 + $0x4d0] sm:$0xff] %v1040
                  %v1042 = vld [vmem:[%s730 + $0x9b0] sm:$0xff]
                  %1043 = vst [vmem:[%s731 + $0x4d8] sm:$0xff] %v1042
                  %v1044 = vld [vmem:[%s730 + $0x9c0] sm:$0xff]
                  %1045 = vst [vmem:[%s731 + $0x4e0] sm:$0xff] %v1044
                  %v1046 = vld [vmem:[%s730 + $0x9d0] sm:$0xff]
                  %1047 = vst [vmem:[%s731 + $0x4e8] sm:$0xff] %v1046
                  %v1048 = vld [vmem:[%s730 + $0x9e0] sm:$0xff]
                  %1049 = vst [vmem:[%s731 + $0x4f0] sm:$0xff] %v1048
                  %v1050 = vld [vmem:[%s730 + $0x9f0] sm:$0xff]
                  %1051 = vst [vmem:[%s731 + $0x4f8] sm:$0xff] %v1050
                  %v1052 = vld [vmem:[%s730 + $0xa00] sm:$0xff]
                  %1053 = vst [vmem:[%s731 + $0x500] sm:$0xff] %v1052
                  %v1054 = vld [vmem:[%s730 + $0xa10] sm:$0xff]
                  %1055 = vst [vmem:[%s731 + $0x508] sm:$0xff] %v1054
                  %v1056 = vld [vmem:[%s730 + $0xa20] sm:$0xff]
                  %1057 = vst [vmem:[%s731 + $0x510] sm:$0xff] %v1056
                  %v1058 = vld [vmem:[%s730 + $0xa30] sm:$0xff]
                  %1059 = vst [vmem:[%s731 + $0x518] sm:$0xff] %v1058
                  %v1060 = vld [vmem:[%s730 + $0xa40] sm:$0xff]
                  %1061 = vst [vmem:[%s731 + $0x520] sm:$0xff] %v1060
                  %v1062 = vld [vmem:[%s730 + $0xa50] sm:$0xff]
                  %1063 = vst [vmem:[%s731 + $0x528] sm:$0xff] %v1062
                  %v1064 = vld [vmem:[%s730 + $0xa60] sm:$0xff]
                  %1065 = vst [vmem:[%s731 + $0x530] sm:$0xff] %v1064
                  %v1066 = vld [vmem:[%s730 + $0xa70] sm:$0xff]
                  %1067 = vst [vmem:[%s731 + $0x538] sm:$0xff] %v1066
                  %v1068 = vld [vmem:[%s730 + $0xa80] sm:$0xff]
                  %1069 = vst [vmem:[%s731 + $0x540] sm:$0xff] %v1068
                  %v1070 = vld [vmem:[%s730 + $0xa90] sm:$0xff]
                  %1071 = vst [vmem:[%s731 + $0x548] sm:$0xff] %v1070
                  %v1072 = vld [vmem:[%s730 + $0xaa0] sm:$0xff]
                  %1073 = vst [vmem:[%s731 + $0x550] sm:$0xff] %v1072
                  %v1074 = vld [vmem:[%s730 + $0xab0] sm:$0xff]
                  %1075 = vst [vmem:[%s731 + $0x558] sm:$0xff] %v1074
                  %v1076 = vld [vmem:[%s730 + $0xac0] sm:$0xff]
                  %1077 = vst [vmem:[%s731 + $0x560] sm:$0xff] %v1076
                  %v1078 = vld [vmem:[%s730 + $0xad0] sm:$0xff]
                  %1079 = vst [vmem:[%s731 + $0x568] sm:$0xff] %v1078
                  %v1080 = vld [vmem:[%s730 + $0xae0] sm:$0xff]
                  %1081 = vst [vmem:[%s731 + $0x570] sm:$0xff] %v1080
                  %v1082 = vld [vmem:[%s730 + $0xaf0] sm:$0xff]
                  %1083 = vst [vmem:[%s731 + $0x578] sm:$0xff] %v1082
                  %v1084 = vld [vmem:[%s730 + $0xb00] sm:$0xff]
                  %1085 = vst [vmem:[%s731 + $0x580] sm:$0xff] %v1084
                  %v1086 = vld [vmem:[%s730 + $0xb10] sm:$0xff]
                  %1087 = vst [vmem:[%s731 + $0x588] sm:$0xff] %v1086
                  %v1088 = vld [vmem:[%s730 + $0xb20] sm:$0xff]
                  %1089 = vst [vmem:[%s731 + $0x590] sm:$0xff] %v1088
                  %v1090 = vld [vmem:[%s730 + $0xb30] sm:$0xff]
                  %1091 = vst [vmem:[%s731 + $0x598] sm:$0xff] %v1090
                  %v1092 = vld [vmem:[%s730 + $0xb40] sm:$0xff]
                  %1093 = vst [vmem:[%s731 + $0x5a0] sm:$0xff] %v1092
                  %v1094 = vld [vmem:[%s730 + $0xb50] sm:$0xff]
                  %1095 = vst [vmem:[%s731 + $0x5a8] sm:$0xff] %v1094
                  %v1096 = vld [vmem:[%s730 + $0xb60] sm:$0xff]
                  %1097 = vst [vmem:[%s731 + $0x5b0] sm:$0xff] %v1096
                  %v1098 = vld [vmem:[%s730 + $0xb70] sm:$0xff]
                  %1099 = vst [vmem:[%s731 + $0x5b8] sm:$0xff] %v1098
                  %v1100 = vld [vmem:[%s730 + $0xb80] sm:$0xff]
                  %1101 = vst [vmem:[%s731 + $0x5c0] sm:$0xff] %v1100
                  %v1102 = vld [vmem:[%s730 + $0xb90] sm:$0xff]
                  %1103 = vst [vmem:[%s731 + $0x5c8] sm:$0xff] %v1102
                  %v1104 = vld [vmem:[%s730 + $0xba0] sm:$0xff]
                  %1105 = vst [vmem:[%s731 + $0x5d0] sm:$0xff] %v1104
                  %v1106 = vld [vmem:[%s730 + $0xbb0] sm:$0xff]
                  %1107 = vst [vmem:[%s731 + $0x5d8] sm:$0xff] %v1106
                  %v1108 = vld [vmem:[%s730 + $0xbc0] sm:$0xff]
                  %1109 = vst [vmem:[%s731 + $0x5e0] sm:$0xff] %v1108
                  %v1110 = vld [vmem:[%s730 + $0xbd0] sm:$0xff]
                  %1111 = vst [vmem:[%s731 + $0x5e8] sm:$0xff] %v1110
                  %v1112 = vld [vmem:[%s730 + $0xbe0] sm:$0xff]
                  %1113 = vst [vmem:[%s731 + $0x5f0] sm:$0xff] %v1112
                  %v1114 = vld [vmem:[%s730 + $0xbf0] sm:$0xff]
                  %1115 = vst [vmem:[%s731 + $0x5f8] sm:$0xff] %v1114
                  %v1116 = vld [vmem:[%s730 + $0xc00] sm:$0xff]
                  %1117 = vst [vmem:[%s731 + $0x600] sm:$0xff] %v1116
                  %v1118 = vld [vmem:[%s730 + $0xc10] sm:$0xff]
                  %1119 = vst [vmem:[%s731 + $0x608] sm:$0xff] %v1118
                  %v1120 = vld [vmem:[%s730 + $0xc20] sm:$0xff]
                  %1121 = vst [vmem:[%s731 + $0x610] sm:$0xff] %v1120
                  %v1122 = vld [vmem:[%s730 + $0xc30] sm:$0xff]
                  %1123 = vst [vmem:[%s731 + $0x618] sm:$0xff] %v1122
                  %v1124 = vld [vmem:[%s730 + $0xc40] sm:$0xff]
                  %1125 = vst [vmem:[%s731 + $0x620] sm:$0xff] %v1124
                  %v1126 = vld [vmem:[%s730 + $0xc50] sm:$0xff]
                  %1127 = vst [vmem:[%s731 + $0x628] sm:$0xff] %v1126
                  %v1128 = vld [vmem:[%s730 + $0xc60] sm:$0xff]
                  %1129 = vst [vmem:[%s731 + $0x630] sm:$0xff] %v1128
                  %v1130 = vld [vmem:[%s730 + $0xc70] sm:$0xff]
                  %1131 = vst [vmem:[%s731 + $0x638] sm:$0xff] %v1130
                  %v1132 = vld [vmem:[%s730 + $0xc80] sm:$0xff]
                  %1133 = vst [vmem:[%s731 + $0x640] sm:$0xff] %v1132
                  %v1134 = vld [vmem:[%s730 + $0xc90] sm:$0xff]
                  %1135 = vst [vmem:[%s731 + $0x648] sm:$0xff] %v1134
                  %v1136 = vld [vmem:[%s730 + $0xca0] sm:$0xff]
                  %1137 = vst [vmem:[%s731 + $0x650] sm:$0xff] %v1136
                  %v1138 = vld [vmem:[%s730 + $0xcb0] sm:$0xff]
                  %1139 = vst [vmem:[%s731 + $0x658] sm:$0xff] %v1138
                  %v1140 = vld [vmem:[%s730 + $0xcc0] sm:$0xff]
                  %1141 = vst [vmem:[%s731 + $0x660] sm:$0xff] %v1140
                  %v1142 = vld [vmem:[%s730 + $0xcd0] sm:$0xff]
                  %1143 = vst [vmem:[%s731 + $0x668] sm:$0xff] %v1142
                  %v1144 = vld [vmem:[%s730 + $0xce0] sm:$0xff]
                  %1145 = vst [vmem:[%s731 + $0x670] sm:$0xff] %v1144
                  %v1146 = vld [vmem:[%s730 + $0xcf0] sm:$0xff]
                  %1147 = vst [vmem:[%s731 + $0x678] sm:$0xff] %v1146
                  %v1148 = vld [vmem:[%s730 + $0xd00] sm:$0xff]
                  %1149 = vst [vmem:[%s731 + $0x680] sm:$0xff] %v1148
                  %v1150 = vld [vmem:[%s730 + $0xd10] sm:$0xff]
                  %1151 = vst [vmem:[%s731 + $0x688] sm:$0xff] %v1150
                  %v1152 = vld [vmem:[%s730 + $0xd20] sm:$0xff]
                  %1153 = vst [vmem:[%s731 + $0x690] sm:$0xff] %v1152
                  %v1154 = vld [vmem:[%s730 + $0xd30] sm:$0xff]
                  %1155 = vst [vmem:[%s731 + $0x698] sm:$0xff] %v1154
                  %v1156 = vld [vmem:[%s730 + $0xd40] sm:$0xff]
                  %1157 = vst [vmem:[%s731 + $0x6a0] sm:$0xff] %v1156
                  %v1158 = vld [vmem:[%s730 + $0xd50] sm:$0xff]
                  %1159 = vst [vmem:[%s731 + $0x6a8] sm:$0xff] %v1158
                  %v1160 = vld [vmem:[%s730 + $0xd60] sm:$0xff]
                  %1161 = vst [vmem:[%s731 + $0x6b0] sm:$0xff] %v1160
                  %v1162 = vld [vmem:[%s730 + $0xd70] sm:$0xff]
                  %1163 = vst [vmem:[%s731 + $0x6b8] sm:$0xff] %v1162
                  %v1164 = vld [vmem:[%s730 + $0xd80] sm:$0xff]
                  %1165 = vst [vmem:[%s731 + $0x6c0] sm:$0xff] %v1164
                  %v1166 = vld [vmem:[%s730 + $0xd90] sm:$0xff]
                  %1167 = vst [vmem:[%s731 + $0x6c8] sm:$0xff] %v1166
                  %v1168 = vld [vmem:[%s730 + $0xda0] sm:$0xff]
                  %1169 = vst [vmem:[%s731 + $0x6d0] sm:$0xff] %v1168
                  %v1170 = vld [vmem:[%s730 + $0xdb0] sm:$0xff]
                  %1171 = vst [vmem:[%s731 + $0x6d8] sm:$0xff] %v1170
                  %v1172 = vld [vmem:[%s730 + $0xdc0] sm:$0xff]
                  %1173 = vst [vmem:[%s731 + $0x6e0] sm:$0xff] %v1172
                  %v1174 = vld [vmem:[%s730 + $0xdd0] sm:$0xff]
                  %1175 = vst [vmem:[%s731 + $0x6e8] sm:$0xff] %v1174
                  %v1176 = vld [vmem:[%s730 + $0xde0] sm:$0xff]
                  %1177 = vst [vmem:[%s731 + $0x6f0] sm:$0xff] %v1176
                  %v1178 = vld [vmem:[%s730 + $0xdf0] sm:$0xff]
                  %1179 = vst [vmem:[%s731 + $0x6f8] sm:$0xff] %v1178
                  %v1180 = vld [vmem:[%s730 + $0xe00] sm:$0xff]
                  %1181 = vst [vmem:[%s731 + $0x700] sm:$0xff] %v1180
                  %v1182 = vld [vmem:[%s730 + $0xe10] sm:$0xff]
                  %1183 = vst [vmem:[%s731 + $0x708] sm:$0xff] %v1182
                  %v1184 = vld [vmem:[%s730 + $0xe20] sm:$0xff]
                  %1185 = vst [vmem:[%s731 + $0x710] sm:$0xff] %v1184
                  %v1186 = vld [vmem:[%s730 + $0xe30] sm:$0xff]
                  %1187 = vst [vmem:[%s731 + $0x718] sm:$0xff] %v1186
                  %v1188 = vld [vmem:[%s730 + $0xe40] sm:$0xff]
                  %1189 = vst [vmem:[%s731 + $0x720] sm:$0xff] %v1188
                  %v1190 = vld [vmem:[%s730 + $0xe50] sm:$0xff]
                  %1191 = vst [vmem:[%s731 + $0x728] sm:$0xff] %v1190
                  %v1192 = vld [vmem:[%s730 + $0xe60] sm:$0xff]
                  %1193 = vst [vmem:[%s731 + $0x730] sm:$0xff] %v1192
                  %v1194 = vld [vmem:[%s730 + $0xe70] sm:$0xff]
                  %1195 = vst [vmem:[%s731 + $0x738] sm:$0xff] %v1194
                  %v1196 = vld [vmem:[%s730 + $0xe80] sm:$0xff]
                  %1197 = vst [vmem:[%s731 + $0x740] sm:$0xff] %v1196
                  %v1198 = vld [vmem:[%s730 + $0xe90] sm:$0xff]
                  %1199 = vst [vmem:[%s731 + $0x748] sm:$0xff] %v1198
                  %v1200 = vld [vmem:[%s730 + $0xea0] sm:$0xff]
                  %1201 = vst [vmem:[%s731 + $0x750] sm:$0xff] %v1200
                  %v1202 = vld [vmem:[%s730 + $0xeb0] sm:$0xff]
                  %1203 = vst [vmem:[%s731 + $0x758] sm:$0xff] %v1202
                  %v1204 = vld [vmem:[%s730 + $0xec0] sm:$0xff]
                  %1205 = vst [vmem:[%s731 + $0x760] sm:$0xff] %v1204
                  %v1206 = vld [vmem:[%s730 + $0xed0] sm:$0xff]
                  %1207 = vst [vmem:[%s731 + $0x768] sm:$0xff] %v1206
                  %v1208 = vld [vmem:[%s730 + $0xee0] sm:$0xff]
                  %1209 = vst [vmem:[%s731 + $0x770] sm:$0xff] %v1208
                  %v1210 = vld [vmem:[%s730 + $0xef0] sm:$0xff]
                  %1211 = vst [vmem:[%s731 + $0x778] sm:$0xff] %v1210
                  %v1212 = vld [vmem:[%s730 + $0xf00] sm:$0xff]
                  %1213 = vst [vmem:[%s731 + $0x780] sm:$0xff] %v1212
                  %v1214 = vld [vmem:[%s730 + $0xf10] sm:$0xff]
                  %1215 = vst [vmem:[%s731 + $0x788] sm:$0xff] %v1214
                  %v1216 = vld [vmem:[%s730 + $0xf20] sm:$0xff]
                  %1217 = vst [vmem:[%s731 + $0x790] sm:$0xff] %v1216
                  %v1218 = vld [vmem:[%s730 + $0xf30] sm:$0xff]
                  %1219 = vst [vmem:[%s731 + $0x798] sm:$0xff] %v1218
                  %v1220 = vld [vmem:[%s730 + $0xf40] sm:$0xff]
                  %1221 = vst [vmem:[%s731 + $0x7a0] sm:$0xff] %v1220
                  %v1222 = vld [vmem:[%s730 + $0xf50] sm:$0xff]
                  %1223 = vst [vmem:[%s731 + $0x7a8] sm:$0xff] %v1222
                  %v1224 = vld [vmem:[%s730 + $0xf60] sm:$0xff]
                  %1225 = vst [vmem:[%s731 + $0x7b0] sm:$0xff] %v1224
                  %v1226 = vld [vmem:[%s730 + $0xf70] sm:$0xff]
                  %1227 = vst [vmem:[%s731 + $0x7b8] sm:$0xff] %v1226
                  %v1228 = vld [vmem:[%s730 + $0xf80] sm:$0xff]
                  %1229 = vst [vmem:[%s731 + $0x7c0] sm:$0xff] %v1228
                  %v1230 = vld [vmem:[%s730 + $0xf90] sm:$0xff]
                  %1231 = vst [vmem:[%s731 + $0x7c8] sm:$0xff] %v1230
                  %v1232 = vld [vmem:[%s730 + $0xfa0] sm:$0xff]
                  %1233 = vst [vmem:[%s731 + $0x7d0] sm:$0xff] %v1232
                  %v1234 = vld [vmem:[%s730 + $0xfb0] sm:$0xff]
                  %1235 = vst [vmem:[%s731 + $0x7d8] sm:$0xff] %v1234
                  %v1236 = vld [vmem:[%s730 + $0xfc0] sm:$0xff]
                  %1237 = vst [vmem:[%s731 + $0x7e0] sm:$0xff] %v1236
                  %v1238 = vld [vmem:[%s730 + $0xfd0] sm:$0xff]
                  %1239 = vst [vmem:[%s731 + $0x7e8] sm:$0xff] %v1238
                  %v1240 = vld [vmem:[%s730 + $0xfe0] sm:$0xff]
                  %1241 = vst [vmem:[%s731 + $0x7f0] sm:$0xff] %v1240
                  %v1242 = vld [vmem:[%s730 + $0xff0] sm:$0xff]
                  %1243 = vst [vmem:[%s731 + $0x7f8] sm:$0xff] %v1242
                $region52: #{detection_model_forward.7} parent=46 // loop_footer
                  %s729 = sadd.s32 1, %s725
                $region53: #{detection_model_forward.7} parent=46 // loop_footer_branch
                  %724 = sbr.rel target = $region49
                $region54: #{detection_model_forward.7} parent=46 // loop_exit
                  _
              $region47: #{detection_model_forward.7} parent=31 // pred_fallthru
                _
              // Predicated region
              $region55: #{detection_model_forward.7} parent=31 // pred_check
                _
              $region56: #{detection_model_forward.7} parent=31 // pred_check_branch
                %1245 = sbr.rel target = $region58
              $region57: #{detection_model_forward.7} parent=31 // pred_region
                _
              $region58: #{detection_model_forward.7} parent=31 // pred_fallthru
                _
            $region32: #{detection_model_forward.7} parent=27 // pred_fallthru
              _
            // Predicated region
            $region33: #{detection_model_forward.7} parent=27 // pred_check
              _
            $region34: #{detection_model_forward.7} parent=27 // pred_check_branch
              %199 = sbr.rel target = $region36
            $region35: #{detection_model_forward.7} parent=27 // pred_region
              %s201 = ssub.s32 256, 1
              loop: start=0, step=1, limit=1
              $region37: #{detection_model_forward.7} parent=35 // loop_pre_header
                _
              $region38: #{detection_model_forward.7} parent=35 // loop_header
                %s203 = sphi 0, %s207
                %p204 = scmp.ge.s32.totalorder %s203, 1
                %s208 = sphi %s193, %s193
                %s209 = sphi %s187, %s187
              $region39: #{detection_model_forward.7} parent=35 // loop_header_branch
                %206 = sbr.rel (%p204) target = $region43
              $region40: #{detection_model_forward.7} parent=35 // loop_body
                %v210 = vld [vmem:[%s208] sm:%s201]
                %211 = vst [vmem:[%s209] sm:%s201] %v210
                %v212 = vld [vmem:[%s208 + $0x10] sm:%s201]
                %213 = vst [vmem:[%s209 + $0x8] sm:%s201] %v212
                %v214 = vld [vmem:[%s208 + $0x20] sm:%s201]
                %215 = vst [vmem:[%s209 + $0x10] sm:%s201] %v214
                %v216 = vld [vmem:[%s208 + $0x30] sm:%s201]
                %217 = vst [vmem:[%s209 + $0x18] sm:%s201] %v216
                %v218 = vld [vmem:[%s208 + $0x40] sm:%s201]
                %219 = vst [vmem:[%s209 + $0x20] sm:%s201] %v218
                %v220 = vld [vmem:[%s208 + $0x50] sm:%s201]
                %221 = vst [vmem:[%s209 + $0x28] sm:%s201] %v220
                %v222 = vld [vmem:[%s208 + $0x60] sm:%s201]
                %223 = vst [vmem:[%s209 + $0x30] sm:%s201] %v222
                %v224 = vld [vmem:[%s208 + $0x70] sm:%s201]
                %225 = vst [vmem:[%s209 + $0x38] sm:%s201] %v224
                %v226 = vld [vmem:[%s208 + $0x80] sm:%s201]
                %227 = vst [vmem:[%s209 + $0x40] sm:%s201] %v226
                %v228 = vld [vmem:[%s208 + $0x90] sm:%s201]
                %229 = vst [vmem:[%s209 + $0x48] sm:%s201] %v228
                %v230 = vld [vmem:[%s208 + $0xa0] sm:%s201]
                %231 = vst [vmem:[%s209 + $0x50] sm:%s201] %v230
                %v232 = vld [vmem:[%s208 + $0xb0] sm:%s201]
                %233 = vst [vmem:[%s209 + $0x58] sm:%s201] %v232
                %v234 = vld [vmem:[%s208 + $0xc0] sm:%s201]
                %235 = vst [vmem:[%s209 + $0x60] sm:%s201] %v234
                %v236 = vld [vmem:[%s208 + $0xd0] sm:%s201]
                %237 = vst [vmem:[%s209 + $0x68] sm:%s201] %v236
                %v238 = vld [vmem:[%s208 + $0xe0] sm:%s201]
                %239 = vst [vmem:[%s209 + $0x70] sm:%s201] %v238
                %v240 = vld [vmem:[%s208 + $0xf0] sm:%s201]
                %241 = vst [vmem:[%s209 + $0x78] sm:%s201] %v240
                %v242 = vld [vmem:[%s208 + $0x100] sm:%s201]
                %243 = vst [vmem:[%s209 + $0x80] sm:%s201] %v242
                %v244 = vld [vmem:[%s208 + $0x110] sm:%s201]
                %245 = vst [vmem:[%s209 + $0x88] sm:%s201] %v244
                %v246 = vld [vmem:[%s208 + $0x120] sm:%s201]
                %247 = vst [vmem:[%s209 + $0x90] sm:%s201] %v246
                %v248 = vld [vmem:[%s208 + $0x130] sm:%s201]
                %249 = vst [vmem:[%s209 + $0x98] sm:%s201] %v248
                %v250 = vld [vmem:[%s208 + $0x140] sm:%s201]
                %251 = vst [vmem:[%s209 + $0xa0] sm:%s201] %v250
                %v252 = vld [vmem:[%s208 + $0x150] sm:%s201]
                %253 = vst [vmem:[%s209 + $0xa8] sm:%s201] %v252
                %v254 = vld [vmem:[%s208 + $0x160] sm:%s201]
                %255 = vst [vmem:[%s209 + $0xb0] sm:%s201] %v254
                %v256 = vld [vmem:[%s208 + $0x170] sm:%s201]
                %257 = vst [vmem:[%s209 + $0xb8] sm:%s201] %v256
                %v258 = vld [vmem:[%s208 + $0x180] sm:%s201]
                %259 = vst [vmem:[%s209 + $0xc0] sm:%s201] %v258
                %v260 = vld [vmem:[%s208 + $0x190] sm:%s201]
                %261 = vst [vmem:[%s209 + $0xc8] sm:%s201] %v260
                %v262 = vld [vmem:[%s208 + $0x1a0] sm:%s201]
                %263 = vst [vmem:[%s209 + $0xd0] sm:%s201] %v262
                %v264 = vld [vmem:[%s208 + $0x1b0] sm:%s201]
                %265 = vst [vmem:[%s209 + $0xd8] sm:%s201] %v264
                %v266 = vld [vmem:[%s208 + $0x1c0] sm:%s201]
                %267 = vst [vmem:[%s209 + $0xe0] sm:%s201] %v266
                %v268 = vld [vmem:[%s208 + $0x1d0] sm:%s201]
                %269 = vst [vmem:[%s209 + $0xe8] sm:%s201] %v268
                %v270 = vld [vmem:[%s208 + $0x1e0] sm:%s201]
                %271 = vst [vmem:[%s209 + $0xf0] sm:%s201] %v270
                %v272 = vld [vmem:[%s208 + $0x1f0] sm:%s201]
                %273 = vst [vmem:[%s209 + $0xf8] sm:%s201] %v272
                %v274 = vld [vmem:[%s208 + $0x200] sm:%s201]
                %275 = vst [vmem:[%s209 + $0x100] sm:%s201] %v274
                %v276 = vld [vmem:[%s208 + $0x210] sm:%s201]
                %277 = vst [vmem:[%s209 + $0x108] sm:%s201] %v276
                %v278 = vld [vmem:[%s208 + $0x220] sm:%s201]
                %279 = vst [vmem:[%s209 + $0x110] sm:%s201] %v278
                %v280 = vld [vmem:[%s208 + $0x230] sm:%s201]
                %281 = vst [vmem:[%s209 + $0x118] sm:%s201] %v280
                %v282 = vld [vmem:[%s208 + $0x240] sm:%s201]
                %283 = vst [vmem:[%s209 + $0x120] sm:%s201] %v282
                %v284 = vld [vmem:[%s208 + $0x250] sm:%s201]
                %285 = vst [vmem:[%s209 + $0x128] sm:%s201] %v284
                %v286 = vld [vmem:[%s208 + $0x260] sm:%s201]
                %287 = vst [vmem:[%s209 + $0x130] sm:%s201] %v286
                %v288 = vld [vmem:[%s208 + $0x270] sm:%s201]
                %289 = vst [vmem:[%s209 + $0x138] sm:%s201] %v288
                %v290 = vld [vmem:[%s208 + $0x280] sm:%s201]
                %291 = vst [vmem:[%s209 + $0x140] sm:%s201] %v290
                %v292 = vld [vmem:[%s208 + $0x290] sm:%s201]
                %293 = vst [vmem:[%s209 + $0x148] sm:%s201] %v292
                %v294 = vld [vmem:[%s208 + $0x2a0] sm:%s201]
                %295 = vst [vmem:[%s209 + $0x150] sm:%s201] %v294
                %v296 = vld [vmem:[%s208 + $0x2b0] sm:%s201]
                %297 = vst [vmem:[%s209 + $0x158] sm:%s201] %v296
                %v298 = vld [vmem:[%s208 + $0x2c0] sm:%s201]
                %299 = vst [vmem:[%s209 + $0x160] sm:%s201] %v298
                %v300 = vld [vmem:[%s208 + $0x2d0] sm:%s201]
                %301 = vst [vmem:[%s209 + $0x168] sm:%s201] %v300
                %v302 = vld [vmem:[%s208 + $0x2e0] sm:%s201]
                %303 = vst [vmem:[%s209 + $0x170] sm:%s201] %v302
                %v304 = vld [vmem:[%s208 + $0x2f0] sm:%s201]
                %305 = vst [vmem:[%s209 + $0x178] sm:%s201] %v304
                %v306 = vld [vmem:[%s208 + $0x300] sm:%s201]
                %307 = vst [vmem:[%s209 + $0x180] sm:%s201] %v306
                %v308 = vld [vmem:[%s208 + $0x310] sm:%s201]
                %309 = vst [vmem:[%s209 + $0x188] sm:%s201] %v308
                %v310 = vld [vmem:[%s208 + $0x320] sm:%s201]
                %311 = vst [vmem:[%s209 + $0x190] sm:%s201] %v310
                %v312 = vld [vmem:[%s208 + $0x330] sm:%s201]
                %313 = vst [vmem:[%s209 + $0x198] sm:%s201] %v312
                %v314 = vld [vmem:[%s208 + $0x340] sm:%s201]
                %315 = vst [vmem:[%s209 + $0x1a0] sm:%s201] %v314
                %v316 = vld [vmem:[%s208 + $0x350] sm:%s201]
                %317 = vst [vmem:[%s209 + $0x1a8] sm:%s201] %v316
                %v318 = vld [vmem:[%s208 + $0x360] sm:%s201]
                %319 = vst [vmem:[%s209 + $0x1b0] sm:%s201] %v318
                %v320 = vld [vmem:[%s208 + $0x370] sm:%s201]
                %321 = vst [vmem:[%s209 + $0x1b8] sm:%s201] %v320
                %v322 = vld [vmem:[%s208 + $0x380] sm:%s201]
                %323 = vst [vmem:[%s209 + $0x1c0] sm:%s201] %v322
                %v324 = vld [vmem:[%s208 + $0x390] sm:%s201]
                %325 = vst [vmem:[%s209 + $0x1c8] sm:%s201] %v324
                %v326 = vld [vmem:[%s208 + $0x3a0] sm:%s201]
                %327 = vst [vmem:[%s209 + $0x1d0] sm:%s201] %v326
                %v328 = vld [vmem:[%s208 + $0x3b0] sm:%s201]
                %329 = vst [vmem:[%s209 + $0x1d8] sm:%s201] %v328
                %v330 = vld [vmem:[%s208 + $0x3c0] sm:%s201]
                %331 = vst [vmem:[%s209 + $0x1e0] sm:%s201] %v330
                %v332 = vld [vmem:[%s208 + $0x3d0] sm:%s201]
                %333 = vst [vmem:[%s209 + $0x1e8] sm:%s201] %v332
                %v334 = vld [vmem:[%s208 + $0x3e0] sm:%s201]
                %335 = vst [vmem:[%s209 + $0x1f0] sm:%s201] %v334
                %v336 = vld [vmem:[%s208 + $0x3f0] sm:%s201]
                %337 = vst [vmem:[%s209 + $0x1f8] sm:%s201] %v336
                %v338 = vld [vmem:[%s208 + $0x400] sm:%s201]
                %339 = vst [vmem:[%s209 + $0x200] sm:%s201] %v338
                %v340 = vld [vmem:[%s208 + $0x410] sm:%s201]
                %341 = vst [vmem:[%s209 + $0x208] sm:%s201] %v340
                %v342 = vld [vmem:[%s208 + $0x420] sm:%s201]
                %343 = vst [vmem:[%s209 + $0x210] sm:%s201] %v342
                %v344 = vld [vmem:[%s208 + $0x430] sm:%s201]
                %345 = vst [vmem:[%s209 + $0x218] sm:%s201] %v344
                %v346 = vld [vmem:[%s208 + $0x440] sm:%s201]
                %347 = vst [vmem:[%s209 + $0x220] sm:%s201] %v346
                %v348 = vld [vmem:[%s208 + $0x450] sm:%s201]
                %349 = vst [vmem:[%s209 + $0x228] sm:%s201] %v348
                %v350 = vld [vmem:[%s208 + $0x460] sm:%s201]
                %351 = vst [vmem:[%s209 + $0x230] sm:%s201] %v350
                %v352 = vld [vmem:[%s208 + $0x470] sm:%s201]
                %353 = vst [vmem:[%s209 + $0x238] sm:%s201] %v352
                %v354 = vld [vmem:[%s208 + $0x480] sm:%s201]
                %355 = vst [vmem:[%s209 + $0x240] sm:%s201] %v354
                %v356 = vld [vmem:[%s208 + $0x490] sm:%s201]
                %357 = vst [vmem:[%s209 + $0x248] sm:%s201] %v356
                %v358 = vld [vmem:[%s208 + $0x4a0] sm:%s201]
                %359 = vst [vmem:[%s209 + $0x250] sm:%s201] %v358
                %v360 = vld [vmem:[%s208 + $0x4b0] sm:%s201]
                %361 = vst [vmem:[%s209 + $0x258] sm:%s201] %v360
                %v362 = vld [vmem:[%s208 + $0x4c0] sm:%s201]
                %363 = vst [vmem:[%s209 + $0x260] sm:%s201] %v362
                %v364 = vld [vmem:[%s208 + $0x4d0] sm:%s201]
                %365 = vst [vmem:[%s209 + $0x268] sm:%s201] %v364
                %v366 = vld [vmem:[%s208 + $0x4e0] sm:%s201]
                %367 = vst [vmem:[%s209 + $0x270] sm:%s201] %v366
                %v368 = vld [vmem:[%s208 + $0x4f0] sm:%s201]
                %369 = vst [vmem:[%s209 + $0x278] sm:%s201] %v368
                %v370 = vld [vmem:[%s208 + $0x500] sm:%s201]
                %371 = vst [vmem:[%s209 + $0x280] sm:%s201] %v370
                %v372 = vld [vmem:[%s208 + $0x510] sm:%s201]
                %373 = vst [vmem:[%s209 + $0x288] sm:%s201] %v372
                %v374 = vld [vmem:[%s208 + $0x520] sm:%s201]
                %375 = vst [vmem:[%s209 + $0x290] sm:%s201] %v374
                %v376 = vld [vmem:[%s208 + $0x530] sm:%s201]
                %377 = vst [vmem:[%s209 + $0x298] sm:%s201] %v376
                %v378 = vld [vmem:[%s208 + $0x540] sm:%s201]
                %379 = vst [vmem:[%s209 + $0x2a0] sm:%s201] %v378
                %v380 = vld [vmem:[%s208 + $0x550] sm:%s201]
                %381 = vst [vmem:[%s209 + $0x2a8] sm:%s201] %v380
                %v382 = vld [vmem:[%s208 + $0x560] sm:%s201]
                %383 = vst [vmem:[%s209 + $0x2b0] sm:%s201] %v382
                %v384 = vld [vmem:[%s208 + $0x570] sm:%s201]
                %385 = vst [vmem:[%s209 + $0x2b8] sm:%s201] %v384
                %v386 = vld [vmem:[%s208 + $0x580] sm:%s201]
                %387 = vst [vmem:[%s209 + $0x2c0] sm:%s201] %v386
                %v388 = vld [vmem:[%s208 + $0x590] sm:%s201]
                %389 = vst [vmem:[%s209 + $0x2c8] sm:%s201] %v388
                %v390 = vld [vmem:[%s208 + $0x5a0] sm:%s201]
                %391 = vst [vmem:[%s209 + $0x2d0] sm:%s201] %v390
                %v392 = vld [vmem:[%s208 + $0x5b0] sm:%s201]
                %393 = vst [vmem:[%s209 + $0x2d8] sm:%s201] %v392
                %v394 = vld [vmem:[%s208 + $0x5c0] sm:%s201]
                %395 = vst [vmem:[%s209 + $0x2e0] sm:%s201] %v394
                %v396 = vld [vmem:[%s208 + $0x5d0] sm:%s201]
                %397 = vst [vmem:[%s209 + $0x2e8] sm:%s201] %v396
                %v398 = vld [vmem:[%s208 + $0x5e0] sm:%s201]
                %399 = vst [vmem:[%s209 + $0x2f0] sm:%s201] %v398
                %v400 = vld [vmem:[%s208 + $0x5f0] sm:%s201]
                %401 = vst [vmem:[%s209 + $0x2f8] sm:%s201] %v400
                %v402 = vld [vmem:[%s208 + $0x600] sm:%s201]
                %403 = vst [vmem:[%s209 + $0x300] sm:%s201] %v402
                %v404 = vld [vmem:[%s208 + $0x610] sm:%s201]
                %405 = vst [vmem:[%s209 + $0x308] sm:%s201] %v404
                %v406 = vld [vmem:[%s208 + $0x620] sm:%s201]
                %407 = vst [vmem:[%s209 + $0x310] sm:%s201] %v406
                %v408 = vld [vmem:[%s208 + $0x630] sm:%s201]
                %409 = vst [vmem:[%s209 + $0x318] sm:%s201] %v408
                %v410 = vld [vmem:[%s208 + $0x640] sm:%s201]
                %411 = vst [vmem:[%s209 + $0x320] sm:%s201] %v410
                %v412 = vld [vmem:[%s208 + $0x650] sm:%s201]
                %413 = vst [vmem:[%s209 + $0x328] sm:%s201] %v412
                %v414 = vld [vmem:[%s208 + $0x660] sm:%s201]
                %415 = vst [vmem:[%s209 + $0x330] sm:%s201] %v414
                %v416 = vld [vmem:[%s208 + $0x670] sm:%s201]
                %417 = vst [vmem:[%s209 + $0x338] sm:%s201] %v416
                %v418 = vld [vmem:[%s208 + $0x680] sm:%s201]
                %419 = vst [vmem:[%s209 + $0x340] sm:%s201] %v418
                %v420 = vld [vmem:[%s208 + $0x690] sm:%s201]
                %421 = vst [vmem:[%s209 + $0x348] sm:%s201] %v420
                %v422 = vld [vmem:[%s208 + $0x6a0] sm:%s201]
                %423 = vst [vmem:[%s209 + $0x350] sm:%s201] %v422
                %v424 = vld [vmem:[%s208 + $0x6b0] sm:%s201]
                %425 = vst [vmem:[%s209 + $0x358] sm:%s201] %v424
                %v426 = vld [vmem:[%s208 + $0x6c0] sm:%s201]
                %427 = vst [vmem:[%s209 + $0x360] sm:%s201] %v426
                %v428 = vld [vmem:[%s208 + $0x6d0] sm:%s201]
                %429 = vst [vmem:[%s209 + $0x368] sm:%s201] %v428
                %v430 = vld [vmem:[%s208 + $0x6e0] sm:%s201]
                %431 = vst [vmem:[%s209 + $0x370] sm:%s201] %v430
                %v432 = vld [vmem:[%s208 + $0x6f0] sm:%s201]
                %433 = vst [vmem:[%s209 + $0x378] sm:%s201] %v432
                %v434 = vld [vmem:[%s208 + $0x700] sm:%s201]
                %435 = vst [vmem:[%s209 + $0x380] sm:%s201] %v434
                %v436 = vld [vmem:[%s208 + $0x710] sm:%s201]
                %437 = vst [vmem:[%s209 + $0x388] sm:%s201] %v436
                %v438 = vld [vmem:[%s208 + $0x720] sm:%s201]
                %439 = vst [vmem:[%s209 + $0x390] sm:%s201] %v438
                %v440 = vld [vmem:[%s208 + $0x730] sm:%s201]
                %441 = vst [vmem:[%s209 + $0x398] sm:%s201] %v440
                %v442 = vld [vmem:[%s208 + $0x740] sm:%s201]
                %443 = vst [vmem:[%s209 + $0x3a0] sm:%s201] %v442
                %v444 = vld [vmem:[%s208 + $0x750] sm:%s201]
                %445 = vst [vmem:[%s209 + $0x3a8] sm:%s201] %v444
                %v446 = vld [vmem:[%s208 + $0x760] sm:%s201]
                %447 = vst [vmem:[%s209 + $0x3b0] sm:%s201] %v446
                %v448 = vld [vmem:[%s208 + $0x770] sm:%s201]
                %449 = vst [vmem:[%s209 + $0x3b8] sm:%s201] %v448
                %v450 = vld [vmem:[%s208 + $0x780] sm:%s201]
                %451 = vst [vmem:[%s209 + $0x3c0] sm:%s201] %v450
                %v452 = vld [vmem:[%s208 + $0x790] sm:%s201]
                %453 = vst [vmem:[%s209 + $0x3c8] sm:%s201] %v452
                %v454 = vld [vmem:[%s208 + $0x7a0] sm:%s201]
                %455 = vst [vmem:[%s209 + $0x3d0] sm:%s201] %v454
                %v456 = vld [vmem:[%s208 + $0x7b0] sm:%s201]
                %457 = vst [vmem:[%s209 + $0x3d8] sm:%s201] %v456
                %v458 = vld [vmem:[%s208 + $0x7c0] sm:%s201]
                %459 = vst [vmem:[%s209 + $0x3e0] sm:%s201] %v458
                %v460 = vld [vmem:[%s208 + $0x7d0] sm:%s201]
                %461 = vst [vmem:[%s209 + $0x3e8] sm:%s201] %v460
                %v462 = vld [vmem:[%s208 + $0x7e0] sm:%s201]
                %463 = vst [vmem:[%s209 + $0x3f0] sm:%s201] %v462
                %v464 = vld [vmem:[%s208 + $0x7f0] sm:%s201]
                %465 = vst [vmem:[%s209 + $0x3f8] sm:%s201] %v464
                %v466 = vld [vmem:[%s208 + $0x800] sm:%s201]
                %467 = vst [vmem:[%s209 + $0x400] sm:%s201] %v466
                %v468 = vld [vmem:[%s208 + $0x810] sm:%s201]
                %469 = vst [vmem:[%s209 + $0x408] sm:%s201] %v468
                %v470 = vld [vmem:[%s208 + $0x820] sm:%s201]
                %471 = vst [vmem:[%s209 + $0x410] sm:%s201] %v470
                %v472 = vld [vmem:[%s208 + $0x830] sm:%s201]
                %473 = vst [vmem:[%s209 + $0x418] sm:%s201] %v472
                %v474 = vld [vmem:[%s208 + $0x840] sm:%s201]
                %475 = vst [vmem:[%s209 + $0x420] sm:%s201] %v474
                %v476 = vld [vmem:[%s208 + $0x850] sm:%s201]
                %477 = vst [vmem:[%s209 + $0x428] sm:%s201] %v476
                %v478 = vld [vmem:[%s208 + $0x860] sm:%s201]
                %479 = vst [vmem:[%s209 + $0x430] sm:%s201] %v478
                %v480 = vld [vmem:[%s208 + $0x870] sm:%s201]
                %481 = vst [vmem:[%s209 + $0x438] sm:%s201] %v480
                %v482 = vld [vmem:[%s208 + $0x880] sm:%s201]
                %483 = vst [vmem:[%s209 + $0x440] sm:%s201] %v482
                %v484 = vld [vmem:[%s208 + $0x890] sm:%s201]
                %485 = vst [vmem:[%s209 + $0x448] sm:%s201] %v484
                %v486 = vld [vmem:[%s208 + $0x8a0] sm:%s201]
                %487 = vst [vmem:[%s209 + $0x450] sm:%s201] %v486
                %v488 = vld [vmem:[%s208 + $0x8b0] sm:%s201]
                %489 = vst [vmem:[%s209 + $0x458] sm:%s201] %v488
                %v490 = vld [vmem:[%s208 + $0x8c0] sm:%s201]
                %491 = vst [vmem:[%s209 + $0x460] sm:%s201] %v490
                %v492 = vld [vmem:[%s208 + $0x8d0] sm:%s201]
                %493 = vst [vmem:[%s209 + $0x468] sm:%s201] %v492
                %v494 = vld [vmem:[%s208 + $0x8e0] sm:%s201]
                %495 = vst [vmem:[%s209 + $0x470] sm:%s201] %v494
                %v496 = vld [vmem:[%s208 + $0x8f0] sm:%s201]
                %497 = vst [vmem:[%s209 + $0x478] sm:%s201] %v496
                %v498 = vld [vmem:[%s208 + $0x900] sm:%s201]
                %499 = vst [vmem:[%s209 + $0x480] sm:%s201] %v498
                %v500 = vld [vmem:[%s208 + $0x910] sm:%s201]
                %501 = vst [vmem:[%s209 + $0x488] sm:%s201] %v500
                %v502 = vld [vmem:[%s208 + $0x920] sm:%s201]
                %503 = vst [vmem:[%s209 + $0x490] sm:%s201] %v502
                %v504 = vld [vmem:[%s208 + $0x930] sm:%s201]
                %505 = vst [vmem:[%s209 + $0x498] sm:%s201] %v504
                %v506 = vld [vmem:[%s208 + $0x940] sm:%s201]
                %507 = vst [vmem:[%s209 + $0x4a0] sm:%s201] %v506
                %v508 = vld [vmem:[%s208 + $0x950] sm:%s201]
                %509 = vst [vmem:[%s209 + $0x4a8] sm:%s201] %v508
                %v510 = vld [vmem:[%s208 + $0x960] sm:%s201]
                %511 = vst [vmem:[%s209 + $0x4b0] sm:%s201] %v510
                %v512 = vld [vmem:[%s208 + $0x970] sm:%s201]
                %513 = vst [vmem:[%s209 + $0x4b8] sm:%s201] %v512
                %v514 = vld [vmem:[%s208 + $0x980] sm:%s201]
                %515 = vst [vmem:[%s209 + $0x4c0] sm:%s201] %v514
                %v516 = vld [vmem:[%s208 + $0x990] sm:%s201]
                %517 = vst [vmem:[%s209 + $0x4c8] sm:%s201] %v516
                %v518 = vld [vmem:[%s208 + $0x9a0] sm:%s201]
                %519 = vst [vmem:[%s209 + $0x4d0] sm:%s201] %v518
                %v520 = vld [vmem:[%s208 + $0x9b0] sm:%s201]
                %521 = vst [vmem:[%s209 + $0x4d8] sm:%s201] %v520
                %v522 = vld [vmem:[%s208 + $0x9c0] sm:%s201]
                %523 = vst [vmem:[%s209 + $0x4e0] sm:%s201] %v522
                %v524 = vld [vmem:[%s208 + $0x9d0] sm:%s201]
                %525 = vst [vmem:[%s209 + $0x4e8] sm:%s201] %v524
                %v526 = vld [vmem:[%s208 + $0x9e0] sm:%s201]
                %527 = vst [vmem:[%s209 + $0x4f0] sm:%s201] %v526
                %v528 = vld [vmem:[%s208 + $0x9f0] sm:%s201]
                %529 = vst [vmem:[%s209 + $0x4f8] sm:%s201] %v528
                %v530 = vld [vmem:[%s208 + $0xa00] sm:%s201]
                %531 = vst [vmem:[%s209 + $0x500] sm:%s201] %v530
                %v532 = vld [vmem:[%s208 + $0xa10] sm:%s201]
                %533 = vst [vmem:[%s209 + $0x508] sm:%s201] %v532
                %v534 = vld [vmem:[%s208 + $0xa20] sm:%s201]
                %535 = vst [vmem:[%s209 + $0x510] sm:%s201] %v534
                %v536 = vld [vmem:[%s208 + $0xa30] sm:%s201]
                %537 = vst [vmem:[%s209 + $0x518] sm:%s201] %v536
                %v538 = vld [vmem:[%s208 + $0xa40] sm:%s201]
                %539 = vst [vmem:[%s209 + $0x520] sm:%s201] %v538
                %v540 = vld [vmem:[%s208 + $0xa50] sm:%s201]
                %541 = vst [vmem:[%s209 + $0x528] sm:%s201] %v540
                %v542 = vld [vmem:[%s208 + $0xa60] sm:%s201]
                %543 = vst [vmem:[%s209 + $0x530] sm:%s201] %v542
                %v544 = vld [vmem:[%s208 + $0xa70] sm:%s201]
                %545 = vst [vmem:[%s209 + $0x538] sm:%s201] %v544
                %v546 = vld [vmem:[%s208 + $0xa80] sm:%s201]
                %547 = vst [vmem:[%s209 + $0x540] sm:%s201] %v546
                %v548 = vld [vmem:[%s208 + $0xa90] sm:%s201]
                %549 = vst [vmem:[%s209 + $0x548] sm:%s201] %v548
                %v550 = vld [vmem:[%s208 + $0xaa0] sm:%s201]
                %551 = vst [vmem:[%s209 + $0x550] sm:%s201] %v550
                %v552 = vld [vmem:[%s208 + $0xab0] sm:%s201]
                %553 = vst [vmem:[%s209 + $0x558] sm:%s201] %v552
                %v554 = vld [vmem:[%s208 + $0xac0] sm:%s201]
                %555 = vst [vmem:[%s209 + $0x560] sm:%s201] %v554
                %v556 = vld [vmem:[%s208 + $0xad0] sm:%s201]
                %557 = vst [vmem:[%s209 + $0x568] sm:%s201] %v556
                %v558 = vld [vmem:[%s208 + $0xae0] sm:%s201]
                %559 = vst [vmem:[%s209 + $0x570] sm:%s201] %v558
                %v560 = vld [vmem:[%s208 + $0xaf0] sm:%s201]
                %561 = vst [vmem:[%s209 + $0x578] sm:%s201] %v560
                %v562 = vld [vmem:[%s208 + $0xb00] sm:%s201]
                %563 = vst [vmem:[%s209 + $0x580] sm:%s201] %v562
                %v564 = vld [vmem:[%s208 + $0xb10] sm:%s201]
                %565 = vst [vmem:[%s209 + $0x588] sm:%s201] %v564
                %v566 = vld [vmem:[%s208 + $0xb20] sm:%s201]
                %567 = vst [vmem:[%s209 + $0x590] sm:%s201] %v566
                %v568 = vld [vmem:[%s208 + $0xb30] sm:%s201]
                %569 = vst [vmem:[%s209 + $0x598] sm:%s201] %v568
                %v570 = vld [vmem:[%s208 + $0xb40] sm:%s201]
                %571 = vst [vmem:[%s209 + $0x5a0] sm:%s201] %v570
                %v572 = vld [vmem:[%s208 + $0xb50] sm:%s201]
                %573 = vst [vmem:[%s209 + $0x5a8] sm:%s201] %v572
                %v574 = vld [vmem:[%s208 + $0xb60] sm:%s201]
                %575 = vst [vmem:[%s209 + $0x5b0] sm:%s201] %v574
                %v576 = vld [vmem:[%s208 + $0xb70] sm:%s201]
                %577 = vst [vmem:[%s209 + $0x5b8] sm:%s201] %v576
                %v578 = vld [vmem:[%s208 + $0xb80] sm:%s201]
                %579 = vst [vmem:[%s209 + $0x5c0] sm:%s201] %v578
                %v580 = vld [vmem:[%s208 + $0xb90] sm:%s201]
                %581 = vst [vmem:[%s209 + $0x5c8] sm:%s201] %v580
                %v582 = vld [vmem:[%s208 + $0xba0] sm:%s201]
                %583 = vst [vmem:[%s209 + $0x5d0] sm:%s201] %v582
                %v584 = vld [vmem:[%s208 + $0xbb0] sm:%s201]
                %585 = vst [vmem:[%s209 + $0x5d8] sm:%s201] %v584
                %v586 = vld [vmem:[%s208 + $0xbc0] sm:%s201]
                %587 = vst [vmem:[%s209 + $0x5e0] sm:%s201] %v586
                %v588 = vld [vmem:[%s208 + $0xbd0] sm:%s201]
                %589 = vst [vmem:[%s209 + $0x5e8] sm:%s201] %v588
                %v590 = vld [vmem:[%s208 + $0xbe0] sm:%s201]
                %591 = vst [vmem:[%s209 + $0x5f0] sm:%s201] %v590
                %v592 = vld [vmem:[%s208 + $0xbf0] sm:%s201]
                %593 = vst [vmem:[%s209 + $0x5f8] sm:%s201] %v592
                %v594 = vld [vmem:[%s208 + $0xc00] sm:%s201]
                %595 = vst [vmem:[%s209 + $0x600] sm:%s201] %v594
                %v596 = vld [vmem:[%s208 + $0xc10] sm:%s201]
                %597 = vst [vmem:[%s209 + $0x608] sm:%s201] %v596
                %v598 = vld [vmem:[%s208 + $0xc20] sm:%s201]
                %599 = vst [vmem:[%s209 + $0x610] sm:%s201] %v598
                %v600 = vld [vmem:[%s208 + $0xc30] sm:%s201]
                %601 = vst [vmem:[%s209 + $0x618] sm:%s201] %v600
                %v602 = vld [vmem:[%s208 + $0xc40] sm:%s201]
                %603 = vst [vmem:[%s209 + $0x620] sm:%s201] %v602
                %v604 = vld [vmem:[%s208 + $0xc50] sm:%s201]
                %605 = vst [vmem:[%s209 + $0x628] sm:%s201] %v604
                %v606 = vld [vmem:[%s208 + $0xc60] sm:%s201]
                %607 = vst [vmem:[%s209 + $0x630] sm:%s201] %v606
                %v608 = vld [vmem:[%s208 + $0xc70] sm:%s201]
                %609 = vst [vmem:[%s209 + $0x638] sm:%s201] %v608
                %v610 = vld [vmem:[%s208 + $0xc80] sm:%s201]
                %611 = vst [vmem:[%s209 + $0x640] sm:%s201] %v610
                %v612 = vld [vmem:[%s208 + $0xc90] sm:%s201]
                %613 = vst [vmem:[%s209 + $0x648] sm:%s201] %v612
                %v614 = vld [vmem:[%s208 + $0xca0] sm:%s201]
                %615 = vst [vmem:[%s209 + $0x650] sm:%s201] %v614
                %v616 = vld [vmem:[%s208 + $0xcb0] sm:%s201]
                %617 = vst [vmem:[%s209 + $0x658] sm:%s201] %v616
                %v618 = vld [vmem:[%s208 + $0xcc0] sm:%s201]
                %619 = vst [vmem:[%s209 + $0x660] sm:%s201] %v618
                %v620 = vld [vmem:[%s208 + $0xcd0] sm:%s201]
                %621 = vst [vmem:[%s209 + $0x668] sm:%s201] %v620
                %v622 = vld [vmem:[%s208 + $0xce0] sm:%s201]
                %623 = vst [vmem:[%s209 + $0x670] sm:%s201] %v622
                %v624 = vld [vmem:[%s208 + $0xcf0] sm:%s201]
                %625 = vst [vmem:[%s209 + $0x678] sm:%s201] %v624
                %v626 = vld [vmem:[%s208 + $0xd00] sm:%s201]
                %627 = vst [vmem:[%s209 + $0x680] sm:%s201] %v626
                %v628 = vld [vmem:[%s208 + $0xd10] sm:%s201]
                %629 = vst [vmem:[%s209 + $0x688] sm:%s201] %v628
                %v630 = vld [vmem:[%s208 + $0xd20] sm:%s201]
                %631 = vst [vmem:[%s209 + $0x690] sm:%s201] %v630
                %v632 = vld [vmem:[%s208 + $0xd30] sm:%s201]
                %633 = vst [vmem:[%s209 + $0x698] sm:%s201] %v632
                %v634 = vld [vmem:[%s208 + $0xd40] sm:%s201]
                %635 = vst [vmem:[%s209 + $0x6a0] sm:%s201] %v634
                %v636 = vld [vmem:[%s208 + $0xd50] sm:%s201]
                %637 = vst [vmem:[%s209 + $0x6a8] sm:%s201] %v636
                %v638 = vld [vmem:[%s208 + $0xd60] sm:%s201]
                %639 = vst [vmem:[%s209 + $0x6b0] sm:%s201] %v638
                %v640 = vld [vmem:[%s208 + $0xd70] sm:%s201]
                %641 = vst [vmem:[%s209 + $0x6b8] sm:%s201] %v640
                %v642 = vld [vmem:[%s208 + $0xd80] sm:%s201]
                %643 = vst [vmem:[%s209 + $0x6c0] sm:%s201] %v642
                %v644 = vld [vmem:[%s208 + $0xd90] sm:%s201]
                %645 = vst [vmem:[%s209 + $0x6c8] sm:%s201] %v644
                %v646 = vld [vmem:[%s208 + $0xda0] sm:%s201]
                %647 = vst [vmem:[%s209 + $0x6d0] sm:%s201] %v646
                %v648 = vld [vmem:[%s208 + $0xdb0] sm:%s201]
                %649 = vst [vmem:[%s209 + $0x6d8] sm:%s201] %v648
                %v650 = vld [vmem:[%s208 + $0xdc0] sm:%s201]
                %651 = vst [vmem:[%s209 + $0x6e0] sm:%s201] %v650
                %v652 = vld [vmem:[%s208 + $0xdd0] sm:%s201]
                %653 = vst [vmem:[%s209 + $0x6e8] sm:%s201] %v652
                %v654 = vld [vmem:[%s208 + $0xde0] sm:%s201]
                %655 = vst [vmem:[%s209 + $0x6f0] sm:%s201] %v654
                %v656 = vld [vmem:[%s208 + $0xdf0] sm:%s201]
                %657 = vst [vmem:[%s209 + $0x6f8] sm:%s201] %v656
                %v658 = vld [vmem:[%s208 + $0xe00] sm:%s201]
                %659 = vst [vmem:[%s209 + $0x700] sm:%s201] %v658
                %v660 = vld [vmem:[%s208 + $0xe10] sm:%s201]
                %661 = vst [vmem:[%s209 + $0x708] sm:%s201] %v660
                %v662 = vld [vmem:[%s208 + $0xe20] sm:%s201]
                %663 = vst [vmem:[%s209 + $0x710] sm:%s201] %v662
                %v664 = vld [vmem:[%s208 + $0xe30] sm:%s201]
                %665 = vst [vmem:[%s209 + $0x718] sm:%s201] %v664
                %v666 = vld [vmem:[%s208 + $0xe40] sm:%s201]
                %667 = vst [vmem:[%s209 + $0x720] sm:%s201] %v666
                %v668 = vld [vmem:[%s208 + $0xe50] sm:%s201]
                %669 = vst [vmem:[%s209 + $0x728] sm:%s201] %v668
                %v670 = vld [vmem:[%s208 + $0xe60] sm:%s201]
                %671 = vst [vmem:[%s209 + $0x730] sm:%s201] %v670
                %v672 = vld [vmem:[%s208 + $0xe70] sm:%s201]
                %673 = vst [vmem:[%s209 + $0x738] sm:%s201] %v672
                %v674 = vld [vmem:[%s208 + $0xe80] sm:%s201]
                %675 = vst [vmem:[%s209 + $0x740] sm:%s201] %v674
                %v676 = vld [vmem:[%s208 + $0xe90] sm:%s201]
                %677 = vst [vmem:[%s209 + $0x748] sm:%s201] %v676
                %v678 = vld [vmem:[%s208 + $0xea0] sm:%s201]
                %679 = vst [vmem:[%s209 + $0x750] sm:%s201] %v678
                %v680 = vld [vmem:[%s208 + $0xeb0] sm:%s201]
                %681 = vst [vmem:[%s209 + $0x758] sm:%s201] %v680
                %v682 = vld [vmem:[%s208 + $0xec0] sm:%s201]
                %683 = vst [vmem:[%s209 + $0x760] sm:%s201] %v682
                %v684 = vld [vmem:[%s208 + $0xed0] sm:%s201]
                %685 = vst [vmem:[%s209 + $0x768] sm:%s201] %v684
                %v686 = vld [vmem:[%s208 + $0xee0] sm:%s201]
                %687 = vst [vmem:[%s209 + $0x770] sm:%s201] %v686
                %v688 = vld [vmem:[%s208 + $0xef0] sm:%s201]
                %689 = vst [vmem:[%s209 + $0x778] sm:%s201] %v688
                %v690 = vld [vmem:[%s208 + $0xf00] sm:%s201]
                %691 = vst [vmem:[%s209 + $0x780] sm:%s201] %v690
                %v692 = vld [vmem:[%s208 + $0xf10] sm:%s201]
                %693 = vst [vmem:[%s209 + $0x788] sm:%s201] %v692
                %v694 = vld [vmem:[%s208 + $0xf20] sm:%s201]
                %695 = vst [vmem:[%s209 + $0x790] sm:%s201] %v694
                %v696 = vld [vmem:[%s208 + $0xf30] sm:%s201]
                %697 = vst [vmem:[%s209 + $0x798] sm:%s201] %v696
                %v698 = vld [vmem:[%s208 + $0xf40] sm:%s201]
                %699 = vst [vmem:[%s209 + $0x7a0] sm:%s201] %v698
                %v700 = vld [vmem:[%s208 + $0xf50] sm:%s201]
                %701 = vst [vmem:[%s209 + $0x7a8] sm:%s201] %v700
                %v702 = vld [vmem:[%s208 + $0xf60] sm:%s201]
                %703 = vst [vmem:[%s209 + $0x7b0] sm:%s201] %v702
                %v704 = vld [vmem:[%s208 + $0xf70] sm:%s201]
                %705 = vst [vmem:[%s209 + $0x7b8] sm:%s201] %v704
                %v706 = vld [vmem:[%s208 + $0xf80] sm:%s201]
                %707 = vst [vmem:[%s209 + $0x7c0] sm:%s201] %v706
                %v708 = vld [vmem:[%s208 + $0xf90] sm:%s201]
                %709 = vst [vmem:[%s209 + $0x7c8] sm:%s201] %v708
                %v710 = vld [vmem:[%s208 + $0xfa0] sm:%s201]
                %711 = vst [vmem:[%s209 + $0x7d0] sm:%s201] %v710
                %v712 = vld [vmem:[%s208 + $0xfb0] sm:%s201]
                %713 = vst [vmem:[%s209 + $0x7d8] sm:%s201] %v712
                %v714 = vld [vmem:[%s208 + $0xfc0] sm:%s201]
                %715 = vst [vmem:[%s209 + $0x7e0] sm:%s201] %v714
                %v716 = vld [vmem:[%s208 + $0xfd0] sm:%s201]
                %717 = vst [vmem:[%s209 + $0x7e8] sm:%s201] %v716
                %v718 = vld [vmem:[%s208 + $0xfe0] sm:%s201]
                %719 = vst [vmem:[%s209 + $0x7f0] sm:%s201] %v718
                %v720 = vld [vmem:[%s208 + $0xff0] sm:%s201]
                %721 = vst [vmem:[%s209 + $0x7f8] sm:%s201] %v720
              $region41: #{detection_model_forward.7} parent=35 // loop_footer
                %s207 = sadd.s32 1, %s203
              $region42: #{detection_model_forward.7} parent=35 // loop_footer_branch
                %202 = sbr.rel target = $region38
              $region43: #{detection_model_forward.7} parent=35 // loop_exit
                _
            $region36: #{detection_model_forward.7} parent=27 // pred_fallthru
              _
          $region28: #{detection_model_forward.7} parent=23 // pred_fallthru
            _
          %1246 = vnop
        $region24: #{detection_model_forward.7} parent=15 // pred_fallthru
          _
        // Predicated region
        $region59: #{detection_model_forward.7} parent=15 // pred_check
          %p1247 = pneg %p96
        $region60: #{detection_model_forward.7} parent=15 // pred_check_branch
          %1249 = sbr.rel (%p1247) target = $region62
        $region61: #{detection_model_forward.7} parent=15 // pred_region
          %s1250 = smul.u32 2, %s17
          %p1251 = scmp.lt.s32.totalorder %s1250, 3
          %s1252 = scalar_select %p1251, %s1250, 3
          %s1253 = scalar_lea.vmem %s2, %s1252
          %s1254 = smul.u32 2, %s17
        $region62: #{detection_model_forward.7} parent=15 // pred_fallthru
          _
        // Predicated region
        $region63: #{detection_model_forward.7} parent=15 // pred_check
          %p1255 = pneg %p122
        $region64: #{detection_model_forward.7} parent=15 // pred_check_branch
          %1257 = sbr.rel (%p1255) target = $region66
        $region65: #{detection_model_forward.7} parent=15 // pred_region
          %s1258 = smul.u32 32, %s17
          %p1259 = scmp.lt.s32.totalorder %s1258, 63
          %s1260 = scalar_select %p1259, %s1258, 63
          %s1261 = smul.addr %s1260, 8
          %s1262 = scalar_lea.vmem %s3, %s1261
          %s1263 = smul.u32 32, %s17
        $region66: #{detection_model_forward.7} parent=15 // pred_fallthru
          _
      $region16: #{detection_model_forward.7} parent=5 // pred_fallthru
        _
      %p1264 = scmp.le.s32.totalorder 1, %s10
      %p1265 = scmp.lt.s32.totalorder %s10, 9
      %p1266 = pnand %p1264, %p1265
      %p1267 = pneg %p1266
      // Predicated region
      $region67: #{detection_model_forward.7} parent=5 // pred_check
        _
      $region68: #{detection_model_forward.7} parent=5 // pred_check_branch
        %1269 = sbr.rel (%p1266) target = $region70
      $region69: #{detection_model_forward.7} parent=5 // pred_region
        %s1270 = ssub.s32 %s10, 1
        %s1271 = sand.u32 %s63, 1
        %s1272 = sand.u32 %s63, 1
        %s1273 = smul.addr %s1272, 2048
        %s1274 = scalar_lea.vmem [#allocation3], %s1273
        // Predicated region
        $region71: #{detection_model_forward.7} parent=69 // pred_check
          %p1275 = pneg %p76
        $region72: #{detection_model_forward.7} parent=69 // pred_check_branch
          %1277 = sbr.rel (%p1275) target = $region74
        $region73: #{detection_model_forward.7} parent=69 // pred_region
          _
        $region74: #{detection_model_forward.7} parent=69 // pred_fallthru
          _
        %s1278 = smul.u32 16, %s20
        %p1279 = scmp.lt.s32.totalorder %s1278, 63
        %s1280 = scalar_select %p1279, %s1278, 63
        %s1281 = scalar_lea.vmem %s0, %s1280
        %p1282 = pneg %p48
        %p1283 = pneg %p45
        %s1284 = sand.u32 %s63, 1
        %s1285 = sand.u32 %s63, 1
        %s1286 = smul.addr %s1285, 2048
        %s1287 = scalar_lea.vmem [#allocation3], %s1286
        %p1288 = pneg %p76
        %p1289 = pneg %p73
        %s1290 = smul.u32 2, %s19
        %p1291 = scmp.lt.s32.totalorder %s1290, 3
        %s1292 = scalar_select %p1291, %s1290, 3
        %s1293 = scalar_lea.vmem %s2, %s1292
        %p1294 = pneg %p102
        %p1295 = pneg %p99
        %s1296 = smul.u32 32, %s19
        %p1297 = scmp.lt.s32.totalorder %s1296, 63
        %s1298 = scalar_select %p1297, %s1296, 63
        %s1299 = smul.addr %s1298, 8
        %s1300 = scalar_lea.vmem %s3, %s1299
        %p1301 = pneg %p128
        %p1302 = pneg %p125
        %p1303 = pneg %p154
        %p1304 = pneg %p151
        %p1305 = scmp.lt.s32.totalorder %s19, 1
        %s1306 = scalar_select %p1305, %s19, 1
        %s1307 = smul.addr %s1306, 2
        %s1308 = scalar_lea.vmem %s4, %s1307
        %s1309 = smul.u32 16, %s20
        %p1310 = scmp.lt.s32.totalorder %s1309, 63
        %s1311 = scalar_select %p1310, %s1309, 63
        %s1312 = scalar_lea.vmem %s0, %s1311
        %s1313 = smul.u32 16, %s20
        %s1314 = smul.u32 256, %s20
        %s1315 = smul.u32 2, %s19
        %s1316 = smul.u32 2, %s19
        %p1317 = scmp.lt.s32.totalorder %s1316, 3
        %s1318 = scalar_select %p1317, %s1316, 3
        %s1319 = scalar_lea.vmem %s2, %s1318
        %s1320 = smul.u32 2, %s19
        %s1321 = smul.u32 32, %s19
        %p1322 = scmp.lt.s32.totalorder %s1321, 63
        %s1323 = scalar_select %p1322, %s1321, 63
        %s1324 = smul.addr %s1323, 8
        %s1325 = scalar_lea.vmem %s3, %s1324
        %s1326 = smul.u32 32, %s19
        %p1327 = scmp.lt.s32.totalorder %s19, 1
        %s1328 = scalar_select %p1327, %s19, 1
        %s1329 = smul.addr %s1328, 2
        %s1330 = scalar_lea.vmem %s4, %s1329
        %p1331 = scmp.eq.s32.totalorder %s20, 0
        // Predicated region
        $region75: #{detection_model_forward.7} parent=69 // pred_check
          %p1332 = pneg %p1331
        $region76: #{detection_model_forward.7} parent=69 // pred_check_branch
          %1334 = sbr.rel (%p1332) target = $region78
        $region77: #{detection_model_forward.7} parent=69 // pred_region
          %1335 = vst [vmem:[#allocation2] sm:$0xf] 0.0
        $region78: #{detection_model_forward.7} parent=69 // pred_fallthru
          _
        %v1336 = vld [vmem:[#allocation2] sm:$0xf]
        %v1337 = vld [vmem:[%s1312] sm:$0xff]
        %v1338 = vld [vmem:[%s1312 + $0x8] sm:$0xff]
        %v1339 = vld [vmem:[%s1274] sm:$0xff]
        %v1340 = vld [vmem:[%s1274 + $0x8] sm:$0xff]
        %v1341 = vld [vmem:[%s1274 + $0x10] sm:$0xff]
        %v1342 = vld [vmem:[%s1274 + $0x18] sm:$0xff]
        %v1343 = vld [vmem:[%s1274 + $0x20] sm:$0xff]
        %v1344 = vld [vmem:[%s1274 + $0x28] sm:$0xff]
        %v1345 = vld [vmem:[%s1274 + $0x30] sm:$0xff]
        %v1346 = vld [vmem:[%s1274 + $0x38] sm:$0xff]
        %v1347 = vld [vmem:[%s1274 + $0x40] sm:$0xff]
        %v1348 = vld [vmem:[%s1274 + $0x48] sm:$0xff]
        %v1349 = vld [vmem:[%s1274 + $0x50] sm:$0xff]
        %v1350 = vld [vmem:[%s1274 + $0x58] sm:$0xff]
        %v1351 = vld [vmem:[%s1274 + $0x60] sm:$0xff]
        %v1352 = vld [vmem:[%s1274 + $0x68] sm:$0xff]
        %v1353 = vld [vmem:[%s1274 + $0x70] sm:$0xff]
        %v1354 = vld [vmem:[%s1274 + $0x78] sm:$0xff]
        %v1355 = vld [vmem:[%s1274 + $0x80] sm:$0xff]
        %v1356 = vld [vmem:[%s1274 + $0x88] sm:$0xff]
        %v1357 = vld [vmem:[%s1274 + $0x90] sm:$0xff]
        %v1358 = vld [vmem:[%s1274 + $0x98] sm:$0xff]
        %v1359 = vld [vmem:[%s1274 + $0xa0] sm:$0xff]
        %v1360 = vld [vmem:[%s1274 + $0xa8] sm:$0xff]
        %v1361 = vld [vmem:[%s1274 + $0xb0] sm:$0xff]
        %v1362 = vld [vmem:[%s1274 + $0xb8] sm:$0xff]
        %v1363 = vld [vmem:[%s1274 + $0xc0] sm:$0xff]
        %v1364 = vld [vmem:[%s1274 + $0xc8] sm:$0xff]
        %v1365 = vld [vmem:[%s1274 + $0xd0] sm:$0xff]
        %v1366 = vld [vmem:[%s1274 + $0xd8] sm:$0xff]
        %v1367 = vld [vmem:[%s1274 + $0xe0] sm:$0xff]
        %v1368 = vld [vmem:[%s1274 + $0xe8] sm:$0xff]
        %v1369 = vld [vmem:[%s1274 + $0xf0] sm:$0xff]
        %v1370 = vld [vmem:[%s1274 + $0xf8] sm:$0xff]
        %v1371 = vld [vmem:[%s1274 + $0x100] sm:$0xff]
        %v1372 = vld [vmem:[%s1274 + $0x108] sm:$0xff]
        %v1373 = vld [vmem:[%s1274 + $0x110] sm:$0xff]
        %v1374 = vld [vmem:[%s1274 + $0x118] sm:$0xff]
        %v1375 = vld [vmem:[%s1274 + $0x120] sm:$0xff]
        %v1376 = vld [vmem:[%s1274 + $0x128] sm:$0xff]
        %v1377 = vld [vmem:[%s1274 + $0x130] sm:$0xff]
        %v1378 = vld [vmem:[%s1274 + $0x138] sm:$0xff]
        %v1379 = vld [vmem:[%s1274 + $0x140] sm:$0xff]
        %v1380 = vld [vmem:[%s1274 + $0x148] sm:$0xff]
        %v1381 = vld [vmem:[%s1274 + $0x150] sm:$0xff]
        %v1382 = vld [vmem:[%s1274 + $0x158] sm:$0xff]
        %v1383 = vld [vmem:[%s1274 + $0x160] sm:$0xff]
        %v1384 = vld [vmem:[%s1274 + $0x168] sm:$0xff]
        %v1385 = vld [vmem:[%s1274 + $0x170] sm:$0xff]
        %v1386 = vld [vmem:[%s1274 + $0x178] sm:$0xff]
        %v1387 = vld [vmem:[%s1274 + $0x180] sm:$0xff]
        %v1388 = vld [vmem:[%s1274 + $0x188] sm:$0xff]
        %v1389 = vld [vmem:[%s1274 + $0x190] sm:$0xff]
        %v1390 = vld [vmem:[%s1274 + $0x198] sm:$0xff]
        %v1391 = vld [vmem:[%s1274 + $0x1a0] sm:$0xff]
        %v1392 = vld [vmem:[%s1274 + $0x1a8] sm:$0xff]
        %v1393 = vld [vmem:[%s1274 + $0x1b0] sm:$0xff]
        %v1394 = vld [vmem:[%s1274 + $0x1b8] sm:$0xff]
        %v1395 = vld [vmem:[%s1274 + $0x1c0] sm:$0xff]
        %v1396 = vld [vmem:[%s1274 + $0x1c8] sm:$0xff]
        %v1397 = vld [vmem:[%s1274 + $0x1d0] sm:$0xff]
        %v1398 = vld [vmem:[%s1274 + $0x1d8] sm:$0xff]
        %v1399 = vld [vmem:[%s1274 + $0x1e0] sm:$0xff]
        %v1400 = vld [vmem:[%s1274 + $0x1e8] sm:$0xff]
        %v1401 = vld [vmem:[%s1274 + $0x1f0] sm:$0xff]
        %v1402 = vld [vmem:[%s1274 + $0x1f8] sm:$0xff]
        %v1403 = vld [vmem:[%s1274 + $0x200] sm:$0xff]
        %v1404 = vld [vmem:[%s1274 + $0x208] sm:$0xff]
        %v1405 = vld [vmem:[%s1274 + $0x210] sm:$0xff]
        %v1406 = vld [vmem:[%s1274 + $0x218] sm:$0xff]
        %v1407 = vld [vmem:[%s1274 + $0x220] sm:$0xff]
        %v1408 = vld [vmem:[%s1274 + $0x228] sm:$0xff]
        %v1409 = vld [vmem:[%s1274 + $0x230] sm:$0xff]
        %v1410 = vld [vmem:[%s1274 + $0x238] sm:$0xff]
        %v1411 = vld [vmem:[%s1274 + $0x240] sm:$0xff]
        %v1412 = vld [vmem:[%s1274 + $0x248] sm:$0xff]
        %v1413 = vld [vmem:[%s1274 + $0x250] sm:$0xff]
        %v1414 = vld [vmem:[%s1274 + $0x258] sm:$0xff]
        %v1415 = vld [vmem:[%s1274 + $0x260] sm:$0xff]
        %v1416 = vld [vmem:[%s1274 + $0x268] sm:$0xff]
        %v1417 = vld [vmem:[%s1274 + $0x270] sm:$0xff]
        %v1418 = vld [vmem:[%s1274 + $0x278] sm:$0xff]
        %v1419 = vld [vmem:[%s1274 + $0x280] sm:$0xff]
        %v1420 = vld [vmem:[%s1274 + $0x288] sm:$0xff]
        %v1421 = vld [vmem:[%s1274 + $0x290] sm:$0xff]
        %v1422 = vld [vmem:[%s1274 + $0x298] sm:$0xff]
        %v1423 = vld [vmem:[%s1274 + $0x2a0] sm:$0xff]
        %v1424 = vld [vmem:[%s1274 + $0x2a8] sm:$0xff]
        %v1425 = vld [vmem:[%s1274 + $0x2b0] sm:$0xff]
        %v1426 = vld [vmem:[%s1274 + $0x2b8] sm:$0xff]
        %v1427 = vld [vmem:[%s1274 + $0x2c0] sm:$0xff]
        %v1428 = vld [vmem:[%s1274 + $0x2c8] sm:$0xff]
        %v1429 = vld [vmem:[%s1274 + $0x2d0] sm:$0xff]
        %v1430 = vld [vmem:[%s1274 + $0x2d8] sm:$0xff]
        %v1431 = vld [vmem:[%s1274 + $0x2e0] sm:$0xff]
        %v1432 = vld [vmem:[%s1274 + $0x2e8] sm:$0xff]
        %v1433 = vld [vmem:[%s1274 + $0x2f0] sm:$0xff]
        %v1434 = vld [vmem:[%s1274 + $0x2f8] sm:$0xff]
        %v1435 = vld [vmem:[%s1274 + $0x300] sm:$0xff]
        %v1436 = vld [vmem:[%s1274 + $0x308] sm:$0xff]
        %v1437 = vld [vmem:[%s1274 + $0x310] sm:$0xff]
        %v1438 = vld [vmem:[%s1274 + $0x318] sm:$0xff]
        %v1439 = vld [vmem:[%s1274 + $0x320] sm:$0xff]
        %v1440 = vld [vmem:[%s1274 + $0x328] sm:$0xff]
        %v1441 = vld [vmem:[%s1274 + $0x330] sm:$0xff]
        %v1442 = vld [vmem:[%s1274 + $0x338] sm:$0xff]
        %v1443 = vld [vmem:[%s1274 + $0x340] sm:$0xff]
        %v1444 = vld [vmem:[%s1274 + $0x348] sm:$0xff]
        %v1445 = vld [vmem:[%s1274 + $0x350] sm:$0xff]
        %v1446 = vld [vmem:[%s1274 + $0x358] sm:$0xff]
        %v1447 = vld [vmem:[%s1274 + $0x360] sm:$0xff]
        %v1448 = vld [vmem:[%s1274 + $0x368] sm:$0xff]
        %v1449 = vld [vmem:[%s1274 + $0x370] sm:$0xff]
        %v1450 = vld [vmem:[%s1274 + $0x378] sm:$0xff]
        %v1451 = vld [vmem:[%s1274 + $0x380] sm:$0xff]
        %v1452 = vld [vmem:[%s1274 + $0x388] sm:$0xff]
        %v1453 = vld [vmem:[%s1274 + $0x390] sm:$0xff]
        %v1454 = vld [vmem:[%s1274 + $0x398] sm:$0xff]
        %v1455 = vld [vmem:[%s1274 + $0x3a0] sm:$0xff]
        %v1456 = vld [vmem:[%s1274 + $0x3a8] sm:$0xff]
        %v1457 = vld [vmem:[%s1274 + $0x3b0] sm:$0xff]
        %v1458 = vld [vmem:[%s1274 + $0x3b8] sm:$0xff]
        %v1459 = vld [vmem:[%s1274 + $0x3c0] sm:$0xff]
        %v1460 = vld [vmem:[%s1274 + $0x3c8] sm:$0xff]
        %v1461 = vld [vmem:[%s1274 + $0x3d0] sm:$0xff]
        %v1462 = vld [vmem:[%s1274 + $0x3d8] sm:$0xff]
        %v1463 = vld [vmem:[%s1274 + $0x3e0] sm:$0xff]
        %v1464 = vld [vmem:[%s1274 + $0x3e8] sm:$0xff]
        %v1465 = vld [vmem:[%s1274 + $0x3f0] sm:$0xff]
        %v1466 = vld [vmem:[%s1274 + $0x3f8] sm:$0xff]
        %v1467 = vld [vmem:[%s1274 + $0x400] sm:$0xff]
        %v1468 = vld [vmem:[%s1274 + $0x408] sm:$0xff]
        %v1469 = vld [vmem:[%s1274 + $0x410] sm:$0xff]
        %v1470 = vld [vmem:[%s1274 + $0x418] sm:$0xff]
        %v1471 = vld [vmem:[%s1274 + $0x420] sm:$0xff]
        %v1472 = vld [vmem:[%s1274 + $0x428] sm:$0xff]
        %v1473 = vld [vmem:[%s1274 + $0x430] sm:$0xff]
        %v1474 = vld [vmem:[%s1274 + $0x438] sm:$0xff]
        %v1475 = vld [vmem:[%s1274 + $0x440] sm:$0xff]
        %v1476 = vld [vmem:[%s1274 + $0x448] sm:$0xff]
        %v1477 = vld [vmem:[%s1274 + $0x450] sm:$0xff]
        %v1478 = vld [vmem:[%s1274 + $0x458] sm:$0xff]
        %v1479 = vld [vmem:[%s1274 + $0x460] sm:$0xff]
        %v1480 = vld [vmem:[%s1274 + $0x468] sm:$0xff]
        %v1481 = vld [vmem:[%s1274 + $0x470] sm:$0xff]
        %v1482 = vld [vmem:[%s1274 + $0x478] sm:$0xff]
        %v1483 = vld [vmem:[%s1274 + $0x480] sm:$0xff]
        %v1484 = vld [vmem:[%s1274 + $0x488] sm:$0xff]
        %v1485 = vld [vmem:[%s1274 + $0x490] sm:$0xff]
        %v1486 = vld [vmem:[%s1274 + $0x498] sm:$0xff]
        %v1487 = vld [vmem:[%s1274 + $0x4a0] sm:$0xff]
        %v1488 = vld [vmem:[%s1274 + $0x4a8] sm:$0xff]
        %v1489 = vld [vmem:[%s1274 + $0x4b0] sm:$0xff]
        %v1490 = vld [vmem:[%s1274 + $0x4b8] sm:$0xff]
        %v1491 = vld [vmem:[%s1274 + $0x4c0] sm:$0xff]
        %v1492 = vld [vmem:[%s1274 + $0x4c8] sm:$0xff]
        %v1493 = vld [vmem:[%s1274 + $0x4d0] sm:$0xff]
        %v1494 = vld [vmem:[%s1274 + $0x4d8] sm:$0xff]
        %v1495 = vld [vmem:[%s1274 + $0x4e0] sm:$0xff]
        %v1496 = vld [vmem:[%s1274 + $0x4e8] sm:$0xff]
        %v1497 = vld [vmem:[%s1274 + $0x4f0] sm:$0xff]
        %v1498 = vld [vmem:[%s1274 + $0x4f8] sm:$0xff]
        %v1499 = vld [vmem:[%s1274 + $0x500] sm:$0xff]
        %v1500 = vld [vmem:[%s1274 + $0x508] sm:$0xff]
        %v1501 = vld [vmem:[%s1274 + $0x510] sm:$0xff]
        %v1502 = vld [vmem:[%s1274 + $0x518] sm:$0xff]
        %v1503 = vld [vmem:[%s1274 + $0x520] sm:$0xff]
        %v1504 = vld [vmem:[%s1274 + $0x528] sm:$0xff]
        %v1505 = vld [vmem:[%s1274 + $0x530] sm:$0xff]
        %v1506 = vld [vmem:[%s1274 + $0x538] sm:$0xff]
        %v1507 = vld [vmem:[%s1274 + $0x540] sm:$0xff]
        %v1508 = vld [vmem:[%s1274 + $0x548] sm:$0xff]
        %v1509 = vld [vmem:[%s1274 + $0x550] sm:$0xff]
        %v1510 = vld [vmem:[%s1274 + $0x558] sm:$0xff]
        %v1511 = vld [vmem:[%s1274 + $0x560] sm:$0xff]
        %v1512 = vld [vmem:[%s1274 + $0x568] sm:$0xff]
        %v1513 = vld [vmem:[%s1274 + $0x570] sm:$0xff]
        %v1514 = vld [vmem:[%s1274 + $0x578] sm:$0xff]
        %v1515 = vld [vmem:[%s1274 + $0x580] sm:$0xff]
        %v1516 = vld [vmem:[%s1274 + $0x588] sm:$0xff]
        %v1517 = vld [vmem:[%s1274 + $0x590] sm:$0xff]
        %v1518 = vld [vmem:[%s1274 + $0x598] sm:$0xff]
        %v1519 = vld [vmem:[%s1274 + $0x5a0] sm:$0xff]
        %v1520 = vld [vmem:[%s1274 + $0x5a8] sm:$0xff]
        %v1521 = vld [vmem:[%s1274 + $0x5b0] sm:$0xff]
        %v1522 = vld [vmem:[%s1274 + $0x5b8] sm:$0xff]
        %v1523 = vld [vmem:[%s1274 + $0x5c0] sm:$0xff]
        %v1524 = vld [vmem:[%s1274 + $0x5c8] sm:$0xff]
        %v1525 = vld [vmem:[%s1274 + $0x5d0] sm:$0xff]
        %v1526 = vld [vmem:[%s1274 + $0x5d8] sm:$0xff]
        %v1527 = vld [vmem:[%s1274 + $0x5e0] sm:$0xff]
        %v1528 = vld [vmem:[%s1274 + $0x5e8] sm:$0xff]
        %v1529 = vld [vmem:[%s1274 + $0x5f0] sm:$0xff]
        %v1530 = vld [vmem:[%s1274 + $0x5f8] sm:$0xff]
        %v1531 = vld [vmem:[%s1274 + $0x600] sm:$0xff]
        %v1532 = vld [vmem:[%s1274 + $0x608] sm:$0xff]
        %v1533 = vld [vmem:[%s1274 + $0x610] sm:$0xff]
        %v1534 = vld [vmem:[%s1274 + $0x618] sm:$0xff]
        %v1535 = vld [vmem:[%s1274 + $0x620] sm:$0xff]
        %v1536 = vld [vmem:[%s1274 + $0x628] sm:$0xff]
        %v1537 = vld [vmem:[%s1274 + $0x630] sm:$0xff]
        %v1538 = vld [vmem:[%s1274 + $0x638] sm:$0xff]
        %v1539 = vld [vmem:[%s1274 + $0x640] sm:$0xff]
        %v1540 = vld [vmem:[%s1274 + $0x648] sm:$0xff]
        %v1541 = vld [vmem:[%s1274 + $0x650] sm:$0xff]
        %v1542 = vld [vmem:[%s1274 + $0x658] sm:$0xff]
        %v1543 = vld [vmem:[%s1274 + $0x660] sm:$0xff]
        %v1544 = vld [vmem:[%s1274 + $0x668] sm:$0xff]
        %v1545 = vld [vmem:[%s1274 + $0x670] sm:$0xff]
        %v1546 = vld [vmem:[%s1274 + $0x678] sm:$0xff]
        %v1547 = vld [vmem:[%s1274 + $0x680] sm:$0xff]
        %v1548 = vld [vmem:[%s1274 + $0x688] sm:$0xff]
        %v1549 = vld [vmem:[%s1274 + $0x690] sm:$0xff]
        %v1550 = vld [vmem:[%s1274 + $0x698] sm:$0xff]
        %v1551 = vld [vmem:[%s1274 + $0x6a0] sm:$0xff]
        %v1552 = vld [vmem:[%s1274 + $0x6a8] sm:$0xff]
        %v1553 = vld [vmem:[%s1274 + $0x6b0] sm:$0xff]
        %v1554 = vld [vmem:[%s1274 + $0x6b8] sm:$0xff]
        %v1555 = vld [vmem:[%s1274 + $0x6c0] sm:$0xff]
        %v1556 = vld [vmem:[%s1274 + $0x6c8] sm:$0xff]
        %v1557 = vld [vmem:[%s1274 + $0x6d0] sm:$0xff]
        %v1558 = vld [vmem:[%s1274 + $0x6d8] sm:$0xff]
        %v1559 = vld [vmem:[%s1274 + $0x6e0] sm:$0xff]
        %v1560 = vld [vmem:[%s1274 + $0x6e8] sm:$0xff]
        %v1561 = vld [vmem:[%s1274 + $0x6f0] sm:$0xff]
        %v1562 = vld [vmem:[%s1274 + $0x6f8] sm:$0xff]
        %v1563 = vld [vmem:[%s1274 + $0x700] sm:$0xff]
        %v1564 = vld [vmem:[%s1274 + $0x708] sm:$0xff]
        %v1565 = vld [vmem:[%s1274 + $0x710] sm:$0xff]
        %v1566 = vld [vmem:[%s1274 + $0x718] sm:$0xff]
        %v1567 = vld [vmem:[%s1274 + $0x720] sm:$0xff]
        %v1568 = vld [vmem:[%s1274 + $0x728] sm:$0xff]
        %v1569 = vld [vmem:[%s1274 + $0x730] sm:$0xff]
        %v1570 = vld [vmem:[%s1274 + $0x738] sm:$0xff]
        %v1571 = vld [vmem:[%s1274 + $0x740] sm:$0xff]
        %v1572 = vld [vmem:[%s1274 + $0x748] sm:$0xff]
        %v1573 = vld [vmem:[%s1274 + $0x750] sm:$0xff]
        %v1574 = vld [vmem:[%s1274 + $0x758] sm:$0xff]
        %v1575 = vld [vmem:[%s1274 + $0x760] sm:$0xff]
        %v1576 = vld [vmem:[%s1274 + $0x768] sm:$0xff]
        %v1577 = vld [vmem:[%s1274 + $0x770] sm:$0xff]
        %v1578 = vld [vmem:[%s1274 + $0x778] sm:$0xff]
        %v1579 = vld [vmem:[%s1274 + $0x780] sm:$0xff]
        %v1580 = vld [vmem:[%s1274 + $0x788] sm:$0xff]
        %v1581 = vld [vmem:[%s1274 + $0x790] sm:$0xff]
        %v1582 = vld [vmem:[%s1274 + $0x798] sm:$0xff]
        %v1583 = vld [vmem:[%s1274 + $0x7a0] sm:$0xff]
        %v1584 = vld [vmem:[%s1274 + $0x7a8] sm:$0xff]
        %v1585 = vld [vmem:[%s1274 + $0x7b0] sm:$0xff]
        %v1586 = vld [vmem:[%s1274 + $0x7b8] sm:$0xff]
        %v1587 = vld [vmem:[%s1274 + $0x7c0] sm:$0xff]
        %v1588 = vld [vmem:[%s1274 + $0x7c8] sm:$0xff]
        %v1589 = vld [vmem:[%s1274 + $0x7d0] sm:$0xff]
        %v1590 = vld [vmem:[%s1274 + $0x7d8] sm:$0xff]
        %v1591 = vld [vmem:[%s1274 + $0x7e0] sm:$0xff]
        %v1592 = vld [vmem:[%s1274 + $0x7e8] sm:$0xff]
        %v1593 = vld [vmem:[%s1274 + $0x7f0] sm:$0xff]
        %v1594 = vld [vmem:[%s1274 + $0x7f8] sm:$0xff]
        %v1597 = vcombine.high %v1337, %v1337
        %v1599 = vunpack.c.l.s4 1966171168
        %v1600 = vunpack.c.0.s8 %v1599
        %v1601 = vlaneseq
        %v1602 = vshrl.u32 %v1601, 7
        %v1603 = vsub.s32 %v1600, %v1602
        %v1604 = vrot.slane %v1337, %v1603
        %v1606 = vunpack.c.l.s4 1966171168
        %v1607 = vunpack.c.0.s8 %v1606
        %v1608 = vlaneseq
        %v1609 = vshrl.u32 %v1608, 7
        %v1610 = vsub.s32 %v1607, %v1609
        %v1611 = vrot.slane %v1597, %v1610
        %v1612 = vcombine.high %v1604, %v1604
        %v1613 = vcombine.high %v1611, %v1611
        %v1615 = vunpack.c.l.s4 1966171168
        %v1616 = vunpack.c.0.s8 %v1615
        %v1617 = vlaneseq
        %v1618 = vshrl.u32 %v1617, 7
        %v1619 = vsub.s32 %v1616, %v1618
        %v1620 = vrot.slane %v1604, %v1619
        %v1622 = vunpack.c.l.s4 1966171168
        %v1623 = vunpack.c.0.s8 %v1622
        %v1624 = vlaneseq
        %v1625 = vshrl.u32 %v1624, 7
        %v1626 = vsub.s32 %v1623, %v1625
        %v1627 = vrot.slane %v1611, %v1626
        %v1629 = vunpack.c.l.s4 1966171168
        %v1630 = vunpack.c.0.s8 %v1629
        %v1631 = vlaneseq
        %v1632 = vshrl.u32 %v1631, 7
        %v1633 = vsub.s32 %v1630, %v1632
        %v1634 = vrot.slane %v1612, %v1633
        %v1636 = vunpack.c.l.s4 1966171168
        %v1637 = vunpack.c.0.s8 %v1636
        %v1638 = vlaneseq
        %v1639 = vshrl.u32 %v1638, 7
        %v1640 = vsub.s32 %v1637, %v1639
        %v1641 = vrot.slane %v1613, %v1640
        %v1642 = vcombine.high %v1620, %v1620
        %v1643 = vcombine.high %v1627, %v1627
        %v1644 = vcombine.high %v1634, %v1634
        %v1645 = vcombine.high %v1641, %v1641
        %v1646 = vcombine.high %v1338, %v1338
        %v1648 = vunpack.c.l.s4 1966171168
        %v1649 = vunpack.c.0.s8 %v1648
        %v1650 = vlaneseq
        %v1651 = vshrl.u32 %v1650, 7
        %v1652 = vsub.s32 %v1649, %v1651
        %v1653 = vrot.slane %v1338, %v1652
        %v1655 = vunpack.c.l.s4 1966171168
        %v1656 = vunpack.c.0.s8 %v1655
        %v1657 = vlaneseq
        %v1658 = vshrl.u32 %v1657, 7
        %v1659 = vsub.s32 %v1656, %v1658
        %v1660 = vrot.slane %v1646, %v1659
        %v1661 = vcombine.high %v1653, %v1653
        %v1662 = vcombine.high %v1660, %v1660
        %v1664 = vunpack.c.l.s4 1966171168
        %v1665 = vunpack.c.0.s8 %v1664
        %v1666 = vlaneseq
        %v1667 = vshrl.u32 %v1666, 7
        %v1668 = vsub.s32 %v1665, %v1667
        %v1669 = vrot.slane %v1653, %v1668
        %v1671 = vunpack.c.l.s4 1966171168
        %v1672 = vunpack.c.0.s8 %v1671
        %v1673 = vlaneseq
        %v1674 = vshrl.u32 %v1673, 7
        %v1675 = vsub.s32 %v1672, %v1674
        %v1676 = vrot.slane %v1660, %v1675
        %v1678 = vunpack.c.l.s4 1966171168
        %v1679 = vunpack.c.0.s8 %v1678
        %v1680 = vlaneseq
        %v1681 = vshrl.u32 %v1680, 7
        %v1682 = vsub.s32 %v1679, %v1681
        %v1683 = vrot.slane %v1661, %v1682
        %v1685 = vunpack.c.l.s4 1966171168
        %v1686 = vunpack.c.0.s8 %v1685
        %v1687 = vlaneseq
        %v1688 = vshrl.u32 %v1687, 7
        %v1689 = vsub.s32 %v1686, %v1688
        %v1690 = vrot.slane %v1662, %v1689
        %v1691 = vcombine.high %v1669, %v1669
        %v1692 = vcombine.high %v1676, %v1676
        %v1693 = vcombine.high %v1683, %v1683
        %v1694 = vcombine.high %v1690, %v1690
        %v1967 = vunpack.c.l.b16 %v1339
        %v1968 = vunpack.c.h.b16 %v1339
        %v1969 = vunpack.c.l.b16 %v1340
        %v1970 = vunpack.c.h.b16 %v1340
        %v1971 = vunpack.c.l.b16 %v1341
        %v1972 = vunpack.c.h.b16 %v1341
        %v1973 = vunpack.c.l.b16 %v1342
        %v1974 = vunpack.c.h.b16 %v1342
        %v1975 = vunpack.c.l.b16 %v1343
        %v1976 = vunpack.c.h.b16 %v1343
        %v1977 = vunpack.c.l.b16 %v1344
        %v1978 = vunpack.c.h.b16 %v1344
        %v1979 = vunpack.c.l.b16 %v1345
        %v1980 = vunpack.c.h.b16 %v1345
        %v1981 = vunpack.c.l.b16 %v1346
        %v1982 = vunpack.c.h.b16 %v1346
        %v1983 = vunpack.c.l.b16 %v1347
        %v1984 = vunpack.c.h.b16 %v1347
        %v1985 = vunpack.c.l.b16 %v1348
        %v1986 = vunpack.c.h.b16 %v1348
        %v1987 = vunpack.c.l.b16 %v1349
        %v1988 = vunpack.c.h.b16 %v1349
        %v1989 = vunpack.c.l.b16 %v1350
        %v1990 = vunpack.c.h.b16 %v1350
        %v1991 = vunpack.c.l.b16 %v1351
        %v1992 = vunpack.c.h.b16 %v1351
        %v1993 = vunpack.c.l.b16 %v1352
        %v1994 = vunpack.c.h.b16 %v1352
        %v1995 = vunpack.c.l.b16 %v1353
        %v1996 = vunpack.c.h.b16 %v1353
        %v1997 = vunpack.c.l.b16 %v1354
        %v1998 = vunpack.c.h.b16 %v1354
        %v1999 = vunpack.c.l.b16 %v1355
        %v2000 = vunpack.c.h.b16 %v1355
        %v2001 = vunpack.c.l.b16 %v1356
        %v2002 = vunpack.c.h.b16 %v1356
        %v2003 = vunpack.c.l.b16 %v1357
        %v2004 = vunpack.c.h.b16 %v1357
        %v2005 = vunpack.c.l.b16 %v1358
        %v2006 = vunpack.c.h.b16 %v1358
        %v2007 = vunpack.c.l.b16 %v1359
        %v2008 = vunpack.c.h.b16 %v1359
        %v2009 = vunpack.c.l.b16 %v1360
        %v2010 = vunpack.c.h.b16 %v1360
        %v2011 = vunpack.c.l.b16 %v1361
        %v2012 = vunpack.c.h.b16 %v1361
        %v2013 = vunpack.c.l.b16 %v1362
        %v2014 = vunpack.c.h.b16 %v1362
        %v2015 = vunpack.c.l.b16 %v1363
        %v2016 = vunpack.c.h.b16 %v1363
        %v2017 = vunpack.c.l.b16 %v1364
        %v2018 = vunpack.c.h.b16 %v1364
        %v2019 = vunpack.c.l.b16 %v1365
        %v2020 = vunpack.c.h.b16 %v1365
        %v2021 = vunpack.c.l.b16 %v1366
        %v2022 = vunpack.c.h.b16 %v1366
        %v2023 = vunpack.c.l.b16 %v1367
        %v2024 = vunpack.c.h.b16 %v1367
        %v2025 = vunpack.c.l.b16 %v1368
        %v2026 = vunpack.c.h.b16 %v1368
        %v2027 = vunpack.c.l.b16 %v1369
        %v2028 = vunpack.c.h.b16 %v1369
        %v2029 = vunpack.c.l.b16 %v1370
        %v2030 = vunpack.c.h.b16 %v1370
        %v2031 = vunpack.c.l.b16 %v1371
        %v2032 = vunpack.c.h.b16 %v1371
        %v2033 = vunpack.c.l.b16 %v1372
        %v2034 = vunpack.c.h.b16 %v1372
        %v2035 = vunpack.c.l.b16 %v1373
        %v2036 = vunpack.c.h.b16 %v1373
        %v2037 = vunpack.c.l.b16 %v1374
        %v2038 = vunpack.c.h.b16 %v1374
        %v2039 = vunpack.c.l.b16 %v1375
        %v2040 = vunpack.c.h.b16 %v1375
        %v2041 = vunpack.c.l.b16 %v1376
        %v2042 = vunpack.c.h.b16 %v1376
        %v2043 = vunpack.c.l.b16 %v1377
        %v2044 = vunpack.c.h.b16 %v1377
        %v2045 = vunpack.c.l.b16 %v1378
        %v2046 = vunpack.c.h.b16 %v1378
        %v2047 = vunpack.c.l.b16 %v1379
        %v2048 = vunpack.c.h.b16 %v1379
        %v2049 = vunpack.c.l.b16 %v1380
        %v2050 = vunpack.c.h.b16 %v1380
        %v2051 = vunpack.c.l.b16 %v1381
        %v2052 = vunpack.c.h.b16 %v1381
        %v2053 = vunpack.c.l.b16 %v1382
        %v2054 = vunpack.c.h.b16 %v1382
        %v2055 = vunpack.c.l.b16 %v1383
        %v2056 = vunpack.c.h.b16 %v1383
        %v2057 = vunpack.c.l.b16 %v1384
        %v2058 = vunpack.c.h.b16 %v1384
        %v2059 = vunpack.c.l.b16 %v1385
        %v2060 = vunpack.c.h.b16 %v1385
        %v2061 = vunpack.c.l.b16 %v1386
        %v2062 = vunpack.c.h.b16 %v1386
        %v2063 = vunpack.c.l.b16 %v1387
        %v2064 = vunpack.c.h.b16 %v1387
        %v2065 = vunpack.c.l.b16 %v1388
        %v2066 = vunpack.c.h.b16 %v1388
        %v2067 = vunpack.c.l.b16 %v1389
        %v2068 = vunpack.c.h.b16 %v1389
        %v2069 = vunpack.c.l.b16 %v1390
        %v2070 = vunpack.c.h.b16 %v1390
        %v2071 = vunpack.c.l.b16 %v1391
        %v2072 = vunpack.c.h.b16 %v1391
        %v2073 = vunpack.c.l.b16 %v1392
        %v2074 = vunpack.c.h.b16 %v1392
        %v2075 = vunpack.c.l.b16 %v1393
        %v2076 = vunpack.c.h.b16 %v1393
        %v2077 = vunpack.c.l.b16 %v1394
        %v2078 = vunpack.c.h.b16 %v1394
        %v2079 = vunpack.c.l.b16 %v1395
        %v2080 = vunpack.c.h.b16 %v1395
        %v2081 = vunpack.c.l.b16 %v1396
        %v2082 = vunpack.c.h.b16 %v1396
        %v2083 = vunpack.c.l.b16 %v1397
        %v2084 = vunpack.c.h.b16 %v1397
        %v2085 = vunpack.c.l.b16 %v1398
        %v2086 = vunpack.c.h.b16 %v1398
        %v2087 = vunpack.c.l.b16 %v1399
        %v2088 = vunpack.c.h.b16 %v1399
        %v2089 = vunpack.c.l.b16 %v1400
        %v2090 = vunpack.c.h.b16 %v1400
        %v2091 = vunpack.c.l.b16 %v1401
        %v2092 = vunpack.c.h.b16 %v1401
        %v2093 = vunpack.c.l.b16 %v1402
        %v2094 = vunpack.c.h.b16 %v1402
        %v2095 = vunpack.c.l.b16 %v1403
        %v2096 = vunpack.c.h.b16 %v1403
        %v2097 = vunpack.c.l.b16 %v1404
        %v2098 = vunpack.c.h.b16 %v1404
        %v2099 = vunpack.c.l.b16 %v1405
        %v2100 = vunpack.c.h.b16 %v1405
        %v2101 = vunpack.c.l.b16 %v1406
        %v2102 = vunpack.c.h.b16 %v1406
        %v2103 = vunpack.c.l.b16 %v1407
        %v2104 = vunpack.c.h.b16 %v1407
        %v2105 = vunpack.c.l.b16 %v1408
        %v2106 = vunpack.c.h.b16 %v1408
        %v2107 = vunpack.c.l.b16 %v1409
        %v2108 = vunpack.c.h.b16 %v1409
        %v2109 = vunpack.c.l.b16 %v1410
        %v2110 = vunpack.c.h.b16 %v1410
        %v2111 = vunpack.c.l.b16 %v1411
        %v2112 = vunpack.c.h.b16 %v1411
        %v2113 = vunpack.c.l.b16 %v1412
        %v2114 = vunpack.c.h.b16 %v1412
        %v2115 = vunpack.c.l.b16 %v1413
        %v2116 = vunpack.c.h.b16 %v1413
        %v2117 = vunpack.c.l.b16 %v1414
        %v2118 = vunpack.c.h.b16 %v1414
        %v2119 = vunpack.c.l.b16 %v1415
        %v2120 = vunpack.c.h.b16 %v1415
        %v2121 = vunpack.c.l.b16 %v1416
        %v2122 = vunpack.c.h.b16 %v1416
        %v2123 = vunpack.c.l.b16 %v1417
        %v2124 = vunpack.c.h.b16 %v1417
        %v2125 = vunpack.c.l.b16 %v1418
        %v2126 = vunpack.c.h.b16 %v1418
        %v2127 = vunpack.c.l.b16 %v1419
        %v2128 = vunpack.c.h.b16 %v1419
        %v2129 = vunpack.c.l.b16 %v1420
        %v2130 = vunpack.c.h.b16 %v1420
        %v2131 = vunpack.c.l.b16 %v1421
        %v2132 = vunpack.c.h.b16 %v1421
        %v2133 = vunpack.c.l.b16 %v1422
        %v2134 = vunpack.c.h.b16 %v1422
        %v2135 = vunpack.c.l.b16 %v1423
        %v2136 = vunpack.c.h.b16 %v1423
        %v2137 = vunpack.c.l.b16 %v1424
        %v2138 = vunpack.c.h.b16 %v1424
        %v2139 = vunpack.c.l.b16 %v1425
        %v2140 = vunpack.c.h.b16 %v1425
        %v2141 = vunpack.c.l.b16 %v1426
        %v2142 = vunpack.c.h.b16 %v1426
        %v2143 = vunpack.c.l.b16 %v1427
        %v2144 = vunpack.c.h.b16 %v1427
        %v2145 = vunpack.c.l.b16 %v1428
        %v2146 = vunpack.c.h.b16 %v1428
        %v2147 = vunpack.c.l.b16 %v1429
        %v2148 = vunpack.c.h.b16 %v1429
        %v2149 = vunpack.c.l.b16 %v1430
        %v2150 = vunpack.c.h.b16 %v1430
        %v2151 = vunpack.c.l.b16 %v1431
        %v2152 = vunpack.c.h.b16 %v1431
        %v2153 = vunpack.c.l.b16 %v1432
        %v2154 = vunpack.c.h.b16 %v1432
        %v2155 = vunpack.c.l.b16 %v1433
        %v2156 = vunpack.c.h.b16 %v1433
        %v2157 = vunpack.c.l.b16 %v1434
        %v2158 = vunpack.c.h.b16 %v1434
        %v2159 = vunpack.c.l.b16 %v1435
        %v2160 = vunpack.c.h.b16 %v1435
        %v2161 = vunpack.c.l.b16 %v1436
        %v2162 = vunpack.c.h.b16 %v1436
        %v2163 = vunpack.c.l.b16 %v1437
        %v2164 = vunpack.c.h.b16 %v1437
        %v2165 = vunpack.c.l.b16 %v1438
        %v2166 = vunpack.c.h.b16 %v1438
        %v2167 = vunpack.c.l.b16 %v1439
        %v2168 = vunpack.c.h.b16 %v1439
        %v2169 = vunpack.c.l.b16 %v1440
        %v2170 = vunpack.c.h.b16 %v1440
        %v2171 = vunpack.c.l.b16 %v1441
        %v2172 = vunpack.c.h.b16 %v1441
        %v2173 = vunpack.c.l.b16 %v1442
        %v2174 = vunpack.c.h.b16 %v1442
        %v2175 = vunpack.c.l.b16 %v1443
        %v2176 = vunpack.c.h.b16 %v1443
        %v2177 = vunpack.c.l.b16 %v1444
        %v2178 = vunpack.c.h.b16 %v1444
        %v2179 = vunpack.c.l.b16 %v1445
        %v2180 = vunpack.c.h.b16 %v1445
        %v2181 = vunpack.c.l.b16 %v1446
        %v2182 = vunpack.c.h.b16 %v1446
        %v2183 = vunpack.c.l.b16 %v1447
        %v2184 = vunpack.c.h.b16 %v1447
        %v2185 = vunpack.c.l.b16 %v1448
        %v2186 = vunpack.c.h.b16 %v1448
        %v2187 = vunpack.c.l.b16 %v1449
        %v2188 = vunpack.c.h.b16 %v1449
        %v2189 = vunpack.c.l.b16 %v1450
        %v2190 = vunpack.c.h.b16 %v1450
        %v2191 = vunpack.c.l.b16 %v1451
        %v2192 = vunpack.c.h.b16 %v1451
        %v2193 = vunpack.c.l.b16 %v1452
        %v2194 = vunpack.c.h.b16 %v1452
        %v2195 = vunpack.c.l.b16 %v1453
        %v2196 = vunpack.c.h.b16 %v1453
        %v2197 = vunpack.c.l.b16 %v1454
        %v2198 = vunpack.c.h.b16 %v1454
        %v2199 = vunpack.c.l.b16 %v1455
        %v2200 = vunpack.c.h.b16 %v1455
        %v2201 = vunpack.c.l.b16 %v1456
        %v2202 = vunpack.c.h.b16 %v1456
        %v2203 = vunpack.c.l.b16 %v1457
        %v2204 = vunpack.c.h.b16 %v1457
        %v2205 = vunpack.c.l.b16 %v1458
        %v2206 = vunpack.c.h.b16 %v1458
        %v2207 = vunpack.c.l.b16 %v1459
        %v2208 = vunpack.c.h.b16 %v1459
        %v2209 = vunpack.c.l.b16 %v1460
        %v2210 = vunpack.c.h.b16 %v1460
        %v2211 = vunpack.c.l.b16 %v1461
        %v2212 = vunpack.c.h.b16 %v1461
        %v2213 = vunpack.c.l.b16 %v1462
        %v2214 = vunpack.c.h.b16 %v1462
        %v2215 = vunpack.c.l.b16 %v1463
        %v2216 = vunpack.c.h.b16 %v1463
        %v2217 = vunpack.c.l.b16 %v1464
        %v2218 = vunpack.c.h.b16 %v1464
        %v2219 = vunpack.c.l.b16 %v1465
        %v2220 = vunpack.c.h.b16 %v1465
        %v2221 = vunpack.c.l.b16 %v1466
        %v2222 = vunpack.c.h.b16 %v1466
        %v2223 = vunpack.c.l.b16 %v1467
        %v2224 = vunpack.c.h.b16 %v1467
        %v2225 = vunpack.c.l.b16 %v1468
        %v2226 = vunpack.c.h.b16 %v1468
        %v2227 = vunpack.c.l.b16 %v1469
        %v2228 = vunpack.c.h.b16 %v1469
        %v2229 = vunpack.c.l.b16 %v1470
        %v2230 = vunpack.c.h.b16 %v1470
        %v2231 = vunpack.c.l.b16 %v1471
        %v2232 = vunpack.c.h.b16 %v1471
        %v2233 = vunpack.c.l.b16 %v1472
        %v2234 = vunpack.c.h.b16 %v1472
        %v2235 = vunpack.c.l.b16 %v1473
        %v2236 = vunpack.c.h.b16 %v1473
        %v2237 = vunpack.c.l.b16 %v1474
        %v2238 = vunpack.c.h.b16 %v1474
        %v2239 = vunpack.c.l.b16 %v1475
        %v2240 = vunpack.c.h.b16 %v1475
        %v2241 = vunpack.c.l.b16 %v1476
        %v2242 = vunpack.c.h.b16 %v1476
        %v2243 = vunpack.c.l.b16 %v1477
        %v2244 = vunpack.c.h.b16 %v1477
        %v2245 = vunpack.c.l.b16 %v1478
        %v2246 = vunpack.c.h.b16 %v1478
        %v2247 = vunpack.c.l.b16 %v1479
        %v2248 = vunpack.c.h.b16 %v1479
        %v2249 = vunpack.c.l.b16 %v1480
        %v2250 = vunpack.c.h.b16 %v1480
        %v2251 = vunpack.c.l.b16 %v1481
        %v2252 = vunpack.c.h.b16 %v1481
        %v2253 = vunpack.c.l.b16 %v1482
        %v2254 = vunpack.c.h.b16 %v1482
        %v2255 = vunpack.c.l.b16 %v1483
        %v2256 = vunpack.c.h.b16 %v1483
        %v2257 = vunpack.c.l.b16 %v1484
        %v2258 = vunpack.c.h.b16 %v1484
        %v2259 = vunpack.c.l.b16 %v1485
        %v2260 = vunpack.c.h.b16 %v1485
        %v2261 = vunpack.c.l.b16 %v1486
        %v2262 = vunpack.c.h.b16 %v1486
        %v2263 = vunpack.c.l.b16 %v1487
        %v2264 = vunpack.c.h.b16 %v1487
        %v2265 = vunpack.c.l.b16 %v1488
        %v2266 = vunpack.c.h.b16 %v1488
        %v2267 = vunpack.c.l.b16 %v1489
        %v2268 = vunpack.c.h.b16 %v1489
        %v2269 = vunpack.c.l.b16 %v1490
        %v2270 = vunpack.c.h.b16 %v1490
        %v2271 = vunpack.c.l.b16 %v1491
        %v2272 = vunpack.c.h.b16 %v1491
        %v2273 = vunpack.c.l.b16 %v1492
        %v2274 = vunpack.c.h.b16 %v1492
        %v2275 = vunpack.c.l.b16 %v1493
        %v2276 = vunpack.c.h.b16 %v1493
        %v2277 = vunpack.c.l.b16 %v1494
        %v2278 = vunpack.c.h.b16 %v1494
        %v2279 = vunpack.c.l.b16 %v1495
        %v2280 = vunpack.c.h.b16 %v1495
        %v2281 = vunpack.c.l.b16 %v1496
        %v2282 = vunpack.c.h.b16 %v1496
        %v2283 = vunpack.c.l.b16 %v1497
        %v2284 = vunpack.c.h.b16 %v1497
        %v2285 = vunpack.c.l.b16 %v1498
        %v2286 = vunpack.c.h.b16 %v1498
        %v2287 = vunpack.c.l.b16 %v1499
        %v2288 = vunpack.c.h.b16 %v1499
        %v2289 = vunpack.c.l.b16 %v1500
        %v2290 = vunpack.c.h.b16 %v1500
        %v2291 = vunpack.c.l.b16 %v1501
        %v2292 = vunpack.c.h.b16 %v1501
        %v2293 = vunpack.c.l.b16 %v1502
        %v2294 = vunpack.c.h.b16 %v1502
        %v2295 = vunpack.c.l.b16 %v1503
        %v2296 = vunpack.c.h.b16 %v1503
        %v2297 = vunpack.c.l.b16 %v1504
        %v2298 = vunpack.c.h.b16 %v1504
        %v2299 = vunpack.c.l.b16 %v1505
        %v2300 = vunpack.c.h.b16 %v1505
        %v2301 = vunpack.c.l.b16 %v1506
        %v2302 = vunpack.c.h.b16 %v1506
        %v2303 = vunpack.c.l.b16 %v1507
        %v2304 = vunpack.c.h.b16 %v1507
        %v2305 = vunpack.c.l.b16 %v1508
        %v2306 = vunpack.c.h.b16 %v1508
        %v2307 = vunpack.c.l.b16 %v1509
        %v2308 = vunpack.c.h.b16 %v1509
        %v2309 = vunpack.c.l.b16 %v1510
        %v2310 = vunpack.c.h.b16 %v1510
        %v2311 = vunpack.c.l.b16 %v1511
        %v2312 = vunpack.c.h.b16 %v1511
        %v2313 = vunpack.c.l.b16 %v1512
        %v2314 = vunpack.c.h.b16 %v1512
        %v2315 = vunpack.c.l.b16 %v1513
        %v2316 = vunpack.c.h.b16 %v1513
        %v2317 = vunpack.c.l.b16 %v1514
        %v2318 = vunpack.c.h.b16 %v1514
        %v2319 = vunpack.c.l.b16 %v1515
        %v2320 = vunpack.c.h.b16 %v1515
        %v2321 = vunpack.c.l.b16 %v1516
        %v2322 = vunpack.c.h.b16 %v1516
        %v2323 = vunpack.c.l.b16 %v1517
        %v2324 = vunpack.c.h.b16 %v1517
        %v2325 = vunpack.c.l.b16 %v1518
        %v2326 = vunpack.c.h.b16 %v1518
        %v2327 = vunpack.c.l.b16 %v1519
        %v2328 = vunpack.c.h.b16 %v1519
        %v2329 = vunpack.c.l.b16 %v1520
        %v2330 = vunpack.c.h.b16 %v1520
        %v2331 = vunpack.c.l.b16 %v1521
        %v2332 = vunpack.c.h.b16 %v1521
        %v2333 = vunpack.c.l.b16 %v1522
        %v2334 = vunpack.c.h.b16 %v1522
        %v2335 = vunpack.c.l.b16 %v1523
        %v2336 = vunpack.c.h.b16 %v1523
        %v2337 = vunpack.c.l.b16 %v1524
        %v2338 = vunpack.c.h.b16 %v1524
        %v2339 = vunpack.c.l.b16 %v1525
        %v2340 = vunpack.c.h.b16 %v1525
        %v2341 = vunpack.c.l.b16 %v1526
        %v2342 = vunpack.c.h.b16 %v1526
        %v2343 = vunpack.c.l.b16 %v1527
        %v2344 = vunpack.c.h.b16 %v1527
        %v2345 = vunpack.c.l.b16 %v1528
        %v2346 = vunpack.c.h.b16 %v1528
        %v2347 = vunpack.c.l.b16 %v1529
        %v2348 = vunpack.c.h.b16 %v1529
        %v2349 = vunpack.c.l.b16 %v1530
        %v2350 = vunpack.c.h.b16 %v1530
        %v2351 = vunpack.c.l.b16 %v1531
        %v2352 = vunpack.c.h.b16 %v1531
        %v2353 = vunpack.c.l.b16 %v1532
        %v2354 = vunpack.c.h.b16 %v1532
        %v2355 = vunpack.c.l.b16 %v1533
        %v2356 = vunpack.c.h.b16 %v1533
        %v2357 = vunpack.c.l.b16 %v1534
        %v2358 = vunpack.c.h.b16 %v1534
        %v2359 = vunpack.c.l.b16 %v1535
        %v2360 = vunpack.c.h.b16 %v1535
        %v2361 = vunpack.c.l.b16 %v1536
        %v2362 = vunpack.c.h.b16 %v1536
        %v2363 = vunpack.c.l.b16 %v1537
        %v2364 = vunpack.c.h.b16 %v1537
        %v2365 = vunpack.c.l.b16 %v1538
        %v2366 = vunpack.c.h.b16 %v1538
        %v2367 = vunpack.c.l.b16 %v1539
        %v2368 = vunpack.c.h.b16 %v1539
        %v2369 = vunpack.c.l.b16 %v1540
        %v2370 = vunpack.c.h.b16 %v1540
        %v2371 = vunpack.c.l.b16 %v1541
        %v2372 = vunpack.c.h.b16 %v1541
        %v2373 = vunpack.c.l.b16 %v1542
        %v2374 = vunpack.c.h.b16 %v1542
        %v2375 = vunpack.c.l.b16 %v1543
        %v2376 = vunpack.c.h.b16 %v1543
        %v2377 = vunpack.c.l.b16 %v1544
        %v2378 = vunpack.c.h.b16 %v1544
        %v2379 = vunpack.c.l.b16 %v1545
        %v2380 = vunpack.c.h.b16 %v1545
        %v2381 = vunpack.c.l.b16 %v1546
        %v2382 = vunpack.c.h.b16 %v1546
        %v2383 = vunpack.c.l.b16 %v1547
        %v2384 = vunpack.c.h.b16 %v1547
        %v2385 = vunpack.c.l.b16 %v1548
        %v2386 = vunpack.c.h.b16 %v1548
        %v2387 = vunpack.c.l.b16 %v1549
        %v2388 = vunpack.c.h.b16 %v1549
        %v2389 = vunpack.c.l.b16 %v1550
        %v2390 = vunpack.c.h.b16 %v1550
        %v2391 = vunpack.c.l.b16 %v1551
        %v2392 = vunpack.c.h.b16 %v1551
        %v2393 = vunpack.c.l.b16 %v1552
        %v2394 = vunpack.c.h.b16 %v1552
        %v2395 = vunpack.c.l.b16 %v1553
        %v2396 = vunpack.c.h.b16 %v1553
        %v2397 = vunpack.c.l.b16 %v1554
        %v2398 = vunpack.c.h.b16 %v1554
        %v2399 = vunpack.c.l.b16 %v1555
        %v2400 = vunpack.c.h.b16 %v1555
        %v2401 = vunpack.c.l.b16 %v1556
        %v2402 = vunpack.c.h.b16 %v1556
        %v2403 = vunpack.c.l.b16 %v1557
        %v2404 = vunpack.c.h.b16 %v1557
        %v2405 = vunpack.c.l.b16 %v1558
        %v2406 = vunpack.c.h.b16 %v1558
        %v2407 = vunpack.c.l.b16 %v1559
        %v2408 = vunpack.c.h.b16 %v1559
        %v2409 = vunpack.c.l.b16 %v1560
        %v2410 = vunpack.c.h.b16 %v1560
        %v2411 = vunpack.c.l.b16 %v1561
        %v2412 = vunpack.c.h.b16 %v1561
        %v2413 = vunpack.c.l.b16 %v1562
        %v2414 = vunpack.c.h.b16 %v1562
        %v2415 = vunpack.c.l.b16 %v1563
        %v2416 = vunpack.c.h.b16 %v1563
        %v2417 = vunpack.c.l.b16 %v1564
        %v2418 = vunpack.c.h.b16 %v1564
        %v2419 = vunpack.c.l.b16 %v1565
        %v2420 = vunpack.c.h.b16 %v1565
        %v2421 = vunpack.c.l.b16 %v1566
        %v2422 = vunpack.c.h.b16 %v1566
        %v2423 = vunpack.c.l.b16 %v1567
        %v2424 = vunpack.c.h.b16 %v1567
        %v2425 = vunpack.c.l.b16 %v1568
        %v2426 = vunpack.c.h.b16 %v1568
        %v2427 = vunpack.c.l.b16 %v1569
        %v2428 = vunpack.c.h.b16 %v1569
        %v2429 = vunpack.c.l.b16 %v1570
        %v2430 = vunpack.c.h.b16 %v1570
        %v2431 = vunpack.c.l.b16 %v1571
        %v2432 = vunpack.c.h.b16 %v1571
        %v2433 = vunpack.c.l.b16 %v1572
        %v2434 = vunpack.c.h.b16 %v1572
        %v2435 = vunpack.c.l.b16 %v1573
        %v2436 = vunpack.c.h.b16 %v1573
        %v2437 = vunpack.c.l.b16 %v1574
        %v2438 = vunpack.c.h.b16 %v1574
        %v2439 = vunpack.c.l.b16 %v1575
        %v2440 = vunpack.c.h.b16 %v1575
        %v2441 = vunpack.c.l.b16 %v1576
        %v2442 = vunpack.c.h.b16 %v1576
        %v2443 = vunpack.c.l.b16 %v1577
        %v2444 = vunpack.c.h.b16 %v1577
        %v2445 = vunpack.c.l.b16 %v1578
        %v2446 = vunpack.c.h.b16 %v1578
        %v2447 = vunpack.c.l.b16 %v1579
        %v2448 = vunpack.c.h.b16 %v1579
        %v2449 = vunpack.c.l.b16 %v1580
        %v2450 = vunpack.c.h.b16 %v1580
        %v2451 = vunpack.c.l.b16 %v1581
        %v2452 = vunpack.c.h.b16 %v1581
        %v2453 = vunpack.c.l.b16 %v1582
        %v2454 = vunpack.c.h.b16 %v1582
        %v2455 = vunpack.c.l.b16 %v1583
        %v2456 = vunpack.c.h.b16 %v1583
        %v2457 = vunpack.c.l.b16 %v1584
        %v2458 = vunpack.c.h.b16 %v1584
        %v2459 = vunpack.c.l.b16 %v1585
        %v2460 = vunpack.c.h.b16 %v1585
        %v2461 = vunpack.c.l.b16 %v1586
        %v2462 = vunpack.c.h.b16 %v1586
        %v2463 = vunpack.c.l.b16 %v1587
        %v2464 = vunpack.c.h.b16 %v1587
        %v2465 = vunpack.c.l.b16 %v1588
        %v2466 = vunpack.c.h.b16 %v1588
        %v2467 = vunpack.c.l.b16 %v1589
        %v2468 = vunpack.c.h.b16 %v1589
        %v2469 = vunpack.c.l.b16 %v1590
        %v2470 = vunpack.c.h.b16 %v1590
        %v2471 = vunpack.c.l.b16 %v1591
        %v2472 = vunpack.c.h.b16 %v1591
        %v2473 = vunpack.c.l.b16 %v1592
        %v2474 = vunpack.c.h.b16 %v1592
        %v2475 = vunpack.c.l.b16 %v1593
        %v2476 = vunpack.c.h.b16 %v1593
        %v2477 = vunpack.c.l.b16 %v1594
        %v2478 = vunpack.c.h.b16 %v1594
        %v2479 = vpack.c.b16 %v1969, %v1967
        %v2480 = vpack.c.b16 %v1970, %v1968
        %v2481 = vpack.c.b16 %v1973, %v1971
        %v2482 = vpack.c.b16 %v1974, %v1972
        %v2483 = vpack.c.b16 %v1977, %v1975
        %v2484 = vpack.c.b16 %v1978, %v1976
        %v2485 = vpack.c.b16 %v1981, %v1979
        %v2486 = vpack.c.b16 %v1982, %v1980
        %v2487 = vpack.c.b16 %v1985, %v1983
        %v2488 = vpack.c.b16 %v1986, %v1984
        %v2489 = vpack.c.b16 %v1989, %v1987
        %v2490 = vpack.c.b16 %v1990, %v1988
        %v2491 = vpack.c.b16 %v1993, %v1991
        %v2492 = vpack.c.b16 %v1994, %v1992
        %v2493 = vpack.c.b16 %v1997, %v1995
        %v2494 = vpack.c.b16 %v1998, %v1996
        %v2495 = vpack.c.b16 %v2001, %v1999
        %v2496 = vpack.c.b16 %v2002, %v2000
        %v2497 = vpack.c.b16 %v2005, %v2003
        %v2498 = vpack.c.b16 %v2006, %v2004
        %v2499 = vpack.c.b16 %v2009, %v2007
        %v2500 = vpack.c.b16 %v2010, %v2008
        %v2501 = vpack.c.b16 %v2013, %v2011
        %v2502 = vpack.c.b16 %v2014, %v2012
        %v2503 = vpack.c.b16 %v2017, %v2015
        %v2504 = vpack.c.b16 %v2018, %v2016
        %v2505 = vpack.c.b16 %v2021, %v2019
        %v2506 = vpack.c.b16 %v2022, %v2020
        %v2507 = vpack.c.b16 %v2025, %v2023
        %v2508 = vpack.c.b16 %v2026, %v2024
        %v2509 = vpack.c.b16 %v2029, %v2027
        %v2510 = vpack.c.b16 %v2030, %v2028
        %v2511 = vpack.c.b16 %v2033, %v2031
        %v2512 = vpack.c.b16 %v2034, %v2032
        %v2513 = vpack.c.b16 %v2037, %v2035
        %v2514 = vpack.c.b16 %v2038, %v2036
        %v2515 = vpack.c.b16 %v2041, %v2039
        %v2516 = vpack.c.b16 %v2042, %v2040
        %v2517 = vpack.c.b16 %v2045, %v2043
        %v2518 = vpack.c.b16 %v2046, %v2044
        %v2519 = vpack.c.b16 %v2049, %v2047
        %v2520 = vpack.c.b16 %v2050, %v2048
        %v2521 = vpack.c.b16 %v2053, %v2051
        %v2522 = vpack.c.b16 %v2054, %v2052
        %v2523 = vpack.c.b16 %v2057, %v2055
        %v2524 = vpack.c.b16 %v2058, %v2056
        %v2525 = vpack.c.b16 %v2061, %v2059
        %v2526 = vpack.c.b16 %v2062, %v2060
        %v2527 = vpack.c.b16 %v2065, %v2063
        %v2528 = vpack.c.b16 %v2066, %v2064
        %v2529 = vpack.c.b16 %v2069, %v2067
        %v2530 = vpack.c.b16 %v2070, %v2068
        %v2531 = vpack.c.b16 %v2073, %v2071
        %v2532 = vpack.c.b16 %v2074, %v2072
        %v2533 = vpack.c.b16 %v2077, %v2075
        %v2534 = vpack.c.b16 %v2078, %v2076
        %v2535 = vpack.c.b16 %v2081, %v2079
        %v2536 = vpack.c.b16 %v2082, %v2080
        %v2537 = vpack.c.b16 %v2085, %v2083
        %v2538 = vpack.c.b16 %v2086, %v2084
        %v2539 = vpack.c.b16 %v2089, %v2087
        %v2540 = vpack.c.b16 %v2090, %v2088
        %v2541 = vpack.c.b16 %v2093, %v2091
        %v2542 = vpack.c.b16 %v2094, %v2092
        %v2543 = vpack.c.b16 %v2097, %v2095
        %v2544 = vpack.c.b16 %v2098, %v2096
        %v2545 = vpack.c.b16 %v2101, %v2099
        %v2546 = vpack.c.b16 %v2102, %v2100
        %v2547 = vpack.c.b16 %v2105, %v2103
        %v2548 = vpack.c.b16 %v2106, %v2104
        %v2549 = vpack.c.b16 %v2109, %v2107
        %v2550 = vpack.c.b16 %v2110, %v2108
        %v2551 = vpack.c.b16 %v2113, %v2111
        %v2552 = vpack.c.b16 %v2114, %v2112
        %v2553 = vpack.c.b16 %v2117, %v2115
        %v2554 = vpack.c.b16 %v2118, %v2116
        %v2555 = vpack.c.b16 %v2121, %v2119
        %v2556 = vpack.c.b16 %v2122, %v2120
        %v2557 = vpack.c.b16 %v2125, %v2123
        %v2558 = vpack.c.b16 %v2126, %v2124
        %v2559 = vpack.c.b16 %v2129, %v2127
        %v2560 = vpack.c.b16 %v2130, %v2128
        %v2561 = vpack.c.b16 %v2133, %v2131
        %v2562 = vpack.c.b16 %v2134, %v2132
        %v2563 = vpack.c.b16 %v2137, %v2135
        %v2564 = vpack.c.b16 %v2138, %v2136
        %v2565 = vpack.c.b16 %v2141, %v2139
        %v2566 = vpack.c.b16 %v2142, %v2140
        %v2567 = vpack.c.b16 %v2145, %v2143
        %v2568 = vpack.c.b16 %v2146, %v2144
        %v2569 = vpack.c.b16 %v2149, %v2147
        %v2570 = vpack.c.b16 %v2150, %v2148
        %v2571 = vpack.c.b16 %v2153, %v2151
        %v2572 = vpack.c.b16 %v2154, %v2152
        %v2573 = vpack.c.b16 %v2157, %v2155
        %v2574 = vpack.c.b16 %v2158, %v2156
        %v2575 = vpack.c.b16 %v2161, %v2159
        %v2576 = vpack.c.b16 %v2162, %v2160
        %v2577 = vpack.c.b16 %v2165, %v2163
        %v2578 = vpack.c.b16 %v2166, %v2164
        %v2579 = vpack.c.b16 %v2169, %v2167
        %v2580 = vpack.c.b16 %v2170, %v2168
        %v2581 = vpack.c.b16 %v2173, %v2171
        %v2582 = vpack.c.b16 %v2174, %v2172
        %v2583 = vpack.c.b16 %v2177, %v2175
        %v2584 = vpack.c.b16 %v2178, %v2176
        %v2585 = vpack.c.b16 %v2181, %v2179
        %v2586 = vpack.c.b16 %v2182, %v2180
        %v2587 = vpack.c.b16 %v2185, %v2183
        %v2588 = vpack.c.b16 %v2186, %v2184
        %v2589 = vpack.c.b16 %v2189, %v2187
        %v2590 = vpack.c.b16 %v2190, %v2188
        %v2591 = vpack.c.b16 %v2193, %v2191
        %v2592 = vpack.c.b16 %v2194, %v2192
        %v2593 = vpack.c.b16 %v2197, %v2195
        %v2594 = vpack.c.b16 %v2198, %v2196
        %v2595 = vpack.c.b16 %v2201, %v2199
        %v2596 = vpack.c.b16 %v2202, %v2200
        %v2597 = vpack.c.b16 %v2205, %v2203
        %v2598 = vpack.c.b16 %v2206, %v2204
        %v2599 = vpack.c.b16 %v2209, %v2207
        %v2600 = vpack.c.b16 %v2210, %v2208
        %v2601 = vpack.c.b16 %v2213, %v2211
        %v2602 = vpack.c.b16 %v2214, %v2212
        %v2603 = vpack.c.b16 %v2217, %v2215
        %v2604 = vpack.c.b16 %v2218, %v2216
        %v2605 = vpack.c.b16 %v2221, %v2219
        %v2606 = vpack.c.b16 %v2222, %v2220
        %v2607 = vpack.c.b16 %v2225, %v2223
        %v2608 = vpack.c.b16 %v2226, %v2224
        %v2609 = vpack.c.b16 %v2229, %v2227
        %v2610 = vpack.c.b16 %v2230, %v2228
        %v2611 = vpack.c.b16 %v2233, %v2231
        %v2612 = vpack.c.b16 %v2234, %v2232
        %v2613 = vpack.c.b16 %v2237, %v2235
        %v2614 = vpack.c.b16 %v2238, %v2236
        %v2615 = vpack.c.b16 %v2241, %v2239
        %v2616 = vpack.c.b16 %v2242, %v2240
        %v2617 = vpack.c.b16 %v2245, %v2243
        %v2618 = vpack.c.b16 %v2246, %v2244
        %v2619 = vpack.c.b16 %v2249, %v2247
        %v2620 = vpack.c.b16 %v2250, %v2248
        %v2621 = vpack.c.b16 %v2253, %v2251
        %v2622 = vpack.c.b16 %v2254, %v2252
        %v2623 = vpack.c.b16 %v2257, %v2255
        %v2624 = vpack.c.b16 %v2258, %v2256
        %v2625 = vpack.c.b16 %v2261, %v2259
        %v2626 = vpack.c.b16 %v2262, %v2260
        %v2627 = vpack.c.b16 %v2265, %v2263
        %v2628 = vpack.c.b16 %v2266, %v2264
        %v2629 = vpack.c.b16 %v2269, %v2267
        %v2630 = vpack.c.b16 %v2270, %v2268
        %v2631 = vpack.c.b16 %v2273, %v2271
        %v2632 = vpack.c.b16 %v2274, %v2272
        %v2633 = vpack.c.b16 %v2277, %v2275
        %v2634 = vpack.c.b16 %v2278, %v2276
        %v2635 = vpack.c.b16 %v2281, %v2279
        %v2636 = vpack.c.b16 %v2282, %v2280
        %v2637 = vpack.c.b16 %v2285, %v2283
        %v2638 = vpack.c.b16 %v2286, %v2284
        %v2639 = vpack.c.b16 %v2289, %v2287
        %v2640 = vpack.c.b16 %v2290, %v2288
        %v2641 = vpack.c.b16 %v2293, %v2291
        %v2642 = vpack.c.b16 %v2294, %v2292
        %v2643 = vpack.c.b16 %v2297, %v2295
        %v2644 = vpack.c.b16 %v2298, %v2296
        %v2645 = vpack.c.b16 %v2301, %v2299
        %v2646 = vpack.c.b16 %v2302, %v2300
        %v2647 = vpack.c.b16 %v2305, %v2303
        %v2648 = vpack.c.b16 %v2306, %v2304
        %v2649 = vpack.c.b16 %v2309, %v2307
        %v2650 = vpack.c.b16 %v2310, %v2308
        %v2651 = vpack.c.b16 %v2313, %v2311
        %v2652 = vpack.c.b16 %v2314, %v2312
        %v2653 = vpack.c.b16 %v2317, %v2315
        %v2654 = vpack.c.b16 %v2318, %v2316
        %v2655 = vpack.c.b16 %v2321, %v2319
        %v2656 = vpack.c.b16 %v2322, %v2320
        %v2657 = vpack.c.b16 %v2325, %v2323
        %v2658 = vpack.c.b16 %v2326, %v2324
        %v2659 = vpack.c.b16 %v2329, %v2327
        %v2660 = vpack.c.b16 %v2330, %v2328
        %v2661 = vpack.c.b16 %v2333, %v2331
        %v2662 = vpack.c.b16 %v2334, %v2332
        %v2663 = vpack.c.b16 %v2337, %v2335
        %v2664 = vpack.c.b16 %v2338, %v2336
        %v2665 = vpack.c.b16 %v2341, %v2339
        %v2666 = vpack.c.b16 %v2342, %v2340
        %v2667 = vpack.c.b16 %v2345, %v2343
        %v2668 = vpack.c.b16 %v2346, %v2344
        %v2669 = vpack.c.b16 %v2349, %v2347
        %v2670 = vpack.c.b16 %v2350, %v2348
        %v2671 = vpack.c.b16 %v2353, %v2351
        %v2672 = vpack.c.b16 %v2354, %v2352
        %v2673 = vpack.c.b16 %v2357, %v2355
        %v2674 = vpack.c.b16 %v2358, %v2356
        %v2675 = vpack.c.b16 %v2361, %v2359
        %v2676 = vpack.c.b16 %v2362, %v2360
        %v2677 = vpack.c.b16 %v2365, %v2363
        %v2678 = vpack.c.b16 %v2366, %v2364
        %v2679 = vpack.c.b16 %v2369, %v2367
        %v2680 = vpack.c.b16 %v2370, %v2368
        %v2681 = vpack.c.b16 %v2373, %v2371
        %v2682 = vpack.c.b16 %v2374, %v2372
        %v2683 = vpack.c.b16 %v2377, %v2375
        %v2684 = vpack.c.b16 %v2378, %v2376
        %v2685 = vpack.c.b16 %v2381, %v2379
        %v2686 = vpack.c.b16 %v2382, %v2380
        %v2687 = vpack.c.b16 %v2385, %v2383
        %v2688 = vpack.c.b16 %v2386, %v2384
        %v2689 = vpack.c.b16 %v2389, %v2387
        %v2690 = vpack.c.b16 %v2390, %v2388
        %v2691 = vpack.c.b16 %v2393, %v2391
        %v2692 = vpack.c.b16 %v2394, %v2392
        %v2693 = vpack.c.b16 %v2397, %v2395
        %v2694 = vpack.c.b16 %v2398, %v2396
        %v2695 = vpack.c.b16 %v2401, %v2399
        %v2696 = vpack.c.b16 %v2402, %v2400
        %v2697 = vpack.c.b16 %v2405, %v2403
        %v2698 = vpack.c.b16 %v2406, %v2404
        %v2699 = vpack.c.b16 %v2409, %v2407
        %v2700 = vpack.c.b16 %v2410, %v2408
        %v2701 = vpack.c.b16 %v2413, %v2411
        %v2702 = vpack.c.b16 %v2414, %v2412
        %v2703 = vpack.c.b16 %v2417, %v2415
        %v2704 = vpack.c.b16 %v2418, %v2416
        %v2705 = vpack.c.b16 %v2421, %v2419
        %v2706 = vpack.c.b16 %v2422, %v2420
        %v2707 = vpack.c.b16 %v2425, %v2423
        %v2708 = vpack.c.b16 %v2426, %v2424
        %v2709 = vpack.c.b16 %v2429, %v2427
        %v2710 = vpack.c.b16 %v2430, %v2428
        %v2711 = vpack.c.b16 %v2433, %v2431
        %v2712 = vpack.c.b16 %v2434, %v2432
        %v2713 = vpack.c.b16 %v2437, %v2435
        %v2714 = vpack.c.b16 %v2438, %v2436
        %v2715 = vpack.c.b16 %v2441, %v2439
        %v2716 = vpack.c.b16 %v2442, %v2440
        %v2717 = vpack.c.b16 %v2445, %v2443
        %v2718 = vpack.c.b16 %v2446, %v2444
        %v2719 = vpack.c.b16 %v2449, %v2447
        %v2720 = vpack.c.b16 %v2450, %v2448
        %v2721 = vpack.c.b16 %v2453, %v2451
        %v2722 = vpack.c.b16 %v2454, %v2452
        %v2723 = vpack.c.b16 %v2457, %v2455
        %v2724 = vpack.c.b16 %v2458, %v2456
        %v2725 = vpack.c.b16 %v2461, %v2459
        %v2726 = vpack.c.b16 %v2462, %v2460
        %v2727 = vpack.c.b16 %v2465, %v2463
        %v2728 = vpack.c.b16 %v2466, %v2464
        %v2729 = vpack.c.b16 %v2469, %v2467
        %v2730 = vpack.c.b16 %v2470, %v2468
        %v2731 = vpack.c.b16 %v2473, %v2471
        %v2732 = vpack.c.b16 %v2474, %v2472
        %v2733 = vpack.c.b16 %v2477, %v2475
        %v2734 = vpack.c.b16 %v2478, %v2476
        %2991 = vmatprep.subr.bf16.mxu0 %v2494
        %2992 = vmatpush1.bf16.msra.mxu0 %v2493
        %2993 = vmatprep.subr.bf16.mxu0 %v2492
        %2994 = vmatpush1.bf16.msra.mxu0 %v2491
        %2995 = vmatprep.subr.bf16.mxu0 %v2490
        %2996 = vmatpush1.bf16.msra.mxu0 %v2489
        %2997 = vmatprep.subr.bf16.mxu0 %v2488
        %2998 = vmatpush1.bf16.msra.mxu0 %v2487
        %2999 = vmatprep.subr.bf16.mxu0 %v2486
        %3000 = vmatpush1.bf16.msra.mxu0 %v2485
        %3001 = vmatprep.subr.bf16.mxu0 %v2484
        %3002 = vmatpush1.bf16.msra.mxu0 %v2483
        %3003 = vmatprep.subr.bf16.mxu0 %v2482
        %3004 = vmatpush1.bf16.msra.mxu0 %v2481
        %3005 = vmatprep.subr.bf16.mxu0 %v2480
        %3006 = vmatpush1.bf16.msra.mxu0 %v2479
        %3007 = vmatprep.subr.bf16.mxu0 %v2510
        %3008 = vmatpush2.bf16.msra.mxu0 %v2509
        %3009 = vmatprep.subr.bf16.mxu0 %v2508
        %3010 = vmatpush2.bf16.msra.mxu0 %v2507
        %3011 = vmatprep.subr.bf16.mxu0 %v2506
        %3012 = vmatpush2.bf16.msra.mxu0 %v2505
        %3013 = vmatprep.subr.bf16.mxu0 %v2504
        %3014 = vmatpush2.bf16.msra.mxu0 %v2503
        %3015 = vmatprep.subr.bf16.mxu0 %v2502
        %3016 = vmatpush2.bf16.msra.mxu0 %v2501
        %3017 = vmatprep.subr.bf16.mxu0 %v2500
        %3018 = vmatpush2.bf16.msra.mxu0 %v2499
        %3019 = vmatprep.subr.bf16.mxu0 %v2498
        %3020 = vmatpush2.bf16.msra.mxu0 %v2497
        %3021 = vmatprep.subr.bf16.mxu0 %v2496
        %3022 = vmatpush2.bf16.msra.mxu0 %v2495
        %3023 = vmatprep.mubr.bf16.mxu0 %v1634
        %3024 = vmatmul.mubr.bf16.gmra.mxu0 %v1620
        %v3025 = vpop.f32.mrf.mxu0
        %v3026 = vadd.f32 0.0, %v3025
        %v3027 = vpop.f32.mrf.mxu0
        %v3028 = vadd.f32 0.0, %v3027
        %v3029 = vpop.f32.mrf.mxu0
        %v3030 = vpop.f32.mrf.mxu0
        %3031 = vdwg.mxu0
        %3032 = vmatprep.subr.bf16.mxu0 %v2526
        %3033 = vmatpush1.bf16.msra.mxu0 %v2525
        %3034 = vmatprep.subr.bf16.mxu0 %v2524
        %3035 = vmatpush1.bf16.msra.mxu0 %v2523
        %3036 = vmatprep.subr.bf16.mxu0 %v2522
        %3037 = vmatpush1.bf16.msra.mxu0 %v2521
        %3038 = vmatprep.subr.bf16.mxu0 %v2520
        %3039 = vmatpush1.bf16.msra.mxu0 %v2519
        %3040 = vmatprep.subr.bf16.mxu0 %v2518
        %3041 = vmatpush1.bf16.msra.mxu0 %v2517
        %3042 = vmatprep.subr.bf16.mxu0 %v2516
        %3043 = vmatpush1.bf16.msra.mxu0 %v2515
        %3044 = vmatprep.subr.bf16.mxu0 %v2514
        %3045 = vmatpush1.bf16.msra.mxu0 %v2513
        %3046 = vmatprep.subr.bf16.mxu0 %v2512
        %3047 = vmatpush1.bf16.msra.mxu0 %v2511
        %3048 = vmatprep.subr.bf16.mxu0 %v2542
        %3049 = vmatpush2.bf16.msra.mxu0 %v2541
        %3050 = vmatprep.subr.bf16.mxu0 %v2540
        %3051 = vmatpush2.bf16.msra.mxu0 %v2539
        %3052 = vmatprep.subr.bf16.mxu0 %v2538
        %3053 = vmatpush2.bf16.msra.mxu0 %v2537
        %3054 = vmatprep.subr.bf16.mxu0 %v2536
        %3055 = vmatpush2.bf16.msra.mxu0 %v2535
        %3056 = vmatprep.subr.bf16.mxu0 %v2534
        %3057 = vmatpush2.bf16.msra.mxu0 %v2533
        %3058 = vmatprep.subr.bf16.mxu0 %v2532
        %3059 = vmatpush2.bf16.msra.mxu0 %v2531
        %3060 = vmatprep.subr.bf16.mxu0 %v2530
        %3061 = vmatpush2.bf16.msra.mxu0 %v2529
        %3062 = vmatprep.subr.bf16.mxu0 %v2528
        %3063 = vmatpush2.bf16.msra.mxu0 %v2527
        %3064 = vmatprep.mubr.bf16.mxu0 %v1644
        %3065 = vmatmul.mubr.bf16.gmra.mxu0 %v1642
        %v3066 = vpop.f32.mrf.mxu0
        %v3067 = vadd.f32 %v3026, %v3066
        %v3068 = vpop.f32.mrf.mxu0
        %v3069 = vadd.f32 %v3028, %v3068
        %v3070 = vpop.f32.mrf.mxu0
        %v3071 = vpop.f32.mrf.mxu0
        %3072 = vdwg.mxu0
        %3073 = vmatprep.subr.bf16.mxu0 %v2558
        %3074 = vmatpush1.bf16.msra.mxu0 %v2557
        %3075 = vmatprep.subr.bf16.mxu0 %v2556
        %3076 = vmatpush1.bf16.msra.mxu0 %v2555
        %3077 = vmatprep.subr.bf16.mxu0 %v2554
        %3078 = vmatpush1.bf16.msra.mxu0 %v2553
        %3079 = vmatprep.subr.bf16.mxu0 %v2552
        %3080 = vmatpush1.bf16.msra.mxu0 %v2551
        %3081 = vmatprep.subr.bf16.mxu0 %v2550
        %3082 = vmatpush1.bf16.msra.mxu0 %v2549
        %3083 = vmatprep.subr.bf16.mxu0 %v2548
        %3084 = vmatpush1.bf16.msra.mxu0 %v2547
        %3085 = vmatprep.subr.bf16.mxu0 %v2546
        %3086 = vmatpush1.bf16.msra.mxu0 %v2545
        %3087 = vmatprep.subr.bf16.mxu0 %v2544
        %3088 = vmatpush1.bf16.msra.mxu0 %v2543
        %3089 = vmatprep.subr.bf16.mxu0 %v2574
        %3090 = vmatpush2.bf16.msra.mxu0 %v2573
        %3091 = vmatprep.subr.bf16.mxu0 %v2572
        %3092 = vmatpush2.bf16.msra.mxu0 %v2571
        %3093 = vmatprep.subr.bf16.mxu0 %v2570
        %3094 = vmatpush2.bf16.msra.mxu0 %v2569
        %3095 = vmatprep.subr.bf16.mxu0 %v2568
        %3096 = vmatpush2.bf16.msra.mxu0 %v2567
        %3097 = vmatprep.subr.bf16.mxu0 %v2566
        %3098 = vmatpush2.bf16.msra.mxu0 %v2565
        %3099 = vmatprep.subr.bf16.mxu0 %v2564
        %3100 = vmatpush2.bf16.msra.mxu0 %v2563
        %3101 = vmatprep.subr.bf16.mxu0 %v2562
        %3102 = vmatpush2.bf16.msra.mxu0 %v2561
        %3103 = vmatprep.subr.bf16.mxu0 %v2560
        %3104 = vmatpush2.bf16.msra.mxu0 %v2559
        %3105 = vmatprep.mubr.bf16.mxu0 %v1641
        %3106 = vmatmul.mubr.bf16.gmra.mxu0 %v1627
        %v3107 = vpop.f32.mrf.mxu0
        %v3108 = vadd.f32 %v3067, %v3107
        %v3109 = vpop.f32.mrf.mxu0
        %v3110 = vadd.f32 %v3069, %v3109
        %v3111 = vpop.f32.mrf.mxu0
        %v3112 = vpop.f32.mrf.mxu0
        %3113 = vdwg.mxu0
        %3114 = vmatprep.subr.bf16.mxu0 %v2590
        %3115 = vmatpush1.bf16.msra.mxu0 %v2589
        %3116 = vmatprep.subr.bf16.mxu0 %v2588
        %3117 = vmatpush1.bf16.msra.mxu0 %v2587
        %3118 = vmatprep.subr.bf16.mxu0 %v2586
        %3119 = vmatpush1.bf16.msra.mxu0 %v2585
        %3120 = vmatprep.subr.bf16.mxu0 %v2584
        %3121 = vmatpush1.bf16.msra.mxu0 %v2583
        %3122 = vmatprep.subr.bf16.mxu0 %v2582
        %3123 = vmatpush1.bf16.msra.mxu0 %v2581
        %3124 = vmatprep.subr.bf16.mxu0 %v2580
        %3125 = vmatpush1.bf16.msra.mxu0 %v2579
        %3126 = vmatprep.subr.bf16.mxu0 %v2578
        %3127 = vmatpush1.bf16.msra.mxu0 %v2577
        %3128 = vmatprep.subr.bf16.mxu0 %v2576
        %3129 = vmatpush1.bf16.msra.mxu0 %v2575
        %3130 = vmatprep.subr.bf16.mxu0 %v2606
        %3131 = vmatpush2.bf16.msra.mxu0 %v2605
        %3132 = vmatprep.subr.bf16.mxu0 %v2604
        %3133 = vmatpush2.bf16.msra.mxu0 %v2603
        %3134 = vmatprep.subr.bf16.mxu0 %v2602
        %3135 = vmatpush2.bf16.msra.mxu0 %v2601
        %3136 = vmatprep.subr.bf16.mxu0 %v2600
        %3137 = vmatpush2.bf16.msra.mxu0 %v2599
        %3138 = vmatprep.subr.bf16.mxu0 %v2598
        %3139 = vmatpush2.bf16.msra.mxu0 %v2597
        %3140 = vmatprep.subr.bf16.mxu0 %v2596
        %3141 = vmatpush2.bf16.msra.mxu0 %v2595
        %3142 = vmatprep.subr.bf16.mxu0 %v2594
        %3143 = vmatpush2.bf16.msra.mxu0 %v2593
        %3144 = vmatprep.subr.bf16.mxu0 %v2592
        %3145 = vmatpush2.bf16.msra.mxu0 %v2591
        %3146 = vmatprep.mubr.bf16.mxu0 %v1645
        %3147 = vmatmul.mubr.bf16.gmra.mxu0 %v1643
        %v3148 = vpop.f32.mrf.mxu0
        %v3149 = vadd.f32 %v3108, %v3148
        %v3150 = vpop.f32.mrf.mxu0
        %v3151 = vadd.f32 %v3110, %v3150
        %v3152 = vpop.f32.mrf.mxu0
        %v3153 = vpop.f32.mrf.mxu0
        %3154 = vdwg.mxu0
        %3155 = vmatprep.subr.bf16.mxu0 %v2622
        %3156 = vmatpush1.bf16.msra.mxu0 %v2621
        %3157 = vmatprep.subr.bf16.mxu0 %v2620
        %3158 = vmatpush1.bf16.msra.mxu0 %v2619
        %3159 = vmatprep.subr.bf16.mxu0 %v2618
        %3160 = vmatpush1.bf16.msra.mxu0 %v2617
        %3161 = vmatprep.subr.bf16.mxu0 %v2616
        %3162 = vmatpush1.bf16.msra.mxu0 %v2615
        %3163 = vmatprep.subr.bf16.mxu0 %v2614
        %3164 = vmatpush1.bf16.msra.mxu0 %v2613
        %3165 = vmatprep.subr.bf16.mxu0 %v2612
        %3166 = vmatpush1.bf16.msra.mxu0 %v2611
        %3167 = vmatprep.subr.bf16.mxu0 %v2610
        %3168 = vmatpush1.bf16.msra.mxu0 %v2609
        %3169 = vmatprep.subr.bf16.mxu0 %v2608
        %3170 = vmatpush1.bf16.msra.mxu0 %v2607
        %3171 = vmatprep.subr.bf16.mxu0 %v2638
        %3172 = vmatpush2.bf16.msra.mxu0 %v2637
        %3173 = vmatprep.subr.bf16.mxu0 %v2636
        %3174 = vmatpush2.bf16.msra.mxu0 %v2635
        %3175 = vmatprep.subr.bf16.mxu0 %v2634
        %3176 = vmatpush2.bf16.msra.mxu0 %v2633
        %3177 = vmatprep.subr.bf16.mxu0 %v2632
        %3178 = vmatpush2.bf16.msra.mxu0 %v2631
        %3179 = vmatprep.subr.bf16.mxu0 %v2630
        %3180 = vmatpush2.bf16.msra.mxu0 %v2629
        %3181 = vmatprep.subr.bf16.mxu0 %v2628
        %3182 = vmatpush2.bf16.msra.mxu0 %v2627
        %3183 = vmatprep.subr.bf16.mxu0 %v2626
        %3184 = vmatpush2.bf16.msra.mxu0 %v2625
        %3185 = vmatprep.subr.bf16.mxu0 %v2624
        %3186 = vmatpush2.bf16.msra.mxu0 %v2623
        %3187 = vmatprep.mubr.bf16.mxu0 %v1683
        %3188 = vmatmul.mubr.bf16.gmra.mxu0 %v1669
        %v3189 = vpop.f32.mrf.mxu0
        %v3190 = vadd.f32 %v3149, %v3189
        %v3191 = vpop.f32.mrf.mxu0
        %v3192 = vadd.f32 %v3151, %v3191
        %v3193 = vpop.f32.mrf.mxu0
        %v3194 = vpop.f32.mrf.mxu0
        %3195 = vdwg.mxu0
        %3196 = vmatprep.subr.bf16.mxu0 %v2654
        %3197 = vmatpush1.bf16.msra.mxu0 %v2653
        %3198 = vmatprep.subr.bf16.mxu0 %v2652
        %3199 = vmatpush1.bf16.msra.mxu0 %v2651
        %3200 = vmatprep.subr.bf16.mxu0 %v2650
        %3201 = vmatpush1.bf16.msra.mxu0 %v2649
        %3202 = vmatprep.subr.bf16.mxu0 %v2648
        %3203 = vmatpush1.bf16.msra.mxu0 %v2647
        %3204 = vmatprep.subr.bf16.mxu0 %v2646
        %3205 = vmatpush1.bf16.msra.mxu0 %v2645
        %3206 = vmatprep.subr.bf16.mxu0 %v2644
        %3207 = vmatpush1.bf16.msra.mxu0 %v2643
        %3208 = vmatprep.subr.bf16.mxu0 %v2642
        %3209 = vmatpush1.bf16.msra.mxu0 %v2641
        %3210 = vmatprep.subr.bf16.mxu0 %v2640
        %3211 = vmatpush1.bf16.msra.mxu0 %v2639
        %3212 = vmatprep.subr.bf16.mxu0 %v2670
        %3213 = vmatpush2.bf16.msra.mxu0 %v2669
        %3214 = vmatprep.subr.bf16.mxu0 %v2668
        %3215 = vmatpush2.bf16.msra.mxu0 %v2667
        %3216 = vmatprep.subr.bf16.mxu0 %v2666
        %3217 = vmatpush2.bf16.msra.mxu0 %v2665
        %3218 = vmatprep.subr.bf16.mxu0 %v2664
        %3219 = vmatpush2.bf16.msra.mxu0 %v2663
        %3220 = vmatprep.subr.bf16.mxu0 %v2662
        %3221 = vmatpush2.bf16.msra.mxu0 %v2661
        %3222 = vmatprep.subr.bf16.mxu0 %v2660
        %3223 = vmatpush2.bf16.msra.mxu0 %v2659
        %3224 = vmatprep.subr.bf16.mxu0 %v2658
        %3225 = vmatpush2.bf16.msra.mxu0 %v2657
        %3226 = vmatprep.subr.bf16.mxu0 %v2656
        %3227 = vmatpush2.bf16.msra.mxu0 %v2655
        %3228 = vmatprep.mubr.bf16.mxu0 %v1693
        %3229 = vmatmul.mubr.bf16.gmra.mxu0 %v1691
        %v3230 = vpop.f32.mrf.mxu0
        %v3231 = vadd.f32 %v3190, %v3230
        %v3232 = vpop.f32.mrf.mxu0
        %v3233 = vadd.f32 %v3192, %v3232
        %v3234 = vpop.f32.mrf.mxu0
        %v3235 = vpop.f32.mrf.mxu0
        %3236 = vdwg.mxu0
        %3237 = vmatprep.subr.bf16.mxu0 %v2686
        %3238 = vmatpush1.bf16.msra.mxu0 %v2685
        %3239 = vmatprep.subr.bf16.mxu0 %v2684
        %3240 = vmatpush1.bf16.msra.mxu0 %v2683
        %3241 = vmatprep.subr.bf16.mxu0 %v2682
        %3242 = vmatpush1.bf16.msra.mxu0 %v2681
        %3243 = vmatprep.subr.bf16.mxu0 %v2680
        %3244 = vmatpush1.bf16.msra.mxu0 %v2679
        %3245 = vmatprep.subr.bf16.mxu0 %v2678
        %3246 = vmatpush1.bf16.msra.mxu0 %v2677
        %3247 = vmatprep.subr.bf16.mxu0 %v2676
        %3248 = vmatpush1.bf16.msra.mxu0 %v2675
        %3249 = vmatprep.subr.bf16.mxu0 %v2674
        %3250 = vmatpush1.bf16.msra.mxu0 %v2673
        %3251 = vmatprep.subr.bf16.mxu0 %v2672
        %3252 = vmatpush1.bf16.msra.mxu0 %v2671
        %3253 = vmatprep.subr.bf16.mxu0 %v2702
        %3254 = vmatpush2.bf16.msra.mxu0 %v2701
        %3255 = vmatprep.subr.bf16.mxu0 %v2700
        %3256 = vmatpush2.bf16.msra.mxu0 %v2699
        %3257 = vmatprep.subr.bf16.mxu0 %v2698
        %3258 = vmatpush2.bf16.msra.mxu0 %v2697
        %3259 = vmatprep.subr.bf16.mxu0 %v2696
        %3260 = vmatpush2.bf16.msra.mxu0 %v2695
        %3261 = vmatprep.subr.bf16.mxu0 %v2694
        %3262 = vmatpush2.bf16.msra.mxu0 %v2693
        %3263 = vmatprep.subr.bf16.mxu0 %v2692
        %3264 = vmatpush2.bf16.msra.mxu0 %v2691
        %3265 = vmatprep.subr.bf16.mxu0 %v2690
        %3266 = vmatpush2.bf16.msra.mxu0 %v2689
        %3267 = vmatprep.subr.bf16.mxu0 %v2688
        %3268 = vmatpush2.bf16.msra.mxu0 %v2687
        %3269 = vmatprep.mubr.bf16.mxu0 %v1690
        %3270 = vmatmul.mubr.bf16.gmra.mxu0 %v1676
        %v3271 = vpop.f32.mrf.mxu0
        %v3272 = vadd.f32 %v3231, %v3271
        %v3273 = vpop.f32.mrf.mxu0
        %v3274 = vadd.f32 %v3233, %v3273
        %v3275 = vpop.f32.mrf.mxu0
        %v3276 = vpop.f32.mrf.mxu0
        %3277 = vdwg.mxu0
        %3278 = vmatprep.subr.bf16.mxu0 %v2718
        %3279 = vmatpush1.bf16.msra.mxu0 %v2717
        %3280 = vmatprep.subr.bf16.mxu0 %v2716
        %3281 = vmatpush1.bf16.msra.mxu0 %v2715
        %3282 = vmatprep.subr.bf16.mxu0 %v2714
        %3283 = vmatpush1.bf16.msra.mxu0 %v2713
        %3284 = vmatprep.subr.bf16.mxu0 %v2712
        %3285 = vmatpush1.bf16.msra.mxu0 %v2711
        %3286 = vmatprep.subr.bf16.mxu0 %v2710
        %3287 = vmatpush1.bf16.msra.mxu0 %v2709
        %3288 = vmatprep.subr.bf16.mxu0 %v2708
        %3289 = vmatpush1.bf16.msra.mxu0 %v2707
        %3290 = vmatprep.subr.bf16.mxu0 %v2706
        %3291 = vmatpush1.bf16.msra.mxu0 %v2705
        %3292 = vmatprep.subr.bf16.mxu0 %v2704
        %3293 = vmatpush1.bf16.msra.mxu0 %v2703
        %3294 = vmatprep.subr.bf16.mxu0 %v2734
        %3295 = vmatpush2.bf16.msra.mxu0 %v2733
        %3296 = vmatprep.subr.bf16.mxu0 %v2732
        %3297 = vmatpush2.bf16.msra.mxu0 %v2731
        %3298 = vmatprep.subr.bf16.mxu0 %v2730
        %3299 = vmatpush2.bf16.msra.mxu0 %v2729
        %3300 = vmatprep.subr.bf16.mxu0 %v2728
        %3301 = vmatpush2.bf16.msra.mxu0 %v2727
        %3302 = vmatprep.subr.bf16.mxu0 %v2726
        %3303 = vmatpush2.bf16.msra.mxu0 %v2725
        %3304 = vmatprep.subr.bf16.mxu0 %v2724
        %3305 = vmatpush2.bf16.msra.mxu0 %v2723
        %3306 = vmatprep.subr.bf16.mxu0 %v2722
        %3307 = vmatpush2.bf16.msra.mxu0 %v2721
        %3308 = vmatprep.subr.bf16.mxu0 %v2720
        %3309 = vmatpush2.bf16.msra.mxu0 %v2719
        %3310 = vmatprep.mubr.bf16.mxu0 %v1694
        %3311 = vmatmul.mubr.bf16.gmra.mxu0 %v1692
        %v3312 = vpop.f32.mrf.mxu0
        %v3313 = vadd.f32 %v3272, %v3312
        %v3314 = vpop.f32.mrf.mxu0
        %v3315 = vadd.f32 %v3274, %v3314
        %v3316 = vpop.f32.mrf.mxu0
        %v3317 = vpop.f32.mrf.mxu0
        %3318 = vdwg.mxu0
        %v3321 = vcombine.low %v3313, %v3315
        %v3323 = vunpack.c.l.s4 1983009808
        %v3324 = vunpack.c.0.s8 %v3323
        %v3325 = vlaneseq
        %v3326 = vshrl.u32 %v3325, 7
        %v3327 = vsub.s32 %v3324, %v3326
        %v3328 = vrot.slane %v3321, %v3327
        %v3330 = vadd.f32 %v1336, %v3328
        %3331 = vst [vmem:[#allocation2] sm:$0xf] %v3330
        %p3332 = scmp.eq.s32.totalorder %s20, 3
        // Predicated region
        $region79: #{detection_model_forward.7} parent=69 // pred_check
          %p3333 = pneg %p3332
        $region80: #{detection_model_forward.7} parent=69 // pred_check_branch
          %3335 = sbr.rel (%p3333) target = $region82
        $region81: #{detection_model_forward.7} parent=69 // pred_region
          %v3336 = vld [vmem:[#allocation2] sm:$0xf]
          %v3337 = vld [vmem:[%s1319] sm:$0x3]
          %v3339 = vlaneseq
          %v3340 = vshrl.u32 %v3339, 7
          %v3341 = vsub.s32 0, %v3340
          %v3342 = vrot.slane %v3337, %v3341
          %v3343 = vlaneseq
          %v3344 = vshrl.u32 %v3343, 7
          %v3345 = vsub.s32 1, %v3344
          %v3346 = vrot.slane %v3337, %v3345
          %v3347 = vcombine.low %v3342, %v3346
          %v3349 = vunpack.c.l.s4 1983009808
          %v3350 = vunpack.c.0.s8 %v3349
          %v3351 = vlaneseq
          %v3352 = vshrl.u32 %v3351, 7
          %v3353 = vsub.s32 %v3350, %v3352
          %v3354 = vrot.slane %v3347, %v3353
          %v3356 = vadd.f32 %v3336, %v3354
          %v3357 = vmax.f32 %v3356, 0.0
          %v3358 = vld [vmem:[%s1325] sm:$0xff]
          %v3359 = vld [vmem:[%s1325 + $0x8] sm:$0xff]
          %v3360 = vld [vmem:[%s1325 + $0x10] sm:$0xff]
          %v3361 = vld [vmem:[%s1325 + $0x18] sm:$0xff]
          %v3362 = vld [vmem:[%s1325 + $0x20] sm:$0xff]
          %v3363 = vld [vmem:[%s1325 + $0x28] sm:$0xff]
          %v3364 = vld [vmem:[%s1325 + $0x30] sm:$0xff]
          %v3365 = vld [vmem:[%s1325 + $0x38] sm:$0xff]
          %v3366 = vld [vmem:[%s1325 + $0x40] sm:$0xff]
          %v3367 = vld [vmem:[%s1325 + $0x48] sm:$0xff]
          %v3368 = vld [vmem:[%s1325 + $0x50] sm:$0xff]
          %v3369 = vld [vmem:[%s1325 + $0x58] sm:$0xff]
          %v3370 = vld [vmem:[%s1325 + $0x60] sm:$0xff]
          %v3371 = vld [vmem:[%s1325 + $0x68] sm:$0xff]
          %v3372 = vld [vmem:[%s1325 + $0x70] sm:$0xff]
          %v3373 = vld [vmem:[%s1325 + $0x78] sm:$0xff]
          %v3374 = vld [vmem:[%s1325 + $0x80] sm:$0xff]
          %v3375 = vld [vmem:[%s1325 + $0x88] sm:$0xff]
          %v3376 = vld [vmem:[%s1325 + $0x90] sm:$0xff]
          %v3377 = vld [vmem:[%s1325 + $0x98] sm:$0xff]
          %v3378 = vld [vmem:[%s1325 + $0xa0] sm:$0xff]
          %v3379 = vld [vmem:[%s1325 + $0xa8] sm:$0xff]
          %v3380 = vld [vmem:[%s1325 + $0xb0] sm:$0xff]
          %v3381 = vld [vmem:[%s1325 + $0xb8] sm:$0xff]
          %v3382 = vld [vmem:[%s1325 + $0xc0] sm:$0xff]
          %v3383 = vld [vmem:[%s1325 + $0xc8] sm:$0xff]
          %v3384 = vld [vmem:[%s1325 + $0xd0] sm:$0xff]
          %v3385 = vld [vmem:[%s1325 + $0xd8] sm:$0xff]
          %v3386 = vld [vmem:[%s1325 + $0xe0] sm:$0xff]
          %v3387 = vld [vmem:[%s1325 + $0xe8] sm:$0xff]
          %v3388 = vld [vmem:[%s1325 + $0xf0] sm:$0xff]
          %v3389 = vld [vmem:[%s1325 + $0xf8] sm:$0xff]
          %v3392 = vunpack.c.l.s4 1983009808
          %v3393 = vunpack.c.0.s8 %v3392
          %v3394 = vlaneseq
          %v3395 = vshrl.u32 %v3394, 7
          %v3396 = vsub.s32 %v3393, %v3395
          %v3397 = vrot.slane %v3357, %v3396
          %v3398 = vcombine.high %v3397, %v3397
          %3401 = vmatprep.subr.mxu0 0.0
          %3402 = vmatpush1.msra.mxu0 %v3373
          %3403 = vmatprep.subr.mxu0 0.0
          %3404 = vmatpush1.msra.mxu0 %v3372
          %3405 = vmatprep.subr.mxu0 0.0
          %3406 = vmatpush1.msra.mxu0 %v3371
          %3407 = vmatprep.subr.mxu0 0.0
          %3408 = vmatpush1.msra.mxu0 %v3370
          %3409 = vmatprep.subr.mxu0 0.0
          %3410 = vmatpush1.msra.mxu0 %v3369
          %3411 = vmatprep.subr.mxu0 0.0
          %3412 = vmatpush1.msra.mxu0 %v3368
          %3413 = vmatprep.subr.mxu0 0.0
          %3414 = vmatpush1.msra.mxu0 %v3367
          %3415 = vmatprep.subr.mxu0 0.0
          %3416 = vmatpush1.msra.mxu0 %v3366
          %3417 = vmatprep.subr.mxu0 0.0
          %3418 = vmatpush1.msra.mxu0 %v3365
          %3419 = vmatprep.subr.mxu0 0.0
          %3420 = vmatpush1.msra.mxu0 %v3364
          %3421 = vmatprep.subr.mxu0 0.0
          %3422 = vmatpush1.msra.mxu0 %v3363
          %3423 = vmatprep.subr.mxu0 0.0
          %3424 = vmatpush1.msra.mxu0 %v3362
          %3425 = vmatprep.subr.mxu0 0.0
          %3426 = vmatpush1.msra.mxu0 %v3361
          %3427 = vmatprep.subr.mxu0 0.0
          %3428 = vmatpush1.msra.mxu0 %v3360
          %3429 = vmatprep.subr.mxu0 0.0
          %3430 = vmatpush1.msra.mxu0 %v3359
          %3431 = vmatprep.subr.mxu0 0.0
          %3432 = vmatpush1.msra.mxu0 %v3358
          %3433 = vmatprep.subr.mxu0 0.0
          %3434 = vmatpush2.msra.mxu0 %v3389
          %3435 = vmatprep.subr.mxu0 0.0
          %3436 = vmatpush2.msra.mxu0 %v3388
          %3437 = vmatprep.subr.mxu0 0.0
          %3438 = vmatpush2.msra.mxu0 %v3387
          %3439 = vmatprep.subr.mxu0 0.0
          %3440 = vmatpush2.msra.mxu0 %v3386
          %3441 = vmatprep.subr.mxu0 0.0
          %3442 = vmatpush2.msra.mxu0 %v3385
          %3443 = vmatprep.subr.mxu0 0.0
          %3444 = vmatpush2.msra.mxu0 %v3384
          %3445 = vmatprep.subr.mxu0 0.0
          %3446 = vmatpush2.msra.mxu0 %v3383
          %3447 = vmatprep.subr.mxu0 0.0
          %3448 = vmatpush2.msra.mxu0 %v3382
          %3449 = vmatprep.subr.mxu0 0.0
          %3450 = vmatpush2.msra.mxu0 %v3381
          %3451 = vmatprep.subr.mxu0 0.0
          %3452 = vmatpush2.msra.mxu0 %v3380
          %3453 = vmatprep.subr.mxu0 0.0
          %3454 = vmatpush2.msra.mxu0 %v3379
          %3455 = vmatprep.subr.mxu0 0.0
          %3456 = vmatpush2.msra.mxu0 %v3378
          %3457 = vmatprep.subr.mxu0 0.0
          %3458 = vmatpush2.msra.mxu0 %v3377
          %3459 = vmatprep.subr.mxu0 0.0
          %3460 = vmatpush2.msra.mxu0 %v3376
          %3461 = vmatprep.subr.mxu0 0.0
          %3462 = vmatpush2.msra.mxu0 %v3375
          %3463 = vmatprep.subr.mxu0 0.0
          %3464 = vmatpush2.msra.mxu0 %v3374
          %3465 = vmatprep.mubr.f32.mxu0 %v3398
          %3466 = vmatmul.mubr.f32.gmra.mxu0 %v3397
          %v3467 = vpop.f32.mrf.mxu0
          %v3468 = vadd.f32 0.0, %v3467
          %v3469 = vpop.f32.mrf.mxu0
          %3470 = vdwg.mxu0
          %vm3471 = vcmask 25600
          %3472 = vst.msk [vmem:[%s1330] sm:$0x3] %vm3471, %v3468
        $region82: #{detection_model_forward.7} parent=69 // pred_fallthru
          _
        %p3473 = scmp.lt.s32.totalorder %s19, 1
        %s3474 = scalar_select %p3473, %s19, 1
        %s3475 = smul.addr %s3474, 2
        %s3476 = scalar_lea.vmem %s4, %s3475
        // Predicated region
        $region83: #{detection_model_forward.7} parent=69 // pred_check
          %p3477 = pneg %p151
        $region84: #{detection_model_forward.7} parent=69 // pred_check_branch
          %3479 = sbr.rel (%p3477) target = $region86
        $region85: #{detection_model_forward.7} parent=69 // pred_region
          _
        $region86: #{detection_model_forward.7} parent=69 // pred_fallthru
          _
      $region70: #{detection_model_forward.7} parent=5 // pred_fallthru
        _
      %p3480 = scmp.le.s32.totalorder 2, %s10
      // Predicated region
      $region87: #{detection_model_forward.7} parent=5 // pred_check
        %p3481 = pneg %p3480
      $region88: #{detection_model_forward.7} parent=5 // pred_check_branch
        %3483 = sbr.rel (%p3481) target = $region90
      $region89: #{detection_model_forward.7} parent=5 // pred_region
        %s3484 = ssub.s32 %s10, 2
        // Predicated region
        $region91: #{detection_model_forward.7} parent=89 // pred_check
          %p3485 = pneg %p157
        $region92: #{detection_model_forward.7} parent=89 // pred_check_branch
          %3487 = sbr.rel (%p3485) target = $region94
        $region93: #{detection_model_forward.7} parent=89 // pred_region
          %p3488 = scmp.lt.s32.totalorder %s21, 1
          %s3489 = scalar_select %p3488, %s21, 1
          %s3490 = smul.addr %s3489, 2
          %s3491 = scalar_lea.vmem %s4, %s3490
        $region94: #{detection_model_forward.7} parent=89 // pred_fallthru
          _
      $region90: #{detection_model_forward.7} parent=5 // pred_fallthru
        _
    $region6: #{detection_model_forward.7} parent=1 // loop_footer
      %s14 = sadd.s32 1, %s10
    $region7: #{detection_model_forward.7} parent=1 // loop_footer_branch
      %9 = sbr.rel target = $region3
    $region8: #{detection_model_forward.7} parent=1 // loop_exit
      _

</llo_original>
